<compile_context>
chip_gen: v7x
topology: tpu7x:2x2x1
jax: 0.10.0
libtpu: 0.0.40
codegen_flags: <defaults>
</compile_context>

<pallas_src>
import functools

import jax
import jax.numpy as jnp
from jax.experimental import pallas as pl
from jax.experimental.pallas import tpu as pltpu

LEAKY_SLOPE = 0.2
BN_EPS = 1e-5
LANE = 128
TM_TARGET = 1024                  # M-tile target for the mem-bound matmuls
VMEM_LIMIT = 48 * 1024 * 1024     # <= ~48 MiB: safe on v7x (64 MiB physical)


def _round_up(x, m):
    return ((x + m - 1) // m) * m


def _choose_tm(m):
    """(padded M, M tile): tile is a multiple of 16 (bf16 sublanes) dividing
    padded M, as large as possible up to TM_TARGET, halved when that would
    leave a single tile on a big layer (v7x has 2 TensorCores to feed)."""
    mp = _round_up(m, 16)
    tm = min(TM_TARGET, mp)
    while mp % tm:
        tm -= 16
    if mp // tm < 2 and mp >= 512 and tm % 32 == 0:
        tm //= 2
    return mp, tm


# ----------------------------------------------------------------------------
# Pallas kernels: one fused (patches @ W) call per conv layer.
# Full-K weight resident in VMEM (constant block), single "parallel" M grid
# axis, f32 accumulation on the MXU, activation / BN-stats fused on the f32
# result before the bf16 downcast.
# ----------------------------------------------------------------------------
def _matmul_act_kernel(p_ref, w_ref, o_ref, *, act):
    y = jnp.dot(p_ref[...], w_ref[...], preferred_element_type=jnp.float32)
    if act == "leaky":
        y = jnp.where(y > 0, y, LEAKY_SLOPE * y)
    elif act == "sigmoid":
        y = jax.nn.sigmoid(y)
    o_ref[...] = y.astype(o_ref.dtype)


def _matmul_bnstats_kernel(p_ref, w_ref, o_ref, stats_ref):
    """Matmul + per-tile BN partials (row 0: sum, row 1: sum of squares),
    computed on the f32 accumulator (not the bf16-rounded output)."""
    y = jnp.dot(p_ref[...], w_ref[...], preferred_element_type=jnp.float32)
    o_ref[...] = y.astype(o_ref.dtype)
    n = y.shape[1]
    ssum = jnp.broadcast_to(jnp.sum(y, axis=0, keepdims=True), (8, n))
    ssq = jnp.broadcast_to(jnp.sum(y * y, axis=0, keepdims=True), (8, n))
    row = jax.lax.broadcasted_iota(jnp.int32, (8, n), 0)
    stats_ref[...] = jnp.where(row == 0, ssum, jnp.where(row == 1, ssq, 0.0))


def pallas_conv_matmul(patches, wmat, *, tm, act="none", emit_stats=False,
                       out_dtype=jnp.bfloat16):
    """(Mp, K) @ (K, Np) -> (Mp, Np) [+ (nmt*8, Np) BN partial sums]."""
    mp, k = patches.shape
    kw, np_ = wmat.shape
    assert k == kw and mp % tm == 0 and tm % 8 == 0, (patches.shape, tm)
    nmt = mp // tm
    in_specs = [
        pl.BlockSpec((tm, k), lambda i: (i, 0)),
        pl.BlockSpec((k, np_), lambda i: (0, 0)),   # constant block: DMA'd once
    ]
    out_spec_mat = pl.BlockSpec((tm, np_), lambda i: (i, 0))
    cp = pltpu.CompilerParams(dimension_semantics=("parallel",),
                              vmem_limit_bytes=VMEM_LIMIT)
    if emit_stats:
        return pl.pallas_call(
            _matmul_bnstats_kernel,
            out_shape=(jax.ShapeDtypeStruct((mp, np_), out_dtype),
                       jax.ShapeDtypeStruct((nmt * 8, np_), jnp.float32)),
            grid=(nmt,),
            in_specs=in_specs,
            out_specs=(out_spec_mat, pl.BlockSpec((8, np_), lambda i: (i, 0))),
            compiler_params=cp,
        )(patches, wmat)
    return pl.pallas_call(
        functools.partial(_matmul_act_kernel, act=act),
        out_shape=jax.ShapeDtypeStruct((mp, np_), out_dtype),
        grid=(nmt,),
        in_specs=in_specs,
        out_specs=out_spec_mat,
        compiler_params=cp,
    )(patches, wmat)


# ----------------------------------------------------------------------------
# XLA glue: stride-phase patch gather (4x duplication), BN apply, param prep.
# ----------------------------------------------------------------------------
def s2d_patches(x):
    """Patches for a 4x4 stride-2 pad-1 conv via space-to-depth + 2x2 gather.

    x: (B, H, W, C) -> (B*OH*OW, 16*C), column order (ti, tj, di, dj, c) with
    kernel tap (ki, kj) = (2*ti + di, 2*tj + dj).  Only duplicates the
    activation 4x (vs 16x for a naive im2col)."""
    B, H, W, C = x.shape
    xp = jnp.pad(x, ((0, 0), (1, 1), (1, 1), (0, 0)))
    hp, wp = H + 2, W + 2
    s = xp.reshape(B, hp // 2, 2, wp // 2, 2, C)
    s = s.transpose(0, 1, 3, 2, 4, 5).reshape(B, hp // 2, wp // 2, 4 * C)
    oh, ow = hp // 2 - 1, wp // 2 - 1
    taps = [s[:, ti:ti + oh, tj:tj + ow, :] for ti in (0, 1) for tj in (0, 1)]
    patches = jnp.concatenate(taps, axis=-1).reshape(B * oh * ow, 16 * C)
    return patches, (B, oh, ow)


def _conv_layer(x_nhwc, wmat, *, act, emit_stats, out_dtype=jnp.bfloat16):
    patches, (B, oh, ow) = s2d_patches(x_nhwc)
    m = B * oh * ow
    mp, tm = _choose_tm(m)
    if mp != m:
        patches = jnp.pad(patches, ((0, mp - m), (0, 0)))
    res = pallas_conv_matmul(patches, wmat, tm=tm, act=act,
                             emit_stats=emit_stats, out_dtype=out_dtype)
    return res, (B, oh, ow, m)


def _to_nhwc(mat, meta, cp):
    B, oh, ow, m = meta
    return mat[:m].reshape(B, oh, ow, cp)


def _bn_leaky_xla(mat, stats, gamma, beta, m_true):
    """Plain XLA normalize + LeakyReLU so it fuses into the next patch gather.
    Stats come from the in-kernel f32 partial sums."""
    np_ = mat.shape[1]
    st = stats.reshape(-1, 8, np_)
    ssum = jnp.sum(st[:, 0, :], axis=0)
    ssq = jnp.sum(st[:, 1, :], axis=0)
    mean = ssum / m_true
    var = jnp.maximum(ssq / m_true - mean * mean, 0.0)   # biased (training) var
    scale = gamma * jax.lax.rsqrt(var + BN_EPS)          # zero on padded chans
    shift = beta - mean * scale
    y = mat.astype(jnp.float32) * scale[None, :] + shift[None, :]
    y = jnp.where(y > 0, y, LEAKY_SLOPE * y)
    return y.astype(jnp.bfloat16)


def prepare_params(raw):
    """One-time: OIHW f32 weights -> bf16 (16*Cin_p, Cout_p) matrices.
    Cout padded to a multiple of 128 (zero columns), Cin padded to the
    previous layer's padded width (zero rows).  Layers 1-4 are re-ordered to
    the space-to-depth column order (ti, tj, di, dj, c); layer 5 keeps the
    plain (ki, kj, c) flatten order.  gamma/beta -> (Cout_p,) f32, zero-pad."""
    prep = {}
    cin_p = raw["w1"].shape[1]                    # layer-1 input channels as-is
    for l in range(1, 6):
        w = raw[f"w{l}"]                          # (Cout, Cin, KH, KW)
        cout, cin, kh, kw = w.shape
        cout_p = _round_up(cout, LANE)
        wk = jnp.transpose(w, (2, 3, 1, 0))       # (KH, KW, Cin, Cout)
        wk = jnp.pad(wk, ((0, 0), (0, 0), (0, cin_p - cin), (0, cout_p - cout)))
        if l < 5:
            # ki -> (ti, di), kj -> (tj, dj); column order (ti, tj, di, dj, c)
            wk = wk.reshape(2, 2, 2, 2, cin_p, cout_p)       # (ti,di,tj,dj,c,o)
            wk = wk.transpose(0, 2, 1, 3, 4, 5)              # (ti,tj,di,dj,c,o)
        prep[f"w{l}"] = wk.reshape(kh * kw * cin_p, cout_p).astype(jnp.bfloat16)
        if f"g{l}" in raw:
            prep[f"g{l}"] = jnp.pad(raw[f"g{l}"], (0, cout_p - cout)) \
                               .astype(jnp.float32)
            prep[f"b{l}"] = jnp.pad(raw[f"b{l}"], (0, cout_p - cout)) \
                               .astype(jnp.float32)
        cin_p = cout_p
    return prep


def discriminator_forward(x_nchw, p):
    """x: (B, nc, 64, 64) NCHW f32 -> (B, 1, 1, 1) f32."""
    x = jnp.transpose(x_nchw, (0, 2, 3, 1)).astype(jnp.bfloat16)   # NHWC bf16

    # layer 1: conv + LeakyReLU (no BN), activation fused in-kernel
    mat, meta = _conv_layer(x, p["w1"], act="leaky", emit_stats=False)
    x = _to_nhwc(mat, meta, p["w1"].shape[1])

    # layers 2-4: conv (+ fused f32 BN partial sums) -> XLA normalize + leaky
    for l in (2, 3, 4):
        (mat, stats), meta = _conv_layer(x, p[f"w{l}"], act="none",
                                         emit_stats=True)
        mat = _bn_leaky_xla(mat, stats, p[f"g{l}"], p[f"b{l}"], meta[3])
        x = _to_nhwc(mat, meta, p[f"w{l}"].shape[1])

    # layer 5: 4x4 stride-1 pad-0 conv on a 4x4 map == flatten + matmul
    B = x.shape[0]
    flat = x.reshape(B, -1)                        # (B, 16*cin_p), (i,j,c) order
    mp, tm = _choose_tm(B)
    if mp != B:
        flat = jnp.pad(flat, ((0, mp - B), (0, 0)))
    out = pallas_conv_matmul(flat, p["w5"], tm=tm, act="sigmoid",
                             emit_stats=False, out_dtype=jnp.float32)
    return out[:B, 0:1].reshape(B, 1, 1, 1)        # drop padded rows / channels


# ----------------------------------------------------------------------------
# Raw (PyTorch-layout) parameter init + pure-JAX f32 reference
# ----------------------------------------------------------------------------
def init_params(key, nc, ndf):
    ks = jax.random.split(key, 11)

    def w(k, shape):
        return 0.02 * jax.random.normal(k, shape, dtype=jnp.float32)

    return {
        "w1": w(ks[0], (ndf, nc, 4, 4)),
        "w2": w(ks[1], (ndf * 2, ndf, 4, 4)),
        "g2": 1.0 + 0.1 * jax.random.normal(ks[2], (ndf * 2,), jnp.float32),
        "b2": 0.1 * jax.random.normal(ks[3], (ndf * 2,), jnp.float32),
        "w3": w(ks[4], (ndf * 4, ndf * 2, 4, 4)),
        "g3": 1.0 + 0.1 * jax.random.normal(ks[5], (ndf * 4,), jnp.float32),
        "b3": 0.1 * jax.random.normal(ks[6], (ndf * 4,), jnp.float32),
        "w4": w(ks[7], (ndf * 8, ndf * 4, 4, 4)),
        "g4": 1.0 + 0.1 * jax.random.normal(ks[8], (ndf * 8,), jnp.float32),
        "b4": 0.1 * jax.random.normal(ks[9], (ndf * 8,), jnp.float32),
        "w5": w(ks[10], (1, ndf * 8, 4, 4)),
    }


def _ref_conv(x, w, stride, pad):
    return jax.lax.conv_general_dilated(
        x, w, (stride, stride), [(pad, pad), (pad, pad)],
        dimension_numbers=("NCHW", "OIHW", "NCHW"))


def _ref_bn_leaky(x, g, b):
    mean = jnp.mean(x, axis=(0, 2, 3), keepdims=True)
    var = jnp.mean((x - mean) ** 2, axis=(0, 2, 3), keepdims=True)
    y = (x - mean) * jax.lax.rsqrt(var + BN_EPS)
    y = y * g.reshape(1, -1, 1, 1) + b.reshape(1, -1, 1, 1)
    return jnp.where(y > 0, y, LEAKY_SLOPE * y)


def reference_forward(x, p):
    y = _ref_conv(x, p["w1"], 2, 1)
    y = jnp.where(y > 0, y, LEAKY_SLOPE * y)
    y = _ref_bn_leaky(_ref_conv(y, p["w2"], 2, 1), p["g2"], p["b2"])
    y = _ref_bn_leaky(_ref_conv(y, p["w3"], 2, 1), p["g3"], p["b3"])
    y = _ref_bn_leaky(_ref_conv(y, p["w4"], 2, 1), p["g4"], p["b4"])
    y = _ref_conv(y, p["w5"], 1, 0)
    return jax.nn.sigmoid(y)


# ----------------------------------------------------------------------------
if __name__ == "__main__":
    # DCGAN discriminator architecture implies 64x64 spatial input
    # (64 -> 32 -> 16 -> 8 -> 4 -> 1). Small channel counts for the test.
    B, NC, NDF, HW = 2, 3, 8, 64

    key = jax.random.PRNGKey(0)
    kx, kp = jax.random.split(key)
    x = jax.random.normal(kx, (B, NC, HW, HW), dtype=jnp.float32)
    raw = init_params(kp, NC, NDF)
    params = prepare_params(raw)

    fwd = jax.jit(discriminator_forward)
    out = jax.block_until_ready(fwd(x, params))
    assert out.shape == (B, 1, 1, 1), out.shape

    ref = jax.block_until_ready(reference_forward(x, raw))
    # bf16 MXU inputs / bf16 inter-layer activations -> looser tolerance than
    # the pure-f32 reference path.
    assert jnp.allclose(out, ref, atol=2e-2, rtol=2e-2), (out, ref)

    print("KERNEL_OK")
</pallas_src>

<mosaic_0001>
module attributes {stable_mosaic.version = 11 : i64} {
  func.func @_matmul_act_kernel(%arg0: i32, %arg1: memref<1024x48xbf16, #tpu.memory_space<vmem>>, %arg2: memref<48x128xbf16, #tpu.memory_space<vmem>>, %arg3: memref<1024x128xbf16, #tpu.memory_space<vmem>>) attributes {dimension_semantics = [#tpu.dimension_semantics<parallel>], iteration_bounds = array<i64: 2>, scalar_prefetch = 0 : i64, scratch_operands = 0 : i64, tpu.core_type = #tpu.core_type<tc>, window_params = [{transform_indices = @transform_0, window_bounds = array<i64: 1024, 48>}, {pipeline_mode = #tpu.pipeline_mode<synchronous>, transform_indices = @transform_1, window_bounds = array<i64: 48, 128>}, {transform_indices = @transform_2, window_bounds = array<i64: 1024, 128>}]} {
    %c0 = arith.constant 0 : index
    %c0_0 = arith.constant 0 : index
    %0 = vector.load %arg1[%c0, %c0_0] : memref<1024x48xbf16, #tpu.memory_space<vmem>>, vector<1024x48xbf16>
    %c0_1 = arith.constant 0 : index
    %c0_2 = arith.constant 0 : index
    %1 = vector.load %arg2[%c0_1, %c0_2] : memref<48x128xbf16, #tpu.memory_space<vmem>>, vector<48x128xbf16>
    %cst = arith.constant dense<0.000000e+00> : vector<1024x128xf32>
    %2 = tpu.matmul %0, %1, %cst {dimension_numbers = #tpu.dot_dimension_numbers<[1], [0], [0], [1], [0, 0, 1, 1], [], []>} : vector<1024x48xbf16>, vector<48x128xbf16>, vector<1024x128xf32> -> vector<1024x128xf32>
    %cst_3 = arith.constant 0.000000e+00 : f32
    %3 = vector.broadcast %cst_3 : f32 to vector<1024x128xf32>
    %4 = arith.cmpf ogt, %2, %3 : vector<1024x128xf32>
    %cst_4 = arith.constant 2.000000e-01 : f32
    %5 = vector.broadcast %cst_4 : f32 to vector<1024x128xf32>
    %6 = arith.mulf %5, %2 : vector<1024x128xf32>
    %7 = arith.select %4, %2, %6 : vector<1024x128xi1>, vector<1024x128xf32>
    %8 = arith.truncf %7 : vector<1024x128xf32> to vector<1024x128xbf16>
    %c0_5 = arith.constant 0 : index
    %c0_6 = arith.constant 0 : index
    %9 = vector.load %arg3[%c0_5, %c0_6] : memref<1024x128xbf16, #tpu.memory_space<vmem>>, vector<1024x128xbf16>
    tpu.vector_store %arg3[%c0_5, %c0_6], %8 {strides = array<i32>} : memref<1024x128xbf16, #tpu.memory_space<vmem>>, vector<1024x128xbf16>,
    return
  }
  func.func @transform_0(%arg0: i32) -> (i32, i32) {
    %c0_i32 = arith.constant 0 : i32
    %c0_i32_0 = arith.constant 0 : i32
    return %arg0, %c0_i32 : i32, i32
  }
  func.func @transform_1(%arg0: i32) -> (i32, i32) {
    %c0_i32 = arith.constant 0 : i32
    %c0_i32_0 = arith.constant 0 : i32
    %c0_i32_1 = arith.constant 0 : i32
    return %c0_i32, %c0_i32_0 : i32, i32
  }
  func.func @transform_2(%arg0: i32) -> (i32, i32) {
    %c0_i32 = arith.constant 0 : i32
    %c0_i32_0 = arith.constant 0 : i32
    return %arg0, %c0_i32 : i32, i32
  }
}

module attributes {stable_mosaic.version = 11 : i64} {
  func.func @_matmul_bnstats_kernel(%arg0: i32, %arg1: memref<256x2048xbf16, #tpu.memory_space<vmem>>, %arg2: memref<2048x128xbf16, #tpu.memory_space<vmem>>, %arg3: memref<256x128xbf16, #tpu.memory_space<vmem>>, %arg4: memref<8x128xf32, #tpu.memory_space<vmem>>) attributes {dimension_semantics = [#tpu.dimension_semantics<parallel>], iteration_bounds = array<i64: 2>, scalar_prefetch = 0 : i64, scratch_operands = 0 : i64, tpu.core_type = #tpu.core_type<tc>, window_params = [{transform_indices = @transform_0, window_bounds = array<i64: 256, 2048>}, {pipeline_mode = #tpu.pipeline_mode<synchronous>, transform_indices = @transform_1, window_bounds = array<i64: 2048, 128>}, {transform_indices = @transform_2, window_bounds = array<i64: 256, 128>}, {transform_indices = @transform_3, window_bounds = array<i64: 8, 128>}]} {
    %c0 = arith.constant 0 : index
    %c0_0 = arith.constant 0 : index
    %0 = vector.load %arg1[%c0, %c0_0] : memref<256x2048xbf16, #tpu.memory_space<vmem>>, vector<256x2048xbf16>
    %c0_1 = arith.constant 0 : index
    %c0_2 = arith.constant 0 : index
    %1 = vector.load %arg2[%c0_1, %c0_2] : memref<2048x128xbf16, #tpu.memory_space<vmem>>, vector<2048x128xbf16>
    %cst = arith.constant dense<0.000000e+00> : vector<256x128xf32>
    %2 = tpu.matmul %0, %1, %cst {dimension_numbers = #tpu.dot_dimension_numbers<[1], [0], [0], [1], [0, 0, 1, 1], [], []>} : vector<256x2048xbf16>, vector<2048x128xbf16>, vector<256x128xf32> -> vector<256x128xf32>
    %3 = arith.truncf %2 : vector<256x128xf32> to vector<256x128xbf16>
    %c0_3 = arith.constant 0 : index
    %c0_4 = arith.constant 0 : index
    %4 = vector.load %arg3[%c0_3, %c0_4] : memref<256x128xbf16, #tpu.memory_space<vmem>>, vector<256x128xbf16>
    tpu.vector_store %arg3[%c0_3, %c0_4], %3 {strides = array<i32>} : memref<256x128xbf16, #tpu.memory_space<vmem>>, vector<256x128xbf16>,
    %cst_5 = arith.constant dense<0.000000e+00> : vector<128xf32>
    %5 = vector.multi_reduction <add>, %2, %cst_5 [0] : vector<256x128xf32> to vector<128xf32>
    %6 = vector.shape_cast %5 : vector<128xf32> to vector<1x128xf32>
    %7 = vector.shape_cast %6 : vector<1x128xf32> to vector<1x128xf32>
    %8 = vector.broadcast %7 : vector<1x128xf32> to vector<8x128xf32>
    %9 = arith.mulf %2, %2 : vector<256x128xf32>
    %cst_6 = arith.constant dense<0.000000e+00> : vector<128xf32>
    %10 = vector.multi_reduction <add>, %9, %cst_6 [0] : vector<256x128xf32> to vector<128xf32>
    %11 = vector.shape_cast %10 : vector<128xf32> to vector<1x128xf32>
    %12 = vector.shape_cast %11 : vector<1x128xf32> to vector<1x128xf32>
    %13 = vector.broadcast %12 : vector<1x128xf32> to vector<8x128xf32>
    %14 = tpu.iota {dimensions = array<i32: 0>} : vector<8x128xi32>
    %c0_i32 = arith.constant 0 : i32
    %15 = vector.broadcast %c0_i32 : i32 to vector<8x128xi32>
    %16 = arith.cmpi eq, %14, %15 : vector<8x128xi32>
    %c1_i32 = arith.constant 1 : i32
    %17 = vector.broadcast %c1_i32 : i32 to vector<8x128xi32>
    %18 = arith.cmpi eq, %14, %17 : vector<8x128xi32>
    %cst_7 = arith.constant 0.000000e+00 : f32
    %19 = vector.broadcast %cst_7 : f32 to vector<8x128xf32>
    %20 = arith.select %18, %13, %19 : vector<8x128xi1>, vector<8x128xf32>
    %21 = arith.select %16, %8, %20 : vector<8x128xi1>, vector<8x128xf32>
    %c0_8 = arith.constant 0 : index
    %c0_9 = arith.constant 0 : index
    %22 = vector.load %arg4[%c0_8, %c0_9] : memref<8x128xf32, #tpu.memory_space<vmem>>, vector<8x128xf32>
    tpu.vector_store %arg4[%c0_8, %c0_9], %21 {strides = array<i32>} : memref<8x128xf32, #tpu.memory_space<vmem>>, vector<8x128xf32>,
    return
  }
  func.func @transform_0(%arg0: i32) -> (i32, i32) {
    %c0_i32 = arith.constant 0 : i32
    %c0_i32_0 = arith.constant 0 : i32
    return %arg0, %c0_i32 : i32, i32
  }
  func.func @transform_1(%arg0: i32) -> (i32, i32) {
    %c0_i32 = arith.constant 0 : i32
    %c0_i32_0 = arith.constant 0 : i32
    %c0_i32_1 = arith.constant 0 : i32
    return %c0_i32, %c0_i32_0 : i32, i32
  }
  func.func @transform_2(%arg0: i32) -> (i32, i32) {
    %c0_i32 = arith.constant 0 : i32
    %c0_i32_0 = arith.constant 0 : i32
    return %arg0, %c0_i32 : i32, i32
  }
  func.func @transform_3(%arg0: i32) -> (i32, i32) {
    %c0_i32 = arith.constant 0 : i32
    %c0_i32_0 = arith.constant 0 : i32
    return %arg0, %c0_i32 : i32, i32
  }
}

module attributes {stable_mosaic.version = 11 : i64} {
  func.func @_matmul_bnstats_kernel(%arg0: i32, %arg1: memref<128x2048xbf16, #tpu.memory_space<vmem>>, %arg2: memref<2048x128xbf16, #tpu.memory_space<vmem>>, %arg3: memref<128x128xbf16, #tpu.memory_space<vmem>>, %arg4: memref<8x128xf32, #tpu.memory_space<vmem>>) attributes {dimension_semantics = [#tpu.dimension_semantics<parallel>], iteration_bounds = array<i64: 1>, scalar_prefetch = 0 : i64, scratch_operands = 0 : i64, tpu.core_type = #tpu.core_type<tc>, window_params = [{transform_indices = @transform_0, window_bounds = array<i64: 128, 2048>}, {pipeline_mode = #tpu.pipeline_mode<synchronous>, transform_indices = @transform_1, window_bounds = array<i64: 2048, 128>}, {transform_indices = @transform_2, window_bounds = array<i64: 128, 128>}, {transform_indices = @transform_3, window_bounds = array<i64: 8, 128>}]} {
    %c0 = arith.constant 0 : index
    %c0_0 = arith.constant 0 : index
    %0 = vector.load %arg1[%c0, %c0_0] : memref<128x2048xbf16, #tpu.memory_space<vmem>>, vector<128x2048xbf16>
    %c0_1 = arith.constant 0 : index
    %c0_2 = arith.constant 0 : index
    %1 = vector.load %arg2[%c0_1, %c0_2] : memref<2048x128xbf16, #tpu.memory_space<vmem>>, vector<2048x128xbf16>
    %cst = arith.constant dense<0.000000e+00> : vector<128x128xf32>
    %2 = tpu.matmul %0, %1, %cst {dimension_numbers = #tpu.dot_dimension_numbers<[1], [0], [0], [1], [0, 0, 1, 1], [], []>} : vector<128x2048xbf16>, vector<2048x128xbf16>, vector<128x128xf32> -> vector<128x128xf32>
    %3 = arith.truncf %2 : vector<128x128xf32> to vector<128x128xbf16>
    %c0_3 = arith.constant 0 : index
    %c0_4 = arith.constant 0 : index
    %4 = vector.load %arg3[%c0_3, %c0_4] : memref<128x128xbf16, #tpu.memory_space<vmem>>, vector<128x128xbf16>
    tpu.vector_store %arg3[%c0_3, %c0_4], %3 {strides = array<i32>} : memref<128x128xbf16, #tpu.memory_space<vmem>>, vector<128x128xbf16>,
    %cst_5 = arith.constant dense<0.000000e+00> : vector<128xf32>
    %5 = vector.multi_reduction <add>, %2, %cst_5 [0] : vector<128x128xf32> to vector<128xf32>
    %6 = vector.shape_cast %5 : vector<128xf32> to vector<1x128xf32>
    %7 = vector.shape_cast %6 : vector<1x128xf32> to vector<1x128xf32>
    %8 = vector.broadcast %7 : vector<1x128xf32> to vector<8x128xf32>
    %9 = arith.mulf %2, %2 : vector<128x128xf32>
    %cst_6 = arith.constant dense<0.000000e+00> : vector<128xf32>
    %10 = vector.multi_reduction <add>, %9, %cst_6 [0] : vector<128x128xf32> to vector<128xf32>
    %11 = vector.shape_cast %10 : vector<128xf32> to vector<1x128xf32>
    %12 = vector.shape_cast %11 : vector<1x128xf32> to vector<1x128xf32>
    %13 = vector.broadcast %12 : vector<1x128xf32> to vector<8x128xf32>
    %14 = tpu.iota {dimensions = array<i32: 0>} : vector<8x128xi32>
    %c0_i32 = arith.constant 0 : i32
    %15 = vector.broadcast %c0_i32 : i32 to vector<8x128xi32>
    %16 = arith.cmpi eq, %14, %15 : vector<8x128xi32>
    %c1_i32 = arith.constant 1 : i32
    %17 = vector.broadcast %c1_i32 : i32 to vector<8x128xi32>
    %18 = arith.cmpi eq, %14, %17 : vector<8x128xi32>
    %cst_7 = arith.constant 0.000000e+00 : f32
    %19 = vector.broadcast %cst_7 : f32 to vector<8x128xf32>
    %20 = arith.select %18, %13, %19 : vector<8x128xi1>, vector<8x128xf32>
    %21 = arith.select %16, %8, %20 : vector<8x128xi1>, vector<8x128xf32>
    %c0_8 = arith.constant 0 : index
    %c0_9 = arith.constant 0 : index
    %22 = vector.load %arg4[%c0_8, %c0_9] : memref<8x128xf32, #tpu.memory_space<vmem>>, vector<8x128xf32>
    tpu.vector_store %arg4[%c0_8, %c0_9], %21 {strides = array<i32>} : memref<8x128xf32, #tpu.memory_space<vmem>>, vector<8x128xf32>,
    return
  }
  func.func @transform_0(%arg0: i32) -> (i32, i32) {
    %c0_i32 = arith.constant 0 : i32
    %c0_i32_0 = arith.constant 0 : i32
    return %arg0, %c0_i32 : i32, i32
  }
  func.func @transform_1(%arg0: i32) -> (i32, i32) {
    %c0_i32 = arith.constant 0 : i32
    %c0_i32_0 = arith.constant 0 : i32
    %c0_i32_1 = arith.constant 0 : i32
    return %c0_i32, %c0_i32_0 : i32, i32
  }
  func.func @transform_2(%arg0: i32) -> (i32, i32) {
    %c0_i32 = arith.constant 0 : i32
    %c0_i32_0 = arith.constant 0 : i32
    return %arg0, %c0_i32 : i32, i32
  }
  func.func @transform_3(%arg0: i32) -> (i32, i32) {
    %c0_i32 = arith.constant 0 : i32
    %c0_i32_0 = arith.constant 0 : i32
    return %arg0, %c0_i32 : i32, i32
  }
}

module attributes {stable_mosaic.version = 11 : i64} {
  func.func @_matmul_bnstats_kernel(%arg0: i32, %arg1: memref<32x2048xbf16, #tpu.memory_space<vmem>>, %arg2: memref<2048x128xbf16, #tpu.memory_space<vmem>>, %arg3: memref<32x128xbf16, #tpu.memory_space<vmem>>, %arg4: memref<8x128xf32, #tpu.memory_space<vmem>>) attributes {dimension_semantics = [#tpu.dimension_semantics<parallel>], iteration_bounds = array<i64: 1>, scalar_prefetch = 0 : i64, scratch_operands = 0 : i64, tpu.core_type = #tpu.core_type<tc>, window_params = [{transform_indices = @transform_0, window_bounds = array<i64: 32, 2048>}, {pipeline_mode = #tpu.pipeline_mode<synchronous>, transform_indices = @transform_1, window_bounds = array<i64: 2048, 128>}, {transform_indices = @transform_2, window_bounds = array<i64: 32, 128>}, {transform_indices = @transform_3, window_bounds = array<i64: 8, 128>}]} {
    %c0 = arith.constant 0 : index
    %c0_0 = arith.constant 0 : index
    %0 = vector.load %arg1[%c0, %c0_0] : memref<32x2048xbf16, #tpu.memory_space<vmem>>, vector<32x2048xbf16>
    %c0_1 = arith.constant 0 : index
    %c0_2 = arith.constant 0 : index
    %1 = vector.load %arg2[%c0_1, %c0_2] : memref<2048x128xbf16, #tpu.memory_space<vmem>>, vector<2048x128xbf16>
    %cst = arith.constant dense<0.000000e+00> : vector<32x128xf32>
    %2 = tpu.matmul %0, %1, %cst {dimension_numbers = #tpu.dot_dimension_numbers<[1], [0], [0], [1], [0, 0, 1, 1], [], []>} : vector<32x2048xbf16>, vector<2048x128xbf16>, vector<32x128xf32> -> vector<32x128xf32>
    %3 = arith.truncf %2 : vector<32x128xf32> to vector<32x128xbf16>
    %c0_3 = arith.constant 0 : index
    %c0_4 = arith.constant 0 : index
    %4 = vector.load %arg3[%c0_3, %c0_4] : memref<32x128xbf16, #tpu.memory_space<vmem>>, vector<32x128xbf16>
    tpu.vector_store %arg3[%c0_3, %c0_4], %3 {strides = array<i32>} : memref<32x128xbf16, #tpu.memory_space<vmem>>, vector<32x128xbf16>,
    %cst_5 = arith.constant dense<0.000000e+00> : vector<128xf32>
    %5 = vector.multi_reduction <add>, %2, %cst_5 [0] : vector<32x128xf32> to vector<128xf32>
    %6 = vector.shape_cast %5 : vector<128xf32> to vector<1x128xf32>
    %7 = vector.shape_cast %6 : vector<1x128xf32> to vector<1x128xf32>
    %8 = vector.broadcast %7 : vector<1x128xf32> to vector<8x128xf32>
    %9 = arith.mulf %2, %2 : vector<32x128xf32>
    %cst_6 = arith.constant dense<0.000000e+00> : vector<128xf32>
    %10 = vector.multi_reduction <add>, %9, %cst_6 [0] : vector<32x128xf32> to vector<128xf32>
    %11 = vector.shape_cast %10 : vector<128xf32> to vector<1x128xf32>
    %12 = vector.shape_cast %11 : vector<1x128xf32> to vector<1x128xf32>
    %13 = vector.broadcast %12 : vector<1x128xf32> to vector<8x128xf32>
    %14 = tpu.iota {dimensions = array<i32: 0>} : vector<8x128xi32>
    %c0_i32 = arith.constant 0 : i32
    %15 = vector.broadcast %c0_i32 : i32 to vector<8x128xi32>
    %16 = arith.cmpi eq, %14, %15 : vector<8x128xi32>
    %c1_i32 = arith.constant 1 : i32
    %17 = vector.broadcast %c1_i32 : i32 to vector<8x128xi32>
    %18 = arith.cmpi eq, %14, %17 : vector<8x128xi32>
    %cst_7 = arith.constant 0.000000e+00 : f32
    %19 = vector.broadcast %cst_7 : f32 to vector<8x128xf32>
    %20 = arith.select %18, %13, %19 : vector<8x128xi1>, vector<8x128xf32>
    %21 = arith.select %16, %8, %20 : vector<8x128xi1>, vector<8x128xf32>
    %c0_8 = arith.constant 0 : index
    %c0_9 = arith.constant 0 : index
    %22 = vector.load %arg4[%c0_8, %c0_9] : memref<8x128xf32, #tpu.memory_space<vmem>>, vector<8x128xf32>
    tpu.vector_store %arg4[%c0_8, %c0_9], %21 {strides = array<i32>} : memref<8x128xf32, #tpu.memory_space<vmem>>, vector<8x128xf32>,
    return
  }
  func.func @transform_0(%arg0: i32) -> (i32, i32) {
    %c0_i32 = arith.constant 0 : i32
    %c0_i32_0 = arith.constant 0 : i32
    return %arg0, %c0_i32 : i32, i32
  }
  func.func @transform_1(%arg0: i32) -> (i32, i32) {
    %c0_i32 = arith.constant 0 : i32
    %c0_i32_0 = arith.constant 0 : i32
    %c0_i32_1 = arith.constant 0 : i32
    return %c0_i32, %c0_i32_0 : i32, i32
  }
  func.func @transform_2(%arg0: i32) -> (i32, i32) {
    %c0_i32 = arith.constant 0 : i32
    %c0_i32_0 = arith.constant 0 : i32
    return %arg0, %c0_i32 : i32, i32
  }
  func.func @transform_3(%arg0: i32) -> (i32, i32) {
    %c0_i32 = arith.constant 0 : i32
    %c0_i32_0 = arith.constant 0 : i32
    return %arg0, %c0_i32 : i32, i32
  }
}

module attributes {stable_mosaic.version = 11 : i64} {
  func.func @_matmul_act_kernel(%arg0: i32, %arg1: memref<16x2048xbf16, #tpu.memory_space<vmem>>, %arg2: memref<2048x128xbf16, #tpu.memory_space<vmem>>, %arg3: memref<16x128xf32, #tpu.memory_space<vmem>>) attributes {dimension_semantics = [#tpu.dimension_semantics<parallel>], iteration_bounds = array<i64: 1>, scalar_prefetch = 0 : i64, scratch_operands = 0 : i64, tpu.core_type = #tpu.core_type<tc>, window_params = [{transform_indices = @transform_0, window_bounds = array<i64: 16, 2048>}, {pipeline_mode = #tpu.pipeline_mode<synchronous>, transform_indices = @transform_1, window_bounds = array<i64: 2048, 128>}, {transform_indices = @transform_2, window_bounds = array<i64: 16, 128>}]} {
    %c0 = arith.constant 0 : index
    %c0_0 = arith.constant 0 : index
    %0 = vector.load %arg1[%c0, %c0_0] : memref<16x2048xbf16, #tpu.memory_space<vmem>>, vector<16x2048xbf16>
    %c0_1 = arith.constant 0 : index
    %c0_2 = arith.constant 0 : index
    %1 = vector.load %arg2[%c0_1, %c0_2] : memref<2048x128xbf16, #tpu.memory_space<vmem>>, vector<2048x128xbf16>
    %cst = arith.constant dense<0.000000e+00> : vector<16x128xf32>
    %2 = tpu.matmul %0, %1, %cst {dimension_numbers = #tpu.dot_dimension_numbers<[1], [0], [0], [1], [0, 0, 1, 1], [], []>} : vector<16x2048xbf16>, vector<2048x128xbf16>, vector<16x128xf32> -> vector<16x128xf32>
    %3 = arith.negf %2 : vector<16x128xf32>
    %4 = math.exp %3 : vector<16x128xf32>
    %cst_3 = arith.constant 1.000000e+00 : f32
    %5 = vector.broadcast %cst_3 : f32 to vector<16x128xf32>
    %6 = arith.addf %5, %4 : vector<16x128xf32>
    %7 = arith.divf %5, %6 : vector<16x128xf32>
    %c0_4 = arith.constant 0 : index
    %c0_5 = arith.constant 0 : index
    %8 = vector.load %arg3[%c0_4, %c0_5] : memref<16x128xf32, #tpu.memory_space<vmem>>, vector<16x128xf32>
    tpu.vector_store %arg3[%c0_4, %c0_5], %7 {strides = array<i32>} : memref<16x128xf32, #tpu.memory_space<vmem>>, vector<16x128xf32>,
    return
  }
  func.func @transform_0(%arg0: i32) -> (i32, i32) {
    %c0_i32 = arith.constant 0 : i32
    %c0_i32_0 = arith.constant 0 : i32
    return %arg0, %c0_i32 : i32, i32
  }
  func.func @transform_1(%arg0: i32) -> (i32, i32) {
    %c0_i32 = arith.constant 0 : i32
    %c0_i32_0 = arith.constant 0 : i32
    %c0_i32_1 = arith.constant 0 : i32
    return %c0_i32, %c0_i32_0 : i32, i32
  }
  func.func @transform_2(%arg0: i32) -> (i32, i32) {
    %c0_i32 = arith.constant 0 : i32
    %c0_i32_0 = arith.constant 0 : i32
    return %arg0, %c0_i32 : i32, i32
  }
}

</mosaic_0001>

<llo_original>
// kernel: discriminator_forward.5
$region0: #{discriminator_forward.5}
  #allocation0 [shape = 'u32[]', space=smem, size = 0x4, offset = 0x4, fixed_abs, tag = 'smem constant byte address 0x4 - core index']
  #allocation1 [shape = 'u32[144,128]{1,0:T(1,128)}', space=vmem, size = 0x12000, scoped, tag = 'internal scratch']
  %s0 = inlined_call_operand.vmem [shape: bf16[2048,48], index: 0, kind: input, shape index: {}]
  %s1 = inlined_call_operand.vmem [shape: bf16[48,128], index: 1, kind: input, shape index: {}]
  %s2 = inlined_call_operand.vmem [shape: bf16[2048,128], index: 2, kind: output, shape index: {}]
  %s3 = sld [smem:[#allocation0]]
  $region41: #{discriminator_forward.5} parent=0
    _
  %s5 = ssub.s32 1, %s3
  %s6 = scalar_select 0, %s5, %s3
  loop: start=0, step=1, limit=4
  $region2: #{discriminator_forward.5} parent=0 // loop_pre_header
    _
  $region3: #{discriminator_forward.5} parent=0 // loop_header
    %s8 = sphi 0, %s12
    %p9 = scmp.ge.s32.totalorder %s8, 4
    %s18 = sphi 0, %s20
    %s21 = sphi 0, %s18
    %s22 = sphi 0, %s21
    %s38 = sphi 0, %s22
    %s42 = sphi 0, %s42
    %s44 = sphi 0, %s42
    %s45 = sphi 0, %s44
    %s59 = sphi 0, %s45
    %s65 = sphi 0, %s67
    %s68 = sphi 0, %s65
    %s69 = sphi 0, %s68
    %s85 = sphi 0, %s69
  $region4: #{discriminator_forward.5} parent=0 // loop_header_branch
    %11 = sbr.rel (%p9) target = $region8
  $region5: #{discriminator_forward.5} parent=0 // loop_body
    %s13 = ssub.s32 %s8, 1
    %s14 = ssub.s32 %s8, 2
    %s15 = sadd.s32 %s8, 1
    %s16 = ssub.s32 %s8, %s15
    %p17 = scmp.eq.s32.totalorder %s16, 0
    %s19 = sadd.s32 %s18, 1
    %s20 = scalar_select %p17, %s18, %s19
    %p23 = pneg %p17
    %p24 = scmp.eq.s32.totalorder %s8, 1
    %p25 = por %p23, %p24
    %p26 = scmp.ne.s32.totalorder %s18, %s21
    %p27 = scmp.eq.s32.totalorder %s8, 0
    %p28 = por %p26, %p27
    %p29 = scmp.ne.s32.totalorder %s18, %s21
    %p30 = scmp.eq.s32.totalorder %s13, 1
    %p31 = por %p29, %p30
    %p32 = scmp.ne.s32.totalorder %s21, %s22
    %p33 = scmp.eq.s32.totalorder %s13, 0
    %p34 = por %p32, %p33
    %p35 = scmp.ne.s32.totalorder %s21, %s22
    %p36 = scmp.eq.s32.totalorder %s14, 1
    %p37 = por %p35, %p36
    %p39 = scmp.ne.s32.totalorder %s22, %s38
    %p40 = scmp.eq.s32.totalorder %s14, 0
    %p41 = por %p39, %p40
    %s43 = sadd.s32 %s42, 1
    %p46 = scmp.eq.s32.totalorder %s8, 1
    %p47 = scmp.ne.s32.totalorder %s42, %s44
    %p48 = scmp.eq.s32.totalorder %s8, 0
    %p49 = por %p47, %p48
    %p50 = scmp.ne.s32.totalorder %s42, %s44
    %p51 = scmp.eq.s32.totalorder %s13, 1
    %p52 = por %p50, %p51
    %p53 = scmp.ne.s32.totalorder %s44, %s45
    %p54 = scmp.eq.s32.totalorder %s13, 0
    %p55 = por %p53, %p54
    %p56 = scmp.ne.s32.totalorder %s44, %s45
    %p57 = scmp.eq.s32.totalorder %s14, 1
    %p58 = por %p56, %p57
    %p60 = scmp.ne.s32.totalorder %s45, %s59
    %p61 = scmp.eq.s32.totalorder %s14, 0
    %p62 = por %p60, %p61
    %s63 = ssub.s32 %s8, %s15
    %p64 = scmp.eq.s32.totalorder %s63, 0
    %s66 = sadd.s32 %s65, 1
    %s67 = scalar_select %p64, %s65, %s66
    %p70 = pneg %p64
    %p71 = scmp.eq.s32.totalorder %s8, 1
    %p72 = por %p70, %p71
    %p73 = scmp.ne.s32.totalorder %s65, %s68
    %p74 = scmp.eq.s32.totalorder %s8, 0
    %p75 = por %p73, %p74
    %p76 = scmp.ne.s32.totalorder %s65, %s68
    %p77 = scmp.eq.s32.totalorder %s13, 1
    %p78 = por %p76, %p77
    %p79 = scmp.ne.s32.totalorder %s68, %s69
    %p80 = scmp.eq.s32.totalorder %s13, 0
    %p81 = por %p79, %p80
    %p82 = scmp.ne.s32.totalorder %s68, %s69
    %p83 = scmp.eq.s32.totalorder %s14, 1
    %p84 = por %p82, %p83
    %p86 = scmp.ne.s32.totalorder %s69, %s85
    %p87 = scmp.eq.s32.totalorder %s14, 0
    %p88 = por %p86, %p87
    %p89 = scmp.le.s32.totalorder 1, %s8
    %p90 = scmp.lt.s32.totalorder %s8, 3
    %p91 = pnand %p89, %p90
    %p92 = pneg %p91
    // Predicated region
    $region9: #{discriminator_forward.5} parent=5 // pred_check
      _
    $region10: #{discriminator_forward.5} parent=5 // pred_check_branch
      %94 = sbr.rel (%p91) target = $region12
    $region11: #{discriminator_forward.5} parent=5 // pred_region
      %s95 = ssub.s32 %s8, 1
      // Predicated region
      $region13: #{discriminator_forward.5} parent=11 // pred_check
        %p96 = pneg %p55
      $region14: #{discriminator_forward.5} parent=11 // pred_check_branch
        %98 = sbr.rel (%p96) target = $region16
      $region15: #{discriminator_forward.5} parent=11 // pred_region
        _
      $region16: #{discriminator_forward.5} parent=11 // pred_fallthru
        _
    $region12: #{discriminator_forward.5} parent=5 // pred_fallthru
      _
    %p99 = scmp.lt.s32.totalorder %s8, 2
    // Predicated region
    $region17: #{discriminator_forward.5} parent=5 // pred_check
      %p100 = pneg %p99
    $region18: #{discriminator_forward.5} parent=5 // pred_check_branch
      %102 = sbr.rel (%p100) target = $region20
    $region19: #{discriminator_forward.5} parent=5 // pred_region
      // Predicated region
      $region21: #{discriminator_forward.5} parent=19 // pred_check
        %p103 = pneg %p28
      $region22: #{discriminator_forward.5} parent=19 // pred_check_branch
        %105 = sbr.rel (%p103) target = $region24
      $region23: #{discriminator_forward.5} parent=19 // pred_region
        %s106 = smul.u32 128, %s8
        %p107 = scmp.lt.s32.totalorder %s106, 255
        %s108 = scalar_select %p107, %s106, 255
        %s109 = smul.addr %s108, 4
        %s110 = scalar_lea.vmem %s0, %s109
        %s111 = smul.u32 128, %s8
      $region24: #{discriminator_forward.5} parent=19 // pred_fallthru
        _
    $region20: #{discriminator_forward.5} parent=5 // pred_fallthru
      _
    %p112 = scmp.le.s32.totalorder 1, %s8
    %p113 = scmp.lt.s32.totalorder %s8, 3
    %p114 = pnand %p112, %p113
    %p115 = pneg %p114
    // Predicated region
    $region25: #{discriminator_forward.5} parent=5 // pred_check
      _
    $region26: #{discriminator_forward.5} parent=5 // pred_check_branch
      %117 = sbr.rel (%p114) target = $region28
    $region27: #{discriminator_forward.5} parent=5 // pred_region
      %s118 = ssub.s32 %s8, 1
      %s119 = smul.u32 128, %s13
      %p120 = scmp.lt.s32.totalorder %s119, 255
      %s121 = scalar_select %p120, %s119, 255
      %s122 = smul.addr %s121, 4
      %s123 = scalar_lea.vmem %s0, %s122
      %p124 = pneg %p34
      %p125 = pneg %p31
      %p126 = pneg %p55
      %p127 = pneg %p52
      %p128 = pneg %p81
      %p129 = pneg %p78
      %s130 = smul.u32 128, %s13
      %p131 = scmp.lt.s32.totalorder %s130, 255
      %s132 = scalar_select %p131, %s130, 255
      %s133 = smul.addr %s132, 4
      %s134 = scalar_lea.vmem %s2, %s133
      %s135 = smul.u32 128, %s13
      %p136 = scmp.lt.s32.totalorder %s135, 255
      %s137 = scalar_select %p136, %s135, 255
      %s138 = smul.addr %s137, 4
      %s139 = scalar_lea.vmem %s0, %s138
      %s140 = smul.u32 128, %s13
      %s141 = smul.u32 128, %s13
      %p142 = scmp.lt.s32.totalorder %s141, 255
      %s143 = scalar_select %p142, %s141, 255
      %s144 = smul.addr %s143, 4
      %s145 = scalar_lea.vmem %s2, %s144
      %s146 = smul.u32 128, %s13
      %v148 = vld [vmem:[%s139] sm:$0xf]
      %v149 = vld [vmem:[%s139 + $0x4] sm:$0xf]
      %v150 = vld [vmem:[%s139 + $0x8] sm:$0xf]
      %v151 = vld [vmem:[%s139 + $0xc] sm:$0xf]
      %v152 = vld [vmem:[%s139 + $0x10] sm:$0xf]
      %v153 = vld [vmem:[%s139 + $0x14] sm:$0xf]
      %v154 = vld [vmem:[%s139 + $0x18] sm:$0xf]
      %v155 = vld [vmem:[%s139 + $0x1c] sm:$0xf]
      %v156 = vld [vmem:[%s139 + $0x20] sm:$0xf]
      %v157 = vld [vmem:[%s139 + $0x24] sm:$0xf]
      %v158 = vld [vmem:[%s139 + $0x28] sm:$0xf]
      %v159 = vld [vmem:[%s139 + $0x2c] sm:$0xf]
      %v160 = vld [vmem:[%s139 + $0x30] sm:$0xf]
      %v161 = vld [vmem:[%s139 + $0x34] sm:$0xf]
      %v162 = vld [vmem:[%s139 + $0x38] sm:$0xf]
      %v163 = vld [vmem:[%s139 + $0x3c] sm:$0xf]
      %v164 = vld [vmem:[%s139 + $0x40] sm:$0xf]
      %v165 = vld [vmem:[%s139 + $0x44] sm:$0xf]
      %v166 = vld [vmem:[%s139 + $0x48] sm:$0xf]
      %v167 = vld [vmem:[%s139 + $0x4c] sm:$0xf]
      %v168 = vld [vmem:[%s139 + $0x50] sm:$0xf]
      %v169 = vld [vmem:[%s139 + $0x54] sm:$0xf]
      %v170 = vld [vmem:[%s139 + $0x58] sm:$0xf]
      %v171 = vld [vmem:[%s139 + $0x5c] sm:$0xf]
      %v172 = vld [vmem:[%s139 + $0x60] sm:$0xf]
      %v173 = vld [vmem:[%s139 + $0x64] sm:$0xf]
      %v174 = vld [vmem:[%s139 + $0x68] sm:$0xf]
      %v175 = vld [vmem:[%s139 + $0x6c] sm:$0xf]
      %v176 = vld [vmem:[%s139 + $0x70] sm:$0xf]
      %v177 = vld [vmem:[%s139 + $0x74] sm:$0xf]
      %v178 = vld [vmem:[%s139 + $0x78] sm:$0xf]
      %v179 = vld [vmem:[%s139 + $0x7c] sm:$0xf]
      %v180 = vld [vmem:[%s139 + $0x80] sm:$0xf]
      %v181 = vld [vmem:[%s139 + $0x84] sm:$0xf]
      %v182 = vld [vmem:[%s139 + $0x88] sm:$0xf]
      %v183 = vld [vmem:[%s139 + $0x8c] sm:$0xf]
      %v184 = vld [vmem:[%s139 + $0x90] sm:$0xf]
      %v185 = vld [vmem:[%s139 + $0x94] sm:$0xf]
      %v186 = vld [vmem:[%s139 + $0x98] sm:$0xf]
      %v187 = vld [vmem:[%s139 + $0x9c] sm:$0xf]
      %v188 = vld [vmem:[%s139 + $0xa0] sm:$0xf]
      %v189 = vld [vmem:[%s139 + $0xa4] sm:$0xf]
      %v190 = vld [vmem:[%s139 + $0xa8] sm:$0xf]
      %v191 = vld [vmem:[%s139 + $0xac] sm:$0xf]
      %v192 = vld [vmem:[%s139 + $0xb0] sm:$0xf]
      %v193 = vld [vmem:[%s139 + $0xb4] sm:$0xf]
      %v194 = vld [vmem:[%s139 + $0xb8] sm:$0xf]
      %v195 = vld [vmem:[%s139 + $0xbc] sm:$0xf]
      %v196 = vld [vmem:[%s139 + $0xc0] sm:$0xf]
      %v197 = vld [vmem:[%s139 + $0xc4] sm:$0xf]
      %v198 = vld [vmem:[%s139 + $0xc8] sm:$0xf]
      %v199 = vld [vmem:[%s139 + $0xcc] sm:$0xf]
      %v200 = vld [vmem:[%s139 + $0xd0] sm:$0xf]
      %v201 = vld [vmem:[%s139 + $0xd4] sm:$0xf]
      %v202 = vld [vmem:[%s139 + $0xd8] sm:$0xf]
      %v203 = vld [vmem:[%s139 + $0xdc] sm:$0xf]
      %v204 = vld [vmem:[%s139 + $0xe0] sm:$0xf]
      %v205 = vld [vmem:[%s139 + $0xe4] sm:$0xf]
      %v206 = vld [vmem:[%s139 + $0xe8] sm:$0xf]
      %v207 = vld [vmem:[%s139 + $0xec] sm:$0xf]
      %v208 = vld [vmem:[%s139 + $0xf0] sm:$0xf]
      %v209 = vld [vmem:[%s139 + $0xf4] sm:$0xf]
      %v210 = vld [vmem:[%s139 + $0xf8] sm:$0xf]
      %v211 = vld [vmem:[%s139 + $0xfc] sm:$0xf]
      %v212 = vld [vmem:[%s139 + $0x100] sm:$0xf]
      %v213 = vld [vmem:[%s139 + $0x104] sm:$0xf]
      %v214 = vld [vmem:[%s139 + $0x108] sm:$0xf]
      %v215 = vld [vmem:[%s139 + $0x10c] sm:$0xf]
      %v216 = vld [vmem:[%s139 + $0x110] sm:$0xf]
      %v217 = vld [vmem:[%s139 + $0x114] sm:$0xf]
      %v218 = vld [vmem:[%s139 + $0x118] sm:$0xf]
      %v219 = vld [vmem:[%s139 + $0x11c] sm:$0xf]
      %v220 = vld [vmem:[%s139 + $0x120] sm:$0xf]
      %v221 = vld [vmem:[%s139 + $0x124] sm:$0xf]
      %v222 = vld [vmem:[%s139 + $0x128] sm:$0xf]
      %v223 = vld [vmem:[%s139 + $0x12c] sm:$0xf]
      %v224 = vld [vmem:[%s139 + $0x130] sm:$0xf]
      %v225 = vld [vmem:[%s139 + $0x134] sm:$0xf]
      %v226 = vld [vmem:[%s139 + $0x138] sm:$0xf]
      %v227 = vld [vmem:[%s139 + $0x13c] sm:$0xf]
      %v228 = vld [vmem:[%s139 + $0x140] sm:$0xf]
      %v229 = vld [vmem:[%s139 + $0x144] sm:$0xf]
      %v230 = vld [vmem:[%s139 + $0x148] sm:$0xf]
      %v231 = vld [vmem:[%s139 + $0x14c] sm:$0xf]
      %v232 = vld [vmem:[%s139 + $0x150] sm:$0xf]
      %v233 = vld [vmem:[%s139 + $0x154] sm:$0xf]
      %v234 = vld [vmem:[%s139 + $0x158] sm:$0xf]
      %v235 = vld [vmem:[%s139 + $0x15c] sm:$0xf]
      %v236 = vld [vmem:[%s139 + $0x160] sm:$0xf]
      %v237 = vld [vmem:[%s139 + $0x164] sm:$0xf]
      %v238 = vld [vmem:[%s139 + $0x168] sm:$0xf]
      %v239 = vld [vmem:[%s139 + $0x16c] sm:$0xf]
      %v240 = vld [vmem:[%s139 + $0x170] sm:$0xf]
      %v241 = vld [vmem:[%s139 + $0x174] sm:$0xf]
      %v242 = vld [vmem:[%s139 + $0x178] sm:$0xf]
      %v243 = vld [vmem:[%s139 + $0x17c] sm:$0xf]
      %v244 = vld [vmem:[%s139 + $0x180] sm:$0xf]
      %v245 = vld [vmem:[%s139 + $0x184] sm:$0xf]
      %v246 = vld [vmem:[%s139 + $0x188] sm:$0xf]
      %v247 = vld [vmem:[%s139 + $0x18c] sm:$0xf]
      %v248 = vld [vmem:[%s139 + $0x190] sm:$0xf]
      %v249 = vld [vmem:[%s139 + $0x194] sm:$0xf]
      %v250 = vld [vmem:[%s139 + $0x198] sm:$0xf]
      %v251 = vld [vmem:[%s139 + $0x19c] sm:$0xf]
      %v252 = vld [vmem:[%s139 + $0x1a0] sm:$0xf]
      %v253 = vld [vmem:[%s139 + $0x1a4] sm:$0xf]
      %v254 = vld [vmem:[%s139 + $0x1a8] sm:$0xf]
      %v255 = vld [vmem:[%s139 + $0x1ac] sm:$0xf]
      %v256 = vld [vmem:[%s139 + $0x1b0] sm:$0xf]
      %v257 = vld [vmem:[%s139 + $0x1b4] sm:$0xf]
      %v258 = vld [vmem:[%s139 + $0x1b8] sm:$0xf]
      %v259 = vld [vmem:[%s139 + $0x1bc] sm:$0xf]
      %v260 = vld [vmem:[%s139 + $0x1c0] sm:$0xf]
      %v261 = vld [vmem:[%s139 + $0x1c4] sm:$0xf]
      %v262 = vld [vmem:[%s139 + $0x1c8] sm:$0xf]
      %v263 = vld [vmem:[%s139 + $0x1cc] sm:$0xf]
      %v264 = vld [vmem:[%s139 + $0x1d0] sm:$0xf]
      %v265 = vld [vmem:[%s139 + $0x1d4] sm:$0xf]
      %v266 = vld [vmem:[%s139 + $0x1d8] sm:$0xf]
      %v267 = vld [vmem:[%s139 + $0x1dc] sm:$0xf]
      %v268 = vld [vmem:[%s139 + $0x1e0] sm:$0xf]
      %v269 = vld [vmem:[%s139 + $0x1e4] sm:$0xf]
      %v270 = vld [vmem:[%s139 + $0x1e8] sm:$0xf]
      %v271 = vld [vmem:[%s139 + $0x1ec] sm:$0xf]
      %v272 = vld [vmem:[%s139 + $0x1f0] sm:$0xf]
      %v273 = vld [vmem:[%s139 + $0x1f4] sm:$0xf]
      %v274 = vld [vmem:[%s139 + $0x1f8] sm:$0xf]
      %v275 = vld [vmem:[%s139 + $0x1fc] sm:$0xf]
      %v276 = vld [vmem:[%s1] sm:$0xf]
      %v277 = vld [vmem:[%s1 + $0x4] sm:$0xf]
      %v278 = vld [vmem:[%s1 + $0x8] sm:$0xf]
      %v279 = vld [vmem:[%s1 + $0xc] sm:$0xf]
      %v280 = vld [vmem:[%s1 + $0x10] sm:$0xf]
      %v281 = vld [vmem:[%s1 + $0x14] sm:$0xf]
      %v410 = vunpack.c.l.b16 %v148
      %v411 = vunpack.c.l.b16 %v149
      %v412 = vunpack.c.l.b16 %v150
      %v413 = vunpack.c.l.b16 %v151
      %v414 = vunpack.c.l.b16 %v152
      %v415 = vunpack.c.l.b16 %v153
      %v416 = vunpack.c.l.b16 %v154
      %v417 = vunpack.c.l.b16 %v155
      %v418 = vunpack.c.l.b16 %v156
      %v419 = vunpack.c.l.b16 %v157
      %v420 = vunpack.c.l.b16 %v158
      %v421 = vunpack.c.l.b16 %v159
      %v422 = vunpack.c.l.b16 %v160
      %v423 = vunpack.c.l.b16 %v161
      %v424 = vunpack.c.l.b16 %v162
      %v425 = vunpack.c.l.b16 %v163
      %v426 = vunpack.c.l.b16 %v164
      %v427 = vunpack.c.l.b16 %v165
      %v428 = vunpack.c.l.b16 %v166
      %v429 = vunpack.c.l.b16 %v167
      %v430 = vunpack.c.l.b16 %v168
      %v431 = vunpack.c.l.b16 %v169
      %v432 = vunpack.c.l.b16 %v170
      %v433 = vunpack.c.l.b16 %v171
      %v434 = vunpack.c.l.b16 %v172
      %v435 = vunpack.c.l.b16 %v173
      %v436 = vunpack.c.l.b16 %v174
      %v437 = vunpack.c.l.b16 %v175
      %v438 = vunpack.c.l.b16 %v176
      %v439 = vunpack.c.l.b16 %v177
      %v440 = vunpack.c.l.b16 %v178
      %v441 = vunpack.c.l.b16 %v179
      %v442 = vunpack.c.l.b16 %v180
      %v443 = vunpack.c.l.b16 %v181
      %v444 = vunpack.c.l.b16 %v182
      %v445 = vunpack.c.l.b16 %v183
      %v446 = vunpack.c.l.b16 %v184
      %v447 = vunpack.c.l.b16 %v185
      %v448 = vunpack.c.l.b16 %v186
      %v449 = vunpack.c.l.b16 %v187
      %v450 = vunpack.c.l.b16 %v188
      %v451 = vunpack.c.l.b16 %v189
      %v452 = vunpack.c.l.b16 %v190
      %v453 = vunpack.c.l.b16 %v191
      %v454 = vunpack.c.l.b16 %v192
      %v455 = vunpack.c.l.b16 %v193
      %v456 = vunpack.c.l.b16 %v194
      %v457 = vunpack.c.l.b16 %v195
      %v458 = vunpack.c.l.b16 %v196
      %v459 = vunpack.c.l.b16 %v197
      %v460 = vunpack.c.l.b16 %v198
      %v461 = vunpack.c.l.b16 %v199
      %v462 = vunpack.c.l.b16 %v200
      %v463 = vunpack.c.l.b16 %v201
      %v464 = vunpack.c.l.b16 %v202
      %v465 = vunpack.c.l.b16 %v203
      %v466 = vunpack.c.l.b16 %v204
      %v467 = vunpack.c.l.b16 %v205
      %v468 = vunpack.c.l.b16 %v206
      %v469 = vunpack.c.l.b16 %v207
      %v470 = vunpack.c.l.b16 %v208
      %v471 = vunpack.c.l.b16 %v209
      %v472 = vunpack.c.l.b16 %v210
      %v473 = vunpack.c.l.b16 %v211
      %v474 = vunpack.c.l.b16 %v212
      %v475 = vunpack.c.l.b16 %v213
      %v476 = vunpack.c.l.b16 %v214
      %v477 = vunpack.c.l.b16 %v215
      %v478 = vunpack.c.l.b16 %v216
      %v479 = vunpack.c.l.b16 %v217
      %v480 = vunpack.c.l.b16 %v218
      %v481 = vunpack.c.l.b16 %v219
      %v482 = vunpack.c.l.b16 %v220
      %v483 = vunpack.c.l.b16 %v221
      %v484 = vunpack.c.l.b16 %v222
      %v485 = vunpack.c.l.b16 %v223
      %v486 = vunpack.c.l.b16 %v224
      %v487 = vunpack.c.l.b16 %v225
      %v488 = vunpack.c.l.b16 %v226
      %v489 = vunpack.c.l.b16 %v227
      %v490 = vunpack.c.l.b16 %v228
      %v491 = vunpack.c.l.b16 %v229
      %v492 = vunpack.c.l.b16 %v230
      %v493 = vunpack.c.l.b16 %v231
      %v494 = vunpack.c.l.b16 %v232
      %v495 = vunpack.c.l.b16 %v233
      %v496 = vunpack.c.l.b16 %v234
      %v497 = vunpack.c.l.b16 %v235
      %v498 = vunpack.c.l.b16 %v236
      %v499 = vunpack.c.l.b16 %v237
      %v500 = vunpack.c.l.b16 %v238
      %v501 = vunpack.c.l.b16 %v239
      %v502 = vunpack.c.l.b16 %v240
      %v503 = vunpack.c.l.b16 %v241
      %v504 = vunpack.c.l.b16 %v242
      %v505 = vunpack.c.l.b16 %v243
      %v506 = vunpack.c.l.b16 %v244
      %v507 = vunpack.c.l.b16 %v245
      %v508 = vunpack.c.l.b16 %v246
      %v509 = vunpack.c.l.b16 %v247
      %v510 = vunpack.c.l.b16 %v248
      %v511 = vunpack.c.l.b16 %v249
      %v512 = vunpack.c.l.b16 %v250
      %v513 = vunpack.c.l.b16 %v251
      %v514 = vunpack.c.l.b16 %v252
      %v515 = vunpack.c.l.b16 %v253
      %v516 = vunpack.c.l.b16 %v254
      %v517 = vunpack.c.l.b16 %v255
      %v518 = vunpack.c.l.b16 %v256
      %v519 = vunpack.c.l.b16 %v257
      %v520 = vunpack.c.l.b16 %v258
      %v521 = vunpack.c.l.b16 %v259
      %v522 = vunpack.c.l.b16 %v260
      %v523 = vunpack.c.l.b16 %v261
      %v524 = vunpack.c.l.b16 %v262
      %v525 = vunpack.c.l.b16 %v263
      %v526 = vunpack.c.l.b16 %v264
      %v527 = vunpack.c.l.b16 %v265
      %v528 = vunpack.c.l.b16 %v266
      %v529 = vunpack.c.l.b16 %v267
      %v530 = vunpack.c.l.b16 %v268
      %v531 = vunpack.c.l.b16 %v269
      %v532 = vunpack.c.l.b16 %v270
      %v533 = vunpack.c.l.b16 %v271
      %v534 = vunpack.c.l.b16 %v272
      %v535 = vunpack.c.l.b16 %v273
      %v536 = vunpack.c.l.b16 %v274
      %v537 = vunpack.c.l.b16 %v275
      %v538 = vpack.c.b16 %v411, %v410
      %v539 = vpack.c.b16 %v413, %v412
      %v540 = vpack.c.b16 %v415, %v414
      %v541 = vpack.c.b16 %v417, %v416
      %v542 = vpack.c.b16 %v419, %v418
      %v543 = vpack.c.b16 %v421, %v420
      %v544 = vpack.c.b16 %v423, %v422
      %v545 = vpack.c.b16 %v425, %v424
      %v546 = vpack.c.b16 %v427, %v426
      %v547 = vpack.c.b16 %v429, %v428
      %v548 = vpack.c.b16 %v431, %v430
      %v549 = vpack.c.b16 %v433, %v432
      %v550 = vpack.c.b16 %v435, %v434
      %v551 = vpack.c.b16 %v437, %v436
      %v552 = vpack.c.b16 %v439, %v438
      %v553 = vpack.c.b16 %v441, %v440
      %v554 = vpack.c.b16 %v443, %v442
      %v555 = vpack.c.b16 %v445, %v444
      %v556 = vpack.c.b16 %v447, %v446
      %v557 = vpack.c.b16 %v449, %v448
      %v558 = vpack.c.b16 %v451, %v450
      %v559 = vpack.c.b16 %v453, %v452
      %v560 = vpack.c.b16 %v455, %v454
      %v561 = vpack.c.b16 %v457, %v456
      %v562 = vpack.c.b16 %v459, %v458
      %v563 = vpack.c.b16 %v461, %v460
      %v564 = vpack.c.b16 %v463, %v462
      %v565 = vpack.c.b16 %v465, %v464
      %v566 = vpack.c.b16 %v467, %v466
      %v567 = vpack.c.b16 %v469, %v468
      %v568 = vpack.c.b16 %v471, %v470
      %v569 = vpack.c.b16 %v473, %v472
      %v570 = vpack.c.b16 %v475, %v474
      %v571 = vpack.c.b16 %v477, %v476
      %v572 = vpack.c.b16 %v479, %v478
      %v573 = vpack.c.b16 %v481, %v480
      %v574 = vpack.c.b16 %v483, %v482
      %v575 = vpack.c.b16 %v485, %v484
      %v576 = vpack.c.b16 %v487, %v486
      %v577 = vpack.c.b16 %v489, %v488
      %v578 = vpack.c.b16 %v491, %v490
      %v579 = vpack.c.b16 %v493, %v492
      %v580 = vpack.c.b16 %v495, %v494
      %v581 = vpack.c.b16 %v497, %v496
      %v582 = vpack.c.b16 %v499, %v498
      %v583 = vpack.c.b16 %v501, %v500
      %v584 = vpack.c.b16 %v503, %v502
      %v585 = vpack.c.b16 %v505, %v504
      %v586 = vpack.c.b16 %v507, %v506
      %v587 = vpack.c.b16 %v509, %v508
      %v588 = vpack.c.b16 %v511, %v510
      %v589 = vpack.c.b16 %v513, %v512
      %v590 = vpack.c.b16 %v515, %v514
      %v591 = vpack.c.b16 %v517, %v516
      %v592 = vpack.c.b16 %v519, %v518
      %v593 = vpack.c.b16 %v521, %v520
      %v594 = vpack.c.b16 %v523, %v522
      %v595 = vpack.c.b16 %v525, %v524
      %v596 = vpack.c.b16 %v527, %v526
      %v597 = vpack.c.b16 %v529, %v528
      %v598 = vpack.c.b16 %v531, %v530
      %v599 = vpack.c.b16 %v533, %v532
      %v600 = vpack.c.b16 %v535, %v534
      %v601 = vpack.c.b16 %v537, %v536
      %v608 = vunpack.c.l.b16 %v276
      %v609 = vunpack.c.l.b16 %v277
      %v610 = vunpack.c.l.b16 %v278
      %v611 = vunpack.c.l.b16 %v279
      %v612 = vunpack.c.l.b16 %v280
      %v613 = vunpack.c.l.b16 %v281
      %v614 = vpack.c.b16 %v609, %v608
      %v615 = vpack.c.b16 %v611, %v610
      %v616 = vpack.c.b16 %v613, %v612
      %vm620 = vcmask 392192
      %v622 = vsel %vm620, %v538, 0
      %v625 = vsel %vm620, %v539, 0
      %v628 = vsel %vm620, %v540, 0
      %v631 = vsel %vm620, %v541, 0
      %v634 = vsel %vm620, %v542, 0
      %v637 = vsel %vm620, %v543, 0
      %v640 = vsel %vm620, %v544, 0
      %v643 = vsel %vm620, %v545, 0
      %v646 = vsel %vm620, %v546, 0
      %v649 = vsel %vm620, %v547, 0
      %v652 = vsel %vm620, %v548, 0
      %v655 = vsel %vm620, %v549, 0
      %v658 = vsel %vm620, %v550, 0
      %v661 = vsel %vm620, %v551, 0
      %v664 = vsel %vm620, %v552, 0
      %v667 = vsel %vm620, %v553, 0
      %v670 = vsel %vm620, %v554, 0
      %v673 = vsel %vm620, %v555, 0
      %v676 = vsel %vm620, %v556, 0
      %v679 = vsel %vm620, %v557, 0
      %v682 = vsel %vm620, %v558, 0
      %v685 = vsel %vm620, %v559, 0
      %v688 = vsel %vm620, %v560, 0
      %v691 = vsel %vm620, %v561, 0
      %v694 = vsel %vm620, %v562, 0
      %v697 = vsel %vm620, %v563, 0
      %v700 = vsel %vm620, %v564, 0
      %v703 = vsel %vm620, %v565, 0
      %v706 = vsel %vm620, %v566, 0
      %v709 = vsel %vm620, %v567, 0
      %v712 = vsel %vm620, %v568, 0
      %v715 = vsel %vm620, %v569, 0
      %v718 = vsel %vm620, %v570, 0
      %v721 = vsel %vm620, %v571, 0
      %v724 = vsel %vm620, %v572, 0
      %v727 = vsel %vm620, %v573, 0
      %v730 = vsel %vm620, %v574, 0
      %v733 = vsel %vm620, %v575, 0
      %v736 = vsel %vm620, %v576, 0
      %v739 = vsel %vm620, %v577, 0
      %v742 = vsel %vm620, %v578, 0
      %v745 = vsel %vm620, %v579, 0
      %v748 = vsel %vm620, %v580, 0
      %v751 = vsel %vm620, %v581, 0
      %v754 = vsel %vm620, %v582, 0
      %v757 = vsel %vm620, %v583, 0
      %v760 = vsel %vm620, %v584, 0
      %v763 = vsel %vm620, %v585, 0
      %v766 = vsel %vm620, %v586, 0
      %v769 = vsel %vm620, %v587, 0
      %v772 = vsel %vm620, %v588, 0
      %v775 = vsel %vm620, %v589, 0
      %v778 = vsel %vm620, %v590, 0
      %v781 = vsel %vm620, %v591, 0
      %v784 = vsel %vm620, %v592, 0
      %v787 = vsel %vm620, %v593, 0
      %v790 = vsel %vm620, %v594, 0
      %v793 = vsel %vm620, %v595, 0
      %v796 = vsel %vm620, %v596, 0
      %v799 = vsel %vm620, %v597, 0
      %v802 = vsel %vm620, %v598, 0
      %v805 = vsel %vm620, %v599, 0
      %v808 = vsel %vm620, %v600, 0
      %v811 = vsel %vm620, %v601, 0
      %813 = vmatprep.subr.bf16.mxu0 0
      %814 = vmatpush1.bf16.msra.mxu0 %v614
      %815 = vmatprep.subr.bf16.mxu0 0
      %816 = vmatpush1.bf16.msra.mxu0 %v615
      %817 = vmatprep.subr.bf16.mxu0 0
      %818 = vmatpush1.bf16.msra.mxu0 %v616
      %819 = vmatprep.subr.bf16.mxu0 0
      %820 = vmatpush1.bf16.msra.mxu0 0
      %821 = vmatprep.subr.bf16.mxu0 0
      %822 = vmatpush1.bf16.msra.mxu0 0
      %823 = vmatprep.subr.bf16.mxu0 0
      %824 = vmatpush1.bf16.msra.mxu0 0
      %825 = vmatprep.subr.bf16.mxu0 0
      %826 = vmatpush1.bf16.msra.mxu0 0
      %827 = vmatprep.subr.bf16.mxu0 0
      %828 = vmatpush1.bf16.msra.mxu0 0
      %829 = vmatprep.subr.bf16.mxu0 0
      %830 = vmatpush1.bf16.msra.mxu0 0
      %831 = vmatprep.subr.bf16.mxu0 0
      %832 = vmatpush1.bf16.msra.mxu0 0
      %833 = vmatprep.subr.bf16.mxu0 0
      %834 = vmatpush1.bf16.msra.mxu0 0
      %835 = vmatprep.subr.bf16.mxu0 0
      %836 = vmatpush1.bf16.msra.mxu0 0
      %837 = vmatprep.subr.bf16.mxu0 0
      %838 = vmatpush1.bf16.msra.mxu0 0
      %839 = vmatprep.subr.bf16.mxu0 0
      %840 = vmatpush1.bf16.msra.mxu0 0
      %841 = vmatprep.subr.bf16.mxu0 0
      %842 = vmatpush1.bf16.msra.mxu0 0
      %843 = vmatprep.subr.bf16.mxu0 0
      %844 = vmatpush1.bf16.msra.mxu0 0
      %845 = vmatprep.mubr.bf16.mxu0 0
      %846 = vmatmul.mubr.bf16.gmra.mrb[0].mxu0 %v622
      %v847 = vpop.f32.mrb[0].mxu0
      %v848 = vadd.f32 0.0, %v847
      %v849 = vpop.f32.mrb[0].mxu0
      %v850 = vpop.f32.mrb[0].mxu0
      %v851 = vadd.f32 0.0, %v850
      %v852 = vpop.f32.mrb[0].mxu0
      %853 = vmatprep.mubr.bf16.mxu0 0
      %854 = vmatmul.mubr.bf16.gmra.mrb[0].mxu0 %v625
      %v855 = vpop.f32.mrb[0].mxu0
      %v856 = vadd.f32 0.0, %v855
      %v857 = vpop.f32.mrb[0].mxu0
      %v858 = vpop.f32.mrb[0].mxu0
      %v859 = vadd.f32 0.0, %v858
      %v860 = vpop.f32.mrb[0].mxu0
      %861 = vmatprep.mubr.bf16.mxu0 0
      %862 = vmatmul.mubr.bf16.gmra.mrb[0].mxu0 %v628
      %v863 = vpop.f32.mrb[0].mxu0
      %v864 = vadd.f32 0.0, %v863
      %v865 = vpop.f32.mrb[0].mxu0
      %v866 = vpop.f32.mrb[0].mxu0
      %v867 = vadd.f32 0.0, %v866
      %v868 = vpop.f32.mrb[0].mxu0
      %869 = vmatprep.mubr.bf16.mxu0 0
      %870 = vmatmul.mubr.bf16.gmra.mrb[0].mxu0 %v631
      %v871 = vpop.f32.mrb[0].mxu0
      %v872 = vadd.f32 0.0, %v871
      %v873 = vpop.f32.mrb[0].mxu0
      %v874 = vpop.f32.mrb[0].mxu0
      %v875 = vadd.f32 0.0, %v874
      %v876 = vpop.f32.mrb[0].mxu0
      %877 = vmatprep.mubr.bf16.mxu0 0
      %878 = vmatmul.mubr.bf16.gmra.mrb[0].mxu0 %v634
      %v879 = vpop.f32.mrb[0].mxu0
      %v880 = vadd.f32 0.0, %v879
      %v881 = vpop.f32.mrb[0].mxu0
      %v882 = vpop.f32.mrb[0].mxu0
      %v883 = vadd.f32 0.0, %v882
      %v884 = vpop.f32.mrb[0].mxu0
      %885 = vmatprep.mubr.bf16.mxu0 0
      %886 = vmatmul.mubr.bf16.gmra.mrb[0].mxu0 %v637
      %v887 = vpop.f32.mrb[0].mxu0
      %v888 = vadd.f32 0.0, %v887
      %v889 = vpop.f32.mrb[0].mxu0
      %v890 = vpop.f32.mrb[0].mxu0
      %v891 = vadd.f32 0.0, %v890
      %v892 = vpop.f32.mrb[0].mxu0
      %893 = vmatprep.mubr.bf16.mxu0 0
      %894 = vmatmul.mubr.bf16.gmra.mrb[0].mxu0 %v640
      %v895 = vpop.f32.mrb[0].mxu0
      %v896 = vadd.f32 0.0, %v895
      %v897 = vpop.f32.mrb[0].mxu0
      %v898 = vpop.f32.mrb[0].mxu0
      %v899 = vadd.f32 0.0, %v898
      %v900 = vpop.f32.mrb[0].mxu0
      %901 = vmatprep.mubr.bf16.mxu0 0
      %902 = vmatmul.mubr.bf16.gmra.mrb[0].mxu0 %v643
      %v903 = vpop.f32.mrb[0].mxu0
      %v904 = vadd.f32 0.0, %v903
      %v905 = vpop.f32.mrb[0].mxu0
      %v906 = vpop.f32.mrb[0].mxu0
      %v907 = vadd.f32 0.0, %v906
      %v908 = vpop.f32.mrb[0].mxu0
      %909 = vmatprep.mubr.bf16.mxu0 0
      %910 = vmatmul.mubr.bf16.gmra.mrb[0].mxu0 %v646
      %v911 = vpop.f32.mrb[0].mxu0
      %v912 = vadd.f32 0.0, %v911
      %v913 = vpop.f32.mrb[0].mxu0
      %v914 = vpop.f32.mrb[0].mxu0
      %v915 = vadd.f32 0.0, %v914
      %v916 = vpop.f32.mrb[0].mxu0
      %917 = vmatprep.mubr.bf16.mxu0 0
      %918 = vmatmul.mubr.bf16.gmra.mrb[0].mxu0 %v649
      %v919 = vpop.f32.mrb[0].mxu0
      %v920 = vadd.f32 0.0, %v919
      %v921 = vpop.f32.mrb[0].mxu0
      %v922 = vpop.f32.mrb[0].mxu0
      %v923 = vadd.f32 0.0, %v922
      %v924 = vpop.f32.mrb[0].mxu0
      %925 = vmatprep.mubr.bf16.mxu0 0
      %926 = vmatmul.mubr.bf16.gmra.mrb[0].mxu0 %v652
      %v927 = vpop.f32.mrb[0].mxu0
      %v928 = vadd.f32 0.0, %v927
      %v929 = vpop.f32.mrb[0].mxu0
      %v930 = vpop.f32.mrb[0].mxu0
      %v931 = vadd.f32 0.0, %v930
      %v932 = vpop.f32.mrb[0].mxu0
      %933 = vmatprep.mubr.bf16.mxu0 0
      %934 = vmatmul.mubr.bf16.gmra.mrb[0].mxu0 %v655
      %v935 = vpop.f32.mrb[0].mxu0
      %v936 = vadd.f32 0.0, %v935
      %v937 = vpop.f32.mrb[0].mxu0
      %v938 = vpop.f32.mrb[0].mxu0
      %v939 = vadd.f32 0.0, %v938
      %v940 = vpop.f32.mrb[0].mxu0
      %941 = vmatprep.mubr.bf16.mxu0 0
      %942 = vmatmul.mubr.bf16.gmra.mrb[0].mxu0 %v658
      %v943 = vpop.f32.mrb[0].mxu0
      %v944 = vadd.f32 0.0, %v943
      %v945 = vpop.f32.mrb[0].mxu0
      %v946 = vpop.f32.mrb[0].mxu0
      %v947 = vadd.f32 0.0, %v946
      %v948 = vpop.f32.mrb[0].mxu0
      %949 = vmatprep.mubr.bf16.mxu0 0
      %950 = vmatmul.mubr.bf16.gmra.mrb[0].mxu0 %v661
      %v951 = vpop.f32.mrb[0].mxu0
      %v952 = vadd.f32 0.0, %v951
      %v953 = vpop.f32.mrb[0].mxu0
      %v954 = vpop.f32.mrb[0].mxu0
      %v955 = vadd.f32 0.0, %v954
      %v956 = vpop.f32.mrb[0].mxu0
      %957 = vmatprep.mubr.bf16.mxu0 0
      %958 = vmatmul.mubr.bf16.gmra.mrb[0].mxu0 %v664
      %v959 = vpop.f32.mrb[0].mxu0
      %v960 = vadd.f32 0.0, %v959
      %v961 = vpop.f32.mrb[0].mxu0
      %v962 = vpop.f32.mrb[0].mxu0
      %v963 = vadd.f32 0.0, %v962
      %v964 = vpop.f32.mrb[0].mxu0
      %965 = vmatprep.mubr.bf16.mxu0 0
      %966 = vmatmul.mubr.bf16.gmra.mrb[0].mxu0 %v667
      %v967 = vpop.f32.mrb[0].mxu0
      %v968 = vadd.f32 0.0, %v967
      %v969 = vpop.f32.mrb[0].mxu0
      %v970 = vpop.f32.mrb[0].mxu0
      %v971 = vadd.f32 0.0, %v970
      %v972 = vpop.f32.mrb[0].mxu0
      %973 = vmatprep.mubr.bf16.mxu0 0
      %974 = vmatmul.mubr.bf16.gmra.mrb[0].mxu0 %v670
      %v975 = vpop.f32.mrb[0].mxu0
      %v976 = vadd.f32 0.0, %v975
      %v977 = vpop.f32.mrb[0].mxu0
      %v978 = vpop.f32.mrb[0].mxu0
      %v979 = vadd.f32 0.0, %v978
      %v980 = vpop.f32.mrb[0].mxu0
      %981 = vmatprep.mubr.bf16.mxu0 0
      %982 = vmatmul.mubr.bf16.gmra.mrb[0].mxu0 %v673
      %v983 = vpop.f32.mrb[0].mxu0
      %v984 = vadd.f32 0.0, %v983
      %v985 = vpop.f32.mrb[0].mxu0
      %v986 = vpop.f32.mrb[0].mxu0
      %v987 = vadd.f32 0.0, %v986
      %v988 = vpop.f32.mrb[0].mxu0
      %989 = vmatprep.mubr.bf16.mxu0 0
      %990 = vmatmul.mubr.bf16.gmra.mrb[0].mxu0 %v676
      %v991 = vpop.f32.mrb[0].mxu0
      %v992 = vadd.f32 0.0, %v991
      %v993 = vpop.f32.mrb[0].mxu0
      %v994 = vpop.f32.mrb[0].mxu0
      %v995 = vadd.f32 0.0, %v994
      %v996 = vpop.f32.mrb[0].mxu0
      %997 = vmatprep.mubr.bf16.mxu0 0
      %998 = vmatmul.mubr.bf16.gmra.mrb[0].mxu0 %v679
      %v999 = vpop.f32.mrb[0].mxu0
      %v1000 = vadd.f32 0.0, %v999
      %v1001 = vpop.f32.mrb[0].mxu0
      %v1002 = vpop.f32.mrb[0].mxu0
      %v1003 = vadd.f32 0.0, %v1002
      %v1004 = vpop.f32.mrb[0].mxu0
      %1005 = vmatprep.mubr.bf16.mxu0 0
      %1006 = vmatmul.mubr.bf16.gmra.mrb[0].mxu0 %v682
      %v1007 = vpop.f32.mrb[0].mxu0
      %v1008 = vadd.f32 0.0, %v1007
      %v1009 = vpop.f32.mrb[0].mxu0
      %v1010 = vpop.f32.mrb[0].mxu0
      %v1011 = vadd.f32 0.0, %v1010
      %v1012 = vpop.f32.mrb[0].mxu0
      %1013 = vmatprep.mubr.bf16.mxu0 0
      %1014 = vmatmul.mubr.bf16.gmra.mrb[0].mxu0 %v685
      %v1015 = vpop.f32.mrb[0].mxu0
      %v1016 = vadd.f32 0.0, %v1015
      %v1017 = vpop.f32.mrb[0].mxu0
      %v1018 = vpop.f32.mrb[0].mxu0
      %v1019 = vadd.f32 0.0, %v1018
      %v1020 = vpop.f32.mrb[0].mxu0
      %1021 = vmatprep.mubr.bf16.mxu0 0
      %1022 = vmatmul.mubr.bf16.gmra.mrb[0].mxu0 %v688
      %v1023 = vpop.f32.mrb[0].mxu0
      %v1024 = vadd.f32 0.0, %v1023
      %v1025 = vpop.f32.mrb[0].mxu0
      %v1026 = vpop.f32.mrb[0].mxu0
      %v1027 = vadd.f32 0.0, %v1026
      %v1028 = vpop.f32.mrb[0].mxu0
      %1029 = vmatprep.mubr.bf16.mxu0 0
      %1030 = vmatmul.mubr.bf16.gmra.mrb[0].mxu0 %v691
      %v1031 = vpop.f32.mrb[0].mxu0
      %v1032 = vadd.f32 0.0, %v1031
      %v1033 = vpop.f32.mrb[0].mxu0
      %v1034 = vpop.f32.mrb[0].mxu0
      %v1035 = vadd.f32 0.0, %v1034
      %v1036 = vpop.f32.mrb[0].mxu0
      %1037 = vmatprep.mubr.bf16.mxu0 0
      %1038 = vmatmul.mubr.bf16.gmra.mrb[0].mxu0 %v694
      %v1039 = vpop.f32.mrb[0].mxu0
      %v1040 = vadd.f32 0.0, %v1039
      %v1041 = vpop.f32.mrb[0].mxu0
      %v1042 = vpop.f32.mrb[0].mxu0
      %v1043 = vadd.f32 0.0, %v1042
      %v1044 = vpop.f32.mrb[0].mxu0
      %1045 = vmatprep.mubr.bf16.mxu0 0
      %1046 = vmatmul.mubr.bf16.gmra.mrb[0].mxu0 %v697
      %v1047 = vpop.f32.mrb[0].mxu0
      %v1048 = vadd.f32 0.0, %v1047
      %v1049 = vpop.f32.mrb[0].mxu0
      %v1050 = vpop.f32.mrb[0].mxu0
      %v1051 = vadd.f32 0.0, %v1050
      %v1052 = vpop.f32.mrb[0].mxu0
      %1053 = vmatprep.mubr.bf16.mxu0 0
      %1054 = vmatmul.mubr.bf16.gmra.mrb[0].mxu0 %v700
      %v1055 = vpop.f32.mrb[0].mxu0
      %v1056 = vadd.f32 0.0, %v1055
      %v1057 = vpop.f32.mrb[0].mxu0
      %v1058 = vpop.f32.mrb[0].mxu0
      %v1059 = vadd.f32 0.0, %v1058
      %v1060 = vpop.f32.mrb[0].mxu0
      %1061 = vmatprep.mubr.bf16.mxu0 0
      %1062 = vmatmul.mubr.bf16.gmra.mrb[0].mxu0 %v703
      %v1063 = vpop.f32.mrb[0].mxu0
      %v1064 = vadd.f32 0.0, %v1063
      %v1065 = vpop.f32.mrb[0].mxu0
      %v1066 = vpop.f32.mrb[0].mxu0
      %v1067 = vadd.f32 0.0, %v1066
      %v1068 = vpop.f32.mrb[0].mxu0
      %1069 = vmatprep.mubr.bf16.mxu0 0
      %1070 = vmatmul.mubr.bf16.gmra.mrb[0].mxu0 %v706
      %v1071 = vpop.f32.mrb[0].mxu0
      %v1072 = vadd.f32 0.0, %v1071
      %v1073 = vpop.f32.mrb[0].mxu0
      %v1074 = vpop.f32.mrb[0].mxu0
      %v1075 = vadd.f32 0.0, %v1074
      %v1076 = vpop.f32.mrb[0].mxu0
      %1077 = vmatprep.mubr.bf16.mxu0 0
      %1078 = vmatmul.mubr.bf16.gmra.mrb[0].mxu0 %v709
      %v1079 = vpop.f32.mrb[0].mxu0
      %v1080 = vadd.f32 0.0, %v1079
      %v1081 = vpop.f32.mrb[0].mxu0
      %v1082 = vpop.f32.mrb[0].mxu0
      %v1083 = vadd.f32 0.0, %v1082
      %v1084 = vpop.f32.mrb[0].mxu0
      %1085 = vmatprep.mubr.bf16.mxu0 0
      %1086 = vmatmul.mubr.bf16.gmra.mrb[0].mxu0 %v712
      %v1087 = vpop.f32.mrb[0].mxu0
      %v1088 = vadd.f32 0.0, %v1087
      %v1089 = vpop.f32.mrb[0].mxu0
      %v1090 = vpop.f32.mrb[0].mxu0
      %v1091 = vadd.f32 0.0, %v1090
      %v1092 = vpop.f32.mrb[0].mxu0
      %1093 = vmatprep.mubr.bf16.mxu0 0
      %1094 = vmatmul.mubr.bf16.gmra.mrb[0].mxu0 %v715
      %v1095 = vpop.f32.mrb[0].mxu0
      %v1096 = vadd.f32 0.0, %v1095
      %v1097 = vpop.f32.mrb[0].mxu0
      %v1098 = vpop.f32.mrb[0].mxu0
      %v1099 = vadd.f32 0.0, %v1098
      %v1100 = vpop.f32.mrb[0].mxu0
      %1101 = vmatprep.mubr.bf16.mxu0 0
      %1102 = vmatmul.mubr.bf16.gmra.mrb[0].mxu0 %v718
      %v1103 = vpop.f32.mrb[0].mxu0
      %v1104 = vadd.f32 0.0, %v1103
      %v1105 = vpop.f32.mrb[0].mxu0
      %v1106 = vpop.f32.mrb[0].mxu0
      %v1107 = vadd.f32 0.0, %v1106
      %v1108 = vpop.f32.mrb[0].mxu0
      %1109 = vmatprep.mubr.bf16.mxu0 0
      %1110 = vmatmul.mubr.bf16.gmra.mrb[0].mxu0 %v721
      %v1111 = vpop.f32.mrb[0].mxu0
      %v1112 = vadd.f32 0.0, %v1111
      %v1113 = vpop.f32.mrb[0].mxu0
      %v1114 = vpop.f32.mrb[0].mxu0
      %v1115 = vadd.f32 0.0, %v1114
      %v1116 = vpop.f32.mrb[0].mxu0
      %1117 = vmatprep.mubr.bf16.mxu0 0
      %1118 = vmatmul.mubr.bf16.gmra.mrb[0].mxu0 %v724
      %v1119 = vpop.f32.mrb[0].mxu0
      %v1120 = vadd.f32 0.0, %v1119
      %v1121 = vpop.f32.mrb[0].mxu0
      %v1122 = vpop.f32.mrb[0].mxu0
      %v1123 = vadd.f32 0.0, %v1122
      %v1124 = vpop.f32.mrb[0].mxu0
      %1125 = vmatprep.mubr.bf16.mxu0 0
      %1126 = vmatmul.mubr.bf16.gmra.mrb[0].mxu0 %v727
      %v1127 = vpop.f32.mrb[0].mxu0
      %v1128 = vadd.f32 0.0, %v1127
      %v1129 = vpop.f32.mrb[0].mxu0
      %v1130 = vpop.f32.mrb[0].mxu0
      %v1131 = vadd.f32 0.0, %v1130
      %v1132 = vpop.f32.mrb[0].mxu0
      %1133 = vmatprep.mubr.bf16.mxu0 0
      %1134 = vmatmul.mubr.bf16.gmra.mrb[0].mxu0 %v730
      %v1135 = vpop.f32.mrb[0].mxu0
      %v1136 = vadd.f32 0.0, %v1135
      %v1137 = vpop.f32.mrb[0].mxu0
      %v1138 = vpop.f32.mrb[0].mxu0
      %v1139 = vadd.f32 0.0, %v1138
      %v1140 = vpop.f32.mrb[0].mxu0
      %1141 = vmatprep.mubr.bf16.mxu0 0
      %1142 = vmatmul.mubr.bf16.gmra.mrb[0].mxu0 %v733
      %v1143 = vpop.f32.mrb[0].mxu0
      %v1144 = vadd.f32 0.0, %v1143
      %v1145 = vpop.f32.mrb[0].mxu0
      %v1146 = vpop.f32.mrb[0].mxu0
      %v1147 = vadd.f32 0.0, %v1146
      %v1148 = vpop.f32.mrb[0].mxu0
      %1149 = vmatprep.mubr.bf16.mxu0 0
      %1150 = vmatmul.mubr.bf16.gmra.mrb[0].mxu0 %v736
      %v1151 = vpop.f32.mrb[0].mxu0
      %v1152 = vadd.f32 0.0, %v1151
      %v1153 = vpop.f32.mrb[0].mxu0
      %v1154 = vpop.f32.mrb[0].mxu0
      %v1155 = vadd.f32 0.0, %v1154
      %v1156 = vpop.f32.mrb[0].mxu0
      %1157 = vmatprep.mubr.bf16.mxu0 0
      %1158 = vmatmul.mubr.bf16.gmra.mrb[0].mxu0 %v739
      %v1159 = vpop.f32.mrb[0].mxu0
      %v1160 = vadd.f32 0.0, %v1159
      %v1161 = vpop.f32.mrb[0].mxu0
      %v1162 = vpop.f32.mrb[0].mxu0
      %v1163 = vadd.f32 0.0, %v1162
      %v1164 = vpop.f32.mrb[0].mxu0
      %1165 = vmatprep.mubr.bf16.mxu0 0
      %1166 = vmatmul.mubr.bf16.gmra.mrb[0].mxu0 %v742
      %v1167 = vpop.f32.mrb[0].mxu0
      %v1168 = vadd.f32 0.0, %v1167
      %v1169 = vpop.f32.mrb[0].mxu0
      %v1170 = vpop.f32.mrb[0].mxu0
      %v1171 = vadd.f32 0.0, %v1170
      %v1172 = vpop.f32.mrb[0].mxu0
      %1173 = vmatprep.mubr.bf16.mxu0 0
      %1174 = vmatmul.mubr.bf16.gmra.mrb[0].mxu0 %v745
      %v1175 = vpop.f32.mrb[0].mxu0
      %v1176 = vadd.f32 0.0, %v1175
      %v1177 = vpop.f32.mrb[0].mxu0
      %v1178 = vpop.f32.mrb[0].mxu0
      %v1179 = vadd.f32 0.0, %v1178
      %v1180 = vpop.f32.mrb[0].mxu0
      %1181 = vmatprep.mubr.bf16.mxu0 0
      %1182 = vmatmul.mubr.bf16.gmra.mrb[0].mxu0 %v748
      %v1183 = vpop.f32.mrb[0].mxu0
      %v1184 = vadd.f32 0.0, %v1183
      %v1185 = vpop.f32.mrb[0].mxu0
      %v1186 = vpop.f32.mrb[0].mxu0
      %v1187 = vadd.f32 0.0, %v1186
      %v1188 = vpop.f32.mrb[0].mxu0
      %1189 = vmatprep.mubr.bf16.mxu0 0
      %1190 = vmatmul.mubr.bf16.gmra.mrb[0].mxu0 %v751
      %v1191 = vpop.f32.mrb[0].mxu0
      %v1192 = vadd.f32 0.0, %v1191
      %v1193 = vpop.f32.mrb[0].mxu0
      %v1194 = vpop.f32.mrb[0].mxu0
      %v1195 = vadd.f32 0.0, %v1194
      %v1196 = vpop.f32.mrb[0].mxu0
      %1197 = vmatprep.mubr.bf16.mxu0 0
      %1198 = vmatmul.mubr.bf16.gmra.mrb[0].mxu0 %v754
      %v1199 = vpop.f32.mrb[0].mxu0
      %v1200 = vadd.f32 0.0, %v1199
      %v1201 = vpop.f32.mrb[0].mxu0
      %v1202 = vpop.f32.mrb[0].mxu0
      %v1203 = vadd.f32 0.0, %v1202
      %v1204 = vpop.f32.mrb[0].mxu0
      %1205 = vmatprep.mubr.bf16.mxu0 0
      %1206 = vmatmul.mubr.bf16.gmra.mrb[0].mxu0 %v757
      %v1207 = vpop.f32.mrb[0].mxu0
      %v1208 = vadd.f32 0.0, %v1207
      %v1209 = vpop.f32.mrb[0].mxu0
      %v1210 = vpop.f32.mrb[0].mxu0
      %v1211 = vadd.f32 0.0, %v1210
      %v1212 = vpop.f32.mrb[0].mxu0
      %1213 = vmatprep.mubr.bf16.mxu0 0
      %1214 = vmatmul.mubr.bf16.gmra.mrb[0].mxu0 %v760
      %v1215 = vpop.f32.mrb[0].mxu0
      %v1216 = vadd.f32 0.0, %v1215
      %v1217 = vpop.f32.mrb[0].mxu0
      %v1218 = vpop.f32.mrb[0].mxu0
      %v1219 = vadd.f32 0.0, %v1218
      %v1220 = vpop.f32.mrb[0].mxu0
      %1221 = vmatprep.mubr.bf16.mxu0 0
      %1222 = vmatmul.mubr.bf16.gmra.mrb[0].mxu0 %v763
      %v1223 = vpop.f32.mrb[0].mxu0
      %v1224 = vadd.f32 0.0, %v1223
      %v1225 = vpop.f32.mrb[0].mxu0
      %v1226 = vpop.f32.mrb[0].mxu0
      %v1227 = vadd.f32 0.0, %v1226
      %v1228 = vpop.f32.mrb[0].mxu0
      %1229 = vmatprep.mubr.bf16.mxu0 0
      %1230 = vmatmul.mubr.bf16.gmra.mrb[0].mxu0 %v766
      %v1231 = vpop.f32.mrb[0].mxu0
      %v1232 = vadd.f32 0.0, %v1231
      %v1233 = vpop.f32.mrb[0].mxu0
      %v1234 = vpop.f32.mrb[0].mxu0
      %v1235 = vadd.f32 0.0, %v1234
      %v1236 = vpop.f32.mrb[0].mxu0
      %1237 = vmatprep.mubr.bf16.mxu0 0
      %1238 = vmatmul.mubr.bf16.gmra.mrb[0].mxu0 %v769
      %v1239 = vpop.f32.mrb[0].mxu0
      %v1240 = vadd.f32 0.0, %v1239
      %v1241 = vpop.f32.mrb[0].mxu0
      %v1242 = vpop.f32.mrb[0].mxu0
      %v1243 = vadd.f32 0.0, %v1242
      %v1244 = vpop.f32.mrb[0].mxu0
      %1245 = vmatprep.mubr.bf16.mxu0 0
      %1246 = vmatmul.mubr.bf16.gmra.mrb[0].mxu0 %v772
      %v1247 = vpop.f32.mrb[0].mxu0
      %v1248 = vadd.f32 0.0, %v1247
      %v1249 = vpop.f32.mrb[0].mxu0
      %v1250 = vpop.f32.mrb[0].mxu0
      %v1251 = vadd.f32 0.0, %v1250
      %v1252 = vpop.f32.mrb[0].mxu0
      %1253 = vmatprep.mubr.bf16.mxu0 0
      %1254 = vmatmul.mubr.bf16.gmra.mrb[0].mxu0 %v775
      %v1255 = vpop.f32.mrb[0].mxu0
      %v1256 = vadd.f32 0.0, %v1255
      %v1257 = vpop.f32.mrb[0].mxu0
      %v1258 = vpop.f32.mrb[0].mxu0
      %v1259 = vadd.f32 0.0, %v1258
      %v1260 = vpop.f32.mrb[0].mxu0
      %1261 = vmatprep.mubr.bf16.mxu0 0
      %1262 = vmatmul.mubr.bf16.gmra.mrb[0].mxu0 %v778
      %v1263 = vpop.f32.mrb[0].mxu0
      %v1264 = vadd.f32 0.0, %v1263
      %v1265 = vpop.f32.mrb[0].mxu0
      %v1266 = vpop.f32.mrb[0].mxu0
      %v1267 = vadd.f32 0.0, %v1266
      %v1268 = vpop.f32.mrb[0].mxu0
      %1269 = vmatprep.mubr.bf16.mxu0 0
      %1270 = vmatmul.mubr.bf16.gmra.mrb[0].mxu0 %v781
      %v1271 = vpop.f32.mrb[0].mxu0
      %v1272 = vadd.f32 0.0, %v1271
      %v1273 = vpop.f32.mrb[0].mxu0
      %v1274 = vpop.f32.mrb[0].mxu0
      %v1275 = vadd.f32 0.0, %v1274
      %v1276 = vpop.f32.mrb[0].mxu0
      %1277 = vmatprep.mubr.bf16.mxu0 0
      %1278 = vmatmul.mubr.bf16.gmra.mrb[0].mxu0 %v784
      %v1279 = vpop.f32.mrb[0].mxu0
      %v1280 = vadd.f32 0.0, %v1279
      %v1281 = vpop.f32.mrb[0].mxu0
      %v1282 = vpop.f32.mrb[0].mxu0
      %v1283 = vadd.f32 0.0, %v1282
      %v1284 = vpop.f32.mrb[0].mxu0
      %1285 = vmatprep.mubr.bf16.mxu0 0
      %1286 = vmatmul.mubr.bf16.gmra.mrb[0].mxu0 %v787
      %v1287 = vpop.f32.mrb[0].mxu0
      %v1288 = vadd.f32 0.0, %v1287
      %v1289 = vpop.f32.mrb[0].mxu0
      %v1290 = vpop.f32.mrb[0].mxu0
      %v1291 = vadd.f32 0.0, %v1290
      %v1292 = vpop.f32.mrb[0].mxu0
      %1293 = vmatprep.mubr.bf16.mxu0 0
      %1294 = vmatmul.mubr.bf16.gmra.mrb[0].mxu0 %v790
      %v1295 = vpop.f32.mrb[0].mxu0
      %v1296 = vadd.f32 0.0, %v1295
      %v1297 = vpop.f32.mrb[0].mxu0
      %v1298 = vpop.f32.mrb[0].mxu0
      %v1299 = vadd.f32 0.0, %v1298
      %v1300 = vpop.f32.mrb[0].mxu0
      %1301 = vmatprep.mubr.bf16.mxu0 0
      %1302 = vmatmul.mubr.bf16.gmra.mrb[0].mxu0 %v793
      %v1303 = vpop.f32.mrb[0].mxu0
      %v1304 = vadd.f32 0.0, %v1303
      %v1305 = vpop.f32.mrb[0].mxu0
      %v1306 = vpop.f32.mrb[0].mxu0
      %v1307 = vadd.f32 0.0, %v1306
      %v1308 = vpop.f32.mrb[0].mxu0
      %1309 = vmatprep.mubr.bf16.mxu0 0
      %1310 = vmatmul.mubr.bf16.gmra.mrb[0].mxu0 %v796
      %v1311 = vpop.f32.mrb[0].mxu0
      %v1312 = vadd.f32 0.0, %v1311
      %v1313 = vpop.f32.mrb[0].mxu0
      %v1314 = vpop.f32.mrb[0].mxu0
      %v1315 = vadd.f32 0.0, %v1314
      %v1316 = vpop.f32.mrb[0].mxu0
      %1317 = vmatprep.mubr.bf16.mxu0 0
      %1318 = vmatmul.mubr.bf16.gmra.mrb[0].mxu0 %v799
      %v1319 = vpop.f32.mrb[0].mxu0
      %v1320 = vadd.f32 0.0, %v1319
      %v1321 = vpop.f32.mrb[0].mxu0
      %v1322 = vpop.f32.mrb[0].mxu0
      %v1323 = vadd.f32 0.0, %v1322
      %v1324 = vpop.f32.mrb[0].mxu0
      %1325 = vmatprep.mubr.bf16.mxu0 0
      %1326 = vmatmul.mubr.bf16.gmra.mrb[0].mxu0 %v802
      %v1327 = vpop.f32.mrb[0].mxu0
      %v1328 = vadd.f32 0.0, %v1327
      %v1329 = vpop.f32.mrb[0].mxu0
      %v1330 = vpop.f32.mrb[0].mxu0
      %v1331 = vadd.f32 0.0, %v1330
      %v1332 = vpop.f32.mrb[0].mxu0
      %1333 = vmatprep.mubr.bf16.mxu0 0
      %1334 = vmatmul.mubr.bf16.gmra.mrb[0].mxu0 %v805
      %v1335 = vpop.f32.mrb[0].mxu0
      %v1336 = vadd.f32 0.0, %v1335
      %v1337 = vpop.f32.mrb[0].mxu0
      %v1338 = vpop.f32.mrb[0].mxu0
      %v1339 = vadd.f32 0.0, %v1338
      %v1340 = vpop.f32.mrb[0].mxu0
      %1341 = vmatprep.mubr.bf16.mxu0 0
      %1342 = vmatmul.mubr.bf16.gmra.mrb[0].mxu0 %v808
      %v1343 = vpop.f32.mrb[0].mxu0
      %v1344 = vadd.f32 0.0, %v1343
      %v1345 = vpop.f32.mrb[0].mxu0
      %v1346 = vpop.f32.mrb[0].mxu0
      %v1347 = vadd.f32 0.0, %v1346
      %v1348 = vpop.f32.mrb[0].mxu0
      %1349 = vmatprep.mubr.bf16.mxu0 0
      %1350 = vmatmul.mubr.bf16.gmra.mrb[0].mxu0 %v811
      %v1351 = vpop.f32.mrb[0].mxu0
      %v1352 = vadd.f32 0.0, %v1351
      %v1353 = vpop.f32.mrb[0].mxu0
      %v1354 = vpop.f32.mrb[0].mxu0
      %v1355 = vadd.f32 0.0, %v1354
      %v1356 = vpop.f32.mrb[0].mxu0
      %1357 = vdwg.mxu0
      %vm1358 = vcmp.gt.f32.partialorder %v848, 0.0
      %vm1359 = vcmp.gt.f32.partialorder %v851, 0.0
      %vm1360 = vcmp.gt.f32.partialorder %v856, 0.0
      %vm1361 = vcmp.gt.f32.partialorder %v859, 0.0
      %vm1362 = vcmp.gt.f32.partialorder %v864, 0.0
      %vm1363 = vcmp.gt.f32.partialorder %v867, 0.0
      %vm1364 = vcmp.gt.f32.partialorder %v872, 0.0
      %vm1365 = vcmp.gt.f32.partialorder %v875, 0.0
      %vm1366 = vcmp.gt.f32.partialorder %v880, 0.0
      %vm1367 = vcmp.gt.f32.partialorder %v883, 0.0
      %vm1368 = vcmp.gt.f32.partialorder %v888, 0.0
      %vm1369 = vcmp.gt.f32.partialorder %v891, 0.0
      %vm1370 = vcmp.gt.f32.partialorder %v896, 0.0
      %vm1371 = vcmp.gt.f32.partialorder %v899, 0.0
      %vm1372 = vcmp.gt.f32.partialorder %v904, 0.0
      %vm1373 = vcmp.gt.f32.partialorder %v907, 0.0
      %vm1374 = vcmp.gt.f32.partialorder %v912, 0.0
      %vm1375 = vcmp.gt.f32.partialorder %v915, 0.0
      %vm1376 = vcmp.gt.f32.partialorder %v920, 0.0
      %vm1377 = vcmp.gt.f32.partialorder %v923, 0.0
      %vm1378 = vcmp.gt.f32.partialorder %v928, 0.0
      %vm1379 = vcmp.gt.f32.partialorder %v931, 0.0
      %vm1380 = vcmp.gt.f32.partialorder %v936, 0.0
      %vm1381 = vcmp.gt.f32.partialorder %v939, 0.0
      %vm1382 = vcmp.gt.f32.partialorder %v944, 0.0
      %vm1383 = vcmp.gt.f32.partialorder %v947, 0.0
      %vm1384 = vcmp.gt.f32.partialorder %v952, 0.0
      %vm1385 = vcmp.gt.f32.partialorder %v955, 0.0
      %vm1386 = vcmp.gt.f32.partialorder %v960, 0.0
      %vm1387 = vcmp.gt.f32.partialorder %v963, 0.0
      %vm1388 = vcmp.gt.f32.partialorder %v968, 0.0
      %vm1389 = vcmp.gt.f32.partialorder %v971, 0.0
      %vm1390 = vcmp.gt.f32.partialorder %v976, 0.0
      %vm1391 = vcmp.gt.f32.partialorder %v979, 0.0
      %vm1392 = vcmp.gt.f32.partialorder %v984, 0.0
      %vm1393 = vcmp.gt.f32.partialorder %v987, 0.0
      %vm1394 = vcmp.gt.f32.partialorder %v992, 0.0
      %vm1395 = vcmp.gt.f32.partialorder %v995, 0.0
      %vm1396 = vcmp.gt.f32.partialorder %v1000, 0.0
      %vm1397 = vcmp.gt.f32.partialorder %v1003, 0.0
      %vm1398 = vcmp.gt.f32.partialorder %v1008, 0.0
      %vm1399 = vcmp.gt.f32.partialorder %v1011, 0.0
      %vm1400 = vcmp.gt.f32.partialorder %v1016, 0.0
      %vm1401 = vcmp.gt.f32.partialorder %v1019, 0.0
      %vm1402 = vcmp.gt.f32.partialorder %v1024, 0.0
      %vm1403 = vcmp.gt.f32.partialorder %v1027, 0.0
      %vm1404 = vcmp.gt.f32.partialorder %v1032, 0.0
      %vm1405 = vcmp.gt.f32.partialorder %v1035, 0.0
      %vm1406 = vcmp.gt.f32.partialorder %v1040, 0.0
      %vm1407 = vcmp.gt.f32.partialorder %v1043, 0.0
      %vm1408 = vcmp.gt.f32.partialorder %v1048, 0.0
      %vm1409 = vcmp.gt.f32.partialorder %v1051, 0.0
      %vm1410 = vcmp.gt.f32.partialorder %v1056, 0.0
      %vm1411 = vcmp.gt.f32.partialorder %v1059, 0.0
      %vm1412 = vcmp.gt.f32.partialorder %v1064, 0.0
      %vm1413 = vcmp.gt.f32.partialorder %v1067, 0.0
      %vm1414 = vcmp.gt.f32.partialorder %v1072, 0.0
      %vm1415 = vcmp.gt.f32.partialorder %v1075, 0.0
      %vm1416 = vcmp.gt.f32.partialorder %v1080, 0.0
      %vm1417 = vcmp.gt.f32.partialorder %v1083, 0.0
      %vm1418 = vcmp.gt.f32.partialorder %v1088, 0.0
      %vm1419 = vcmp.gt.f32.partialorder %v1091, 0.0
      %vm1420 = vcmp.gt.f32.partialorder %v1096, 0.0
      %vm1421 = vcmp.gt.f32.partialorder %v1099, 0.0
      %vm1422 = vcmp.gt.f32.partialorder %v1104, 0.0
      %vm1423 = vcmp.gt.f32.partialorder %v1107, 0.0
      %vm1424 = vcmp.gt.f32.partialorder %v1112, 0.0
      %vm1425 = vcmp.gt.f32.partialorder %v1115, 0.0
      %vm1426 = vcmp.gt.f32.partialorder %v1120, 0.0
      %vm1427 = vcmp.gt.f32.partialorder %v1123, 0.0
      %vm1428 = vcmp.gt.f32.partialorder %v1128, 0.0
      %vm1429 = vcmp.gt.f32.partialorder %v1131, 0.0
      %vm1430 = vcmp.gt.f32.partialorder %v1136, 0.0
      %vm1431 = vcmp.gt.f32.partialorder %v1139, 0.0
      %vm1432 = vcmp.gt.f32.partialorder %v1144, 0.0
      %vm1433 = vcmp.gt.f32.partialorder %v1147, 0.0
      %vm1434 = vcmp.gt.f32.partialorder %v1152, 0.0
      %vm1435 = vcmp.gt.f32.partialorder %v1155, 0.0
      %vm1436 = vcmp.gt.f32.partialorder %v1160, 0.0
      %vm1437 = vcmp.gt.f32.partialorder %v1163, 0.0
      %vm1438 = vcmp.gt.f32.partialorder %v1168, 0.0
      %vm1439 = vcmp.gt.f32.partialorder %v1171, 0.0
      %vm1440 = vcmp.gt.f32.partialorder %v1176, 0.0
      %vm1441 = vcmp.gt.f32.partialorder %v1179, 0.0
      %vm1442 = vcmp.gt.f32.partialorder %v1184, 0.0
      %vm1443 = vcmp.gt.f32.partialorder %v1187, 0.0
      %vm1444 = vcmp.gt.f32.partialorder %v1192, 0.0
      %vm1445 = vcmp.gt.f32.partialorder %v1195, 0.0
      %vm1446 = vcmp.gt.f32.partialorder %v1200, 0.0
      %vm1447 = vcmp.gt.f32.partialorder %v1203, 0.0
      %vm1448 = vcmp.gt.f32.partialorder %v1208, 0.0
      %vm1449 = vcmp.gt.f32.partialorder %v1211, 0.0
      %vm1450 = vcmp.gt.f32.partialorder %v1216, 0.0
      %vm1451 = vcmp.gt.f32.partialorder %v1219, 0.0
      %vm1452 = vcmp.gt.f32.partialorder %v1224, 0.0
      %vm1453 = vcmp.gt.f32.partialorder %v1227, 0.0
      %vm1454 = vcmp.gt.f32.partialorder %v1232, 0.0
      %vm1455 = vcmp.gt.f32.partialorder %v1235, 0.0
      %vm1456 = vcmp.gt.f32.partialorder %v1240, 0.0
      %vm1457 = vcmp.gt.f32.partialorder %v1243, 0.0
      %vm1458 = vcmp.gt.f32.partialorder %v1248, 0.0
      %vm1459 = vcmp.gt.f32.partialorder %v1251, 0.0
      %vm1460 = vcmp.gt.f32.partialorder %v1256, 0.0
      %vm1461 = vcmp.gt.f32.partialorder %v1259, 0.0
      %vm1462 = vcmp.gt.f32.partialorder %v1264, 0.0
      %vm1463 = vcmp.gt.f32.partialorder %v1267, 0.0
      %vm1464 = vcmp.gt.f32.partialorder %v1272, 0.0
      %vm1465 = vcmp.gt.f32.partialorder %v1275, 0.0
      %vm1466 = vcmp.gt.f32.partialorder %v1280, 0.0
      %vm1467 = vcmp.gt.f32.partialorder %v1283, 0.0
      %vm1468 = vcmp.gt.f32.partialorder %v1288, 0.0
      %vm1469 = vcmp.gt.f32.partialorder %v1291, 0.0
      %vm1470 = vcmp.gt.f32.partialorder %v1296, 0.0
      %vm1471 = vcmp.gt.f32.partialorder %v1299, 0.0
      %vm1472 = vcmp.gt.f32.partialorder %v1304, 0.0
      %vm1473 = vcmp.gt.f32.partialorder %v1307, 0.0
      %vm1474 = vcmp.gt.f32.partialorder %v1312, 0.0
      %vm1475 = vcmp.gt.f32.partialorder %v1315, 0.0
      %vm1476 = vcmp.gt.f32.partialorder %v1320, 0.0
      %vm1477 = vcmp.gt.f32.partialorder %v1323, 0.0
      %vm1478 = vcmp.gt.f32.partialorder %v1328, 0.0
      %vm1479 = vcmp.gt.f32.partialorder %v1331, 0.0
      %vm1480 = vcmp.gt.f32.partialorder %v1336, 0.0
      %vm1481 = vcmp.gt.f32.partialorder %v1339, 0.0
      %vm1482 = vcmp.gt.f32.partialorder %v1344, 0.0
      %vm1483 = vcmp.gt.f32.partialorder %v1347, 0.0
      %vm1484 = vcmp.gt.f32.partialorder %v1352, 0.0
      %vm1485 = vcmp.gt.f32.partialorder %v1355, 0.0
      %v1486 = vmul.f32 %v848, 0.2
      %v1487 = vmul.f32 %v851, 0.2
      %v1488 = vmul.f32 %v856, 0.2
      %v1489 = vmul.f32 %v859, 0.2
      %v1490 = vmul.f32 %v864, 0.2
      %v1491 = vmul.f32 %v867, 0.2
      %v1492 = vmul.f32 %v872, 0.2
      %v1493 = vmul.f32 %v875, 0.2
      %v1494 = vmul.f32 %v880, 0.2
      %v1495 = vmul.f32 %v883, 0.2
      %v1496 = vmul.f32 %v888, 0.2
      %v1497 = vmul.f32 %v891, 0.2
      %v1498 = vmul.f32 %v896, 0.2
      %v1499 = vmul.f32 %v899, 0.2
      %v1500 = vmul.f32 %v904, 0.2
      %v1501 = vmul.f32 %v907, 0.2
      %v1502 = vmul.f32 %v912, 0.2
      %v1503 = vmul.f32 %v915, 0.2
      %v1504 = vmul.f32 %v920, 0.2
      %v1505 = vmul.f32 %v923, 0.2
      %v1506 = vmul.f32 %v928, 0.2
      %v1507 = vmul.f32 %v931, 0.2
      %v1508 = vmul.f32 %v936, 0.2
      %v1509 = vmul.f32 %v939, 0.2
      %v1510 = vmul.f32 %v944, 0.2
      %v1511 = vmul.f32 %v947, 0.2
      %v1512 = vmul.f32 %v952, 0.2
      %v1513 = vmul.f32 %v955, 0.2
      %v1514 = vmul.f32 %v960, 0.2
      %v1515 = vmul.f32 %v963, 0.2
      %v1516 = vmul.f32 %v968, 0.2
      %v1517 = vmul.f32 %v971, 0.2
      %v1518 = vmul.f32 %v976, 0.2
      %v1519 = vmul.f32 %v979, 0.2
      %v1520 = vmul.f32 %v984, 0.2
      %v1521 = vmul.f32 %v987, 0.2
      %v1522 = vmul.f32 %v992, 0.2
      %v1523 = vmul.f32 %v995, 0.2
      %v1524 = vmul.f32 %v1000, 0.2
      %v1525 = vmul.f32 %v1003, 0.2
      %v1526 = vmul.f32 %v1008, 0.2
      %v1527 = vmul.f32 %v1011, 0.2
      %v1528 = vmul.f32 %v1016, 0.2
      %v1529 = vmul.f32 %v1019, 0.2
      %v1530 = vmul.f32 %v1024, 0.2
      %v1531 = vmul.f32 %v1027, 0.2
      %v1532 = vmul.f32 %v1032, 0.2
      %v1533 = vmul.f32 %v1035, 0.2
      %v1534 = vmul.f32 %v1040, 0.2
      %v1535 = vmul.f32 %v1043, 0.2
      %v1536 = vmul.f32 %v1048, 0.2
      %v1537 = vmul.f32 %v1051, 0.2
      %v1538 = vmul.f32 %v1056, 0.2
      %v1539 = vmul.f32 %v1059, 0.2
      %v1540 = vmul.f32 %v1064, 0.2
      %v1541 = vmul.f32 %v1067, 0.2
      %v1542 = vmul.f32 %v1072, 0.2
      %v1543 = vmul.f32 %v1075, 0.2
      %v1544 = vmul.f32 %v1080, 0.2
      %v1545 = vmul.f32 %v1083, 0.2
      %v1546 = vmul.f32 %v1088, 0.2
      %v1547 = vmul.f32 %v1091, 0.2
      %v1548 = vmul.f32 %v1096, 0.2
      %v1549 = vmul.f32 %v1099, 0.2
      %v1550 = vmul.f32 %v1104, 0.2
      %v1551 = vmul.f32 %v1107, 0.2
      %v1552 = vmul.f32 %v1112, 0.2
      %v1553 = vmul.f32 %v1115, 0.2
      %v1554 = vmul.f32 %v1120, 0.2
      %v1555 = vmul.f32 %v1123, 0.2
      %v1556 = vmul.f32 %v1128, 0.2
      %v1557 = vmul.f32 %v1131, 0.2
      %v1558 = vmul.f32 %v1136, 0.2
      %v1559 = vmul.f32 %v1139, 0.2
      %v1560 = vmul.f32 %v1144, 0.2
      %v1561 = vmul.f32 %v1147, 0.2
      %v1562 = vmul.f32 %v1152, 0.2
      %v1563 = vmul.f32 %v1155, 0.2
      %v1564 = vmul.f32 %v1160, 0.2
      %v1565 = vmul.f32 %v1163, 0.2
      %v1566 = vmul.f32 %v1168, 0.2
      %v1567 = vmul.f32 %v1171, 0.2
      %v1568 = vmul.f32 %v1176, 0.2
      %v1569 = vmul.f32 %v1179, 0.2
      %v1570 = vmul.f32 %v1184, 0.2
      %v1571 = vmul.f32 %v1187, 0.2
      %v1572 = vmul.f32 %v1192, 0.2
      %v1573 = vmul.f32 %v1195, 0.2
      %v1574 = vmul.f32 %v1200, 0.2
      %v1575 = vmul.f32 %v1203, 0.2
      %v1576 = vmul.f32 %v1208, 0.2
      %v1577 = vmul.f32 %v1211, 0.2
      %v1578 = vmul.f32 %v1216, 0.2
      %v1579 = vmul.f32 %v1219, 0.2
      %v1580 = vmul.f32 %v1224, 0.2
      %v1581 = vmul.f32 %v1227, 0.2
      %v1582 = vmul.f32 %v1232, 0.2
      %v1583 = vmul.f32 %v1235, 0.2
      %v1584 = vmul.f32 %v1240, 0.2
      %v1585 = vmul.f32 %v1243, 0.2
      %v1586 = vmul.f32 %v1248, 0.2
      %v1587 = vmul.f32 %v1251, 0.2
      %v1588 = vmul.f32 %v1256, 0.2
      %v1589 = vmul.f32 %v1259, 0.2
      %v1590 = vmul.f32 %v1264, 0.2
      %v1591 = vmul.f32 %v1267, 0.2
      %v1592 = vmul.f32 %v1272, 0.2
      %v1593 = vmul.f32 %v1275, 0.2
      %v1594 = vmul.f32 %v1280, 0.2
      %v1595 = vmul.f32 %v1283, 0.2
      %v1596 = vmul.f32 %v1288, 0.2
      %v1597 = vmul.f32 %v1291, 0.2
      %v1598 = vmul.f32 %v1296, 0.2
      %v1599 = vmul.f32 %v1299, 0.2
      %v1600 = vmul.f32 %v1304, 0.2
      %v1601 = vmul.f32 %v1307, 0.2
      %v1602 = vmul.f32 %v1312, 0.2
      %v1603 = vmul.f32 %v1315, 0.2
      %v1604 = vmul.f32 %v1320, 0.2
      %v1605 = vmul.f32 %v1323, 0.2
      %v1606 = vmul.f32 %v1328, 0.2
      %v1607 = vmul.f32 %v1331, 0.2
      %v1608 = vmul.f32 %v1336, 0.2
      %v1609 = vmul.f32 %v1339, 0.2
      %v1610 = vmul.f32 %v1344, 0.2
      %v1611 = vmul.f32 %v1347, 0.2
      %v1612 = vmul.f32 %v1352, 0.2
      %v1613 = vmul.f32 %v1355, 0.2
      %v1614 = vsel %vm1358, %v848, %v1486
      %v1615 = vsel %vm1359, %v851, %v1487
      %v1616 = vsel %vm1360, %v856, %v1488
      %v1617 = vsel %vm1361, %v859, %v1489
      %v1618 = vsel %vm1362, %v864, %v1490
      %v1619 = vsel %vm1363, %v867, %v1491
      %v1620 = vsel %vm1364, %v872, %v1492
      %v1621 = vsel %vm1365, %v875, %v1493
      %v1622 = vsel %vm1366, %v880, %v1494
      %v1623 = vsel %vm1367, %v883, %v1495
      %v1624 = vsel %vm1368, %v888, %v1496
      %v1625 = vsel %vm1369, %v891, %v1497
      %v1626 = vsel %vm1370, %v896, %v1498
      %v1627 = vsel %vm1371, %v899, %v1499
      %v1628 = vsel %vm1372, %v904, %v1500
      %v1629 = vsel %vm1373, %v907, %v1501
      %v1630 = vsel %vm1374, %v912, %v1502
      %v1631 = vsel %vm1375, %v915, %v1503
      %v1632 = vsel %vm1376, %v920, %v1504
      %v1633 = vsel %vm1377, %v923, %v1505
      %v1634 = vsel %vm1378, %v928, %v1506
      %v1635 = vsel %vm1379, %v931, %v1507
      %v1636 = vsel %vm1380, %v936, %v1508
      %v1637 = vsel %vm1381, %v939, %v1509
      %v1638 = vsel %vm1382, %v944, %v1510
      %v1639 = vsel %vm1383, %v947, %v1511
      %v1640 = vsel %vm1384, %v952, %v1512
      %v1641 = vsel %vm1385, %v955, %v1513
      %v1642 = vsel %vm1386, %v960, %v1514
      %v1643 = vsel %vm1387, %v963, %v1515
      %v1644 = vsel %vm1388, %v968, %v1516
      %v1645 = vsel %vm1389, %v971, %v1517
      %v1646 = vsel %vm1390, %v976, %v1518
      %v1647 = vsel %vm1391, %v979, %v1519
      %v1648 = vsel %vm1392, %v984, %v1520
      %v1649 = vsel %vm1393, %v987, %v1521
      %v1650 = vsel %vm1394, %v992, %v1522
      %v1651 = vsel %vm1395, %v995, %v1523
      %v1652 = vsel %vm1396, %v1000, %v1524
      %v1653 = vsel %vm1397, %v1003, %v1525
      %v1654 = vsel %vm1398, %v1008, %v1526
      %v1655 = vsel %vm1399, %v1011, %v1527
      %v1656 = vsel %vm1400, %v1016, %v1528
      %v1657 = vsel %vm1401, %v1019, %v1529
      %v1658 = vsel %vm1402, %v1024, %v1530
      %v1659 = vsel %vm1403, %v1027, %v1531
      %v1660 = vsel %vm1404, %v1032, %v1532
      %v1661 = vsel %vm1405, %v1035, %v1533
      %v1662 = vsel %vm1406, %v1040, %v1534
      %v1663 = vsel %vm1407, %v1043, %v1535
      %v1664 = vsel %vm1408, %v1048, %v1536
      %v1665 = vsel %vm1409, %v1051, %v1537
      %v1666 = vsel %vm1410, %v1056, %v1538
      %v1667 = vsel %vm1411, %v1059, %v1539
      %v1668 = vsel %vm1412, %v1064, %v1540
      %v1669 = vsel %vm1413, %v1067, %v1541
      %v1670 = vsel %vm1414, %v1072, %v1542
      %v1671 = vsel %vm1415, %v1075, %v1543
      %v1672 = vsel %vm1416, %v1080, %v1544
      %v1673 = vsel %vm1417, %v1083, %v1545
      %v1674 = vsel %vm1418, %v1088, %v1546
      %v1675 = vsel %vm1419, %v1091, %v1547
      %v1676 = vsel %vm1420, %v1096, %v1548
      %v1677 = vsel %vm1421, %v1099, %v1549
      %v1678 = vsel %vm1422, %v1104, %v1550
      %v1679 = vsel %vm1423, %v1107, %v1551
      %v1680 = vsel %vm1424, %v1112, %v1552
      %v1681 = vsel %vm1425, %v1115, %v1553
      %v1682 = vsel %vm1426, %v1120, %v1554
      %v1683 = vsel %vm1427, %v1123, %v1555
      %v1684 = vsel %vm1428, %v1128, %v1556
      %v1685 = vsel %vm1429, %v1131, %v1557
      %v1686 = vsel %vm1430, %v1136, %v1558
      %v1687 = vsel %vm1431, %v1139, %v1559
      %v1688 = vsel %vm1432, %v1144, %v1560
      %v1689 = vsel %vm1433, %v1147, %v1561
      %v1690 = vsel %vm1434, %v1152, %v1562
      %v1691 = vsel %vm1435, %v1155, %v1563
      %v1692 = vsel %vm1436, %v1160, %v1564
      %v1693 = vsel %vm1437, %v1163, %v1565
      %v1694 = vsel %vm1438, %v1168, %v1566
      %v1695 = vsel %vm1439, %v1171, %v1567
      %v1696 = vsel %vm1440, %v1176, %v1568
      %v1697 = vsel %vm1441, %v1179, %v1569
      %v1698 = vsel %vm1442, %v1184, %v1570
      %v1699 = vsel %vm1443, %v1187, %v1571
      %v1700 = vsel %vm1444, %v1192, %v1572
      %v1701 = vsel %vm1445, %v1195, %v1573
      %v1702 = vsel %vm1446, %v1200, %v1574
      %v1703 = vsel %vm1447, %v1203, %v1575
      %v1704 = vsel %vm1448, %v1208, %v1576
      %v1705 = vsel %vm1449, %v1211, %v1577
      %v1706 = vsel %vm1450, %v1216, %v1578
      %v1707 = vsel %vm1451, %v1219, %v1579
      %v1708 = vsel %vm1452, %v1224, %v1580
      %v1709 = vsel %vm1453, %v1227, %v1581
      %v1710 = vsel %vm1454, %v1232, %v1582
      %v1711 = vsel %vm1455, %v1235, %v1583
      %v1712 = vsel %vm1456, %v1240, %v1584
      %v1713 = vsel %vm1457, %v1243, %v1585
      %v1714 = vsel %vm1458, %v1248, %v1586
      %v1715 = vsel %vm1459, %v1251, %v1587
      %v1716 = vsel %vm1460, %v1256, %v1588
      %v1717 = vsel %vm1461, %v1259, %v1589
      %v1718 = vsel %vm1462, %v1264, %v1590
      %v1719 = vsel %vm1463, %v1267, %v1591
      %v1720 = vsel %vm1464, %v1272, %v1592
      %v1721 = vsel %vm1465, %v1275, %v1593
      %v1722 = vsel %vm1466, %v1280, %v1594
      %v1723 = vsel %vm1467, %v1283, %v1595
      %v1724 = vsel %vm1468, %v1288, %v1596
      %v1725 = vsel %vm1469, %v1291, %v1597
      %v1726 = vsel %vm1470, %v1296, %v1598
      %v1727 = vsel %vm1471, %v1299, %v1599
      %v1728 = vsel %vm1472, %v1304, %v1600
      %v1729 = vsel %vm1473, %v1307, %v1601
      %v1730 = vsel %vm1474, %v1312, %v1602
      %v1731 = vsel %vm1475, %v1315, %v1603
      %v1732 = vsel %vm1476, %v1320, %v1604
      %v1733 = vsel %vm1477, %v1323, %v1605
      %v1734 = vsel %vm1478, %v1328, %v1606
      %v1735 = vsel %vm1479, %v1331, %v1607
      %v1736 = vsel %vm1480, %v1336, %v1608
      %v1737 = vsel %vm1481, %v1339, %v1609
      %v1738 = vsel %vm1482, %v1344, %v1610
      %v1739 = vsel %vm1483, %v1347, %v1611
      %v1740 = vsel %vm1484, %v1352, %v1612
      %v1741 = vsel %vm1485, %v1355, %v1613
      %v1742 = vpack.c.bf16 %v1615, %v1614
      %v1743 = vpack.c.bf16 %v1617, %v1616
      %v1744 = vpack.c.bf16 %v1619, %v1618
      %v1745 = vpack.c.bf16 %v1621, %v1620
      %v1746 = vpack.c.bf16 %v1623, %v1622
      %v1747 = vpack.c.bf16 %v1625, %v1624
      %v1748 = vpack.c.bf16 %v1627, %v1626
      %v1749 = vpack.c.bf16 %v1629, %v1628
      %v1750 = vpack.c.bf16 %v1631, %v1630
      %v1751 = vpack.c.bf16 %v1633, %v1632
      %v1752 = vpack.c.bf16 %v1635, %v1634
      %v1753 = vpack.c.bf16 %v1637, %v1636
      %v1754 = vpack.c.bf16 %v1639, %v1638
      %v1755 = vpack.c.bf16 %v1641, %v1640
      %v1756 = vpack.c.bf16 %v1643, %v1642
      %v1757 = vpack.c.bf16 %v1645, %v1644
      %v1758 = vpack.c.bf16 %v1647, %v1646
      %v1759 = vpack.c.bf16 %v1649, %v1648
      %v1760 = vpack.c.bf16 %v1651, %v1650
      %v1761 = vpack.c.bf16 %v1653, %v1652
      %v1762 = vpack.c.bf16 %v1655, %v1654
      %v1763 = vpack.c.bf16 %v1657, %v1656
      %v1764 = vpack.c.bf16 %v1659, %v1658
      %v1765 = vpack.c.bf16 %v1661, %v1660
      %v1766 = vpack.c.bf16 %v1663, %v1662
      %v1767 = vpack.c.bf16 %v1665, %v1664
      %v1768 = vpack.c.bf16 %v1667, %v1666
      %v1769 = vpack.c.bf16 %v1669, %v1668
      %v1770 = vpack.c.bf16 %v1671, %v1670
      %v1771 = vpack.c.bf16 %v1673, %v1672
      %v1772 = vpack.c.bf16 %v1675, %v1674
      %v1773 = vpack.c.bf16 %v1677, %v1676
      %v1774 = vpack.c.bf16 %v1679, %v1678
      %v1775 = vpack.c.bf16 %v1681, %v1680
      %v1776 = vpack.c.bf16 %v1683, %v1682
      %v1777 = vpack.c.bf16 %v1685, %v1684
      %v1778 = vpack.c.bf16 %v1687, %v1686
      %v1779 = vpack.c.bf16 %v1689, %v1688
      %v1780 = vpack.c.bf16 %v1691, %v1690
      %v1781 = vpack.c.bf16 %v1693, %v1692
      %v1782 = vpack.c.bf16 %v1695, %v1694
      %v1783 = vpack.c.bf16 %v1697, %v1696
      %v1784 = vpack.c.bf16 %v1699, %v1698
      %v1785 = vpack.c.bf16 %v1701, %v1700
      %v1786 = vpack.c.bf16 %v1703, %v1702
      %v1787 = vpack.c.bf16 %v1705, %v1704
      %v1788 = vpack.c.bf16 %v1707, %v1706
      %v1789 = vpack.c.bf16 %v1709, %v1708
      %v1790 = vpack.c.bf16 %v1711, %v1710
      %v1791 = vpack.c.bf16 %v1713, %v1712
      %v1792 = vpack.c.bf16 %v1715, %v1714
      %v1793 = vpack.c.bf16 %v1717, %v1716
      %v1794 = vpack.c.bf16 %v1719, %v1718
      %v1795 = vpack.c.bf16 %v1721, %v1720
      %v1796 = vpack.c.bf16 %v1723, %v1722
      %v1797 = vpack.c.bf16 %v1725, %v1724
      %v1798 = vpack.c.bf16 %v1727, %v1726
      %v1799 = vpack.c.bf16 %v1729, %v1728
      %v1800 = vpack.c.bf16 %v1731, %v1730
      %v1801 = vpack.c.bf16 %v1733, %v1732
      %v1802 = vpack.c.bf16 %v1735, %v1734
      %v1803 = vpack.c.bf16 %v1737, %v1736
      %v1804 = vpack.c.bf16 %v1739, %v1738
      %v1805 = vpack.c.bf16 %v1741, %v1740
      %v1870 = vunpack.c.l.b16 %v1742
      %v1871 = vunpack.c.h.b16 %v1742
      %v1872 = vunpack.c.l.b16 %v1743
      %v1873 = vunpack.c.h.b16 %v1743
      %v1874 = vunpack.c.l.b16 %v1744
      %v1875 = vunpack.c.h.b16 %v1744
      %v1876 = vunpack.c.l.b16 %v1745
      %v1877 = vunpack.c.h.b16 %v1745
      %v1878 = vunpack.c.l.b16 %v1746
      %v1879 = vunpack.c.h.b16 %v1746
      %v1880 = vunpack.c.l.b16 %v1747
      %v1881 = vunpack.c.h.b16 %v1747
      %v1882 = vunpack.c.l.b16 %v1748
      %v1883 = vunpack.c.h.b16 %v1748
      %v1884 = vunpack.c.l.b16 %v1749
      %v1885 = vunpack.c.h.b16 %v1749
      %v1886 = vunpack.c.l.b16 %v1750
      %v1887 = vunpack.c.h.b16 %v1750
      %v1888 = vunpack.c.l.b16 %v1751
      %v1889 = vunpack.c.h.b16 %v1751
      %v1890 = vunpack.c.l.b16 %v1752
      %v1891 = vunpack.c.h.b16 %v1752
      %v1892 = vunpack.c.l.b16 %v1753
      %v1893 = vunpack.c.h.b16 %v1753
      %v1894 = vunpack.c.l.b16 %v1754
      %v1895 = vunpack.c.h.b16 %v1754
      %v1896 = vunpack.c.l.b16 %v1755
      %v1897 = vunpack.c.h.b16 %v1755
      %v1898 = vunpack.c.l.b16 %v1756
      %v1899 = vunpack.c.h.b16 %v1756
      %v1900 = vunpack.c.l.b16 %v1757
      %v1901 = vunpack.c.h.b16 %v1757
      %v1902 = vunpack.c.l.b16 %v1758
      %v1903 = vunpack.c.h.b16 %v1758
      %v1904 = vunpack.c.l.b16 %v1759
      %v1905 = vunpack.c.h.b16 %v1759
      %v1906 = vunpack.c.l.b16 %v1760
      %v1907 = vunpack.c.h.b16 %v1760
      %v1908 = vunpack.c.l.b16 %v1761
      %v1909 = vunpack.c.h.b16 %v1761
      %v1910 = vunpack.c.l.b16 %v1762
      %v1911 = vunpack.c.h.b16 %v1762
      %v1912 = vunpack.c.l.b16 %v1763
      %v1913 = vunpack.c.h.b16 %v1763
      %v1914 = vunpack.c.l.b16 %v1764
      %v1915 = vunpack.c.h.b16 %v1764
      %v1916 = vunpack.c.l.b16 %v1765
      %v1917 = vunpack.c.h.b16 %v1765
      %v1918 = vunpack.c.l.b16 %v1766
      %v1919 = vunpack.c.h.b16 %v1766
      %v1920 = vunpack.c.l.b16 %v1767
      %v1921 = vunpack.c.h.b16 %v1767
      %v1922 = vunpack.c.l.b16 %v1768
      %v1923 = vunpack.c.h.b16 %v1768
      %v1924 = vunpack.c.l.b16 %v1769
      %v1925 = vunpack.c.h.b16 %v1769
      %v1926 = vunpack.c.l.b16 %v1770
      %v1927 = vunpack.c.h.b16 %v1770
      %v1928 = vunpack.c.l.b16 %v1771
      %v1929 = vunpack.c.h.b16 %v1771
      %v1930 = vunpack.c.l.b16 %v1772
      %v1931 = vunpack.c.h.b16 %v1772
      %v1932 = vunpack.c.l.b16 %v1773
      %v1933 = vunpack.c.h.b16 %v1773
      %v1934 = vunpack.c.l.b16 %v1774
      %v1935 = vunpack.c.h.b16 %v1774
      %v1936 = vunpack.c.l.b16 %v1775
      %v1937 = vunpack.c.h.b16 %v1775
      %v1938 = vunpack.c.l.b16 %v1776
      %v1939 = vunpack.c.h.b16 %v1776
      %v1940 = vunpack.c.l.b16 %v1777
      %v1941 = vunpack.c.h.b16 %v1777
      %v1942 = vunpack.c.l.b16 %v1778
      %v1943 = vunpack.c.h.b16 %v1778
      %v1944 = vunpack.c.l.b16 %v1779
      %v1945 = vunpack.c.h.b16 %v1779
      %v1946 = vunpack.c.l.b16 %v1780
      %v1947 = vunpack.c.h.b16 %v1780
      %v1948 = vunpack.c.l.b16 %v1781
      %v1949 = vunpack.c.h.b16 %v1781
      %v1950 = vunpack.c.l.b16 %v1782
      %v1951 = vunpack.c.h.b16 %v1782
      %v1952 = vunpack.c.l.b16 %v1783
      %v1953 = vunpack.c.h.b16 %v1783
      %v1954 = vunpack.c.l.b16 %v1784
      %v1955 = vunpack.c.h.b16 %v1784
      %v1956 = vunpack.c.l.b16 %v1785
      %v1957 = vunpack.c.h.b16 %v1785
      %v1958 = vunpack.c.l.b16 %v1786
      %v1959 = vunpack.c.h.b16 %v1786
      %v1960 = vunpack.c.l.b16 %v1787
      %v1961 = vunpack.c.h.b16 %v1787
      %v1962 = vunpack.c.l.b16 %v1788
      %v1963 = vunpack.c.h.b16 %v1788
      %v1964 = vunpack.c.l.b16 %v1789
      %v1965 = vunpack.c.h.b16 %v1789
      %v1966 = vunpack.c.l.b16 %v1790
      %v1967 = vunpack.c.h.b16 %v1790
      %v1968 = vunpack.c.l.b16 %v1791
      %v1969 = vunpack.c.h.b16 %v1791
      %v1970 = vunpack.c.l.b16 %v1792
      %v1971 = vunpack.c.h.b16 %v1792
      %v1972 = vunpack.c.l.b16 %v1793
      %v1973 = vunpack.c.h.b16 %v1793
      %v1974 = vunpack.c.l.b16 %v1794
      %v1975 = vunpack.c.h.b16 %v1794
      %v1976 = vunpack.c.l.b16 %v1795
      %v1977 = vunpack.c.h.b16 %v1795
      %v1978 = vunpack.c.l.b16 %v1796
      %v1979 = vunpack.c.h.b16 %v1796
      %v1980 = vunpack.c.l.b16 %v1797
      %v1981 = vunpack.c.h.b16 %v1797
      %v1982 = vunpack.c.l.b16 %v1798
      %v1983 = vunpack.c.h.b16 %v1798
      %v1984 = vunpack.c.l.b16 %v1799
      %v1985 = vunpack.c.h.b16 %v1799
      %v1986 = vunpack.c.l.b16 %v1800
      %v1987 = vunpack.c.h.b16 %v1800
      %v1988 = vunpack.c.l.b16 %v1801
      %v1989 = vunpack.c.h.b16 %v1801
      %v1990 = vunpack.c.l.b16 %v1802
      %v1991 = vunpack.c.h.b16 %v1802
      %v1992 = vunpack.c.l.b16 %v1803
      %v1993 = vunpack.c.h.b16 %v1803
      %v1994 = vunpack.c.l.b16 %v1804
      %v1995 = vunpack.c.h.b16 %v1804
      %v1996 = vunpack.c.l.b16 %v1805
      %v1997 = vunpack.c.h.b16 %v1805
      %v1998 = vpack.c.b16 %v1870, %v1870
      %v1999 = vpack.c.b16 %v1871, %v1871
      %v2000 = vpack.c.b16 %v1872, %v1872
      %v2001 = vpack.c.b16 %v1873, %v1873
      %v2002 = vpack.c.b16 %v1874, %v1874
      %v2003 = vpack.c.b16 %v1875, %v1875
      %v2004 = vpack.c.b16 %v1876, %v1876
      %v2005 = vpack.c.b16 %v1877, %v1877
      %v2006 = vpack.c.b16 %v1878, %v1878
      %v2007 = vpack.c.b16 %v1879, %v1879
      %v2008 = vpack.c.b16 %v1880, %v1880
      %v2009 = vpack.c.b16 %v1881, %v1881
      %v2010 = vpack.c.b16 %v1882, %v1882
      %v2011 = vpack.c.b16 %v1883, %v1883
      %v2012 = vpack.c.b16 %v1884, %v1884
      %v2013 = vpack.c.b16 %v1885, %v1885
      %v2014 = vpack.c.b16 %v1886, %v1886
      %v2015 = vpack.c.b16 %v1887, %v1887
      %v2016 = vpack.c.b16 %v1888, %v1888
      %v2017 = vpack.c.b16 %v1889, %v1889
      %v2018 = vpack.c.b16 %v1890, %v1890
      %v2019 = vpack.c.b16 %v1891, %v1891
      %v2020 = vpack.c.b16 %v1892, %v1892
      %v2021 = vpack.c.b16 %v1893, %v1893
      %v2022 = vpack.c.b16 %v1894, %v1894
      %v2023 = vpack.c.b16 %v1895, %v1895
      %v2024 = vpack.c.b16 %v1896, %v1896
      %v2025 = vpack.c.b16 %v1897, %v1897
      %v2026 = vpack.c.b16 %v1898, %v1898
      %v2027 = vpack.c.b16 %v1899, %v1899
      %v2028 = vpack.c.b16 %v1900, %v1900
      %v2029 = vpack.c.b16 %v1901, %v1901
      %v2030 = vpack.c.b16 %v1902, %v1902
      %v2031 = vpack.c.b16 %v1903, %v1903
      %v2032 = vpack.c.b16 %v1904, %v1904
      %v2033 = vpack.c.b16 %v1905, %v1905
      %v2034 = vpack.c.b16 %v1906, %v1906
      %v2035 = vpack.c.b16 %v1907, %v1907
      %v2036 = vpack.c.b16 %v1908, %v1908
      %v2037 = vpack.c.b16 %v1909, %v1909
      %v2038 = vpack.c.b16 %v1910, %v1910
      %v2039 = vpack.c.b16 %v1911, %v1911
      %v2040 = vpack.c.b16 %v1912, %v1912
      %v2041 = vpack.c.b16 %v1913, %v1913
      %v2042 = vpack.c.b16 %v1914, %v1914
      %v2043 = vpack.c.b16 %v1915, %v1915
      %v2044 = vpack.c.b16 %v1916, %v1916
      %v2045 = vpack.c.b16 %v1917, %v1917
      %v2046 = vpack.c.b16 %v1918, %v1918
      %v2047 = vpack.c.b16 %v1919, %v1919
      %v2048 = vpack.c.b16 %v1920, %v1920
      %v2049 = vpack.c.b16 %v1921, %v1921
      %v2050 = vpack.c.b16 %v1922, %v1922
      %v2051 = vpack.c.b16 %v1923, %v1923
      %v2052 = vpack.c.b16 %v1924, %v1924
      %v2053 = vpack.c.b16 %v1925, %v1925
      %v2054 = vpack.c.b16 %v1926, %v1926
      %v2055 = vpack.c.b16 %v1927, %v1927
      %v2056 = vpack.c.b16 %v1928, %v1928
      %v2057 = vpack.c.b16 %v1929, %v1929
      %v2058 = vpack.c.b16 %v1930, %v1930
      %v2059 = vpack.c.b16 %v1931, %v1931
      %v2060 = vpack.c.b16 %v1932, %v1932
      %v2061 = vpack.c.b16 %v1933, %v1933
      %v2062 = vpack.c.b16 %v1934, %v1934
      %v2063 = vpack.c.b16 %v1935, %v1935
      %v2064 = vpack.c.b16 %v1936, %v1936
      %v2065 = vpack.c.b16 %v1937, %v1937
      %v2066 = vpack.c.b16 %v1938, %v1938
      %v2067 = vpack.c.b16 %v1939, %v1939
      %v2068 = vpack.c.b16 %v1940, %v1940
      %v2069 = vpack.c.b16 %v1941, %v1941
      %v2070 = vpack.c.b16 %v1942, %v1942
      %v2071 = vpack.c.b16 %v1943, %v1943
      %v2072 = vpack.c.b16 %v1944, %v1944
      %v2073 = vpack.c.b16 %v1945, %v1945
      %v2074 = vpack.c.b16 %v1946, %v1946
      %v2075 = vpack.c.b16 %v1947, %v1947
      %v2076 = vpack.c.b16 %v1948, %v1948
      %v2077 = vpack.c.b16 %v1949, %v1949
      %v2078 = vpack.c.b16 %v1950, %v1950
      %v2079 = vpack.c.b16 %v1951, %v1951
      %v2080 = vpack.c.b16 %v1952, %v1952
      %v2081 = vpack.c.b16 %v1953, %v1953
      %v2082 = vpack.c.b16 %v1954, %v1954
      %v2083 = vpack.c.b16 %v1955, %v1955
      %v2084 = vpack.c.b16 %v1956, %v1956
      %v2085 = vpack.c.b16 %v1957, %v1957
      %v2086 = vpack.c.b16 %v1958, %v1958
      %v2087 = vpack.c.b16 %v1959, %v1959
      %v2088 = vpack.c.b16 %v1960, %v1960
      %v2089 = vpack.c.b16 %v1961, %v1961
      %v2090 = vpack.c.b16 %v1962, %v1962
      %v2091 = vpack.c.b16 %v1963, %v1963
      %v2092 = vpack.c.b16 %v1964, %v1964
      %v2093 = vpack.c.b16 %v1965, %v1965
      %v2094 = vpack.c.b16 %v1966, %v1966
      %v2095 = vpack.c.b16 %v1967, %v1967
      %v2096 = vpack.c.b16 %v1968, %v1968
      %v2097 = vpack.c.b16 %v1969, %v1969
      %v2098 = vpack.c.b16 %v1970, %v1970
      %v2099 = vpack.c.b16 %v1971, %v1971
      %v2100 = vpack.c.b16 %v1972, %v1972
      %v2101 = vpack.c.b16 %v1973, %v1973
      %v2102 = vpack.c.b16 %v1974, %v1974
      %v2103 = vpack.c.b16 %v1975, %v1975
      %v2104 = vpack.c.b16 %v1976, %v1976
      %v2105 = vpack.c.b16 %v1977, %v1977
      %v2106 = vpack.c.b16 %v1978, %v1978
      %v2107 = vpack.c.b16 %v1979, %v1979
      %v2108 = vpack.c.b16 %v1980, %v1980
      %v2109 = vpack.c.b16 %v1981, %v1981
      %v2110 = vpack.c.b16 %v1982, %v1982
      %v2111 = vpack.c.b16 %v1983, %v1983
      %v2112 = vpack.c.b16 %v1984, %v1984
      %v2113 = vpack.c.b16 %v1985, %v1985
      %v2114 = vpack.c.b16 %v1986, %v1986
      %v2115 = vpack.c.b16 %v1987, %v1987
      %v2116 = vpack.c.b16 %v1988, %v1988
      %v2117 = vpack.c.b16 %v1989, %v1989
      %v2118 = vpack.c.b16 %v1990, %v1990
      %v2119 = vpack.c.b16 %v1991, %v1991
      %v2120 = vpack.c.b16 %v1992, %v1992
      %v2121 = vpack.c.b16 %v1993, %v1993
      %v2122 = vpack.c.b16 %v1994, %v1994
      %v2123 = vpack.c.b16 %v1995, %v1995
      %v2124 = vpack.c.b16 %v1996, %v1996
      %v2125 = vpack.c.b16 %v1997, %v1997
      %2254 = vst [vmem:[%s145] sm:$0xf] %v1998
      %2255 = vst [vmem:[%s145 + $0x4] sm:$0xf] %v1999
      %2256 = vst [vmem:[%s145 + $0x8] sm:$0xf] %v2000
      %2257 = vst [vmem:[%s145 + $0xc] sm:$0xf] %v2001
      %2258 = vst [vmem:[%s145 + $0x10] sm:$0xf] %v2002
      %2259 = vst [vmem:[%s145 + $0x14] sm:$0xf] %v2003
      %2260 = vst [vmem:[%s145 + $0x18] sm:$0xf] %v2004
      %2261 = vst [vmem:[%s145 + $0x1c] sm:$0xf] %v2005
      %2262 = vst [vmem:[%s145 + $0x20] sm:$0xf] %v2006
      %2263 = vst [vmem:[%s145 + $0x24] sm:$0xf] %v2007
      %2264 = vst [vmem:[%s145 + $0x28] sm:$0xf] %v2008
      %2265 = vst [vmem:[%s145 + $0x2c] sm:$0xf] %v2009
      %2266 = vst [vmem:[%s145 + $0x30] sm:$0xf] %v2010
      %2267 = vst [vmem:[%s145 + $0x34] sm:$0xf] %v2011
      %2268 = vst [vmem:[%s145 + $0x38] sm:$0xf] %v2012
      %2269 = vst [vmem:[%s145 + $0x3c] sm:$0xf] %v2013
      %2270 = vst [vmem:[%s145 + $0x40] sm:$0xf] %v2014
      %2271 = vst [vmem:[%s145 + $0x44] sm:$0xf] %v2015
      %2272 = vst [vmem:[%s145 + $0x48] sm:$0xf] %v2016
      %2273 = vst [vmem:[%s145 + $0x4c] sm:$0xf] %v2017
      %2274 = vst [vmem:[%s145 + $0x50] sm:$0xf] %v2018
      %2275 = vst [vmem:[%s145 + $0x54] sm:$0xf] %v2019
      %2276 = vst [vmem:[%s145 + $0x58] sm:$0xf] %v2020
      %2277 = vst [vmem:[%s145 + $0x5c] sm:$0xf] %v2021
      %2278 = vst [vmem:[%s145 + $0x60] sm:$0xf] %v2022
      %2279 = vst [vmem:[%s145 + $0x64] sm:$0xf] %v2023
      %2280 = vst [vmem:[%s145 + $0x68] sm:$0xf] %v2024
      %2281 = vst [vmem:[%s145 + $0x6c] sm:$0xf] %v2025
      %2282 = vst [vmem:[%s145 + $0x70] sm:$0xf] %v2026
      %2283 = vst [vmem:[%s145 + $0x74] sm:$0xf] %v2027
      %2284 = vst [vmem:[%s145 + $0x78] sm:$0xf] %v2028
      %2285 = vst [vmem:[%s145 + $0x7c] sm:$0xf] %v2029
      %2286 = vst [vmem:[%s145 + $0x80] sm:$0xf] %v2030
      %2287 = vst [vmem:[%s145 + $0x84] sm:$0xf] %v2031
      %2288 = vst [vmem:[%s145 + $0x88] sm:$0xf] %v2032
      %2289 = vst [vmem:[%s145 + $0x8c] sm:$0xf] %v2033
      %2290 = vst [vmem:[%s145 + $0x90] sm:$0xf] %v2034
      %2291 = vst [vmem:[%s145 + $0x94] sm:$0xf] %v2035
      %2292 = vst [vmem:[%s145 + $0x98] sm:$0xf] %v2036
      %2293 = vst [vmem:[%s145 + $0x9c] sm:$0xf] %v2037
      %2294 = vst [vmem:[%s145 + $0xa0] sm:$0xf] %v2038
      %2295 = vst [vmem:[%s145 + $0xa4] sm:$0xf] %v2039
      %2296 = vst [vmem:[%s145 + $0xa8] sm:$0xf] %v2040
      %2297 = vst [vmem:[%s145 + $0xac] sm:$0xf] %v2041
      %2298 = vst [vmem:[%s145 + $0xb0] sm:$0xf] %v2042
      %2299 = vst [vmem:[%s145 + $0xb4] sm:$0xf] %v2043
      %2300 = vst [vmem:[%s145 + $0xb8] sm:$0xf] %v2044
      %2301 = vst [vmem:[%s145 + $0xbc] sm:$0xf] %v2045
      %2302 = vst [vmem:[%s145 + $0xc0] sm:$0xf] %v2046
      %2303 = vst [vmem:[%s145 + $0xc4] sm:$0xf] %v2047
      %2304 = vst [vmem:[%s145 + $0xc8] sm:$0xf] %v2048
      %2305 = vst [vmem:[%s145 + $0xcc] sm:$0xf] %v2049
      %2306 = vst [vmem:[%s145 + $0xd0] sm:$0xf] %v2050
      %2307 = vst [vmem:[%s145 + $0xd4] sm:$0xf] %v2051
      %2308 = vst [vmem:[%s145 + $0xd8] sm:$0xf] %v2052
      %2309 = vst [vmem:[%s145 + $0xdc] sm:$0xf] %v2053
      %2310 = vst [vmem:[%s145 + $0xe0] sm:$0xf] %v2054
      %2311 = vst [vmem:[%s145 + $0xe4] sm:$0xf] %v2055
      %2312 = vst [vmem:[%s145 + $0xe8] sm:$0xf] %v2056
      %2313 = vst [vmem:[%s145 + $0xec] sm:$0xf] %v2057
      %2314 = vst [vmem:[%s145 + $0xf0] sm:$0xf] %v2058
      %2315 = vst [vmem:[%s145 + $0xf4] sm:$0xf] %v2059
      %2316 = vst [vmem:[%s145 + $0xf8] sm:$0xf] %v2060
      %2317 = vst [vmem:[%s145 + $0xfc] sm:$0xf] %v2061
      %2318 = vst [vmem:[%s145 + $0x100] sm:$0xf] %v2062
      %2319 = vst [vmem:[%s145 + $0x104] sm:$0xf] %v2063
      %2320 = vst [vmem:[%s145 + $0x108] sm:$0xf] %v2064
      %2321 = vst [vmem:[%s145 + $0x10c] sm:$0xf] %v2065
      %2322 = vst [vmem:[%s145 + $0x110] sm:$0xf] %v2066
      %2323 = vst [vmem:[%s145 + $0x114] sm:$0xf] %v2067
      %2324 = vst [vmem:[%s145 + $0x118] sm:$0xf] %v2068
      %2325 = vst [vmem:[%s145 + $0x11c] sm:$0xf] %v2069
      %2326 = vst [vmem:[%s145 + $0x120] sm:$0xf] %v2070
      %2327 = vst [vmem:[%s145 + $0x124] sm:$0xf] %v2071
      %2328 = vst [vmem:[%s145 + $0x128] sm:$0xf] %v2072
      %2329 = vst [vmem:[%s145 + $0x12c] sm:$0xf] %v2073
      %2330 = vst [vmem:[%s145 + $0x130] sm:$0xf] %v2074
      %2331 = vst [vmem:[%s145 + $0x134] sm:$0xf] %v2075
      %2332 = vst [vmem:[%s145 + $0x138] sm:$0xf] %v2076
      %2333 = vst [vmem:[%s145 + $0x13c] sm:$0xf] %v2077
      %2334 = vst [vmem:[%s145 + $0x140] sm:$0xf] %v2078
      %2335 = vst [vmem:[%s145 + $0x144] sm:$0xf] %v2079
      %2336 = vst [vmem:[%s145 + $0x148] sm:$0xf] %v2080
      %2337 = vst [vmem:[%s145 + $0x14c] sm:$0xf] %v2081
      %2338 = vst [vmem:[%s145 + $0x150] sm:$0xf] %v2082
      %2339 = vst [vmem:[%s145 + $0x154] sm:$0xf] %v2083
      %2340 = vst [vmem:[%s145 + $0x158] sm:$0xf] %v2084
      %2341 = vst [vmem:[%s145 + $0x15c] sm:$0xf] %v2085
      %2342 = vst [vmem:[%s145 + $0x160] sm:$0xf] %v2086
      %2343 = vst [vmem:[%s145 + $0x164] sm:$0xf] %v2087
      %2344 = vst [vmem:[%s145 + $0x168] sm:$0xf] %v2088
      %2345 = vst [vmem:[%s145 + $0x16c] sm:$0xf] %v2089
      %2346 = vst [vmem:[%s145 + $0x170] sm:$0xf] %v2090
      %2347 = vst [vmem:[%s145 + $0x174] sm:$0xf] %v2091
      %2348 = vst [vmem:[%s145 + $0x178] sm:$0xf] %v2092
      %2349 = vst [vmem:[%s145 + $0x17c] sm:$0xf] %v2093
      %2350 = vst [vmem:[%s145 + $0x180] sm:$0xf] %v2094
      %2351 = vst [vmem:[%s145 + $0x184] sm:$0xf] %v2095
      %2352 = vst [vmem:[%s145 + $0x188] sm:$0xf] %v2096
      %2353 = vst [vmem:[%s145 + $0x18c] sm:$0xf] %v2097
      %2354 = vst [vmem:[%s145 + $0x190] sm:$0xf] %v2098
      %2355 = vst [vmem:[%s145 + $0x194] sm:$0xf] %v2099
      %2356 = vst [vmem:[%s145 + $0x198] sm:$0xf] %v2100
      %2357 = vst [vmem:[%s145 + $0x19c] sm:$0xf] %v2101
      %2358 = vst [vmem:[%s145 + $0x1a0] sm:$0xf] %v2102
      %2359 = vst [vmem:[%s145 + $0x1a4] sm:$0xf] %v2103
      %2360 = vst [vmem:[%s145 + $0x1a8] sm:$0xf] %v2104
      %2361 = vst [vmem:[%s145 + $0x1ac] sm:$0xf] %v2105
      %2362 = vst [vmem:[%s145 + $0x1b0] sm:$0xf] %v2106
      %2363 = vst [vmem:[%s145 + $0x1b4] sm:$0xf] %v2107
      %2364 = vst [vmem:[%s145 + $0x1b8] sm:$0xf] %v2108
      %2365 = vst [vmem:[%s145 + $0x1bc] sm:$0xf] %v2109
      %2366 = vst [vmem:[%s145 + $0x1c0] sm:$0xf] %v2110
      %2367 = vst [vmem:[%s145 + $0x1c4] sm:$0xf] %v2111
      %2368 = vst [vmem:[%s145 + $0x1c8] sm:$0xf] %v2112
      %2369 = vst [vmem:[%s145 + $0x1cc] sm:$0xf] %v2113
      %2370 = vst [vmem:[%s145 + $0x1d0] sm:$0xf] %v2114
      %2371 = vst [vmem:[%s145 + $0x1d4] sm:$0xf] %v2115
      %2372 = vst [vmem:[%s145 + $0x1d8] sm:$0xf] %v2116
      %2373 = vst [vmem:[%s145 + $0x1dc] sm:$0xf] %v2117
      %2374 = vst [vmem:[%s145 + $0x1e0] sm:$0xf] %v2118
      %2375 = vst [vmem:[%s145 + $0x1e4] sm:$0xf] %v2119
      %2376 = vst [vmem:[%s145 + $0x1e8] sm:$0xf] %v2120
      %2377 = vst [vmem:[%s145 + $0x1ec] sm:$0xf] %v2121
      %2378 = vst [vmem:[%s145 + $0x1f0] sm:$0xf] %v2122
      %2379 = vst [vmem:[%s145 + $0x1f4] sm:$0xf] %v2123
      %2380 = vst [vmem:[%s145 + $0x1f8] sm:$0xf] %v2124
      %2381 = vst [vmem:[%s145 + $0x1fc] sm:$0xf] %v2125
      %s2382 = smul.u32 128, %s13
      %p2383 = scmp.lt.s32.totalorder %s2382, 255
      %s2384 = scalar_select %p2383, %s2382, 255
      %s2385 = smul.addr %s2384, 4
      %s2386 = scalar_lea.vmem %s2, %s2385
      // Predicated region
      $region29: #{discriminator_forward.5} parent=27 // pred_check
        %p2387 = pneg %p78
      $region30: #{discriminator_forward.5} parent=27 // pred_check_branch
        %2389 = sbr.rel (%p2387) target = $region32
      $region31: #{discriminator_forward.5} parent=27 // pred_region
        %s2390 = smul.u32 128, %s13
      $region32: #{discriminator_forward.5} parent=27 // pred_fallthru
        _
    $region28: #{discriminator_forward.5} parent=5 // pred_fallthru
      _
    %p2391 = scmp.le.s32.totalorder 2, %s8
    // Predicated region
    $region33: #{discriminator_forward.5} parent=5 // pred_check
      %p2392 = pneg %p2391
    $region34: #{discriminator_forward.5} parent=5 // pred_check_branch
      %2394 = sbr.rel (%p2392) target = $region36
    $region35: #{discriminator_forward.5} parent=5 // pred_region
      %s2395 = ssub.s32 %s8, 2
      // Predicated region
      $region37: #{discriminator_forward.5} parent=35 // pred_check
        %p2396 = pneg %p84
      $region38: #{discriminator_forward.5} parent=35 // pred_check_branch
        %2398 = sbr.rel (%p2396) target = $region40
      $region39: #{discriminator_forward.5} parent=35 // pred_region
        %s2399 = smul.u32 128, %s14
        %p2400 = scmp.lt.s32.totalorder %s2399, 255
        %s2401 = scalar_select %p2400, %s2399, 255
        %s2402 = smul.addr %s2401, 4
        %s2403 = scalar_lea.vmem %s2, %s2402
      $region40: #{discriminator_forward.5} parent=35 // pred_fallthru
        _
    $region36: #{discriminator_forward.5} parent=5 // pred_fallthru
      _
  $region6: #{discriminator_forward.5} parent=0 // loop_footer
    %s12 = sadd.s32 1, %s8
  $region7: #{discriminator_forward.5} parent=0 // loop_footer_branch
    %7 = sbr.rel target = $region3
  $region8: #{discriminator_forward.5} parent=0 // loop_exit
    _

// kernel: discriminator_forward.6
$region0: #{discriminator_forward.6}
  #allocation0 [shape = 'u32[]', space=smem, size = 0x4, offset = 0x4, fixed_abs, tag = 'smem constant byte address 0x4 - core index']
  #allocation1 [shape = 'u32[144,128]{1,0:T(1,128)}', space=vmem, size = 0x12000, scoped, tag = 'internal scratch']
  %s0 = inlined_call_operand.vmem [shape: bf16[512,2048], index: 0, kind: input, shape index: {}]
  %s1 = inlined_call_operand.vmem [shape: bf16[2048,128], index: 1, kind: input, shape index: {}]
  %s2 = inlined_call_operand.vmem [shape: bf16[512,128], index: 2, kind: output, shape index: {0}]
  %s3 = inlined_call_operand.vmem [shape: f32[16,128], index: 3, kind: output, shape index: {1}]
  %4 = xla_tuple %s2, %s3
  %s5 = sld [smem:[#allocation0]]
  $region49: #{discriminator_forward.6} parent=0
    _
  %s7 = ssub.s32 1, %s5
  %s8 = scalar_select 0, %s7, %s5
  loop: start=0, step=1, limit=4
  $region2: #{discriminator_forward.6} parent=0 // loop_pre_header
    _
  $region3: #{discriminator_forward.6} parent=0 // loop_header
    %s10 = sphi 0, %s14
    %p11 = scmp.ge.s32.totalorder %s10, 4
    %s20 = sphi 0, %s22
    %s23 = sphi 0, %s20
    %s24 = sphi 0, %s23
    %s40 = sphi 0, %s24
    %s44 = sphi 0, %s44
    %s46 = sphi 0, %s44
    %s47 = sphi 0, %s46
    %s61 = sphi 0, %s47
    %s67 = sphi 0, %s69
    %s70 = sphi 0, %s67
    %s71 = sphi 0, %s70
    %s87 = sphi 0, %s71
    %s93 = sphi 0, %s95
    %s96 = sphi 0, %s93
    %s97 = sphi 0, %s96
    %s113 = sphi 0, %s97
  $region4: #{discriminator_forward.6} parent=0 // loop_header_branch
    %13 = sbr.rel (%p11) target = $region8
  $region5: #{discriminator_forward.6} parent=0 // loop_body
    %s15 = ssub.s32 %s10, 1
    %s16 = ssub.s32 %s10, 2
    %s17 = sadd.s32 %s10, 1
    %s18 = ssub.s32 %s10, %s17
    %p19 = scmp.eq.s32.totalorder %s18, 0
    %s21 = sadd.s32 %s20, 1
    %s22 = scalar_select %p19, %s20, %s21
    %p25 = pneg %p19
    %p26 = scmp.eq.s32.totalorder %s10, 1
    %p27 = por %p25, %p26
    %p28 = scmp.ne.s32.totalorder %s20, %s23
    %p29 = scmp.eq.s32.totalorder %s10, 0
    %p30 = por %p28, %p29
    %p31 = scmp.ne.s32.totalorder %s20, %s23
    %p32 = scmp.eq.s32.totalorder %s15, 1
    %p33 = por %p31, %p32
    %p34 = scmp.ne.s32.totalorder %s23, %s24
    %p35 = scmp.eq.s32.totalorder %s15, 0
    %p36 = por %p34, %p35
    %p37 = scmp.ne.s32.totalorder %s23, %s24
    %p38 = scmp.eq.s32.totalorder %s16, 1
    %p39 = por %p37, %p38
    %p41 = scmp.ne.s32.totalorder %s24, %s40
    %p42 = scmp.eq.s32.totalorder %s16, 0
    %p43 = por %p41, %p42
    %s45 = sadd.s32 %s44, 1
    %p48 = scmp.eq.s32.totalorder %s10, 1
    %p49 = scmp.ne.s32.totalorder %s44, %s46
    %p50 = scmp.eq.s32.totalorder %s10, 0
    %p51 = por %p49, %p50
    %p52 = scmp.ne.s32.totalorder %s44, %s46
    %p53 = scmp.eq.s32.totalorder %s15, 1
    %p54 = por %p52, %p53
    %p55 = scmp.ne.s32.totalorder %s46, %s47
    %p56 = scmp.eq.s32.totalorder %s15, 0
    %p57 = por %p55, %p56
    %p58 = scmp.ne.s32.totalorder %s46, %s47
    %p59 = scmp.eq.s32.totalorder %s16, 1
    %p60 = por %p58, %p59
    %p62 = scmp.ne.s32.totalorder %s47, %s61
    %p63 = scmp.eq.s32.totalorder %s16, 0
    %p64 = por %p62, %p63
    %s65 = ssub.s32 %s10, %s17
    %p66 = scmp.eq.s32.totalorder %s65, 0
    %s68 = sadd.s32 %s67, 1
    %s69 = scalar_select %p66, %s67, %s68
    %p72 = pneg %p66
    %p73 = scmp.eq.s32.totalorder %s10, 1
    %p74 = por %p72, %p73
    %p75 = scmp.ne.s32.totalorder %s67, %s70
    %p76 = scmp.eq.s32.totalorder %s10, 0
    %p77 = por %p75, %p76
    %p78 = scmp.ne.s32.totalorder %s67, %s70
    %p79 = scmp.eq.s32.totalorder %s15, 1
    %p80 = por %p78, %p79
    %p81 = scmp.ne.s32.totalorder %s70, %s71
    %p82 = scmp.eq.s32.totalorder %s15, 0
    %p83 = por %p81, %p82
    %p84 = scmp.ne.s32.totalorder %s70, %s71
    %p85 = scmp.eq.s32.totalorder %s16, 1
    %p86 = por %p84, %p85
    %p88 = scmp.ne.s32.totalorder %s71, %s87
    %p89 = scmp.eq.s32.totalorder %s16, 0
    %p90 = por %p88, %p89
    %s91 = ssub.s32 %s10, %s17
    %p92 = scmp.eq.s32.totalorder %s91, 0
    %s94 = sadd.s32 %s93, 1
    %s95 = scalar_select %p92, %s93, %s94
    %p98 = pneg %p92
    %p99 = scmp.eq.s32.totalorder %s10, 1
    %p100 = por %p98, %p99
    %p101 = scmp.ne.s32.totalorder %s93, %s96
    %p102 = scmp.eq.s32.totalorder %s10, 0
    %p103 = por %p101, %p102
    %p104 = scmp.ne.s32.totalorder %s93, %s96
    %p105 = scmp.eq.s32.totalorder %s15, 1
    %p106 = por %p104, %p105
    %p107 = scmp.ne.s32.totalorder %s96, %s97
    %p108 = scmp.eq.s32.totalorder %s15, 0
    %p109 = por %p107, %p108
    %p110 = scmp.ne.s32.totalorder %s96, %s97
    %p111 = scmp.eq.s32.totalorder %s16, 1
    %p112 = por %p110, %p111
    %p114 = scmp.ne.s32.totalorder %s97, %s113
    %p115 = scmp.eq.s32.totalorder %s16, 0
    %p116 = por %p114, %p115
    %p117 = scmp.le.s32.totalorder 1, %s10
    %p118 = scmp.lt.s32.totalorder %s10, 3
    %p119 = pnand %p117, %p118
    %p120 = pneg %p119
    // Predicated region
    $region9: #{discriminator_forward.6} parent=5 // pred_check
      _
    $region10: #{discriminator_forward.6} parent=5 // pred_check_branch
      %122 = sbr.rel (%p119) target = $region12
    $region11: #{discriminator_forward.6} parent=5 // pred_region
      %s123 = ssub.s32 %s10, 1
      // Predicated region
      $region13: #{discriminator_forward.6} parent=11 // pred_check
        %p124 = pneg %p57
      $region14: #{discriminator_forward.6} parent=11 // pred_check_branch
        %126 = sbr.rel (%p124) target = $region16
      $region15: #{discriminator_forward.6} parent=11 // pred_region
        _
      $region16: #{discriminator_forward.6} parent=11 // pred_fallthru
        _
    $region12: #{discriminator_forward.6} parent=5 // pred_fallthru
      _
    %p127 = scmp.lt.s32.totalorder %s10, 2
    // Predicated region
    $region17: #{discriminator_forward.6} parent=5 // pred_check
      %p128 = pneg %p127
    $region18: #{discriminator_forward.6} parent=5 // pred_check_branch
      %130 = sbr.rel (%p128) target = $region20
    $region19: #{discriminator_forward.6} parent=5 // pred_region
      // Predicated region
      $region21: #{discriminator_forward.6} parent=19 // pred_check
        %p131 = pneg %p30
      $region22: #{discriminator_forward.6} parent=19 // pred_check_branch
        %133 = sbr.rel (%p131) target = $region24
      $region23: #{discriminator_forward.6} parent=19 // pred_region
        %s134 = smul.u32 32, %s10
        %p135 = scmp.lt.s32.totalorder %s134, 63
        %s136 = scalar_select %p135, %s134, 63
        %s137 = smul.addr %s136, 16
        %s138 = smul.addr %s137, 4
        %s139 = scalar_lea.vmem %s0, %s138
        %s140 = smul.u32 32, %s10
      $region24: #{discriminator_forward.6} parent=19 // pred_fallthru
        _
    $region20: #{discriminator_forward.6} parent=5 // pred_fallthru
      _
    %p141 = scmp.le.s32.totalorder 1, %s10
    %p142 = scmp.lt.s32.totalorder %s10, 3
    %p143 = pnand %p141, %p142
    %p144 = pneg %p143
    // Predicated region
    $region25: #{discriminator_forward.6} parent=5 // pred_check
      _
    $region26: #{discriminator_forward.6} parent=5 // pred_check_branch
      %146 = sbr.rel (%p143) target = $region28
    $region27: #{discriminator_forward.6} parent=5 // pred_region
      %s147 = ssub.s32 %s10, 1
      %s148 = smul.u32 32, %s15
      %p149 = scmp.lt.s32.totalorder %s148, 63
      %s150 = scalar_select %p149, %s148, 63
      %s151 = smul.addr %s150, 16
      %s152 = smul.addr %s151, 4
      %s153 = scalar_lea.vmem %s0, %s152
      %p154 = pneg %p36
      %p155 = pneg %p33
      %p156 = pneg %p57
      %p157 = pneg %p54
      %p158 = pneg %p83
      %p159 = pneg %p80
      %s160 = smul.u32 32, %s15
      %p161 = scmp.lt.s32.totalorder %s160, 63
      %s162 = scalar_select %p161, %s160, 63
      %s163 = smul.addr %s162, 4
      %s164 = scalar_lea.vmem %s2, %s163
      %p165 = pneg %p109
      %p166 = pneg %p106
      %p167 = scmp.lt.s32.totalorder %s15, 1
      %s168 = scalar_select %p167, %s15, 1
      %s169 = smul.addr %s168, 8
      %s170 = scalar_lea.vmem %s3, %s169
      %s171 = smul.u32 32, %s15
      %p172 = scmp.lt.s32.totalorder %s171, 63
      %s173 = scalar_select %p172, %s171, 63
      %s174 = smul.addr %s173, 16
      %s175 = smul.addr %s174, 4
      %s176 = scalar_lea.vmem %s0, %s175
      %s177 = smul.u32 32, %s15
      %s178 = smul.u32 32, %s15
      %p179 = scmp.lt.s32.totalorder %s178, 63
      %s180 = scalar_select %p179, %s178, 63
      %s181 = smul.addr %s180, 4
      %s182 = scalar_lea.vmem %s2, %s181
      %s183 = smul.u32 32, %s15
      %p184 = scmp.lt.s32.totalorder %s15, 1
      %s185 = scalar_select %p184, %s15, 1
      %s186 = smul.addr %s185, 8
      %s187 = scalar_lea.vmem %s3, %s186
      %v189 = vld [vmem:[%s176] sm:$0xff]
      %v190 = vld [vmem:[%s176 + $0x8] sm:$0xff]
      %v191 = vld [vmem:[%s176 + $0x10] sm:$0xff]
      %v192 = vld [vmem:[%s176 + $0x18] sm:$0xff]
      %v193 = vld [vmem:[%s176 + $0x20] sm:$0xff]
      %v194 = vld [vmem:[%s176 + $0x28] sm:$0xff]
      %v195 = vld [vmem:[%s176 + $0x30] sm:$0xff]
      %v196 = vld [vmem:[%s176 + $0x38] sm:$0xff]
      %v197 = vld [vmem:[%s176 + $0x40] sm:$0xff]
      %v198 = vld [vmem:[%s176 + $0x48] sm:$0xff]
      %v199 = vld [vmem:[%s176 + $0x50] sm:$0xff]
      %v200 = vld [vmem:[%s176 + $0x58] sm:$0xff]
      %v201 = vld [vmem:[%s176 + $0x60] sm:$0xff]
      %v202 = vld [vmem:[%s176 + $0x68] sm:$0xff]
      %v203 = vld [vmem:[%s176 + $0x70] sm:$0xff]
      %v204 = vld [vmem:[%s176 + $0x78] sm:$0xff]
      %v205 = vld [vmem:[%s176 + $0x80] sm:$0xff]
      %v206 = vld [vmem:[%s176 + $0x88] sm:$0xff]
      %v207 = vld [vmem:[%s176 + $0x90] sm:$0xff]
      %v208 = vld [vmem:[%s176 + $0x98] sm:$0xff]
      %v209 = vld [vmem:[%s176 + $0xa0] sm:$0xff]
      %v210 = vld [vmem:[%s176 + $0xa8] sm:$0xff]
      %v211 = vld [vmem:[%s176 + $0xb0] sm:$0xff]
      %v212 = vld [vmem:[%s176 + $0xb8] sm:$0xff]
      %v213 = vld [vmem:[%s176 + $0xc0] sm:$0xff]
      %v214 = vld [vmem:[%s176 + $0xc8] sm:$0xff]
      %v215 = vld [vmem:[%s176 + $0xd0] sm:$0xff]
      %v216 = vld [vmem:[%s176 + $0xd8] sm:$0xff]
      %v217 = vld [vmem:[%s176 + $0xe0] sm:$0xff]
      %v218 = vld [vmem:[%s176 + $0xe8] sm:$0xff]
      %v219 = vld [vmem:[%s176 + $0xf0] sm:$0xff]
      %v220 = vld [vmem:[%s176 + $0xf8] sm:$0xff]
      %v221 = vld [vmem:[%s176 + $0x100] sm:$0xff]
      %v222 = vld [vmem:[%s176 + $0x108] sm:$0xff]
      %v223 = vld [vmem:[%s176 + $0x110] sm:$0xff]
      %v224 = vld [vmem:[%s176 + $0x118] sm:$0xff]
      %v225 = vld [vmem:[%s176 + $0x120] sm:$0xff]
      %v226 = vld [vmem:[%s176 + $0x128] sm:$0xff]
      %v227 = vld [vmem:[%s176 + $0x130] sm:$0xff]
      %v228 = vld [vmem:[%s176 + $0x138] sm:$0xff]
      %v229 = vld [vmem:[%s176 + $0x140] sm:$0xff]
      %v230 = vld [vmem:[%s176 + $0x148] sm:$0xff]
      %v231 = vld [vmem:[%s176 + $0x150] sm:$0xff]
      %v232 = vld [vmem:[%s176 + $0x158] sm:$0xff]
      %v233 = vld [vmem:[%s176 + $0x160] sm:$0xff]
      %v234 = vld [vmem:[%s176 + $0x168] sm:$0xff]
      %v235 = vld [vmem:[%s176 + $0x170] sm:$0xff]
      %v236 = vld [vmem:[%s176 + $0x178] sm:$0xff]
      %v237 = vld [vmem:[%s176 + $0x180] sm:$0xff]
      %v238 = vld [vmem:[%s176 + $0x188] sm:$0xff]
      %v239 = vld [vmem:[%s176 + $0x190] sm:$0xff]
      %v240 = vld [vmem:[%s176 + $0x198] sm:$0xff]
      %v241 = vld [vmem:[%s176 + $0x1a0] sm:$0xff]
      %v242 = vld [vmem:[%s176 + $0x1a8] sm:$0xff]
      %v243 = vld [vmem:[%s176 + $0x1b0] sm:$0xff]
      %v244 = vld [vmem:[%s176 + $0x1b8] sm:$0xff]
      %v245 = vld [vmem:[%s176 + $0x1c0] sm:$0xff]
      %v246 = vld [vmem:[%s176 + $0x1c8] sm:$0xff]
      %v247 = vld [vmem:[%s176 + $0x1d0] sm:$0xff]
      %v248 = vld [vmem:[%s176 + $0x1d8] sm:$0xff]
      %v249 = vld [vmem:[%s176 + $0x1e0] sm:$0xff]
      %v250 = vld [vmem:[%s176 + $0x1e8] sm:$0xff]
      %v251 = vld [vmem:[%s176 + $0x1f0] sm:$0xff]
      %v252 = vld [vmem:[%s176 + $0x1f8] sm:$0xff]
      %v253 = vld [vmem:[%s176 + $0x200] sm:$0xff]
      %v254 = vld [vmem:[%s176 + $0x208] sm:$0xff]
      %v255 = vld [vmem:[%s176 + $0x210] sm:$0xff]
      %v256 = vld [vmem:[%s176 + $0x218] sm:$0xff]
      %v257 = vld [vmem:[%s176 + $0x220] sm:$0xff]
      %v258 = vld [vmem:[%s176 + $0x228] sm:$0xff]
      %v259 = vld [vmem:[%s176 + $0x230] sm:$0xff]
      %v260 = vld [vmem:[%s176 + $0x238] sm:$0xff]
      %v261 = vld [vmem:[%s176 + $0x240] sm:$0xff]
      %v262 = vld [vmem:[%s176 + $0x248] sm:$0xff]
      %v263 = vld [vmem:[%s176 + $0x250] sm:$0xff]
      %v264 = vld [vmem:[%s176 + $0x258] sm:$0xff]
      %v265 = vld [vmem:[%s176 + $0x260] sm:$0xff]
      %v266 = vld [vmem:[%s176 + $0x268] sm:$0xff]
      %v267 = vld [vmem:[%s176 + $0x270] sm:$0xff]
      %v268 = vld [vmem:[%s176 + $0x278] sm:$0xff]
      %v269 = vld [vmem:[%s176 + $0x280] sm:$0xff]
      %v270 = vld [vmem:[%s176 + $0x288] sm:$0xff]
      %v271 = vld [vmem:[%s176 + $0x290] sm:$0xff]
      %v272 = vld [vmem:[%s176 + $0x298] sm:$0xff]
      %v273 = vld [vmem:[%s176 + $0x2a0] sm:$0xff]
      %v274 = vld [vmem:[%s176 + $0x2a8] sm:$0xff]
      %v275 = vld [vmem:[%s176 + $0x2b0] sm:$0xff]
      %v276 = vld [vmem:[%s176 + $0x2b8] sm:$0xff]
      %v277 = vld [vmem:[%s176 + $0x2c0] sm:$0xff]
      %v278 = vld [vmem:[%s176 + $0x2c8] sm:$0xff]
      %v279 = vld [vmem:[%s176 + $0x2d0] sm:$0xff]
      %v280 = vld [vmem:[%s176 + $0x2d8] sm:$0xff]
      %v281 = vld [vmem:[%s176 + $0x2e0] sm:$0xff]
      %v282 = vld [vmem:[%s176 + $0x2e8] sm:$0xff]
      %v283 = vld [vmem:[%s176 + $0x2f0] sm:$0xff]
      %v284 = vld [vmem:[%s176 + $0x2f8] sm:$0xff]
      %v285 = vld [vmem:[%s176 + $0x300] sm:$0xff]
      %v286 = vld [vmem:[%s176 + $0x308] sm:$0xff]
      %v287 = vld [vmem:[%s176 + $0x310] sm:$0xff]
      %v288 = vld [vmem:[%s176 + $0x318] sm:$0xff]
      %v289 = vld [vmem:[%s176 + $0x320] sm:$0xff]
      %v290 = vld [vmem:[%s176 + $0x328] sm:$0xff]
      %v291 = vld [vmem:[%s176 + $0x330] sm:$0xff]
      %v292 = vld [vmem:[%s176 + $0x338] sm:$0xff]
      %v293 = vld [vmem:[%s176 + $0x340] sm:$0xff]
      %v294 = vld [vmem:[%s176 + $0x348] sm:$0xff]
      %v295 = vld [vmem:[%s176 + $0x350] sm:$0xff]
      %v296 = vld [vmem:[%s176 + $0x358] sm:$0xff]
      %v297 = vld [vmem:[%s176 + $0x360] sm:$0xff]
      %v298 = vld [vmem:[%s176 + $0x368] sm:$0xff]
      %v299 = vld [vmem:[%s176 + $0x370] sm:$0xff]
      %v300 = vld [vmem:[%s176 + $0x378] sm:$0xff]
      %v301 = vld [vmem:[%s176 + $0x380] sm:$0xff]
      %v302 = vld [vmem:[%s176 + $0x388] sm:$0xff]
      %v303 = vld [vmem:[%s176 + $0x390] sm:$0xff]
      %v304 = vld [vmem:[%s176 + $0x398] sm:$0xff]
      %v305 = vld [vmem:[%s176 + $0x3a0] sm:$0xff]
      %v306 = vld [vmem:[%s176 + $0x3a8] sm:$0xff]
      %v307 = vld [vmem:[%s176 + $0x3b0] sm:$0xff]
      %v308 = vld [vmem:[%s176 + $0x3b8] sm:$0xff]
      %v309 = vld [vmem:[%s176 + $0x3c0] sm:$0xff]
      %v310 = vld [vmem:[%s176 + $0x3c8] sm:$0xff]
      %v311 = vld [vmem:[%s176 + $0x3d0] sm:$0xff]
      %v312 = vld [vmem:[%s176 + $0x3d8] sm:$0xff]
      %v313 = vld [vmem:[%s176 + $0x3e0] sm:$0xff]
      %v314 = vld [vmem:[%s176 + $0x3e8] sm:$0xff]
      %v315 = vld [vmem:[%s176 + $0x3f0] sm:$0xff]
      %v316 = vld [vmem:[%s176 + $0x3f8] sm:$0xff]
      %v317 = vld [vmem:[%s176 + $0x400] sm:$0xff]
      %v318 = vld [vmem:[%s176 + $0x408] sm:$0xff]
      %v319 = vld [vmem:[%s176 + $0x410] sm:$0xff]
      %v320 = vld [vmem:[%s176 + $0x418] sm:$0xff]
      %v321 = vld [vmem:[%s176 + $0x420] sm:$0xff]
      %v322 = vld [vmem:[%s176 + $0x428] sm:$0xff]
      %v323 = vld [vmem:[%s176 + $0x430] sm:$0xff]
      %v324 = vld [vmem:[%s176 + $0x438] sm:$0xff]
      %v325 = vld [vmem:[%s176 + $0x440] sm:$0xff]
      %v326 = vld [vmem:[%s176 + $0x448] sm:$0xff]
      %v327 = vld [vmem:[%s176 + $0x450] sm:$0xff]
      %v328 = vld [vmem:[%s176 + $0x458] sm:$0xff]
      %v329 = vld [vmem:[%s176 + $0x460] sm:$0xff]
      %v330 = vld [vmem:[%s176 + $0x468] sm:$0xff]
      %v331 = vld [vmem:[%s176 + $0x470] sm:$0xff]
      %v332 = vld [vmem:[%s176 + $0x478] sm:$0xff]
      %v333 = vld [vmem:[%s176 + $0x480] sm:$0xff]
      %v334 = vld [vmem:[%s176 + $0x488] sm:$0xff]
      %v335 = vld [vmem:[%s176 + $0x490] sm:$0xff]
      %v336 = vld [vmem:[%s176 + $0x498] sm:$0xff]
      %v337 = vld [vmem:[%s176 + $0x4a0] sm:$0xff]
      %v338 = vld [vmem:[%s176 + $0x4a8] sm:$0xff]
      %v339 = vld [vmem:[%s176 + $0x4b0] sm:$0xff]
      %v340 = vld [vmem:[%s176 + $0x4b8] sm:$0xff]
      %v341 = vld [vmem:[%s176 + $0x4c0] sm:$0xff]
      %v342 = vld [vmem:[%s176 + $0x4c8] sm:$0xff]
      %v343 = vld [vmem:[%s176 + $0x4d0] sm:$0xff]
      %v344 = vld [vmem:[%s176 + $0x4d8] sm:$0xff]
      %v345 = vld [vmem:[%s176 + $0x4e0] sm:$0xff]
      %v346 = vld [vmem:[%s176 + $0x4e8] sm:$0xff]
      %v347 = vld [vmem:[%s176 + $0x4f0] sm:$0xff]
      %v348 = vld [vmem:[%s176 + $0x4f8] sm:$0xff]
      %v349 = vld [vmem:[%s176 + $0x500] sm:$0xff]
      %v350 = vld [vmem:[%s176 + $0x508] sm:$0xff]
      %v351 = vld [vmem:[%s176 + $0x510] sm:$0xff]
      %v352 = vld [vmem:[%s176 + $0x518] sm:$0xff]
      %v353 = vld [vmem:[%s176 + $0x520] sm:$0xff]
      %v354 = vld [vmem:[%s176 + $0x528] sm:$0xff]
      %v355 = vld [vmem:[%s176 + $0x530] sm:$0xff]
      %v356 = vld [vmem:[%s176 + $0x538] sm:$0xff]
      %v357 = vld [vmem:[%s176 + $0x540] sm:$0xff]
      %v358 = vld [vmem:[%s176 + $0x548] sm:$0xff]
      %v359 = vld [vmem:[%s176 + $0x550] sm:$0xff]
      %v360 = vld [vmem:[%s176 + $0x558] sm:$0xff]
      %v361 = vld [vmem:[%s176 + $0x560] sm:$0xff]
      %v362 = vld [vmem:[%s176 + $0x568] sm:$0xff]
      %v363 = vld [vmem:[%s176 + $0x570] sm:$0xff]
      %v364 = vld [vmem:[%s176 + $0x578] sm:$0xff]
      %v365 = vld [vmem:[%s176 + $0x580] sm:$0xff]
      %v366 = vld [vmem:[%s176 + $0x588] sm:$0xff]
      %v367 = vld [vmem:[%s176 + $0x590] sm:$0xff]
      %v368 = vld [vmem:[%s176 + $0x598] sm:$0xff]
      %v369 = vld [vmem:[%s176 + $0x5a0] sm:$0xff]
      %v370 = vld [vmem:[%s176 + $0x5a8] sm:$0xff]
      %v371 = vld [vmem:[%s176 + $0x5b0] sm:$0xff]
      %v372 = vld [vmem:[%s176 + $0x5b8] sm:$0xff]
      %v373 = vld [vmem:[%s176 + $0x5c0] sm:$0xff]
      %v374 = vld [vmem:[%s176 + $0x5c8] sm:$0xff]
      %v375 = vld [vmem:[%s176 + $0x5d0] sm:$0xff]
      %v376 = vld [vmem:[%s176 + $0x5d8] sm:$0xff]
      %v377 = vld [vmem:[%s176 + $0x5e0] sm:$0xff]
      %v378 = vld [vmem:[%s176 + $0x5e8] sm:$0xff]
      %v379 = vld [vmem:[%s176 + $0x5f0] sm:$0xff]
      %v380 = vld [vmem:[%s176 + $0x5f8] sm:$0xff]
      %v381 = vld [vmem:[%s176 + $0x600] sm:$0xff]
      %v382 = vld [vmem:[%s176 + $0x608] sm:$0xff]
      %v383 = vld [vmem:[%s176 + $0x610] sm:$0xff]
      %v384 = vld [vmem:[%s176 + $0x618] sm:$0xff]
      %v385 = vld [vmem:[%s176 + $0x620] sm:$0xff]
      %v386 = vld [vmem:[%s176 + $0x628] sm:$0xff]
      %v387 = vld [vmem:[%s176 + $0x630] sm:$0xff]
      %v388 = vld [vmem:[%s176 + $0x638] sm:$0xff]
      %v389 = vld [vmem:[%s176 + $0x640] sm:$0xff]
      %v390 = vld [vmem:[%s176 + $0x648] sm:$0xff]
      %v391 = vld [vmem:[%s176 + $0x650] sm:$0xff]
      %v392 = vld [vmem:[%s176 + $0x658] sm:$0xff]
      %v393 = vld [vmem:[%s176 + $0x660] sm:$0xff]
      %v394 = vld [vmem:[%s176 + $0x668] sm:$0xff]
      %v395 = vld [vmem:[%s176 + $0x670] sm:$0xff]
      %v396 = vld [vmem:[%s176 + $0x678] sm:$0xff]
      %v397 = vld [vmem:[%s176 + $0x680] sm:$0xff]
      %v398 = vld [vmem:[%s176 + $0x688] sm:$0xff]
      %v399 = vld [vmem:[%s176 + $0x690] sm:$0xff]
      %v400 = vld [vmem:[%s176 + $0x698] sm:$0xff]
      %v401 = vld [vmem:[%s176 + $0x6a0] sm:$0xff]
      %v402 = vld [vmem:[%s176 + $0x6a8] sm:$0xff]
      %v403 = vld [vmem:[%s176 + $0x6b0] sm:$0xff]
      %v404 = vld [vmem:[%s176 + $0x6b8] sm:$0xff]
      %v405 = vld [vmem:[%s176 + $0x6c0] sm:$0xff]
      %v406 = vld [vmem:[%s176 + $0x6c8] sm:$0xff]
      %v407 = vld [vmem:[%s176 + $0x6d0] sm:$0xff]
      %v408 = vld [vmem:[%s176 + $0x6d8] sm:$0xff]
      %v409 = vld [vmem:[%s176 + $0x6e0] sm:$0xff]
      %v410 = vld [vmem:[%s176 + $0x6e8] sm:$0xff]
      %v411 = vld [vmem:[%s176 + $0x6f0] sm:$0xff]
      %v412 = vld [vmem:[%s176 + $0x6f8] sm:$0xff]
      %v413 = vld [vmem:[%s176 + $0x700] sm:$0xff]
      %v414 = vld [vmem:[%s176 + $0x708] sm:$0xff]
      %v415 = vld [vmem:[%s176 + $0x710] sm:$0xff]
      %v416 = vld [vmem:[%s176 + $0x718] sm:$0xff]
      %v417 = vld [vmem:[%s176 + $0x720] sm:$0xff]
      %v418 = vld [vmem:[%s176 + $0x728] sm:$0xff]
      %v419 = vld [vmem:[%s176 + $0x730] sm:$0xff]
      %v420 = vld [vmem:[%s176 + $0x738] sm:$0xff]
      %v421 = vld [vmem:[%s176 + $0x740] sm:$0xff]
      %v422 = vld [vmem:[%s176 + $0x748] sm:$0xff]
      %v423 = vld [vmem:[%s176 + $0x750] sm:$0xff]
      %v424 = vld [vmem:[%s176 + $0x758] sm:$0xff]
      %v425 = vld [vmem:[%s176 + $0x760] sm:$0xff]
      %v426 = vld [vmem:[%s176 + $0x768] sm:$0xff]
      %v427 = vld [vmem:[%s176 + $0x770] sm:$0xff]
      %v428 = vld [vmem:[%s176 + $0x778] sm:$0xff]
      %v429 = vld [vmem:[%s176 + $0x780] sm:$0xff]
      %v430 = vld [vmem:[%s176 + $0x788] sm:$0xff]
      %v431 = vld [vmem:[%s176 + $0x790] sm:$0xff]
      %v432 = vld [vmem:[%s176 + $0x798] sm:$0xff]
      %v433 = vld [vmem:[%s176 + $0x7a0] sm:$0xff]
      %v434 = vld [vmem:[%s176 + $0x7a8] sm:$0xff]
      %v435 = vld [vmem:[%s176 + $0x7b0] sm:$0xff]
      %v436 = vld [vmem:[%s176 + $0x7b8] sm:$0xff]
      %v437 = vld [vmem:[%s176 + $0x7c0] sm:$0xff]
      %v438 = vld [vmem:[%s176 + $0x7c8] sm:$0xff]
      %v439 = vld [vmem:[%s176 + $0x7d0] sm:$0xff]
      %v440 = vld [vmem:[%s176 + $0x7d8] sm:$0xff]
      %v441 = vld [vmem:[%s176 + $0x7e0] sm:$0xff]
      %v442 = vld [vmem:[%s176 + $0x7e8] sm:$0xff]
      %v443 = vld [vmem:[%s176 + $0x7f0] sm:$0xff]
      %v444 = vld [vmem:[%s176 + $0x7f8] sm:$0xff]
      %v445 = vld [vmem:[%s1] sm:$0xf]
      %v446 = vld [vmem:[%s1 + $0x4] sm:$0xf]
      %v447 = vld [vmem:[%s1 + $0x8] sm:$0xf]
      %v448 = vld [vmem:[%s1 + $0xc] sm:$0xf]
      %v449 = vld [vmem:[%s1 + $0x10] sm:$0xf]
      %v450 = vld [vmem:[%s1 + $0x14] sm:$0xf]
      %v451 = vld [vmem:[%s1 + $0x18] sm:$0xf]
      %v452 = vld [vmem:[%s1 + $0x1c] sm:$0xf]
      %v453 = vld [vmem:[%s1 + $0x20] sm:$0xf]
      %v454 = vld [vmem:[%s1 + $0x24] sm:$0xf]
      %v455 = vld [vmem:[%s1 + $0x28] sm:$0xf]
      %v456 = vld [vmem:[%s1 + $0x2c] sm:$0xf]
      %v457 = vld [vmem:[%s1 + $0x30] sm:$0xf]
      %v458 = vld [vmem:[%s1 + $0x34] sm:$0xf]
      %v459 = vld [vmem:[%s1 + $0x38] sm:$0xf]
      %v460 = vld [vmem:[%s1 + $0x3c] sm:$0xf]
      %v461 = vld [vmem:[%s1 + $0x40] sm:$0xf]
      %v462 = vld [vmem:[%s1 + $0x44] sm:$0xf]
      %v463 = vld [vmem:[%s1 + $0x48] sm:$0xf]
      %v464 = vld [vmem:[%s1 + $0x4c] sm:$0xf]
      %v465 = vld [vmem:[%s1 + $0x50] sm:$0xf]
      %v466 = vld [vmem:[%s1 + $0x54] sm:$0xf]
      %v467 = vld [vmem:[%s1 + $0x58] sm:$0xf]
      %v468 = vld [vmem:[%s1 + $0x5c] sm:$0xf]
      %v469 = vld [vmem:[%s1 + $0x60] sm:$0xf]
      %v470 = vld [vmem:[%s1 + $0x64] sm:$0xf]
      %v471 = vld [vmem:[%s1 + $0x68] sm:$0xf]
      %v472 = vld [vmem:[%s1 + $0x6c] sm:$0xf]
      %v473 = vld [vmem:[%s1 + $0x70] sm:$0xf]
      %v474 = vld [vmem:[%s1 + $0x74] sm:$0xf]
      %v475 = vld [vmem:[%s1 + $0x78] sm:$0xf]
      %v476 = vld [vmem:[%s1 + $0x7c] sm:$0xf]
      %v477 = vld [vmem:[%s1 + $0x80] sm:$0xf]
      %v478 = vld [vmem:[%s1 + $0x84] sm:$0xf]
      %v479 = vld [vmem:[%s1 + $0x88] sm:$0xf]
      %v480 = vld [vmem:[%s1 + $0x8c] sm:$0xf]
      %v481 = vld [vmem:[%s1 + $0x90] sm:$0xf]
      %v482 = vld [vmem:[%s1 + $0x94] sm:$0xf]
      %v483 = vld [vmem:[%s1 + $0x98] sm:$0xf]
      %v484 = vld [vmem:[%s1 + $0x9c] sm:$0xf]
      %v485 = vld [vmem:[%s1 + $0xa0] sm:$0xf]
      %v486 = vld [vmem:[%s1 + $0xa4] sm:$0xf]
      %v487 = vld [vmem:[%s1 + $0xa8] sm:$0xf]
      %v488 = vld [vmem:[%s1 + $0xac] sm:$0xf]
      %v489 = vld [vmem:[%s1 + $0xb0] sm:$0xf]
      %v490 = vld [vmem:[%s1 + $0xb4] sm:$0xf]
      %v491 = vld [vmem:[%s1 + $0xb8] sm:$0xf]
      %v492 = vld [vmem:[%s1 + $0xbc] sm:$0xf]
      %v493 = vld [vmem:[%s1 + $0xc0] sm:$0xf]
      %v494 = vld [vmem:[%s1 + $0xc4] sm:$0xf]
      %v495 = vld [vmem:[%s1 + $0xc8] sm:$0xf]
      %v496 = vld [vmem:[%s1 + $0xcc] sm:$0xf]
      %v497 = vld [vmem:[%s1 + $0xd0] sm:$0xf]
      %v498 = vld [vmem:[%s1 + $0xd4] sm:$0xf]
      %v499 = vld [vmem:[%s1 + $0xd8] sm:$0xf]
      %v500 = vld [vmem:[%s1 + $0xdc] sm:$0xf]
      %v501 = vld [vmem:[%s1 + $0xe0] sm:$0xf]
      %v502 = vld [vmem:[%s1 + $0xe4] sm:$0xf]
      %v503 = vld [vmem:[%s1 + $0xe8] sm:$0xf]
      %v504 = vld [vmem:[%s1 + $0xec] sm:$0xf]
      %v505 = vld [vmem:[%s1 + $0xf0] sm:$0xf]
      %v506 = vld [vmem:[%s1 + $0xf4] sm:$0xf]
      %v507 = vld [vmem:[%s1 + $0xf8] sm:$0xf]
      %v508 = vld [vmem:[%s1 + $0xfc] sm:$0xf]
      %v509 = vld [vmem:[%s1 + $0x100] sm:$0xf]
      %v510 = vld [vmem:[%s1 + $0x104] sm:$0xf]
      %v511 = vld [vmem:[%s1 + $0x108] sm:$0xf]
      %v512 = vld [vmem:[%s1 + $0x10c] sm:$0xf]
      %v513 = vld [vmem:[%s1 + $0x110] sm:$0xf]
      %v514 = vld [vmem:[%s1 + $0x114] sm:$0xf]
      %v515 = vld [vmem:[%s1 + $0x118] sm:$0xf]
      %v516 = vld [vmem:[%s1 + $0x11c] sm:$0xf]
      %v517 = vld [vmem:[%s1 + $0x120] sm:$0xf]
      %v518 = vld [vmem:[%s1 + $0x124] sm:$0xf]
      %v519 = vld [vmem:[%s1 + $0x128] sm:$0xf]
      %v520 = vld [vmem:[%s1 + $0x12c] sm:$0xf]
      %v521 = vld [vmem:[%s1 + $0x130] sm:$0xf]
      %v522 = vld [vmem:[%s1 + $0x134] sm:$0xf]
      %v523 = vld [vmem:[%s1 + $0x138] sm:$0xf]
      %v524 = vld [vmem:[%s1 + $0x13c] sm:$0xf]
      %v525 = vld [vmem:[%s1 + $0x140] sm:$0xf]
      %v526 = vld [vmem:[%s1 + $0x144] sm:$0xf]
      %v527 = vld [vmem:[%s1 + $0x148] sm:$0xf]
      %v528 = vld [vmem:[%s1 + $0x14c] sm:$0xf]
      %v529 = vld [vmem:[%s1 + $0x150] sm:$0xf]
      %v530 = vld [vmem:[%s1 + $0x154] sm:$0xf]
      %v531 = vld [vmem:[%s1 + $0x158] sm:$0xf]
      %v532 = vld [vmem:[%s1 + $0x15c] sm:$0xf]
      %v533 = vld [vmem:[%s1 + $0x160] sm:$0xf]
      %v534 = vld [vmem:[%s1 + $0x164] sm:$0xf]
      %v535 = vld [vmem:[%s1 + $0x168] sm:$0xf]
      %v536 = vld [vmem:[%s1 + $0x16c] sm:$0xf]
      %v537 = vld [vmem:[%s1 + $0x170] sm:$0xf]
      %v538 = vld [vmem:[%s1 + $0x174] sm:$0xf]
      %v539 = vld [vmem:[%s1 + $0x178] sm:$0xf]
      %v540 = vld [vmem:[%s1 + $0x17c] sm:$0xf]
      %v541 = vld [vmem:[%s1 + $0x180] sm:$0xf]
      %v542 = vld [vmem:[%s1 + $0x184] sm:$0xf]
      %v543 = vld [vmem:[%s1 + $0x188] sm:$0xf]
      %v544 = vld [vmem:[%s1 + $0x18c] sm:$0xf]
      %v545 = vld [vmem:[%s1 + $0x190] sm:$0xf]
      %v546 = vld [vmem:[%s1 + $0x194] sm:$0xf]
      %v547 = vld [vmem:[%s1 + $0x198] sm:$0xf]
      %v548 = vld [vmem:[%s1 + $0x19c] sm:$0xf]
      %v549 = vld [vmem:[%s1 + $0x1a0] sm:$0xf]
      %v550 = vld [vmem:[%s1 + $0x1a4] sm:$0xf]
      %v551 = vld [vmem:[%s1 + $0x1a8] sm:$0xf]
      %v552 = vld [vmem:[%s1 + $0x1ac] sm:$0xf]
      %v553 = vld [vmem:[%s1 + $0x1b0] sm:$0xf]
      %v554 = vld [vmem:[%s1 + $0x1b4] sm:$0xf]
      %v555 = vld [vmem:[%s1 + $0x1b8] sm:$0xf]
      %v556 = vld [vmem:[%s1 + $0x1bc] sm:$0xf]
      %v557 = vld [vmem:[%s1 + $0x1c0] sm:$0xf]
      %v558 = vld [vmem:[%s1 + $0x1c4] sm:$0xf]
      %v559 = vld [vmem:[%s1 + $0x1c8] sm:$0xf]
      %v560 = vld [vmem:[%s1 + $0x1cc] sm:$0xf]
      %v561 = vld [vmem:[%s1 + $0x1d0] sm:$0xf]
      %v562 = vld [vmem:[%s1 + $0x1d4] sm:$0xf]
      %v563 = vld [vmem:[%s1 + $0x1d8] sm:$0xf]
      %v564 = vld [vmem:[%s1 + $0x1dc] sm:$0xf]
      %v565 = vld [vmem:[%s1 + $0x1e0] sm:$0xf]
      %v566 = vld [vmem:[%s1 + $0x1e4] sm:$0xf]
      %v567 = vld [vmem:[%s1 + $0x1e8] sm:$0xf]
      %v568 = vld [vmem:[%s1 + $0x1ec] sm:$0xf]
      %v569 = vld [vmem:[%s1 + $0x1f0] sm:$0xf]
      %v570 = vld [vmem:[%s1 + $0x1f4] sm:$0xf]
      %v571 = vld [vmem:[%s1 + $0x1f8] sm:$0xf]
      %v572 = vld [vmem:[%s1 + $0x1fc] sm:$0xf]
      %v573 = vld [vmem:[%s1 + $0x200] sm:$0xf]
      %v574 = vld [vmem:[%s1 + $0x204] sm:$0xf]
      %v575 = vld [vmem:[%s1 + $0x208] sm:$0xf]
      %v576 = vld [vmem:[%s1 + $0x20c] sm:$0xf]
      %v577 = vld [vmem:[%s1 + $0x210] sm:$0xf]
      %v578 = vld [vmem:[%s1 + $0x214] sm:$0xf]
      %v579 = vld [vmem:[%s1 + $0x218] sm:$0xf]
      %v580 = vld [vmem:[%s1 + $0x21c] sm:$0xf]
      %v581 = vld [vmem:[%s1 + $0x220] sm:$0xf]
      %v582 = vld [vmem:[%s1 + $0x224] sm:$0xf]
      %v583 = vld [vmem:[%s1 + $0x228] sm:$0xf]
      %v584 = vld [vmem:[%s1 + $0x22c] sm:$0xf]
      %v585 = vld [vmem:[%s1 + $0x230] sm:$0xf]
      %v586 = vld [vmem:[%s1 + $0x234] sm:$0xf]
      %v587 = vld [vmem:[%s1 + $0x238] sm:$0xf]
      %v588 = vld [vmem:[%s1 + $0x23c] sm:$0xf]
      %v589 = vld [vmem:[%s1 + $0x240] sm:$0xf]
      %v590 = vld [vmem:[%s1 + $0x244] sm:$0xf]
      %v591 = vld [vmem:[%s1 + $0x248] sm:$0xf]
      %v592 = vld [vmem:[%s1 + $0x24c] sm:$0xf]
      %v593 = vld [vmem:[%s1 + $0x250] sm:$0xf]
      %v594 = vld [vmem:[%s1 + $0x254] sm:$0xf]
      %v595 = vld [vmem:[%s1 + $0x258] sm:$0xf]
      %v596 = vld [vmem:[%s1 + $0x25c] sm:$0xf]
      %v597 = vld [vmem:[%s1 + $0x260] sm:$0xf]
      %v598 = vld [vmem:[%s1 + $0x264] sm:$0xf]
      %v599 = vld [vmem:[%s1 + $0x268] sm:$0xf]
      %v600 = vld [vmem:[%s1 + $0x26c] sm:$0xf]
      %v601 = vld [vmem:[%s1 + $0x270] sm:$0xf]
      %v602 = vld [vmem:[%s1 + $0x274] sm:$0xf]
      %v603 = vld [vmem:[%s1 + $0x278] sm:$0xf]
      %v604 = vld [vmem:[%s1 + $0x27c] sm:$0xf]
      %v605 = vld [vmem:[%s1 + $0x280] sm:$0xf]
      %v606 = vld [vmem:[%s1 + $0x284] sm:$0xf]
      %v607 = vld [vmem:[%s1 + $0x288] sm:$0xf]
      %v608 = vld [vmem:[%s1 + $0x28c] sm:$0xf]
      %v609 = vld [vmem:[%s1 + $0x290] sm:$0xf]
      %v610 = vld [vmem:[%s1 + $0x294] sm:$0xf]
      %v611 = vld [vmem:[%s1 + $0x298] sm:$0xf]
      %v612 = vld [vmem:[%s1 + $0x29c] sm:$0xf]
      %v613 = vld [vmem:[%s1 + $0x2a0] sm:$0xf]
      %v614 = vld [vmem:[%s1 + $0x2a4] sm:$0xf]
      %v615 = vld [vmem:[%s1 + $0x2a8] sm:$0xf]
      %v616 = vld [vmem:[%s1 + $0x2ac] sm:$0xf]
      %v617 = vld [vmem:[%s1 + $0x2b0] sm:$0xf]
      %v618 = vld [vmem:[%s1 + $0x2b4] sm:$0xf]
      %v619 = vld [vmem:[%s1 + $0x2b8] sm:$0xf]
      %v620 = vld [vmem:[%s1 + $0x2bc] sm:$0xf]
      %v621 = vld [vmem:[%s1 + $0x2c0] sm:$0xf]
      %v622 = vld [vmem:[%s1 + $0x2c4] sm:$0xf]
      %v623 = vld [vmem:[%s1 + $0x2c8] sm:$0xf]
      %v624 = vld [vmem:[%s1 + $0x2cc] sm:$0xf]
      %v625 = vld [vmem:[%s1 + $0x2d0] sm:$0xf]
      %v626 = vld [vmem:[%s1 + $0x2d4] sm:$0xf]
      %v627 = vld [vmem:[%s1 + $0x2d8] sm:$0xf]
      %v628 = vld [vmem:[%s1 + $0x2dc] sm:$0xf]
      %v629 = vld [vmem:[%s1 + $0x2e0] sm:$0xf]
      %v630 = vld [vmem:[%s1 + $0x2e4] sm:$0xf]
      %v631 = vld [vmem:[%s1 + $0x2e8] sm:$0xf]
      %v632 = vld [vmem:[%s1 + $0x2ec] sm:$0xf]
      %v633 = vld [vmem:[%s1 + $0x2f0] sm:$0xf]
      %v634 = vld [vmem:[%s1 + $0x2f4] sm:$0xf]
      %v635 = vld [vmem:[%s1 + $0x2f8] sm:$0xf]
      %v636 = vld [vmem:[%s1 + $0x2fc] sm:$0xf]
      %v637 = vld [vmem:[%s1 + $0x300] sm:$0xf]
      %v638 = vld [vmem:[%s1 + $0x304] sm:$0xf]
      %v639 = vld [vmem:[%s1 + $0x308] sm:$0xf]
      %v640 = vld [vmem:[%s1 + $0x30c] sm:$0xf]
      %v641 = vld [vmem:[%s1 + $0x310] sm:$0xf]
      %v642 = vld [vmem:[%s1 + $0x314] sm:$0xf]
      %v643 = vld [vmem:[%s1 + $0x318] sm:$0xf]
      %v644 = vld [vmem:[%s1 + $0x31c] sm:$0xf]
      %v645 = vld [vmem:[%s1 + $0x320] sm:$0xf]
      %v646 = vld [vmem:[%s1 + $0x324] sm:$0xf]
      %v647 = vld [vmem:[%s1 + $0x328] sm:$0xf]
      %v648 = vld [vmem:[%s1 + $0x32c] sm:$0xf]
      %v649 = vld [vmem:[%s1 + $0x330] sm:$0xf]
      %v650 = vld [vmem:[%s1 + $0x334] sm:$0xf]
      %v651 = vld [vmem:[%s1 + $0x338] sm:$0xf]
      %v652 = vld [vmem:[%s1 + $0x33c] sm:$0xf]
      %v653 = vld [vmem:[%s1 + $0x340] sm:$0xf]
      %v654 = vld [vmem:[%s1 + $0x344] sm:$0xf]
      %v655 = vld [vmem:[%s1 + $0x348] sm:$0xf]
      %v656 = vld [vmem:[%s1 + $0x34c] sm:$0xf]
      %v657 = vld [vmem:[%s1 + $0x350] sm:$0xf]
      %v658 = vld [vmem:[%s1 + $0x354] sm:$0xf]
      %v659 = vld [vmem:[%s1 + $0x358] sm:$0xf]
      %v660 = vld [vmem:[%s1 + $0x35c] sm:$0xf]
      %v661 = vld [vmem:[%s1 + $0x360] sm:$0xf]
      %v662 = vld [vmem:[%s1 + $0x364] sm:$0xf]
      %v663 = vld [vmem:[%s1 + $0x368] sm:$0xf]
      %v664 = vld [vmem:[%s1 + $0x36c] sm:$0xf]
      %v665 = vld [vmem:[%s1 + $0x370] sm:$0xf]
      %v666 = vld [vmem:[%s1 + $0x374] sm:$0xf]
      %v667 = vld [vmem:[%s1 + $0x378] sm:$0xf]
      %v668 = vld [vmem:[%s1 + $0x37c] sm:$0xf]
      %v669 = vld [vmem:[%s1 + $0x380] sm:$0xf]
      %v670 = vld [vmem:[%s1 + $0x384] sm:$0xf]
      %v671 = vld [vmem:[%s1 + $0x388] sm:$0xf]
      %v672 = vld [vmem:[%s1 + $0x38c] sm:$0xf]
      %v673 = vld [vmem:[%s1 + $0x390] sm:$0xf]
      %v674 = vld [vmem:[%s1 + $0x394] sm:$0xf]
      %v675 = vld [vmem:[%s1 + $0x398] sm:$0xf]
      %v676 = vld [vmem:[%s1 + $0x39c] sm:$0xf]
      %v677 = vld [vmem:[%s1 + $0x3a0] sm:$0xf]
      %v678 = vld [vmem:[%s1 + $0x3a4] sm:$0xf]
      %v679 = vld [vmem:[%s1 + $0x3a8] sm:$0xf]
      %v680 = vld [vmem:[%s1 + $0x3ac] sm:$0xf]
      %v681 = vld [vmem:[%s1 + $0x3b0] sm:$0xf]
      %v682 = vld [vmem:[%s1 + $0x3b4] sm:$0xf]
      %v683 = vld [vmem:[%s1 + $0x3b8] sm:$0xf]
      %v684 = vld [vmem:[%s1 + $0x3bc] sm:$0xf]
      %v685 = vld [vmem:[%s1 + $0x3c0] sm:$0xf]
      %v686 = vld [vmem:[%s1 + $0x3c4] sm:$0xf]
      %v687 = vld [vmem:[%s1 + $0x3c8] sm:$0xf]
      %v688 = vld [vmem:[%s1 + $0x3cc] sm:$0xf]
      %v689 = vld [vmem:[%s1 + $0x3d0] sm:$0xf]
      %v690 = vld [vmem:[%s1 + $0x3d4] sm:$0xf]
      %v691 = vld [vmem:[%s1 + $0x3d8] sm:$0xf]
      %v692 = vld [vmem:[%s1 + $0x3dc] sm:$0xf]
      %v693 = vld [vmem:[%s1 + $0x3e0] sm:$0xf]
      %v694 = vld [vmem:[%s1 + $0x3e4] sm:$0xf]
      %v695 = vld [vmem:[%s1 + $0x3e8] sm:$0xf]
      %v696 = vld [vmem:[%s1 + $0x3ec] sm:$0xf]
      %v697 = vld [vmem:[%s1 + $0x3f0] sm:$0xf]
      %v698 = vld [vmem:[%s1 + $0x3f4] sm:$0xf]
      %v699 = vld [vmem:[%s1 + $0x3f8] sm:$0xf]
      %v700 = vld [vmem:[%s1 + $0x3fc] sm:$0xf]
      %v957 = vunpack.c.l.b16 %v189
      %v958 = vunpack.c.h.b16 %v189
      %v959 = vunpack.c.l.b16 %v190
      %v960 = vunpack.c.h.b16 %v190
      %v961 = vunpack.c.l.b16 %v191
      %v962 = vunpack.c.h.b16 %v191
      %v963 = vunpack.c.l.b16 %v192
      %v964 = vunpack.c.h.b16 %v192
      %v965 = vunpack.c.l.b16 %v193
      %v966 = vunpack.c.h.b16 %v193
      %v967 = vunpack.c.l.b16 %v194
      %v968 = vunpack.c.h.b16 %v194
      %v969 = vunpack.c.l.b16 %v195
      %v970 = vunpack.c.h.b16 %v195
      %v971 = vunpack.c.l.b16 %v196
      %v972 = vunpack.c.h.b16 %v196
      %v973 = vunpack.c.l.b16 %v197
      %v974 = vunpack.c.h.b16 %v197
      %v975 = vunpack.c.l.b16 %v198
      %v976 = vunpack.c.h.b16 %v198
      %v977 = vunpack.c.l.b16 %v199
      %v978 = vunpack.c.h.b16 %v199
      %v979 = vunpack.c.l.b16 %v200
      %v980 = vunpack.c.h.b16 %v200
      %v981 = vunpack.c.l.b16 %v201
      %v982 = vunpack.c.h.b16 %v201
      %v983 = vunpack.c.l.b16 %v202
      %v984 = vunpack.c.h.b16 %v202
      %v985 = vunpack.c.l.b16 %v203
      %v986 = vunpack.c.h.b16 %v203
      %v987 = vunpack.c.l.b16 %v204
      %v988 = vunpack.c.h.b16 %v204
      %v989 = vunpack.c.l.b16 %v205
      %v990 = vunpack.c.h.b16 %v205
      %v991 = vunpack.c.l.b16 %v206
      %v992 = vunpack.c.h.b16 %v206
      %v993 = vunpack.c.l.b16 %v207
      %v994 = vunpack.c.h.b16 %v207
      %v995 = vunpack.c.l.b16 %v208
      %v996 = vunpack.c.h.b16 %v208
      %v997 = vunpack.c.l.b16 %v209
      %v998 = vunpack.c.h.b16 %v209
      %v999 = vunpack.c.l.b16 %v210
      %v1000 = vunpack.c.h.b16 %v210
      %v1001 = vunpack.c.l.b16 %v211
      %v1002 = vunpack.c.h.b16 %v211
      %v1003 = vunpack.c.l.b16 %v212
      %v1004 = vunpack.c.h.b16 %v212
      %v1005 = vunpack.c.l.b16 %v213
      %v1006 = vunpack.c.h.b16 %v213
      %v1007 = vunpack.c.l.b16 %v214
      %v1008 = vunpack.c.h.b16 %v214
      %v1009 = vunpack.c.l.b16 %v215
      %v1010 = vunpack.c.h.b16 %v215
      %v1011 = vunpack.c.l.b16 %v216
      %v1012 = vunpack.c.h.b16 %v216
      %v1013 = vunpack.c.l.b16 %v217
      %v1014 = vunpack.c.h.b16 %v217
      %v1015 = vunpack.c.l.b16 %v218
      %v1016 = vunpack.c.h.b16 %v218
      %v1017 = vunpack.c.l.b16 %v219
      %v1018 = vunpack.c.h.b16 %v219
      %v1019 = vunpack.c.l.b16 %v220
      %v1020 = vunpack.c.h.b16 %v220
      %v1021 = vunpack.c.l.b16 %v221
      %v1022 = vunpack.c.h.b16 %v221
      %v1023 = vunpack.c.l.b16 %v222
      %v1024 = vunpack.c.h.b16 %v222
      %v1025 = vunpack.c.l.b16 %v223
      %v1026 = vunpack.c.h.b16 %v223
      %v1027 = vunpack.c.l.b16 %v224
      %v1028 = vunpack.c.h.b16 %v224
      %v1029 = vunpack.c.l.b16 %v225
      %v1030 = vunpack.c.h.b16 %v225
      %v1031 = vunpack.c.l.b16 %v226
      %v1032 = vunpack.c.h.b16 %v226
      %v1033 = vunpack.c.l.b16 %v227
      %v1034 = vunpack.c.h.b16 %v227
      %v1035 = vunpack.c.l.b16 %v228
      %v1036 = vunpack.c.h.b16 %v228
      %v1037 = vunpack.c.l.b16 %v229
      %v1038 = vunpack.c.h.b16 %v229
      %v1039 = vunpack.c.l.b16 %v230
      %v1040 = vunpack.c.h.b16 %v230
      %v1041 = vunpack.c.l.b16 %v231
      %v1042 = vunpack.c.h.b16 %v231
      %v1043 = vunpack.c.l.b16 %v232
      %v1044 = vunpack.c.h.b16 %v232
      %v1045 = vunpack.c.l.b16 %v233
      %v1046 = vunpack.c.h.b16 %v233
      %v1047 = vunpack.c.l.b16 %v234
      %v1048 = vunpack.c.h.b16 %v234
      %v1049 = vunpack.c.l.b16 %v235
      %v1050 = vunpack.c.h.b16 %v235
      %v1051 = vunpack.c.l.b16 %v236
      %v1052 = vunpack.c.h.b16 %v236
      %v1053 = vunpack.c.l.b16 %v237
      %v1054 = vunpack.c.h.b16 %v237
      %v1055 = vunpack.c.l.b16 %v238
      %v1056 = vunpack.c.h.b16 %v238
      %v1057 = vunpack.c.l.b16 %v239
      %v1058 = vunpack.c.h.b16 %v239
      %v1059 = vunpack.c.l.b16 %v240
      %v1060 = vunpack.c.h.b16 %v240
      %v1061 = vunpack.c.l.b16 %v241
      %v1062 = vunpack.c.h.b16 %v241
      %v1063 = vunpack.c.l.b16 %v242
      %v1064 = vunpack.c.h.b16 %v242
      %v1065 = vunpack.c.l.b16 %v243
      %v1066 = vunpack.c.h.b16 %v243
      %v1067 = vunpack.c.l.b16 %v244
      %v1068 = vunpack.c.h.b16 %v244
      %v1069 = vunpack.c.l.b16 %v245
      %v1070 = vunpack.c.h.b16 %v245
      %v1071 = vunpack.c.l.b16 %v246
      %v1072 = vunpack.c.h.b16 %v246
      %v1073 = vunpack.c.l.b16 %v247
      %v1074 = vunpack.c.h.b16 %v247
      %v1075 = vunpack.c.l.b16 %v248
      %v1076 = vunpack.c.h.b16 %v248
      %v1077 = vunpack.c.l.b16 %v249
      %v1078 = vunpack.c.h.b16 %v249
      %v1079 = vunpack.c.l.b16 %v250
      %v1080 = vunpack.c.h.b16 %v250
      %v1081 = vunpack.c.l.b16 %v251
      %v1082 = vunpack.c.h.b16 %v251
      %v1083 = vunpack.c.l.b16 %v252
      %v1084 = vunpack.c.h.b16 %v252
      %v1085 = vunpack.c.l.b16 %v253
      %v1086 = vunpack.c.h.b16 %v253
      %v1087 = vunpack.c.l.b16 %v254
      %v1088 = vunpack.c.h.b16 %v254
      %v1089 = vunpack.c.l.b16 %v255
      %v1090 = vunpack.c.h.b16 %v255
      %v1091 = vunpack.c.l.b16 %v256
      %v1092 = vunpack.c.h.b16 %v256
      %v1093 = vunpack.c.l.b16 %v257
      %v1094 = vunpack.c.h.b16 %v257
      %v1095 = vunpack.c.l.b16 %v258
      %v1096 = vunpack.c.h.b16 %v258
      %v1097 = vunpack.c.l.b16 %v259
      %v1098 = vunpack.c.h.b16 %v259
      %v1099 = vunpack.c.l.b16 %v260
      %v1100 = vunpack.c.h.b16 %v260
      %v1101 = vunpack.c.l.b16 %v261
      %v1102 = vunpack.c.h.b16 %v261
      %v1103 = vunpack.c.l.b16 %v262
      %v1104 = vunpack.c.h.b16 %v262
      %v1105 = vunpack.c.l.b16 %v263
      %v1106 = vunpack.c.h.b16 %v263
      %v1107 = vunpack.c.l.b16 %v264
      %v1108 = vunpack.c.h.b16 %v264
      %v1109 = vunpack.c.l.b16 %v265
      %v1110 = vunpack.c.h.b16 %v265
      %v1111 = vunpack.c.l.b16 %v266
      %v1112 = vunpack.c.h.b16 %v266
      %v1113 = vunpack.c.l.b16 %v267
      %v1114 = vunpack.c.h.b16 %v267
      %v1115 = vunpack.c.l.b16 %v268
      %v1116 = vunpack.c.h.b16 %v268
      %v1117 = vunpack.c.l.b16 %v269
      %v1118 = vunpack.c.h.b16 %v269
      %v1119 = vunpack.c.l.b16 %v270
      %v1120 = vunpack.c.h.b16 %v270
      %v1121 = vunpack.c.l.b16 %v271
      %v1122 = vunpack.c.h.b16 %v271
      %v1123 = vunpack.c.l.b16 %v272
      %v1124 = vunpack.c.h.b16 %v272
      %v1125 = vunpack.c.l.b16 %v273
      %v1126 = vunpack.c.h.b16 %v273
      %v1127 = vunpack.c.l.b16 %v274
      %v1128 = vunpack.c.h.b16 %v274
      %v1129 = vunpack.c.l.b16 %v275
      %v1130 = vunpack.c.h.b16 %v275
      %v1131 = vunpack.c.l.b16 %v276
      %v1132 = vunpack.c.h.b16 %v276
      %v1133 = vunpack.c.l.b16 %v277
      %v1134 = vunpack.c.h.b16 %v277
      %v1135 = vunpack.c.l.b16 %v278
      %v1136 = vunpack.c.h.b16 %v278
      %v1137 = vunpack.c.l.b16 %v279
      %v1138 = vunpack.c.h.b16 %v279
      %v1139 = vunpack.c.l.b16 %v280
      %v1140 = vunpack.c.h.b16 %v280
      %v1141 = vunpack.c.l.b16 %v281
      %v1142 = vunpack.c.h.b16 %v281
      %v1143 = vunpack.c.l.b16 %v282
      %v1144 = vunpack.c.h.b16 %v282
      %v1145 = vunpack.c.l.b16 %v283
      %v1146 = vunpack.c.h.b16 %v283
      %v1147 = vunpack.c.l.b16 %v284
      %v1148 = vunpack.c.h.b16 %v284
      %v1149 = vunpack.c.l.b16 %v285
      %v1150 = vunpack.c.h.b16 %v285
      %v1151 = vunpack.c.l.b16 %v286
      %v1152 = vunpack.c.h.b16 %v286
      %v1153 = vunpack.c.l.b16 %v287
      %v1154 = vunpack.c.h.b16 %v287
      %v1155 = vunpack.c.l.b16 %v288
      %v1156 = vunpack.c.h.b16 %v288
      %v1157 = vunpack.c.l.b16 %v289
      %v1158 = vunpack.c.h.b16 %v289
      %v1159 = vunpack.c.l.b16 %v290
      %v1160 = vunpack.c.h.b16 %v290
      %v1161 = vunpack.c.l.b16 %v291
      %v1162 = vunpack.c.h.b16 %v291
      %v1163 = vunpack.c.l.b16 %v292
      %v1164 = vunpack.c.h.b16 %v292
      %v1165 = vunpack.c.l.b16 %v293
      %v1166 = vunpack.c.h.b16 %v293
      %v1167 = vunpack.c.l.b16 %v294
      %v1168 = vunpack.c.h.b16 %v294
      %v1169 = vunpack.c.l.b16 %v295
      %v1170 = vunpack.c.h.b16 %v295
      %v1171 = vunpack.c.l.b16 %v296
      %v1172 = vunpack.c.h.b16 %v296
      %v1173 = vunpack.c.l.b16 %v297
      %v1174 = vunpack.c.h.b16 %v297
      %v1175 = vunpack.c.l.b16 %v298
      %v1176 = vunpack.c.h.b16 %v298
      %v1177 = vunpack.c.l.b16 %v299
      %v1178 = vunpack.c.h.b16 %v299
      %v1179 = vunpack.c.l.b16 %v300
      %v1180 = vunpack.c.h.b16 %v300
      %v1181 = vunpack.c.l.b16 %v301
      %v1182 = vunpack.c.h.b16 %v301
      %v1183 = vunpack.c.l.b16 %v302
      %v1184 = vunpack.c.h.b16 %v302
      %v1185 = vunpack.c.l.b16 %v303
      %v1186 = vunpack.c.h.b16 %v303
      %v1187 = vunpack.c.l.b16 %v304
      %v1188 = vunpack.c.h.b16 %v304
      %v1189 = vunpack.c.l.b16 %v305
      %v1190 = vunpack.c.h.b16 %v305
      %v1191 = vunpack.c.l.b16 %v306
      %v1192 = vunpack.c.h.b16 %v306
      %v1193 = vunpack.c.l.b16 %v307
      %v1194 = vunpack.c.h.b16 %v307
      %v1195 = vunpack.c.l.b16 %v308
      %v1196 = vunpack.c.h.b16 %v308
      %v1197 = vunpack.c.l.b16 %v309
      %v1198 = vunpack.c.h.b16 %v309
      %v1199 = vunpack.c.l.b16 %v310
      %v1200 = vunpack.c.h.b16 %v310
      %v1201 = vunpack.c.l.b16 %v311
      %v1202 = vunpack.c.h.b16 %v311
      %v1203 = vunpack.c.l.b16 %v312
      %v1204 = vunpack.c.h.b16 %v312
      %v1205 = vunpack.c.l.b16 %v313
      %v1206 = vunpack.c.h.b16 %v313
      %v1207 = vunpack.c.l.b16 %v314
      %v1208 = vunpack.c.h.b16 %v314
      %v1209 = vunpack.c.l.b16 %v315
      %v1210 = vunpack.c.h.b16 %v315
      %v1211 = vunpack.c.l.b16 %v316
      %v1212 = vunpack.c.h.b16 %v316
      %v1213 = vunpack.c.l.b16 %v317
      %v1214 = vunpack.c.h.b16 %v317
      %v1215 = vunpack.c.l.b16 %v318
      %v1216 = vunpack.c.h.b16 %v318
      %v1217 = vunpack.c.l.b16 %v319
      %v1218 = vunpack.c.h.b16 %v319
      %v1219 = vunpack.c.l.b16 %v320
      %v1220 = vunpack.c.h.b16 %v320
      %v1221 = vunpack.c.l.b16 %v321
      %v1222 = vunpack.c.h.b16 %v321
      %v1223 = vunpack.c.l.b16 %v322
      %v1224 = vunpack.c.h.b16 %v322
      %v1225 = vunpack.c.l.b16 %v323
      %v1226 = vunpack.c.h.b16 %v323
      %v1227 = vunpack.c.l.b16 %v324
      %v1228 = vunpack.c.h.b16 %v324
      %v1229 = vunpack.c.l.b16 %v325
      %v1230 = vunpack.c.h.b16 %v325
      %v1231 = vunpack.c.l.b16 %v326
      %v1232 = vunpack.c.h.b16 %v326
      %v1233 = vunpack.c.l.b16 %v327
      %v1234 = vunpack.c.h.b16 %v327
      %v1235 = vunpack.c.l.b16 %v328
      %v1236 = vunpack.c.h.b16 %v328
      %v1237 = vunpack.c.l.b16 %v329
      %v1238 = vunpack.c.h.b16 %v329
      %v1239 = vunpack.c.l.b16 %v330
      %v1240 = vunpack.c.h.b16 %v330
      %v1241 = vunpack.c.l.b16 %v331
      %v1242 = vunpack.c.h.b16 %v331
      %v1243 = vunpack.c.l.b16 %v332
      %v1244 = vunpack.c.h.b16 %v332
      %v1245 = vunpack.c.l.b16 %v333
      %v1246 = vunpack.c.h.b16 %v333
      %v1247 = vunpack.c.l.b16 %v334
      %v1248 = vunpack.c.h.b16 %v334
      %v1249 = vunpack.c.l.b16 %v335
      %v1250 = vunpack.c.h.b16 %v335
      %v1251 = vunpack.c.l.b16 %v336
      %v1252 = vunpack.c.h.b16 %v336
      %v1253 = vunpack.c.l.b16 %v337
      %v1254 = vunpack.c.h.b16 %v337
      %v1255 = vunpack.c.l.b16 %v338
      %v1256 = vunpack.c.h.b16 %v338
      %v1257 = vunpack.c.l.b16 %v339
      %v1258 = vunpack.c.h.b16 %v339
      %v1259 = vunpack.c.l.b16 %v340
      %v1260 = vunpack.c.h.b16 %v340
      %v1261 = vunpack.c.l.b16 %v341
      %v1262 = vunpack.c.h.b16 %v341
      %v1263 = vunpack.c.l.b16 %v342
      %v1264 = vunpack.c.h.b16 %v342
      %v1265 = vunpack.c.l.b16 %v343
      %v1266 = vunpack.c.h.b16 %v343
      %v1267 = vunpack.c.l.b16 %v344
      %v1268 = vunpack.c.h.b16 %v344
      %v1269 = vunpack.c.l.b16 %v345
      %v1270 = vunpack.c.h.b16 %v345
      %v1271 = vunpack.c.l.b16 %v346
      %v1272 = vunpack.c.h.b16 %v346
      %v1273 = vunpack.c.l.b16 %v347
      %v1274 = vunpack.c.h.b16 %v347
      %v1275 = vunpack.c.l.b16 %v348
      %v1276 = vunpack.c.h.b16 %v348
      %v1277 = vunpack.c.l.b16 %v349
      %v1278 = vunpack.c.h.b16 %v349
      %v1279 = vunpack.c.l.b16 %v350
      %v1280 = vunpack.c.h.b16 %v350
      %v1281 = vunpack.c.l.b16 %v351
      %v1282 = vunpack.c.h.b16 %v351
      %v1283 = vunpack.c.l.b16 %v352
      %v1284 = vunpack.c.h.b16 %v352
      %v1285 = vunpack.c.l.b16 %v353
      %v1286 = vunpack.c.h.b16 %v353
      %v1287 = vunpack.c.l.b16 %v354
      %v1288 = vunpack.c.h.b16 %v354
      %v1289 = vunpack.c.l.b16 %v355
      %v1290 = vunpack.c.h.b16 %v355
      %v1291 = vunpack.c.l.b16 %v356
      %v1292 = vunpack.c.h.b16 %v356
      %v1293 = vunpack.c.l.b16 %v357
      %v1294 = vunpack.c.h.b16 %v357
      %v1295 = vunpack.c.l.b16 %v358
      %v1296 = vunpack.c.h.b16 %v358
      %v1297 = vunpack.c.l.b16 %v359
      %v1298 = vunpack.c.h.b16 %v359
      %v1299 = vunpack.c.l.b16 %v360
      %v1300 = vunpack.c.h.b16 %v360
      %v1301 = vunpack.c.l.b16 %v361
      %v1302 = vunpack.c.h.b16 %v361
      %v1303 = vunpack.c.l.b16 %v362
      %v1304 = vunpack.c.h.b16 %v362
      %v1305 = vunpack.c.l.b16 %v363
      %v1306 = vunpack.c.h.b16 %v363
      %v1307 = vunpack.c.l.b16 %v364
      %v1308 = vunpack.c.h.b16 %v364
      %v1309 = vunpack.c.l.b16 %v365
      %v1310 = vunpack.c.h.b16 %v365
      %v1311 = vunpack.c.l.b16 %v366
      %v1312 = vunpack.c.h.b16 %v366
      %v1313 = vunpack.c.l.b16 %v367
      %v1314 = vunpack.c.h.b16 %v367
      %v1315 = vunpack.c.l.b16 %v368
      %v1316 = vunpack.c.h.b16 %v368
      %v1317 = vunpack.c.l.b16 %v369
      %v1318 = vunpack.c.h.b16 %v369
      %v1319 = vunpack.c.l.b16 %v370
      %v1320 = vunpack.c.h.b16 %v370
      %v1321 = vunpack.c.l.b16 %v371
      %v1322 = vunpack.c.h.b16 %v371
      %v1323 = vunpack.c.l.b16 %v372
      %v1324 = vunpack.c.h.b16 %v372
      %v1325 = vunpack.c.l.b16 %v373
      %v1326 = vunpack.c.h.b16 %v373
      %v1327 = vunpack.c.l.b16 %v374
      %v1328 = vunpack.c.h.b16 %v374
      %v1329 = vunpack.c.l.b16 %v375
      %v1330 = vunpack.c.h.b16 %v375
      %v1331 = vunpack.c.l.b16 %v376
      %v1332 = vunpack.c.h.b16 %v376
      %v1333 = vunpack.c.l.b16 %v377
      %v1334 = vunpack.c.h.b16 %v377
      %v1335 = vunpack.c.l.b16 %v378
      %v1336 = vunpack.c.h.b16 %v378
      %v1337 = vunpack.c.l.b16 %v379
      %v1338 = vunpack.c.h.b16 %v379
      %v1339 = vunpack.c.l.b16 %v380
      %v1340 = vunpack.c.h.b16 %v380
      %v1341 = vunpack.c.l.b16 %v381
      %v1342 = vunpack.c.h.b16 %v381
      %v1343 = vunpack.c.l.b16 %v382
      %v1344 = vunpack.c.h.b16 %v382
      %v1345 = vunpack.c.l.b16 %v383
      %v1346 = vunpack.c.h.b16 %v383
      %v1347 = vunpack.c.l.b16 %v384
      %v1348 = vunpack.c.h.b16 %v384
      %v1349 = vunpack.c.l.b16 %v385
      %v1350 = vunpack.c.h.b16 %v385
      %v1351 = vunpack.c.l.b16 %v386
      %v1352 = vunpack.c.h.b16 %v386
      %v1353 = vunpack.c.l.b16 %v387
      %v1354 = vunpack.c.h.b16 %v387
      %v1355 = vunpack.c.l.b16 %v388
      %v1356 = vunpack.c.h.b16 %v388
      %v1357 = vunpack.c.l.b16 %v389
      %v1358 = vunpack.c.h.b16 %v389
      %v1359 = vunpack.c.l.b16 %v390
      %v1360 = vunpack.c.h.b16 %v390
      %v1361 = vunpack.c.l.b16 %v391
      %v1362 = vunpack.c.h.b16 %v391
      %v1363 = vunpack.c.l.b16 %v392
      %v1364 = vunpack.c.h.b16 %v392
      %v1365 = vunpack.c.l.b16 %v393
      %v1366 = vunpack.c.h.b16 %v393
      %v1367 = vunpack.c.l.b16 %v394
      %v1368 = vunpack.c.h.b16 %v394
      %v1369 = vunpack.c.l.b16 %v395
      %v1370 = vunpack.c.h.b16 %v395
      %v1371 = vunpack.c.l.b16 %v396
      %v1372 = vunpack.c.h.b16 %v396
      %v1373 = vunpack.c.l.b16 %v397
      %v1374 = vunpack.c.h.b16 %v397
      %v1375 = vunpack.c.l.b16 %v398
      %v1376 = vunpack.c.h.b16 %v398
      %v1377 = vunpack.c.l.b16 %v399
      %v1378 = vunpack.c.h.b16 %v399
      %v1379 = vunpack.c.l.b16 %v400
      %v1380 = vunpack.c.h.b16 %v400
      %v1381 = vunpack.c.l.b16 %v401
      %v1382 = vunpack.c.h.b16 %v401
      %v1383 = vunpack.c.l.b16 %v402
      %v1384 = vunpack.c.h.b16 %v402
      %v1385 = vunpack.c.l.b16 %v403
      %v1386 = vunpack.c.h.b16 %v403
      %v1387 = vunpack.c.l.b16 %v404
      %v1388 = vunpack.c.h.b16 %v404
      %v1389 = vunpack.c.l.b16 %v405
      %v1390 = vunpack.c.h.b16 %v405
      %v1391 = vunpack.c.l.b16 %v406
      %v1392 = vunpack.c.h.b16 %v406
      %v1393 = vunpack.c.l.b16 %v407
      %v1394 = vunpack.c.h.b16 %v407
      %v1395 = vunpack.c.l.b16 %v408
      %v1396 = vunpack.c.h.b16 %v408
      %v1397 = vunpack.c.l.b16 %v409
      %v1398 = vunpack.c.h.b16 %v409
      %v1399 = vunpack.c.l.b16 %v410
      %v1400 = vunpack.c.h.b16 %v410
      %v1401 = vunpack.c.l.b16 %v411
      %v1402 = vunpack.c.h.b16 %v411
      %v1403 = vunpack.c.l.b16 %v412
      %v1404 = vunpack.c.h.b16 %v412
      %v1405 = vunpack.c.l.b16 %v413
      %v1406 = vunpack.c.h.b16 %v413
      %v1407 = vunpack.c.l.b16 %v414
      %v1408 = vunpack.c.h.b16 %v414
      %v1409 = vunpack.c.l.b16 %v415
      %v1410 = vunpack.c.h.b16 %v415
      %v1411 = vunpack.c.l.b16 %v416
      %v1412 = vunpack.c.h.b16 %v416
      %v1413 = vunpack.c.l.b16 %v417
      %v1414 = vunpack.c.h.b16 %v417
      %v1415 = vunpack.c.l.b16 %v418
      %v1416 = vunpack.c.h.b16 %v418
      %v1417 = vunpack.c.l.b16 %v419
      %v1418 = vunpack.c.h.b16 %v419
      %v1419 = vunpack.c.l.b16 %v420
      %v1420 = vunpack.c.h.b16 %v420
      %v1421 = vunpack.c.l.b16 %v421
      %v1422 = vunpack.c.h.b16 %v421
      %v1423 = vunpack.c.l.b16 %v422
      %v1424 = vunpack.c.h.b16 %v422
      %v1425 = vunpack.c.l.b16 %v423
      %v1426 = vunpack.c.h.b16 %v423
      %v1427 = vunpack.c.l.b16 %v424
      %v1428 = vunpack.c.h.b16 %v424
      %v1429 = vunpack.c.l.b16 %v425
      %v1430 = vunpack.c.h.b16 %v425
      %v1431 = vunpack.c.l.b16 %v426
      %v1432 = vunpack.c.h.b16 %v426
      %v1433 = vunpack.c.l.b16 %v427
      %v1434 = vunpack.c.h.b16 %v427
      %v1435 = vunpack.c.l.b16 %v428
      %v1436 = vunpack.c.h.b16 %v428
      %v1437 = vunpack.c.l.b16 %v429
      %v1438 = vunpack.c.h.b16 %v429
      %v1439 = vunpack.c.l.b16 %v430
      %v1440 = vunpack.c.h.b16 %v430
      %v1441 = vunpack.c.l.b16 %v431
      %v1442 = vunpack.c.h.b16 %v431
      %v1443 = vunpack.c.l.b16 %v432
      %v1444 = vunpack.c.h.b16 %v432
      %v1445 = vunpack.c.l.b16 %v433
      %v1446 = vunpack.c.h.b16 %v433
      %v1447 = vunpack.c.l.b16 %v434
      %v1448 = vunpack.c.h.b16 %v434
      %v1449 = vunpack.c.l.b16 %v435
      %v1450 = vunpack.c.h.b16 %v435
      %v1451 = vunpack.c.l.b16 %v436
      %v1452 = vunpack.c.h.b16 %v436
      %v1453 = vunpack.c.l.b16 %v437
      %v1454 = vunpack.c.h.b16 %v437
      %v1455 = vunpack.c.l.b16 %v438
      %v1456 = vunpack.c.h.b16 %v438
      %v1457 = vunpack.c.l.b16 %v439
      %v1458 = vunpack.c.h.b16 %v439
      %v1459 = vunpack.c.l.b16 %v440
      %v1460 = vunpack.c.h.b16 %v440
      %v1461 = vunpack.c.l.b16 %v441
      %v1462 = vunpack.c.h.b16 %v441
      %v1463 = vunpack.c.l.b16 %v442
      %v1464 = vunpack.c.h.b16 %v442
      %v1465 = vunpack.c.l.b16 %v443
      %v1466 = vunpack.c.h.b16 %v443
      %v1467 = vunpack.c.l.b16 %v444
      %v1468 = vunpack.c.h.b16 %v444
      %v1469 = vpack.c.b16 %v973, %v957
      %v1470 = vpack.c.b16 %v974, %v958
      %v1471 = vpack.c.b16 %v975, %v959
      %v1472 = vpack.c.b16 %v976, %v960
      %v1473 = vpack.c.b16 %v977, %v961
      %v1474 = vpack.c.b16 %v978, %v962
      %v1475 = vpack.c.b16 %v979, %v963
      %v1476 = vpack.c.b16 %v980, %v964
      %v1477 = vpack.c.b16 %v981, %v965
      %v1478 = vpack.c.b16 %v982, %v966
      %v1479 = vpack.c.b16 %v983, %v967
      %v1480 = vpack.c.b16 %v984, %v968
      %v1481 = vpack.c.b16 %v985, %v969
      %v1482 = vpack.c.b16 %v986, %v970
      %v1483 = vpack.c.b16 %v987, %v971
      %v1484 = vpack.c.b16 %v988, %v972
      %v1485 = vpack.c.b16 %v1005, %v989
      %v1486 = vpack.c.b16 %v1006, %v990
      %v1487 = vpack.c.b16 %v1007, %v991
      %v1488 = vpack.c.b16 %v1008, %v992
      %v1489 = vpack.c.b16 %v1009, %v993
      %v1490 = vpack.c.b16 %v1010, %v994
      %v1491 = vpack.c.b16 %v1011, %v995
      %v1492 = vpack.c.b16 %v1012, %v996
      %v1493 = vpack.c.b16 %v1013, %v997
      %v1494 = vpack.c.b16 %v1014, %v998
      %v1495 = vpack.c.b16 %v1015, %v999
      %v1496 = vpack.c.b16 %v1016, %v1000
      %v1497 = vpack.c.b16 %v1017, %v1001
      %v1498 = vpack.c.b16 %v1018, %v1002
      %v1499 = vpack.c.b16 %v1019, %v1003
      %v1500 = vpack.c.b16 %v1020, %v1004
      %v1501 = vpack.c.b16 %v1037, %v1021
      %v1502 = vpack.c.b16 %v1038, %v1022
      %v1503 = vpack.c.b16 %v1039, %v1023
      %v1504 = vpack.c.b16 %v1040, %v1024
      %v1505 = vpack.c.b16 %v1041, %v1025
      %v1506 = vpack.c.b16 %v1042, %v1026
      %v1507 = vpack.c.b16 %v1043, %v1027
      %v1508 = vpack.c.b16 %v1044, %v1028
      %v1509 = vpack.c.b16 %v1045, %v1029
      %v1510 = vpack.c.b16 %v1046, %v1030
      %v1511 = vpack.c.b16 %v1047, %v1031
      %v1512 = vpack.c.b16 %v1048, %v1032
      %v1513 = vpack.c.b16 %v1049, %v1033
      %v1514 = vpack.c.b16 %v1050, %v1034
      %v1515 = vpack.c.b16 %v1051, %v1035
      %v1516 = vpack.c.b16 %v1052, %v1036
      %v1517 = vpack.c.b16 %v1069, %v1053
      %v1518 = vpack.c.b16 %v1070, %v1054
      %v1519 = vpack.c.b16 %v1071, %v1055
      %v1520 = vpack.c.b16 %v1072, %v1056
      %v1521 = vpack.c.b16 %v1073, %v1057
      %v1522 = vpack.c.b16 %v1074, %v1058
      %v1523 = vpack.c.b16 %v1075, %v1059
      %v1524 = vpack.c.b16 %v1076, %v1060
      %v1525 = vpack.c.b16 %v1077, %v1061
      %v1526 = vpack.c.b16 %v1078, %v1062
      %v1527 = vpack.c.b16 %v1079, %v1063
      %v1528 = vpack.c.b16 %v1080, %v1064
      %v1529 = vpack.c.b16 %v1081, %v1065
      %v1530 = vpack.c.b16 %v1082, %v1066
      %v1531 = vpack.c.b16 %v1083, %v1067
      %v1532 = vpack.c.b16 %v1084, %v1068
      %v1533 = vpack.c.b16 %v1101, %v1085
      %v1534 = vpack.c.b16 %v1102, %v1086
      %v1535 = vpack.c.b16 %v1103, %v1087
      %v1536 = vpack.c.b16 %v1104, %v1088
      %v1537 = vpack.c.b16 %v1105, %v1089
      %v1538 = vpack.c.b16 %v1106, %v1090
      %v1539 = vpack.c.b16 %v1107, %v1091
      %v1540 = vpack.c.b16 %v1108, %v1092
      %v1541 = vpack.c.b16 %v1109, %v1093
      %v1542 = vpack.c.b16 %v1110, %v1094
      %v1543 = vpack.c.b16 %v1111, %v1095
      %v1544 = vpack.c.b16 %v1112, %v1096
      %v1545 = vpack.c.b16 %v1113, %v1097
      %v1546 = vpack.c.b16 %v1114, %v1098
      %v1547 = vpack.c.b16 %v1115, %v1099
      %v1548 = vpack.c.b16 %v1116, %v1100
      %v1549 = vpack.c.b16 %v1133, %v1117
      %v1550 = vpack.c.b16 %v1134, %v1118
      %v1551 = vpack.c.b16 %v1135, %v1119
      %v1552 = vpack.c.b16 %v1136, %v1120
      %v1553 = vpack.c.b16 %v1137, %v1121
      %v1554 = vpack.c.b16 %v1138, %v1122
      %v1555 = vpack.c.b16 %v1139, %v1123
      %v1556 = vpack.c.b16 %v1140, %v1124
      %v1557 = vpack.c.b16 %v1141, %v1125
      %v1558 = vpack.c.b16 %v1142, %v1126
      %v1559 = vpack.c.b16 %v1143, %v1127
      %v1560 = vpack.c.b16 %v1144, %v1128
      %v1561 = vpack.c.b16 %v1145, %v1129
      %v1562 = vpack.c.b16 %v1146, %v1130
      %v1563 = vpack.c.b16 %v1147, %v1131
      %v1564 = vpack.c.b16 %v1148, %v1132
      %v1565 = vpack.c.b16 %v1165, %v1149
      %v1566 = vpack.c.b16 %v1166, %v1150
      %v1567 = vpack.c.b16 %v1167, %v1151
      %v1568 = vpack.c.b16 %v1168, %v1152
      %v1569 = vpack.c.b16 %v1169, %v1153
      %v1570 = vpack.c.b16 %v1170, %v1154
      %v1571 = vpack.c.b16 %v1171, %v1155
      %v1572 = vpack.c.b16 %v1172, %v1156
      %v1573 = vpack.c.b16 %v1173, %v1157
      %v1574 = vpack.c.b16 %v1174, %v1158
      %v1575 = vpack.c.b16 %v1175, %v1159
      %v1576 = vpack.c.b16 %v1176, %v1160
      %v1577 = vpack.c.b16 %v1177, %v1161
      %v1578 = vpack.c.b16 %v1178, %v1162
      %v1579 = vpack.c.b16 %v1179, %v1163
      %v1580 = vpack.c.b16 %v1180, %v1164
      %v1581 = vpack.c.b16 %v1197, %v1181
      %v1582 = vpack.c.b16 %v1198, %v1182
      %v1583 = vpack.c.b16 %v1199, %v1183
      %v1584 = vpack.c.b16 %v1200, %v1184
      %v1585 = vpack.c.b16 %v1201, %v1185
      %v1586 = vpack.c.b16 %v1202, %v1186
      %v1587 = vpack.c.b16 %v1203, %v1187
      %v1588 = vpack.c.b16 %v1204, %v1188
      %v1589 = vpack.c.b16 %v1205, %v1189
      %v1590 = vpack.c.b16 %v1206, %v1190
      %v1591 = vpack.c.b16 %v1207, %v1191
      %v1592 = vpack.c.b16 %v1208, %v1192
      %v1593 = vpack.c.b16 %v1209, %v1193
      %v1594 = vpack.c.b16 %v1210, %v1194
      %v1595 = vpack.c.b16 %v1211, %v1195
      %v1596 = vpack.c.b16 %v1212, %v1196
      %v1597 = vpack.c.b16 %v1229, %v1213
      %v1598 = vpack.c.b16 %v1230, %v1214
      %v1599 = vpack.c.b16 %v1231, %v1215
      %v1600 = vpack.c.b16 %v1232, %v1216
      %v1601 = vpack.c.b16 %v1233, %v1217
      %v1602 = vpack.c.b16 %v1234, %v1218
      %v1603 = vpack.c.b16 %v1235, %v1219
      %v1604 = vpack.c.b16 %v1236, %v1220
      %v1605 = vpack.c.b16 %v1237, %v1221
      %v1606 = vpack.c.b16 %v1238, %v1222
      %v1607 = vpack.c.b16 %v1239, %v1223
      %v1608 = vpack.c.b16 %v1240, %v1224
      %v1609 = vpack.c.b16 %v1241, %v1225
      %v1610 = vpack.c.b16 %v1242, %v1226
      %v1611 = vpack.c.b16 %v1243, %v1227
      %v1612 = vpack.c.b16 %v1244, %v1228
      %v1613 = vpack.c.b16 %v1261, %v1245
      %v1614 = vpack.c.b16 %v1262, %v1246
      %v1615 = vpack.c.b16 %v1263, %v1247
      %v1616 = vpack.c.b16 %v1264, %v1248
      %v1617 = vpack.c.b16 %v1265, %v1249
      %v1618 = vpack.c.b16 %v1266, %v1250
      %v1619 = vpack.c.b16 %v1267, %v1251
      %v1620 = vpack.c.b16 %v1268, %v1252
      %v1621 = vpack.c.b16 %v1269, %v1253
      %v1622 = vpack.c.b16 %v1270, %v1254
      %v1623 = vpack.c.b16 %v1271, %v1255
      %v1624 = vpack.c.b16 %v1272, %v1256
      %v1625 = vpack.c.b16 %v1273, %v1257
      %v1626 = vpack.c.b16 %v1274, %v1258
      %v1627 = vpack.c.b16 %v1275, %v1259
      %v1628 = vpack.c.b16 %v1276, %v1260
      %v1629 = vpack.c.b16 %v1293, %v1277
      %v1630 = vpack.c.b16 %v1294, %v1278
      %v1631 = vpack.c.b16 %v1295, %v1279
      %v1632 = vpack.c.b16 %v1296, %v1280
      %v1633 = vpack.c.b16 %v1297, %v1281
      %v1634 = vpack.c.b16 %v1298, %v1282
      %v1635 = vpack.c.b16 %v1299, %v1283
      %v1636 = vpack.c.b16 %v1300, %v1284
      %v1637 = vpack.c.b16 %v1301, %v1285
      %v1638 = vpack.c.b16 %v1302, %v1286
      %v1639 = vpack.c.b16 %v1303, %v1287
      %v1640 = vpack.c.b16 %v1304, %v1288
      %v1641 = vpack.c.b16 %v1305, %v1289
      %v1642 = vpack.c.b16 %v1306, %v1290
      %v1643 = vpack.c.b16 %v1307, %v1291
      %v1644 = vpack.c.b16 %v1308, %v1292
      %v1645 = vpack.c.b16 %v1325, %v1309
      %v1646 = vpack.c.b16 %v1326, %v1310
      %v1647 = vpack.c.b16 %v1327, %v1311
      %v1648 = vpack.c.b16 %v1328, %v1312
      %v1649 = vpack.c.b16 %v1329, %v1313
      %v1650 = vpack.c.b16 %v1330, %v1314
      %v1651 = vpack.c.b16 %v1331, %v1315
      %v1652 = vpack.c.b16 %v1332, %v1316
      %v1653 = vpack.c.b16 %v1333, %v1317
      %v1654 = vpack.c.b16 %v1334, %v1318
      %v1655 = vpack.c.b16 %v1335, %v1319
      %v1656 = vpack.c.b16 %v1336, %v1320
      %v1657 = vpack.c.b16 %v1337, %v1321
      %v1658 = vpack.c.b16 %v1338, %v1322
      %v1659 = vpack.c.b16 %v1339, %v1323
      %v1660 = vpack.c.b16 %v1340, %v1324
      %v1661 = vpack.c.b16 %v1357, %v1341
      %v1662 = vpack.c.b16 %v1358, %v1342
      %v1663 = vpack.c.b16 %v1359, %v1343
      %v1664 = vpack.c.b16 %v1360, %v1344
      %v1665 = vpack.c.b16 %v1361, %v1345
      %v1666 = vpack.c.b16 %v1362, %v1346
      %v1667 = vpack.c.b16 %v1363, %v1347
      %v1668 = vpack.c.b16 %v1364, %v1348
      %v1669 = vpack.c.b16 %v1365, %v1349
      %v1670 = vpack.c.b16 %v1366, %v1350
      %v1671 = vpack.c.b16 %v1367, %v1351
      %v1672 = vpack.c.b16 %v1368, %v1352
      %v1673 = vpack.c.b16 %v1369, %v1353
      %v1674 = vpack.c.b16 %v1370, %v1354
      %v1675 = vpack.c.b16 %v1371, %v1355
      %v1676 = vpack.c.b16 %v1372, %v1356
      %v1677 = vpack.c.b16 %v1389, %v1373
      %v1678 = vpack.c.b16 %v1390, %v1374
      %v1679 = vpack.c.b16 %v1391, %v1375
      %v1680 = vpack.c.b16 %v1392, %v1376
      %v1681 = vpack.c.b16 %v1393, %v1377
      %v1682 = vpack.c.b16 %v1394, %v1378
      %v1683 = vpack.c.b16 %v1395, %v1379
      %v1684 = vpack.c.b16 %v1396, %v1380
      %v1685 = vpack.c.b16 %v1397, %v1381
      %v1686 = vpack.c.b16 %v1398, %v1382
      %v1687 = vpack.c.b16 %v1399, %v1383
      %v1688 = vpack.c.b16 %v1400, %v1384
      %v1689 = vpack.c.b16 %v1401, %v1385
      %v1690 = vpack.c.b16 %v1402, %v1386
      %v1691 = vpack.c.b16 %v1403, %v1387
      %v1692 = vpack.c.b16 %v1404, %v1388
      %v1693 = vpack.c.b16 %v1421, %v1405
      %v1694 = vpack.c.b16 %v1422, %v1406
      %v1695 = vpack.c.b16 %v1423, %v1407
      %v1696 = vpack.c.b16 %v1424, %v1408
      %v1697 = vpack.c.b16 %v1425, %v1409
      %v1698 = vpack.c.b16 %v1426, %v1410
      %v1699 = vpack.c.b16 %v1427, %v1411
      %v1700 = vpack.c.b16 %v1428, %v1412
      %v1701 = vpack.c.b16 %v1429, %v1413
      %v1702 = vpack.c.b16 %v1430, %v1414
      %v1703 = vpack.c.b16 %v1431, %v1415
      %v1704 = vpack.c.b16 %v1432, %v1416
      %v1705 = vpack.c.b16 %v1433, %v1417
      %v1706 = vpack.c.b16 %v1434, %v1418
      %v1707 = vpack.c.b16 %v1435, %v1419
      %v1708 = vpack.c.b16 %v1436, %v1420
      %v1709 = vpack.c.b16 %v1453, %v1437
      %v1710 = vpack.c.b16 %v1454, %v1438
      %v1711 = vpack.c.b16 %v1455, %v1439
      %v1712 = vpack.c.b16 %v1456, %v1440
      %v1713 = vpack.c.b16 %v1457, %v1441
      %v1714 = vpack.c.b16 %v1458, %v1442
      %v1715 = vpack.c.b16 %v1459, %v1443
      %v1716 = vpack.c.b16 %v1460, %v1444
      %v1717 = vpack.c.b16 %v1461, %v1445
      %v1718 = vpack.c.b16 %v1462, %v1446
      %v1719 = vpack.c.b16 %v1463, %v1447
      %v1720 = vpack.c.b16 %v1464, %v1448
      %v1721 = vpack.c.b16 %v1465, %v1449
      %v1722 = vpack.c.b16 %v1466, %v1450
      %v1723 = vpack.c.b16 %v1467, %v1451
      %v1724 = vpack.c.b16 %v1468, %v1452
      %v2237 = vunpack.c.l.b16 %v445
      %v2238 = vunpack.c.l.b16 %v446
      %v2239 = vunpack.c.l.b16 %v447
      %v2240 = vunpack.c.l.b16 %v448
      %v2241 = vunpack.c.l.b16 %v449
      %v2242 = vunpack.c.l.b16 %v450
      %v2243 = vunpack.c.l.b16 %v451
      %v2244 = vunpack.c.l.b16 %v452
      %v2245 = vunpack.c.l.b16 %v453
      %v2246 = vunpack.c.l.b16 %v454
      %v2247 = vunpack.c.l.b16 %v455
      %v2248 = vunpack.c.l.b16 %v456
      %v2249 = vunpack.c.l.b16 %v457
      %v2250 = vunpack.c.l.b16 %v458
      %v2251 = vunpack.c.l.b16 %v459
      %v2252 = vunpack.c.l.b16 %v460
      %v2253 = vunpack.c.l.b16 %v461
      %v2254 = vunpack.c.l.b16 %v462
      %v2255 = vunpack.c.l.b16 %v463
      %v2256 = vunpack.c.l.b16 %v464
      %v2257 = vunpack.c.l.b16 %v465
      %v2258 = vunpack.c.l.b16 %v466
      %v2259 = vunpack.c.l.b16 %v467
      %v2260 = vunpack.c.l.b16 %v468
      %v2261 = vunpack.c.l.b16 %v469
      %v2262 = vunpack.c.l.b16 %v470
      %v2263 = vunpack.c.l.b16 %v471
      %v2264 = vunpack.c.l.b16 %v472
      %v2265 = vunpack.c.l.b16 %v473
      %v2266 = vunpack.c.l.b16 %v474
      %v2267 = vunpack.c.l.b16 %v475
      %v2268 = vunpack.c.l.b16 %v476
      %v2269 = vunpack.c.l.b16 %v477
      %v2270 = vunpack.c.l.b16 %v478
      %v2271 = vunpack.c.l.b16 %v479
      %v2272 = vunpack.c.l.b16 %v480
      %v2273 = vunpack.c.l.b16 %v481
      %v2274 = vunpack.c.l.b16 %v482
      %v2275 = vunpack.c.l.b16 %v483
      %v2276 = vunpack.c.l.b16 %v484
      %v2277 = vunpack.c.l.b16 %v485
      %v2278 = vunpack.c.l.b16 %v486
      %v2279 = vunpack.c.l.b16 %v487
      %v2280 = vunpack.c.l.b16 %v488
      %v2281 = vunpack.c.l.b16 %v489
      %v2282 = vunpack.c.l.b16 %v490
      %v2283 = vunpack.c.l.b16 %v491
      %v2284 = vunpack.c.l.b16 %v492
      %v2285 = vunpack.c.l.b16 %v493
      %v2286 = vunpack.c.l.b16 %v494
      %v2287 = vunpack.c.l.b16 %v495
      %v2288 = vunpack.c.l.b16 %v496
      %v2289 = vunpack.c.l.b16 %v497
      %v2290 = vunpack.c.l.b16 %v498
      %v2291 = vunpack.c.l.b16 %v499
      %v2292 = vunpack.c.l.b16 %v500
      %v2293 = vunpack.c.l.b16 %v501
      %v2294 = vunpack.c.l.b16 %v502
      %v2295 = vunpack.c.l.b16 %v503
      %v2296 = vunpack.c.l.b16 %v504
      %v2297 = vunpack.c.l.b16 %v505
      %v2298 = vunpack.c.l.b16 %v506
      %v2299 = vunpack.c.l.b16 %v507
      %v2300 = vunpack.c.l.b16 %v508
      %v2301 = vunpack.c.l.b16 %v509
      %v2302 = vunpack.c.l.b16 %v510
      %v2303 = vunpack.c.l.b16 %v511
      %v2304 = vunpack.c.l.b16 %v512
      %v2305 = vunpack.c.l.b16 %v513
      %v2306 = vunpack.c.l.b16 %v514
      %v2307 = vunpack.c.l.b16 %v515
      %v2308 = vunpack.c.l.b16 %v516
      %v2309 = vunpack.c.l.b16 %v517
      %v2310 = vunpack.c.l.b16 %v518
      %v2311 = vunpack.c.l.b16 %v519
      %v2312 = vunpack.c.l.b16 %v520
      %v2313 = vunpack.c.l.b16 %v521
      %v2314 = vunpack.c.l.b16 %v522
      %v2315 = vunpack.c.l.b16 %v523
      %v2316 = vunpack.c.l.b16 %v524
      %v2317 = vunpack.c.l.b16 %v525
      %v2318 = vunpack.c.l.b16 %v526
      %v2319 = vunpack.c.l.b16 %v527
      %v2320 = vunpack.c.l.b16 %v528
      %v2321 = vunpack.c.l.b16 %v529
      %v2322 = vunpack.c.l.b16 %v530
      %v2323 = vunpack.c.l.b16 %v531
      %v2324 = vunpack.c.l.b16 %v532
      %v2325 = vunpack.c.l.b16 %v533
      %v2326 = vunpack.c.l.b16 %v534
      %v2327 = vunpack.c.l.b16 %v535
      %v2328 = vunpack.c.l.b16 %v536
      %v2329 = vunpack.c.l.b16 %v537
      %v2330 = vunpack.c.l.b16 %v538
      %v2331 = vunpack.c.l.b16 %v539
      %v2332 = vunpack.c.l.b16 %v540
      %v2333 = vunpack.c.l.b16 %v541
      %v2334 = vunpack.c.l.b16 %v542
      %v2335 = vunpack.c.l.b16 %v543
      %v2336 = vunpack.c.l.b16 %v544
      %v2337 = vunpack.c.l.b16 %v545
      %v2338 = vunpack.c.l.b16 %v546
      %v2339 = vunpack.c.l.b16 %v547
      %v2340 = vunpack.c.l.b16 %v548
      %v2341 = vunpack.c.l.b16 %v549
      %v2342 = vunpack.c.l.b16 %v550
      %v2343 = vunpack.c.l.b16 %v551
      %v2344 = vunpack.c.l.b16 %v552
      %v2345 = vunpack.c.l.b16 %v553
      %v2346 = vunpack.c.l.b16 %v554
      %v2347 = vunpack.c.l.b16 %v555
      %v2348 = vunpack.c.l.b16 %v556
      %v2349 = vunpack.c.l.b16 %v557
      %v2350 = vunpack.c.l.b16 %v558
      %v2351 = vunpack.c.l.b16 %v559
      %v2352 = vunpack.c.l.b16 %v560
      %v2353 = vunpack.c.l.b16 %v561
      %v2354 = vunpack.c.l.b16 %v562
      %v2355 = vunpack.c.l.b16 %v563
      %v2356 = vunpack.c.l.b16 %v564
      %v2357 = vunpack.c.l.b16 %v565
      %v2358 = vunpack.c.l.b16 %v566
      %v2359 = vunpack.c.l.b16 %v567
      %v2360 = vunpack.c.l.b16 %v568
      %v2361 = vunpack.c.l.b16 %v569
      %v2362 = vunpack.c.l.b16 %v570
      %v2363 = vunpack.c.l.b16 %v571
      %v2364 = vunpack.c.l.b16 %v572
      %v2365 = vunpack.c.l.b16 %v573
      %v2366 = vunpack.c.l.b16 %v574
      %v2367 = vunpack.c.l.b16 %v575
      %v2368 = vunpack.c.l.b16 %v576
      %v2369 = vunpack.c.l.b16 %v577
      %v2370 = vunpack.c.l.b16 %v578
      %v2371 = vunpack.c.l.b16 %v579
      %v2372 = vunpack.c.l.b16 %v580
      %v2373 = vunpack.c.l.b16 %v581
      %v2374 = vunpack.c.l.b16 %v582
      %v2375 = vunpack.c.l.b16 %v583
      %v2376 = vunpack.c.l.b16 %v584
      %v2377 = vunpack.c.l.b16 %v585
      %v2378 = vunpack.c.l.b16 %v586
      %v2379 = vunpack.c.l.b16 %v587
      %v2380 = vunpack.c.l.b16 %v588
      %v2381 = vunpack.c.l.b16 %v589
      %v2382 = vunpack.c.l.b16 %v590
      %v2383 = vunpack.c.l.b16 %v591
      %v2384 = vunpack.c.l.b16 %v592
      %v2385 = vunpack.c.l.b16 %v593
      %v2386 = vunpack.c.l.b16 %v594
      %v2387 = vunpack.c.l.b16 %v595
      %v2388 = vunpack.c.l.b16 %v596
      %v2389 = vunpack.c.l.b16 %v597
      %v2390 = vunpack.c.l.b16 %v598
      %v2391 = vunpack.c.l.b16 %v599
      %v2392 = vunpack.c.l.b16 %v600
      %v2393 = vunpack.c.l.b16 %v601
      %v2394 = vunpack.c.l.b16 %v602
      %v2395 = vunpack.c.l.b16 %v603
      %v2396 = vunpack.c.l.b16 %v604
      %v2397 = vunpack.c.l.b16 %v605
      %v2398 = vunpack.c.l.b16 %v606
      %v2399 = vunpack.c.l.b16 %v607
      %v2400 = vunpack.c.l.b16 %v608
      %v2401 = vunpack.c.l.b16 %v609
      %v2402 = vunpack.c.l.b16 %v610
      %v2403 = vunpack.c.l.b16 %v611
      %v2404 = vunpack.c.l.b16 %v612
      %v2405 = vunpack.c.l.b16 %v613
      %v2406 = vunpack.c.l.b16 %v614
      %v2407 = vunpack.c.l.b16 %v615
      %v2408 = vunpack.c.l.b16 %v616
      %v2409 = vunpack.c.l.b16 %v617
      %v2410 = vunpack.c.l.b16 %v618
      %v2411 = vunpack.c.l.b16 %v619
      %v2412 = vunpack.c.l.b16 %v620
      %v2413 = vunpack.c.l.b16 %v621
      %v2414 = vunpack.c.l.b16 %v622
      %v2415 = vunpack.c.l.b16 %v623
      %v2416 = vunpack.c.l.b16 %v624
      %v2417 = vunpack.c.l.b16 %v625
      %v2418 = vunpack.c.l.b16 %v626
      %v2419 = vunpack.c.l.b16 %v627
      %v2420 = vunpack.c.l.b16 %v628
      %v2421 = vunpack.c.l.b16 %v629
      %v2422 = vunpack.c.l.b16 %v630
      %v2423 = vunpack.c.l.b16 %v631
      %v2424 = vunpack.c.l.b16 %v632
      %v2425 = vunpack.c.l.b16 %v633
      %v2426 = vunpack.c.l.b16 %v634
      %v2427 = vunpack.c.l.b16 %v635
      %v2428 = vunpack.c.l.b16 %v636
      %v2429 = vunpack.c.l.b16 %v637
      %v2430 = vunpack.c.l.b16 %v638
      %v2431 = vunpack.c.l.b16 %v639
      %v2432 = vunpack.c.l.b16 %v640
      %v2433 = vunpack.c.l.b16 %v641
      %v2434 = vunpack.c.l.b16 %v642
      %v2435 = vunpack.c.l.b16 %v643
      %v2436 = vunpack.c.l.b16 %v644
      %v2437 = vunpack.c.l.b16 %v645
      %v2438 = vunpack.c.l.b16 %v646
      %v2439 = vunpack.c.l.b16 %v647
      %v2440 = vunpack.c.l.b16 %v648
      %v2441 = vunpack.c.l.b16 %v649
      %v2442 = vunpack.c.l.b16 %v650
      %v2443 = vunpack.c.l.b16 %v651
      %v2444 = vunpack.c.l.b16 %v652
      %v2445 = vunpack.c.l.b16 %v653
      %v2446 = vunpack.c.l.b16 %v654
      %v2447 = vunpack.c.l.b16 %v655
      %v2448 = vunpack.c.l.b16 %v656
      %v2449 = vunpack.c.l.b16 %v657
      %v2450 = vunpack.c.l.b16 %v658
      %v2451 = vunpack.c.l.b16 %v659
      %v2452 = vunpack.c.l.b16 %v660
      %v2453 = vunpack.c.l.b16 %v661
      %v2454 = vunpack.c.l.b16 %v662
      %v2455 = vunpack.c.l.b16 %v663
      %v2456 = vunpack.c.l.b16 %v664
      %v2457 = vunpack.c.l.b16 %v665
      %v2458 = vunpack.c.l.b16 %v666
      %v2459 = vunpack.c.l.b16 %v667
      %v2460 = vunpack.c.l.b16 %v668
      %v2461 = vunpack.c.l.b16 %v669
      %v2462 = vunpack.c.l.b16 %v670
      %v2463 = vunpack.c.l.b16 %v671
      %v2464 = vunpack.c.l.b16 %v672
      %v2465 = vunpack.c.l.b16 %v673
      %v2466 = vunpack.c.l.b16 %v674
      %v2467 = vunpack.c.l.b16 %v675
      %v2468 = vunpack.c.l.b16 %v676
      %v2469 = vunpack.c.l.b16 %v677
      %v2470 = vunpack.c.l.b16 %v678
      %v2471 = vunpack.c.l.b16 %v679
      %v2472 = vunpack.c.l.b16 %v680
      %v2473 = vunpack.c.l.b16 %v681
      %v2474 = vunpack.c.l.b16 %v682
      %v2475 = vunpack.c.l.b16 %v683
      %v2476 = vunpack.c.l.b16 %v684
      %v2477 = vunpack.c.l.b16 %v685
      %v2478 = vunpack.c.l.b16 %v686
      %v2479 = vunpack.c.l.b16 %v687
      %v2480 = vunpack.c.l.b16 %v688
      %v2481 = vunpack.c.l.b16 %v689
      %v2482 = vunpack.c.l.b16 %v690
      %v2483 = vunpack.c.l.b16 %v691
      %v2484 = vunpack.c.l.b16 %v692
      %v2485 = vunpack.c.l.b16 %v693
      %v2486 = vunpack.c.l.b16 %v694
      %v2487 = vunpack.c.l.b16 %v695
      %v2488 = vunpack.c.l.b16 %v696
      %v2489 = vunpack.c.l.b16 %v697
      %v2490 = vunpack.c.l.b16 %v698
      %v2491 = vunpack.c.l.b16 %v699
      %v2492 = vunpack.c.l.b16 %v700
      %v2493 = vpack.c.b16 %v2238, %v2237
      %v2494 = vpack.c.b16 %v2240, %v2239
      %v2495 = vpack.c.b16 %v2242, %v2241
      %v2496 = vpack.c.b16 %v2244, %v2243
      %v2497 = vpack.c.b16 %v2246, %v2245
      %v2498 = vpack.c.b16 %v2248, %v2247
      %v2499 = vpack.c.b16 %v2250, %v2249
      %v2500 = vpack.c.b16 %v2252, %v2251
      %v2501 = vpack.c.b16 %v2254, %v2253
      %v2502 = vpack.c.b16 %v2256, %v2255
      %v2503 = vpack.c.b16 %v2258, %v2257
      %v2504 = vpack.c.b16 %v2260, %v2259
      %v2505 = vpack.c.b16 %v2262, %v2261
      %v2506 = vpack.c.b16 %v2264, %v2263
      %v2507 = vpack.c.b16 %v2266, %v2265
      %v2508 = vpack.c.b16 %v2268, %v2267
      %v2509 = vpack.c.b16 %v2270, %v2269
      %v2510 = vpack.c.b16 %v2272, %v2271
      %v2511 = vpack.c.b16 %v2274, %v2273
      %v2512 = vpack.c.b16 %v2276, %v2275
      %v2513 = vpack.c.b16 %v2278, %v2277
      %v2514 = vpack.c.b16 %v2280, %v2279
      %v2515 = vpack.c.b16 %v2282, %v2281
      %v2516 = vpack.c.b16 %v2284, %v2283
      %v2517 = vpack.c.b16 %v2286, %v2285
      %v2518 = vpack.c.b16 %v2288, %v2287
      %v2519 = vpack.c.b16 %v2290, %v2289
      %v2520 = vpack.c.b16 %v2292, %v2291
      %v2521 = vpack.c.b16 %v2294, %v2293
      %v2522 = vpack.c.b16 %v2296, %v2295
      %v2523 = vpack.c.b16 %v2298, %v2297
      %v2524 = vpack.c.b16 %v2300, %v2299
      %v2525 = vpack.c.b16 %v2302, %v2301
      %v2526 = vpack.c.b16 %v2304, %v2303
      %v2527 = vpack.c.b16 %v2306, %v2305
      %v2528 = vpack.c.b16 %v2308, %v2307
      %v2529 = vpack.c.b16 %v2310, %v2309
      %v2530 = vpack.c.b16 %v2312, %v2311
      %v2531 = vpack.c.b16 %v2314, %v2313
      %v2532 = vpack.c.b16 %v2316, %v2315
      %v2533 = vpack.c.b16 %v2318, %v2317
      %v2534 = vpack.c.b16 %v2320, %v2319
      %v2535 = vpack.c.b16 %v2322, %v2321
      %v2536 = vpack.c.b16 %v2324, %v2323
      %v2537 = vpack.c.b16 %v2326, %v2325
      %v2538 = vpack.c.b16 %v2328, %v2327
      %v2539 = vpack.c.b16 %v2330, %v2329
      %v2540 = vpack.c.b16 %v2332, %v2331
      %v2541 = vpack.c.b16 %v2334, %v2333
      %v2542 = vpack.c.b16 %v2336, %v2335
      %v2543 = vpack.c.b16 %v2338, %v2337
      %v2544 = vpack.c.b16 %v2340, %v2339
      %v2545 = vpack.c.b16 %v2342, %v2341
      %v2546 = vpack.c.b16 %v2344, %v2343
      %v2547 = vpack.c.b16 %v2346, %v2345
      %v2548 = vpack.c.b16 %v2348, %v2347
      %v2549 = vpack.c.b16 %v2350, %v2349
      %v2550 = vpack.c.b16 %v2352, %v2351
      %v2551 = vpack.c.b16 %v2354, %v2353
      %v2552 = vpack.c.b16 %v2356, %v2355
      %v2553 = vpack.c.b16 %v2358, %v2357
      %v2554 = vpack.c.b16 %v2360, %v2359
      %v2555 = vpack.c.b16 %v2362, %v2361
      %v2556 = vpack.c.b16 %v2364, %v2363
      %v2557 = vpack.c.b16 %v2366, %v2365
      %v2558 = vpack.c.b16 %v2368, %v2367
      %v2559 = vpack.c.b16 %v2370, %v2369
      %v2560 = vpack.c.b16 %v2372, %v2371
      %v2561 = vpack.c.b16 %v2374, %v2373
      %v2562 = vpack.c.b16 %v2376, %v2375
      %v2563 = vpack.c.b16 %v2378, %v2377
      %v2564 = vpack.c.b16 %v2380, %v2379
      %v2565 = vpack.c.b16 %v2382, %v2381
      %v2566 = vpack.c.b16 %v2384, %v2383
      %v2567 = vpack.c.b16 %v2386, %v2385
      %v2568 = vpack.c.b16 %v2388, %v2387
      %v2569 = vpack.c.b16 %v2390, %v2389
      %v2570 = vpack.c.b16 %v2392, %v2391
      %v2571 = vpack.c.b16 %v2394, %v2393
      %v2572 = vpack.c.b16 %v2396, %v2395
      %v2573 = vpack.c.b16 %v2398, %v2397
      %v2574 = vpack.c.b16 %v2400, %v2399
      %v2575 = vpack.c.b16 %v2402, %v2401
      %v2576 = vpack.c.b16 %v2404, %v2403
      %v2577 = vpack.c.b16 %v2406, %v2405
      %v2578 = vpack.c.b16 %v2408, %v2407
      %v2579 = vpack.c.b16 %v2410, %v2409
      %v2580 = vpack.c.b16 %v2412, %v2411
      %v2581 = vpack.c.b16 %v2414, %v2413
      %v2582 = vpack.c.b16 %v2416, %v2415
      %v2583 = vpack.c.b16 %v2418, %v2417
      %v2584 = vpack.c.b16 %v2420, %v2419
      %v2585 = vpack.c.b16 %v2422, %v2421
      %v2586 = vpack.c.b16 %v2424, %v2423
      %v2587 = vpack.c.b16 %v2426, %v2425
      %v2588 = vpack.c.b16 %v2428, %v2427
      %v2589 = vpack.c.b16 %v2430, %v2429
      %v2590 = vpack.c.b16 %v2432, %v2431
      %v2591 = vpack.c.b16 %v2434, %v2433
      %v2592 = vpack.c.b16 %v2436, %v2435
      %v2593 = vpack.c.b16 %v2438, %v2437
      %v2594 = vpack.c.b16 %v2440, %v2439
      %v2595 = vpack.c.b16 %v2442, %v2441
      %v2596 = vpack.c.b16 %v2444, %v2443
      %v2597 = vpack.c.b16 %v2446, %v2445
      %v2598 = vpack.c.b16 %v2448, %v2447
      %v2599 = vpack.c.b16 %v2450, %v2449
      %v2600 = vpack.c.b16 %v2452, %v2451
      %v2601 = vpack.c.b16 %v2454, %v2453
      %v2602 = vpack.c.b16 %v2456, %v2455
      %v2603 = vpack.c.b16 %v2458, %v2457
      %v2604 = vpack.c.b16 %v2460, %v2459
      %v2605 = vpack.c.b16 %v2462, %v2461
      %v2606 = vpack.c.b16 %v2464, %v2463
      %v2607 = vpack.c.b16 %v2466, %v2465
      %v2608 = vpack.c.b16 %v2468, %v2467
      %v2609 = vpack.c.b16 %v2470, %v2469
      %v2610 = vpack.c.b16 %v2472, %v2471
      %v2611 = vpack.c.b16 %v2474, %v2473
      %v2612 = vpack.c.b16 %v2476, %v2475
      %v2613 = vpack.c.b16 %v2478, %v2477
      %v2614 = vpack.c.b16 %v2480, %v2479
      %v2615 = vpack.c.b16 %v2482, %v2481
      %v2616 = vpack.c.b16 %v2484, %v2483
      %v2617 = vpack.c.b16 %v2486, %v2485
      %v2618 = vpack.c.b16 %v2488, %v2487
      %v2619 = vpack.c.b16 %v2490, %v2489
      %v2620 = vpack.c.b16 %v2492, %v2491
      %2749 = vmatprep.subr.bf16.mxu0 0
      %2750 = vmatpush1.bf16.msra.mxu0 %v2493
      %2751 = vmatprep.subr.bf16.mxu0 0
      %2752 = vmatpush1.bf16.msra.mxu0 %v2494
      %2753 = vmatprep.subr.bf16.mxu0 0
      %2754 = vmatpush1.bf16.msra.mxu0 %v2495
      %2755 = vmatprep.subr.bf16.mxu0 0
      %2756 = vmatpush1.bf16.msra.mxu0 %v2496
      %2757 = vmatprep.subr.bf16.mxu0 0
      %2758 = vmatpush1.bf16.msra.mxu0 %v2497
      %2759 = vmatprep.subr.bf16.mxu0 0
      %2760 = vmatpush1.bf16.msra.mxu0 %v2498
      %2761 = vmatprep.subr.bf16.mxu0 0
      %2762 = vmatpush1.bf16.msra.mxu0 %v2499
      %2763 = vmatprep.subr.bf16.mxu0 0
      %2764 = vmatpush1.bf16.msra.mxu0 %v2500
      %2765 = vmatprep.subr.bf16.mxu0 0
      %2766 = vmatpush1.bf16.msra.mxu0 %v2501
      %2767 = vmatprep.subr.bf16.mxu0 0
      %2768 = vmatpush1.bf16.msra.mxu0 %v2502
      %2769 = vmatprep.subr.bf16.mxu0 0
      %2770 = vmatpush1.bf16.msra.mxu0 %v2503
      %2771 = vmatprep.subr.bf16.mxu0 0
      %2772 = vmatpush1.bf16.msra.mxu0 %v2504
      %2773 = vmatprep.subr.bf16.mxu0 0
      %2774 = vmatpush1.bf16.msra.mxu0 %v2505
      %2775 = vmatprep.subr.bf16.mxu0 0
      %2776 = vmatpush1.bf16.msra.mxu0 %v2506
      %2777 = vmatprep.subr.bf16.mxu0 0
      %2778 = vmatpush1.bf16.msra.mxu0 %v2507
      %2779 = vmatprep.subr.bf16.mxu0 0
      %2780 = vmatpush1.bf16.msra.mxu0 %v2508
      %2781 = vmatprep.mubr.bf16.mxu0 %v1470
      %2782 = vmatmul.mubr.bf16.gmra.mrb[0].mxu0 %v1469
      %v2783 = vpop.f32.mrb[0].mxu0
      %v2784 = vadd.f32 0.0, %v2783
      %v2785 = vpop.f32.mrb[0].mxu0
      %v2786 = vpop.f32.mrb[0].mxu0
      %v2787 = vadd.f32 0.0, %v2786
      %v2788 = vpop.f32.mrb[0].mxu0
      %2789 = vmatprep.mubr.bf16.mxu0 %v1486
      %2790 = vmatmul.mubr.bf16.gmra.mrb[0].mxu0 %v1485
      %v2791 = vpop.f32.mrb[0].mxu0
      %v2792 = vadd.f32 0.0, %v2791
      %v2793 = vpop.f32.mrb[0].mxu0
      %v2794 = vpop.f32.mrb[0].mxu0
      %v2795 = vadd.f32 0.0, %v2794
      %v2796 = vpop.f32.mrb[0].mxu0
      %2797 = vmatprep.mubr.bf16.mxu0 %v1502
      %2798 = vmatmul.mubr.bf16.gmra.mrb[0].mxu0 %v1501
      %v2799 = vpop.f32.mrb[0].mxu0
      %v2800 = vadd.f32 0.0, %v2799
      %v2801 = vpop.f32.mrb[0].mxu0
      %v2802 = vpop.f32.mrb[0].mxu0
      %v2803 = vadd.f32 0.0, %v2802
      %v2804 = vpop.f32.mrb[0].mxu0
      %2805 = vmatprep.mubr.bf16.mxu0 %v1518
      %2806 = vmatmul.mubr.bf16.gmra.mrb[0].mxu0 %v1517
      %v2807 = vpop.f32.mrb[0].mxu0
      %v2808 = vadd.f32 0.0, %v2807
      %v2809 = vpop.f32.mrb[0].mxu0
      %v2810 = vpop.f32.mrb[0].mxu0
      %v2811 = vadd.f32 0.0, %v2810
      %v2812 = vpop.f32.mrb[0].mxu0
      %2813 = vmatprep.mubr.bf16.mxu0 %v1534
      %2814 = vmatmul.mubr.bf16.gmra.mrb[0].mxu0 %v1533
      %v2815 = vpop.f32.mrb[0].mxu0
      %v2816 = vadd.f32 0.0, %v2815
      %v2817 = vpop.f32.mrb[0].mxu0
      %v2818 = vpop.f32.mrb[0].mxu0
      %v2819 = vadd.f32 0.0, %v2818
      %v2820 = vpop.f32.mrb[0].mxu0
      %2821 = vmatprep.mubr.bf16.mxu0 %v1550
      %2822 = vmatmul.mubr.bf16.gmra.mrb[0].mxu0 %v1549
      %v2823 = vpop.f32.mrb[0].mxu0
      %v2824 = vadd.f32 0.0, %v2823
      %v2825 = vpop.f32.mrb[0].mxu0
      %v2826 = vpop.f32.mrb[0].mxu0
      %v2827 = vadd.f32 0.0, %v2826
      %v2828 = vpop.f32.mrb[0].mxu0
      %2829 = vmatprep.mubr.bf16.mxu0 %v1566
      %2830 = vmatmul.mubr.bf16.gmra.mrb[0].mxu0 %v1565
      %v2831 = vpop.f32.mrb[0].mxu0
      %v2832 = vadd.f32 0.0, %v2831
      %v2833 = vpop.f32.mrb[0].mxu0
      %v2834 = vpop.f32.mrb[0].mxu0
      %v2835 = vadd.f32 0.0, %v2834
      %v2836 = vpop.f32.mrb[0].mxu0
      %2837 = vmatprep.mubr.bf16.mxu0 %v1582
      %2838 = vmatmul.mubr.bf16.gmra.mrb[0].mxu0 %v1581
      %v2839 = vpop.f32.mrb[0].mxu0
      %v2840 = vadd.f32 0.0, %v2839
      %v2841 = vpop.f32.mrb[0].mxu0
      %v2842 = vpop.f32.mrb[0].mxu0
      %v2843 = vadd.f32 0.0, %v2842
      %v2844 = vpop.f32.mrb[0].mxu0
      %2845 = vmatprep.mubr.bf16.mxu0 %v1598
      %2846 = vmatmul.mubr.bf16.gmra.mrb[0].mxu0 %v1597
      %v2847 = vpop.f32.mrb[0].mxu0
      %v2848 = vadd.f32 0.0, %v2847
      %v2849 = vpop.f32.mrb[0].mxu0
      %v2850 = vpop.f32.mrb[0].mxu0
      %v2851 = vadd.f32 0.0, %v2850
      %v2852 = vpop.f32.mrb[0].mxu0
      %2853 = vmatprep.mubr.bf16.mxu0 %v1614
      %2854 = vmatmul.mubr.bf16.gmra.mrb[0].mxu0 %v1613
      %v2855 = vpop.f32.mrb[0].mxu0
      %v2856 = vadd.f32 0.0, %v2855
      %v2857 = vpop.f32.mrb[0].mxu0
      %v2858 = vpop.f32.mrb[0].mxu0
      %v2859 = vadd.f32 0.0, %v2858
      %v2860 = vpop.f32.mrb[0].mxu0
      %2861 = vmatprep.mubr.bf16.mxu0 %v1630
      %2862 = vmatmul.mubr.bf16.gmra.mrb[0].mxu0 %v1629
      %v2863 = vpop.f32.mrb[0].mxu0
      %v2864 = vadd.f32 0.0, %v2863
      %v2865 = vpop.f32.mrb[0].mxu0
      %v2866 = vpop.f32.mrb[0].mxu0
      %v2867 = vadd.f32 0.0, %v2866
      %v2868 = vpop.f32.mrb[0].mxu0
      %2869 = vmatprep.mubr.bf16.mxu0 %v1646
      %2870 = vmatmul.mubr.bf16.gmra.mrb[0].mxu0 %v1645
      %v2871 = vpop.f32.mrb[0].mxu0
      %v2872 = vadd.f32 0.0, %v2871
      %v2873 = vpop.f32.mrb[0].mxu0
      %v2874 = vpop.f32.mrb[0].mxu0
      %v2875 = vadd.f32 0.0, %v2874
      %v2876 = vpop.f32.mrb[0].mxu0
      %2877 = vmatprep.mubr.bf16.mxu0 %v1662
      %2878 = vmatmul.mubr.bf16.gmra.mrb[0].mxu0 %v1661
      %v2879 = vpop.f32.mrb[0].mxu0
      %v2880 = vadd.f32 0.0, %v2879
      %v2881 = vpop.f32.mrb[0].mxu0
      %v2882 = vpop.f32.mrb[0].mxu0
      %v2883 = vadd.f32 0.0, %v2882
      %v2884 = vpop.f32.mrb[0].mxu0
      %2885 = vmatprep.mubr.bf16.mxu0 %v1678
      %2886 = vmatmul.mubr.bf16.gmra.mrb[0].mxu0 %v1677
      %v2887 = vpop.f32.mrb[0].mxu0
      %v2888 = vadd.f32 0.0, %v2887
      %v2889 = vpop.f32.mrb[0].mxu0
      %v2890 = vpop.f32.mrb[0].mxu0
      %v2891 = vadd.f32 0.0, %v2890
      %v2892 = vpop.f32.mrb[0].mxu0
      %2893 = vmatprep.mubr.bf16.mxu0 %v1694
      %2894 = vmatmul.mubr.bf16.gmra.mrb[0].mxu0 %v1693
      %v2895 = vpop.f32.mrb[0].mxu0
      %v2896 = vadd.f32 0.0, %v2895
      %v2897 = vpop.f32.mrb[0].mxu0
      %v2898 = vpop.f32.mrb[0].mxu0
      %v2899 = vadd.f32 0.0, %v2898
      %v2900 = vpop.f32.mrb[0].mxu0
      %2901 = vmatprep.mubr.bf16.mxu0 %v1710
      %2902 = vmatmul.mubr.bf16.gmra.mrb[0].mxu0 %v1709
      %v2903 = vpop.f32.mrb[0].mxu0
      %v2904 = vadd.f32 0.0, %v2903
      %v2905 = vpop.f32.mrb[0].mxu0
      %v2906 = vpop.f32.mrb[0].mxu0
      %v2907 = vadd.f32 0.0, %v2906
      %v2908 = vpop.f32.mrb[0].mxu0
      %2909 = vdwg.mxu0
      %2910 = vmatprep.subr.bf16.mxu0 0
      %2911 = vmatpush1.bf16.msra.mxu0 %v2509
      %2912 = vmatprep.subr.bf16.mxu0 0
      %2913 = vmatpush1.bf16.msra.mxu0 %v2510
      %2914 = vmatprep.subr.bf16.mxu0 0
      %2915 = vmatpush1.bf16.msra.mxu0 %v2511
      %2916 = vmatprep.subr.bf16.mxu0 0
      %2917 = vmatpush1.bf16.msra.mxu0 %v2512
      %2918 = vmatprep.subr.bf16.mxu0 0
      %2919 = vmatpush1.bf16.msra.mxu0 %v2513
      %2920 = vmatprep.subr.bf16.mxu0 0
      %2921 = vmatpush1.bf16.msra.mxu0 %v2514
      %2922 = vmatprep.subr.bf16.mxu0 0
      %2923 = vmatpush1.bf16.msra.mxu0 %v2515
      %2924 = vmatprep.subr.bf16.mxu0 0
      %2925 = vmatpush1.bf16.msra.mxu0 %v2516
      %2926 = vmatprep.subr.bf16.mxu0 0
      %2927 = vmatpush1.bf16.msra.mxu0 %v2517
      %2928 = vmatprep.subr.bf16.mxu0 0
      %2929 = vmatpush1.bf16.msra.mxu0 %v2518
      %2930 = vmatprep.subr.bf16.mxu0 0
      %2931 = vmatpush1.bf16.msra.mxu0 %v2519
      %2932 = vmatprep.subr.bf16.mxu0 0
      %2933 = vmatpush1.bf16.msra.mxu0 %v2520
      %2934 = vmatprep.subr.bf16.mxu0 0
      %2935 = vmatpush1.bf16.msra.mxu0 %v2521
      %2936 = vmatprep.subr.bf16.mxu0 0
      %2937 = vmatpush1.bf16.msra.mxu0 %v2522
      %2938 = vmatprep.subr.bf16.mxu0 0
      %2939 = vmatpush1.bf16.msra.mxu0 %v2523
      %2940 = vmatprep.subr.bf16.mxu0 0
      %2941 = vmatpush1.bf16.msra.mxu0 %v2524
      %2942 = vmatprep.mubr.bf16.mxu0 %v1472
      %2943 = vmatmul.mubr.bf16.gmra.mrb[0].mxu0 %v1471
      %v2944 = vpop.f32.mrb[0].mxu0
      %v2945 = vadd.f32 %v2784, %v2944
      %v2946 = vpop.f32.mrb[0].mxu0
      %v2947 = vpop.f32.mrb[0].mxu0
      %v2948 = vadd.f32 %v2787, %v2947
      %v2949 = vpop.f32.mrb[0].mxu0
      %2950 = vmatprep.mubr.bf16.mxu0 %v1488
      %2951 = vmatmul.mubr.bf16.gmra.mrb[0].mxu0 %v1487
      %v2952 = vpop.f32.mrb[0].mxu0
      %v2953 = vadd.f32 %v2792, %v2952
      %v2954 = vpop.f32.mrb[0].mxu0
      %v2955 = vpop.f32.mrb[0].mxu0
      %v2956 = vadd.f32 %v2795, %v2955
      %v2957 = vpop.f32.mrb[0].mxu0
      %2958 = vmatprep.mubr.bf16.mxu0 %v1504
      %2959 = vmatmul.mubr.bf16.gmra.mrb[0].mxu0 %v1503
      %v2960 = vpop.f32.mrb[0].mxu0
      %v2961 = vadd.f32 %v2800, %v2960
      %v2962 = vpop.f32.mrb[0].mxu0
      %v2963 = vpop.f32.mrb[0].mxu0
      %v2964 = vadd.f32 %v2803, %v2963
      %v2965 = vpop.f32.mrb[0].mxu0
      %2966 = vmatprep.mubr.bf16.mxu0 %v1520
      %2967 = vmatmul.mubr.bf16.gmra.mrb[0].mxu0 %v1519
      %v2968 = vpop.f32.mrb[0].mxu0
      %v2969 = vadd.f32 %v2808, %v2968
      %v2970 = vpop.f32.mrb[0].mxu0
      %v2971 = vpop.f32.mrb[0].mxu0
      %v2972 = vadd.f32 %v2811, %v2971
      %v2973 = vpop.f32.mrb[0].mxu0
      %2974 = vmatprep.mubr.bf16.mxu0 %v1536
      %2975 = vmatmul.mubr.bf16.gmra.mrb[0].mxu0 %v1535
      %v2976 = vpop.f32.mrb[0].mxu0
      %v2977 = vadd.f32 %v2816, %v2976
      %v2978 = vpop.f32.mrb[0].mxu0
      %v2979 = vpop.f32.mrb[0].mxu0
      %v2980 = vadd.f32 %v2819, %v2979
      %v2981 = vpop.f32.mrb[0].mxu0
      %2982 = vmatprep.mubr.bf16.mxu0 %v1552
      %2983 = vmatmul.mubr.bf16.gmra.mrb[0].mxu0 %v1551
      %v2984 = vpop.f32.mrb[0].mxu0
      %v2985 = vadd.f32 %v2824, %v2984
      %v2986 = vpop.f32.mrb[0].mxu0
      %v2987 = vpop.f32.mrb[0].mxu0
      %v2988 = vadd.f32 %v2827, %v2987
      %v2989 = vpop.f32.mrb[0].mxu0
      %2990 = vmatprep.mubr.bf16.mxu0 %v1568
      %2991 = vmatmul.mubr.bf16.gmra.mrb[0].mxu0 %v1567
      %v2992 = vpop.f32.mrb[0].mxu0
      %v2993 = vadd.f32 %v2832, %v2992
      %v2994 = vpop.f32.mrb[0].mxu0
      %v2995 = vpop.f32.mrb[0].mxu0
      %v2996 = vadd.f32 %v2835, %v2995
      %v2997 = vpop.f32.mrb[0].mxu0
      %2998 = vmatprep.mubr.bf16.mxu0 %v1584
      %2999 = vmatmul.mubr.bf16.gmra.mrb[0].mxu0 %v1583
      %v3000 = vpop.f32.mrb[0].mxu0
      %v3001 = vadd.f32 %v2840, %v3000
      %v3002 = vpop.f32.mrb[0].mxu0
      %v3003 = vpop.f32.mrb[0].mxu0
      %v3004 = vadd.f32 %v2843, %v3003
      %v3005 = vpop.f32.mrb[0].mxu0
      %3006 = vmatprep.mubr.bf16.mxu0 %v1600
      %3007 = vmatmul.mubr.bf16.gmra.mrb[0].mxu0 %v1599
      %v3008 = vpop.f32.mrb[0].mxu0
      %v3009 = vadd.f32 %v2848, %v3008
      %v3010 = vpop.f32.mrb[0].mxu0
      %v3011 = vpop.f32.mrb[0].mxu0
      %v3012 = vadd.f32 %v2851, %v3011
      %v3013 = vpop.f32.mrb[0].mxu0
      %3014 = vmatprep.mubr.bf16.mxu0 %v1616
      %3015 = vmatmul.mubr.bf16.gmra.mrb[0].mxu0 %v1615
      %v3016 = vpop.f32.mrb[0].mxu0
      %v3017 = vadd.f32 %v2856, %v3016
      %v3018 = vpop.f32.mrb[0].mxu0
      %v3019 = vpop.f32.mrb[0].mxu0
      %v3020 = vadd.f32 %v2859, %v3019
      %v3021 = vpop.f32.mrb[0].mxu0
      %3022 = vmatprep.mubr.bf16.mxu0 %v1632
      %3023 = vmatmul.mubr.bf16.gmra.mrb[0].mxu0 %v1631
      %v3024 = vpop.f32.mrb[0].mxu0
      %v3025 = vadd.f32 %v2864, %v3024
      %v3026 = vpop.f32.mrb[0].mxu0
      %v3027 = vpop.f32.mrb[0].mxu0
      %v3028 = vadd.f32 %v2867, %v3027
      %v3029 = vpop.f32.mrb[0].mxu0
      %3030 = vmatprep.mubr.bf16.mxu0 %v1648
      %3031 = vmatmul.mubr.bf16.gmra.mrb[0].mxu0 %v1647
      %v3032 = vpop.f32.mrb[0].mxu0
      %v3033 = vadd.f32 %v2872, %v3032
      %v3034 = vpop.f32.mrb[0].mxu0
      %v3035 = vpop.f32.mrb[0].mxu0
      %v3036 = vadd.f32 %v2875, %v3035
      %v3037 = vpop.f32.mrb[0].mxu0
      %3038 = vmatprep.mubr.bf16.mxu0 %v1664
      %3039 = vmatmul.mubr.bf16.gmra.mrb[0].mxu0 %v1663
      %v3040 = vpop.f32.mrb[0].mxu0
      %v3041 = vadd.f32 %v2880, %v3040
      %v3042 = vpop.f32.mrb[0].mxu0
      %v3043 = vpop.f32.mrb[0].mxu0
      %v3044 = vadd.f32 %v2883, %v3043
      %v3045 = vpop.f32.mrb[0].mxu0
      %3046 = vmatprep.mubr.bf16.mxu0 %v1680
      %3047 = vmatmul.mubr.bf16.gmra.mrb[0].mxu0 %v1679
      %v3048 = vpop.f32.mrb[0].mxu0
      %v3049 = vadd.f32 %v2888, %v3048
      %v3050 = vpop.f32.mrb[0].mxu0
      %v3051 = vpop.f32.mrb[0].mxu0
      %v3052 = vadd.f32 %v2891, %v3051
      %v3053 = vpop.f32.mrb[0].mxu0
      %3054 = vmatprep.mubr.bf16.mxu0 %v1696
      %3055 = vmatmul.mubr.bf16.gmra.mrb[0].mxu0 %v1695
      %v3056 = vpop.f32.mrb[0].mxu0
      %v3057 = vadd.f32 %v2896, %v3056
      %v3058 = vpop.f32.mrb[0].mxu0
      %v3059 = vpop.f32.mrb[0].mxu0
      %v3060 = vadd.f32 %v2899, %v3059
      %v3061 = vpop.f32.mrb[0].mxu0
      %3062 = vmatprep.mubr.bf16.mxu0 %v1712
      %3063 = vmatmul.mubr.bf16.gmra.mrb[0].mxu0 %v1711
      %v3064 = vpop.f32.mrb[0].mxu0
      %v3065 = vadd.f32 %v2904, %v3064
      %v3066 = vpop.f32.mrb[0].mxu0
      %v3067 = vpop.f32.mrb[0].mxu0
      %v3068 = vadd.f32 %v2907, %v3067
      %v3069 = vpop.f32.mrb[0].mxu0
      %3070 = vdwg.mxu0
      %3071 = vmatprep.subr.bf16.mxu0 0
      %3072 = vmatpush1.bf16.msra.mxu0 %v2525
      %3073 = vmatprep.subr.bf16.mxu0 0
      %3074 = vmatpush1.bf16.msra.mxu0 %v2526
      %3075 = vmatprep.subr.bf16.mxu0 0
      %3076 = vmatpush1.bf16.msra.mxu0 %v2527
      %3077 = vmatprep.subr.bf16.mxu0 0
      %3078 = vmatpush1.bf16.msra.mxu0 %v2528
      %3079 = vmatprep.subr.bf16.mxu0 0
      %3080 = vmatpush1.bf16.msra.mxu0 %v2529
      %3081 = vmatprep.subr.bf16.mxu0 0
      %3082 = vmatpush1.bf16.msra.mxu0 %v2530
      %3083 = vmatprep.subr.bf16.mxu0 0
      %3084 = vmatpush1.bf16.msra.mxu0 %v2531
      %3085 = vmatprep.subr.bf16.mxu0 0
      %3086 = vmatpush1.bf16.msra.mxu0 %v2532
      %3087 = vmatprep.subr.bf16.mxu0 0
      %3088 = vmatpush1.bf16.msra.mxu0 %v2533
      %3089 = vmatprep.subr.bf16.mxu0 0
      %3090 = vmatpush1.bf16.msra.mxu0 %v2534
      %3091 = vmatprep.subr.bf16.mxu0 0
      %3092 = vmatpush1.bf16.msra.mxu0 %v2535
      %3093 = vmatprep.subr.bf16.mxu0 0
      %3094 = vmatpush1.bf16.msra.mxu0 %v2536
      %3095 = vmatprep.subr.bf16.mxu0 0
      %3096 = vmatpush1.bf16.msra.mxu0 %v2537
      %3097 = vmatprep.subr.bf16.mxu0 0
      %3098 = vmatpush1.bf16.msra.mxu0 %v2538
      %3099 = vmatprep.subr.bf16.mxu0 0
      %3100 = vmatpush1.bf16.msra.mxu0 %v2539
      %3101 = vmatprep.subr.bf16.mxu0 0
      %3102 = vmatpush1.bf16.msra.mxu0 %v2540
      %3103 = vmatprep.mubr.bf16.mxu0 %v1474
      %3104 = vmatmul.mubr.bf16.gmra.mrb[0].mxu0 %v1473
      %v3105 = vpop.f32.mrb[0].mxu0
      %v3106 = vadd.f32 %v2945, %v3105
      %v3107 = vpop.f32.mrb[0].mxu0
      %v3108 = vpop.f32.mrb[0].mxu0
      %v3109 = vadd.f32 %v2948, %v3108
      %v3110 = vpop.f32.mrb[0].mxu0
      %3111 = vmatprep.mubr.bf16.mxu0 %v1490
      %3112 = vmatmul.mubr.bf16.gmra.mrb[0].mxu0 %v1489
      %v3113 = vpop.f32.mrb[0].mxu0
      %v3114 = vadd.f32 %v2953, %v3113
      %v3115 = vpop.f32.mrb[0].mxu0
      %v3116 = vpop.f32.mrb[0].mxu0
      %v3117 = vadd.f32 %v2956, %v3116
      %v3118 = vpop.f32.mrb[0].mxu0
      %3119 = vmatprep.mubr.bf16.mxu0 %v1506
      %3120 = vmatmul.mubr.bf16.gmra.mrb[0].mxu0 %v1505
      %v3121 = vpop.f32.mrb[0].mxu0
      %v3122 = vadd.f32 %v2961, %v3121
      %v3123 = vpop.f32.mrb[0].mxu0
      %v3124 = vpop.f32.mrb[0].mxu0
      %v3125 = vadd.f32 %v2964, %v3124
      %v3126 = vpop.f32.mrb[0].mxu0
      %3127 = vmatprep.mubr.bf16.mxu0 %v1522
      %3128 = vmatmul.mubr.bf16.gmra.mrb[0].mxu0 %v1521
      %v3129 = vpop.f32.mrb[0].mxu0
      %v3130 = vadd.f32 %v2969, %v3129
      %v3131 = vpop.f32.mrb[0].mxu0
      %v3132 = vpop.f32.mrb[0].mxu0
      %v3133 = vadd.f32 %v2972, %v3132
      %v3134 = vpop.f32.mrb[0].mxu0
      %3135 = vmatprep.mubr.bf16.mxu0 %v1538
      %3136 = vmatmul.mubr.bf16.gmra.mrb[0].mxu0 %v1537
      %v3137 = vpop.f32.mrb[0].mxu0
      %v3138 = vadd.f32 %v2977, %v3137
      %v3139 = vpop.f32.mrb[0].mxu0
      %v3140 = vpop.f32.mrb[0].mxu0
      %v3141 = vadd.f32 %v2980, %v3140
      %v3142 = vpop.f32.mrb[0].mxu0
      %3143 = vmatprep.mubr.bf16.mxu0 %v1554
      %3144 = vmatmul.mubr.bf16.gmra.mrb[0].mxu0 %v1553
      %v3145 = vpop.f32.mrb[0].mxu0
      %v3146 = vadd.f32 %v2985, %v3145
      %v3147 = vpop.f32.mrb[0].mxu0
      %v3148 = vpop.f32.mrb[0].mxu0
      %v3149 = vadd.f32 %v2988, %v3148
      %v3150 = vpop.f32.mrb[0].mxu0
      %3151 = vmatprep.mubr.bf16.mxu0 %v1570
      %3152 = vmatmul.mubr.bf16.gmra.mrb[0].mxu0 %v1569
      %v3153 = vpop.f32.mrb[0].mxu0
      %v3154 = vadd.f32 %v2993, %v3153
      %v3155 = vpop.f32.mrb[0].mxu0
      %v3156 = vpop.f32.mrb[0].mxu0
      %v3157 = vadd.f32 %v2996, %v3156
      %v3158 = vpop.f32.mrb[0].mxu0
      %3159 = vmatprep.mubr.bf16.mxu0 %v1586
      %3160 = vmatmul.mubr.bf16.gmra.mrb[0].mxu0 %v1585
      %v3161 = vpop.f32.mrb[0].mxu0
      %v3162 = vadd.f32 %v3001, %v3161
      %v3163 = vpop.f32.mrb[0].mxu0
      %v3164 = vpop.f32.mrb[0].mxu0
      %v3165 = vadd.f32 %v3004, %v3164
      %v3166 = vpop.f32.mrb[0].mxu0
      %3167 = vmatprep.mubr.bf16.mxu0 %v1602
      %3168 = vmatmul.mubr.bf16.gmra.mrb[0].mxu0 %v1601
      %v3169 = vpop.f32.mrb[0].mxu0
      %v3170 = vadd.f32 %v3009, %v3169
      %v3171 = vpop.f32.mrb[0].mxu0
      %v3172 = vpop.f32.mrb[0].mxu0
      %v3173 = vadd.f32 %v3012, %v3172
      %v3174 = vpop.f32.mrb[0].mxu0
      %3175 = vmatprep.mubr.bf16.mxu0 %v1618
      %3176 = vmatmul.mubr.bf16.gmra.mrb[0].mxu0 %v1617
      %v3177 = vpop.f32.mrb[0].mxu0
      %v3178 = vadd.f32 %v3017, %v3177
      %v3179 = vpop.f32.mrb[0].mxu0
      %v3180 = vpop.f32.mrb[0].mxu0
      %v3181 = vadd.f32 %v3020, %v3180
      %v3182 = vpop.f32.mrb[0].mxu0
      %3183 = vmatprep.mubr.bf16.mxu0 %v1634
      %3184 = vmatmul.mubr.bf16.gmra.mrb[0].mxu0 %v1633
      %v3185 = vpop.f32.mrb[0].mxu0
      %v3186 = vadd.f32 %v3025, %v3185
      %v3187 = vpop.f32.mrb[0].mxu0
      %v3188 = vpop.f32.mrb[0].mxu0
      %v3189 = vadd.f32 %v3028, %v3188
      %v3190 = vpop.f32.mrb[0].mxu0
      %3191 = vmatprep.mubr.bf16.mxu0 %v1650
      %3192 = vmatmul.mubr.bf16.gmra.mrb[0].mxu0 %v1649
      %v3193 = vpop.f32.mrb[0].mxu0
      %v3194 = vadd.f32 %v3033, %v3193
      %v3195 = vpop.f32.mrb[0].mxu0
      %v3196 = vpop.f32.mrb[0].mxu0
      %v3197 = vadd.f32 %v3036, %v3196
      %v3198 = vpop.f32.mrb[0].mxu0
      %3199 = vmatprep.mubr.bf16.mxu0 %v1666
      %3200 = vmatmul.mubr.bf16.gmra.mrb[0].mxu0 %v1665
      %v3201 = vpop.f32.mrb[0].mxu0
      %v3202 = vadd.f32 %v3041, %v3201
      %v3203 = vpop.f32.mrb[0].mxu0
      %v3204 = vpop.f32.mrb[0].mxu0
      %v3205 = vadd.f32 %v3044, %v3204
      %v3206 = vpop.f32.mrb[0].mxu0
      %3207 = vmatprep.mubr.bf16.mxu0 %v1682
      %3208 = vmatmul.mubr.bf16.gmra.mrb[0].mxu0 %v1681
      %v3209 = vpop.f32.mrb[0].mxu0
      %v3210 = vadd.f32 %v3049, %v3209
      %v3211 = vpop.f32.mrb[0].mxu0
      %v3212 = vpop.f32.mrb[0].mxu0
      %v3213 = vadd.f32 %v3052, %v3212
      %v3214 = vpop.f32.mrb[0].mxu0
      %3215 = vmatprep.mubr.bf16.mxu0 %v1698
      %3216 = vmatmul.mubr.bf16.gmra.mrb[0].mxu0 %v1697
      %v3217 = vpop.f32.mrb[0].mxu0
      %v3218 = vadd.f32 %v3057, %v3217
      %v3219 = vpop.f32.mrb[0].mxu0
      %v3220 = vpop.f32.mrb[0].mxu0
      %v3221 = vadd.f32 %v3060, %v3220
      %v3222 = vpop.f32.mrb[0].mxu0
      %3223 = vmatprep.mubr.bf16.mxu0 %v1714
      %3224 = vmatmul.mubr.bf16.gmra.mrb[0].mxu0 %v1713
      %v3225 = vpop.f32.mrb[0].mxu0
      %v3226 = vadd.f32 %v3065, %v3225
      %v3227 = vpop.f32.mrb[0].mxu0
      %v3228 = vpop.f32.mrb[0].mxu0
      %v3229 = vadd.f32 %v3068, %v3228
      %v3230 = vpop.f32.mrb[0].mxu0
      %3231 = vdwg.mxu0
      %3232 = vmatprep.subr.bf16.mxu0 0
      %3233 = vmatpush1.bf16.msra.mxu0 %v2541
      %3234 = vmatprep.subr.bf16.mxu0 0
      %3235 = vmatpush1.bf16.msra.mxu0 %v2542
      %3236 = vmatprep.subr.bf16.mxu0 0
      %3237 = vmatpush1.bf16.msra.mxu0 %v2543
      %3238 = vmatprep.subr.bf16.mxu0 0
      %3239 = vmatpush1.bf16.msra.mxu0 %v2544
      %3240 = vmatprep.subr.bf16.mxu0 0
      %3241 = vmatpush1.bf16.msra.mxu0 %v2545
      %3242 = vmatprep.subr.bf16.mxu0 0
      %3243 = vmatpush1.bf16.msra.mxu0 %v2546
      %3244 = vmatprep.subr.bf16.mxu0 0
      %3245 = vmatpush1.bf16.msra.mxu0 %v2547
      %3246 = vmatprep.subr.bf16.mxu0 0
      %3247 = vmatpush1.bf16.msra.mxu0 %v2548
      %3248 = vmatprep.subr.bf16.mxu0 0
      %3249 = vmatpush1.bf16.msra.mxu0 %v2549
      %3250 = vmatprep.subr.bf16.mxu0 0
      %3251 = vmatpush1.bf16.msra.mxu0 %v2550
      %3252 = vmatprep.subr.bf16.mxu0 0
      %3253 = vmatpush1.bf16.msra.mxu0 %v2551
      %3254 = vmatprep.subr.bf16.mxu0 0
      %3255 = vmatpush1.bf16.msra.mxu0 %v2552
      %3256 = vmatprep.subr.bf16.mxu0 0
      %3257 = vmatpush1.bf16.msra.mxu0 %v2553
      %3258 = vmatprep.subr.bf16.mxu0 0
      %3259 = vmatpush1.bf16.msra.mxu0 %v2554
      %3260 = vmatprep.subr.bf16.mxu0 0
      %3261 = vmatpush1.bf16.msra.mxu0 %v2555
      %3262 = vmatprep.subr.bf16.mxu0 0
      %3263 = vmatpush1.bf16.msra.mxu0 %v2556
      %3264 = vmatprep.mubr.bf16.mxu0 %v1476
      %3265 = vmatmul.mubr.bf16.gmra.mrb[0].mxu0 %v1475
      %v3266 = vpop.f32.mrb[0].mxu0
      %v3267 = vadd.f32 %v3106, %v3266
      %v3268 = vpop.f32.mrb[0].mxu0
      %v3269 = vpop.f32.mrb[0].mxu0
      %v3270 = vadd.f32 %v3109, %v3269
      %v3271 = vpop.f32.mrb[0].mxu0
      %3272 = vmatprep.mubr.bf16.mxu0 %v1492
      %3273 = vmatmul.mubr.bf16.gmra.mrb[0].mxu0 %v1491
      %v3274 = vpop.f32.mrb[0].mxu0
      %v3275 = vadd.f32 %v3114, %v3274
      %v3276 = vpop.f32.mrb[0].mxu0
      %v3277 = vpop.f32.mrb[0].mxu0
      %v3278 = vadd.f32 %v3117, %v3277
      %v3279 = vpop.f32.mrb[0].mxu0
      %3280 = vmatprep.mubr.bf16.mxu0 %v1508
      %3281 = vmatmul.mubr.bf16.gmra.mrb[0].mxu0 %v1507
      %v3282 = vpop.f32.mrb[0].mxu0
      %v3283 = vadd.f32 %v3122, %v3282
      %v3284 = vpop.f32.mrb[0].mxu0
      %v3285 = vpop.f32.mrb[0].mxu0
      %v3286 = vadd.f32 %v3125, %v3285
      %v3287 = vpop.f32.mrb[0].mxu0
      %3288 = vmatprep.mubr.bf16.mxu0 %v1524
      %3289 = vmatmul.mubr.bf16.gmra.mrb[0].mxu0 %v1523
      %v3290 = vpop.f32.mrb[0].mxu0
      %v3291 = vadd.f32 %v3130, %v3290
      %v3292 = vpop.f32.mrb[0].mxu0
      %v3293 = vpop.f32.mrb[0].mxu0
      %v3294 = vadd.f32 %v3133, %v3293
      %v3295 = vpop.f32.mrb[0].mxu0
      %3296 = vmatprep.mubr.bf16.mxu0 %v1540
      %3297 = vmatmul.mubr.bf16.gmra.mrb[0].mxu0 %v1539
      %v3298 = vpop.f32.mrb[0].mxu0
      %v3299 = vadd.f32 %v3138, %v3298
      %v3300 = vpop.f32.mrb[0].mxu0
      %v3301 = vpop.f32.mrb[0].mxu0
      %v3302 = vadd.f32 %v3141, %v3301
      %v3303 = vpop.f32.mrb[0].mxu0
      %3304 = vmatprep.mubr.bf16.mxu0 %v1556
      %3305 = vmatmul.mubr.bf16.gmra.mrb[0].mxu0 %v1555
      %v3306 = vpop.f32.mrb[0].mxu0
      %v3307 = vadd.f32 %v3146, %v3306
      %v3308 = vpop.f32.mrb[0].mxu0
      %v3309 = vpop.f32.mrb[0].mxu0
      %v3310 = vadd.f32 %v3149, %v3309
      %v3311 = vpop.f32.mrb[0].mxu0
      %3312 = vmatprep.mubr.bf16.mxu0 %v1572
      %3313 = vmatmul.mubr.bf16.gmra.mrb[0].mxu0 %v1571
      %v3314 = vpop.f32.mrb[0].mxu0
      %v3315 = vadd.f32 %v3154, %v3314
      %v3316 = vpop.f32.mrb[0].mxu0
      %v3317 = vpop.f32.mrb[0].mxu0
      %v3318 = vadd.f32 %v3157, %v3317
      %v3319 = vpop.f32.mrb[0].mxu0
      %3320 = vmatprep.mubr.bf16.mxu0 %v1588
      %3321 = vmatmul.mubr.bf16.gmra.mrb[0].mxu0 %v1587
      %v3322 = vpop.f32.mrb[0].mxu0
      %v3323 = vadd.f32 %v3162, %v3322
      %v3324 = vpop.f32.mrb[0].mxu0
      %v3325 = vpop.f32.mrb[0].mxu0
      %v3326 = vadd.f32 %v3165, %v3325
      %v3327 = vpop.f32.mrb[0].mxu0
      %3328 = vmatprep.mubr.bf16.mxu0 %v1604
      %3329 = vmatmul.mubr.bf16.gmra.mrb[0].mxu0 %v1603
      %v3330 = vpop.f32.mrb[0].mxu0
      %v3331 = vadd.f32 %v3170, %v3330
      %v3332 = vpop.f32.mrb[0].mxu0
      %v3333 = vpop.f32.mrb[0].mxu0
      %v3334 = vadd.f32 %v3173, %v3333
      %v3335 = vpop.f32.mrb[0].mxu0
      %3336 = vmatprep.mubr.bf16.mxu0 %v1620
      %3337 = vmatmul.mubr.bf16.gmra.mrb[0].mxu0 %v1619
      %v3338 = vpop.f32.mrb[0].mxu0
      %v3339 = vadd.f32 %v3178, %v3338
      %v3340 = vpop.f32.mrb[0].mxu0
      %v3341 = vpop.f32.mrb[0].mxu0
      %v3342 = vadd.f32 %v3181, %v3341
      %v3343 = vpop.f32.mrb[0].mxu0
      %3344 = vmatprep.mubr.bf16.mxu0 %v1636
      %3345 = vmatmul.mubr.bf16.gmra.mrb[0].mxu0 %v1635
      %v3346 = vpop.f32.mrb[0].mxu0
      %v3347 = vadd.f32 %v3186, %v3346
      %v3348 = vpop.f32.mrb[0].mxu0
      %v3349 = vpop.f32.mrb[0].mxu0
      %v3350 = vadd.f32 %v3189, %v3349
      %v3351 = vpop.f32.mrb[0].mxu0
      %3352 = vmatprep.mubr.bf16.mxu0 %v1652
      %3353 = vmatmul.mubr.bf16.gmra.mrb[0].mxu0 %v1651
      %v3354 = vpop.f32.mrb[0].mxu0
      %v3355 = vadd.f32 %v3194, %v3354
      %v3356 = vpop.f32.mrb[0].mxu0
      %v3357 = vpop.f32.mrb[0].mxu0
      %v3358 = vadd.f32 %v3197, %v3357
      %v3359 = vpop.f32.mrb[0].mxu0
      %3360 = vmatprep.mubr.bf16.mxu0 %v1668
      %3361 = vmatmul.mubr.bf16.gmra.mrb[0].mxu0 %v1667
      %v3362 = vpop.f32.mrb[0].mxu0
      %v3363 = vadd.f32 %v3202, %v3362
      %v3364 = vpop.f32.mrb[0].mxu0
      %v3365 = vpop.f32.mrb[0].mxu0
      %v3366 = vadd.f32 %v3205, %v3365
      %v3367 = vpop.f32.mrb[0].mxu0
      %3368 = vmatprep.mubr.bf16.mxu0 %v1684
      %3369 = vmatmul.mubr.bf16.gmra.mrb[0].mxu0 %v1683
      %v3370 = vpop.f32.mrb[0].mxu0
      %v3371 = vadd.f32 %v3210, %v3370
      %v3372 = vpop.f32.mrb[0].mxu0
      %v3373 = vpop.f32.mrb[0].mxu0
      %v3374 = vadd.f32 %v3213, %v3373
      %v3375 = vpop.f32.mrb[0].mxu0
      %3376 = vmatprep.mubr.bf16.mxu0 %v1700
      %3377 = vmatmul.mubr.bf16.gmra.mrb[0].mxu0 %v1699
      %v3378 = vpop.f32.mrb[0].mxu0
      %v3379 = vadd.f32 %v3218, %v3378
      %v3380 = vpop.f32.mrb[0].mxu0
      %v3381 = vpop.f32.mrb[0].mxu0
      %v3382 = vadd.f32 %v3221, %v3381
      %v3383 = vpop.f32.mrb[0].mxu0
      %3384 = vmatprep.mubr.bf16.mxu0 %v1716
      %3385 = vmatmul.mubr.bf16.gmra.mrb[0].mxu0 %v1715
      %v3386 = vpop.f32.mrb[0].mxu0
      %v3387 = vadd.f32 %v3226, %v3386
      %v3388 = vpop.f32.mrb[0].mxu0
      %v3389 = vpop.f32.mrb[0].mxu0
      %v3390 = vadd.f32 %v3229, %v3389
      %v3391 = vpop.f32.mrb[0].mxu0
      %3392 = vdwg.mxu0
      %3393 = vmatprep.subr.bf16.mxu0 0
      %3394 = vmatpush1.bf16.msra.mxu0 %v2557
      %3395 = vmatprep.subr.bf16.mxu0 0
      %3396 = vmatpush1.bf16.msra.mxu0 %v2558
      %3397 = vmatprep.subr.bf16.mxu0 0
      %3398 = vmatpush1.bf16.msra.mxu0 %v2559
      %3399 = vmatprep.subr.bf16.mxu0 0
      %3400 = vmatpush1.bf16.msra.mxu0 %v2560
      %3401 = vmatprep.subr.bf16.mxu0 0
      %3402 = vmatpush1.bf16.msra.mxu0 %v2561
      %3403 = vmatprep.subr.bf16.mxu0 0
      %3404 = vmatpush1.bf16.msra.mxu0 %v2562
      %3405 = vmatprep.subr.bf16.mxu0 0
      %3406 = vmatpush1.bf16.msra.mxu0 %v2563
      %3407 = vmatprep.subr.bf16.mxu0 0
      %3408 = vmatpush1.bf16.msra.mxu0 %v2564
      %3409 = vmatprep.subr.bf16.mxu0 0
      %3410 = vmatpush1.bf16.msra.mxu0 %v2565
      %3411 = vmatprep.subr.bf16.mxu0 0
      %3412 = vmatpush1.bf16.msra.mxu0 %v2566
      %3413 = vmatprep.subr.bf16.mxu0 0
      %3414 = vmatpush1.bf16.msra.mxu0 %v2567
      %3415 = vmatprep.subr.bf16.mxu0 0
      %3416 = vmatpush1.bf16.msra.mxu0 %v2568
      %3417 = vmatprep.subr.bf16.mxu0 0
      %3418 = vmatpush1.bf16.msra.mxu0 %v2569
      %3419 = vmatprep.subr.bf16.mxu0 0
      %3420 = vmatpush1.bf16.msra.mxu0 %v2570
      %3421 = vmatprep.subr.bf16.mxu0 0
      %3422 = vmatpush1.bf16.msra.mxu0 %v2571
      %3423 = vmatprep.subr.bf16.mxu0 0
      %3424 = vmatpush1.bf16.msra.mxu0 %v2572
      %3425 = vmatprep.mubr.bf16.mxu0 %v1478
      %3426 = vmatmul.mubr.bf16.gmra.mrb[0].mxu0 %v1477
      %v3427 = vpop.f32.mrb[0].mxu0
      %v3428 = vadd.f32 %v3267, %v3427
      %v3429 = vpop.f32.mrb[0].mxu0
      %v3430 = vpop.f32.mrb[0].mxu0
      %v3431 = vadd.f32 %v3270, %v3430
      %v3432 = vpop.f32.mrb[0].mxu0
      %3433 = vmatprep.mubr.bf16.mxu0 %v1494
      %3434 = vmatmul.mubr.bf16.gmra.mrb[0].mxu0 %v1493
      %v3435 = vpop.f32.mrb[0].mxu0
      %v3436 = vadd.f32 %v3275, %v3435
      %v3437 = vpop.f32.mrb[0].mxu0
      %v3438 = vpop.f32.mrb[0].mxu0
      %v3439 = vadd.f32 %v3278, %v3438
      %v3440 = vpop.f32.mrb[0].mxu0
      %3441 = vmatprep.mubr.bf16.mxu0 %v1510
      %3442 = vmatmul.mubr.bf16.gmra.mrb[0].mxu0 %v1509
      %v3443 = vpop.f32.mrb[0].mxu0
      %v3444 = vadd.f32 %v3283, %v3443
      %v3445 = vpop.f32.mrb[0].mxu0
      %v3446 = vpop.f32.mrb[0].mxu0
      %v3447 = vadd.f32 %v3286, %v3446
      %v3448 = vpop.f32.mrb[0].mxu0
      %3449 = vmatprep.mubr.bf16.mxu0 %v1526
      %3450 = vmatmul.mubr.bf16.gmra.mrb[0].mxu0 %v1525
      %v3451 = vpop.f32.mrb[0].mxu0
      %v3452 = vadd.f32 %v3291, %v3451
      %v3453 = vpop.f32.mrb[0].mxu0
      %v3454 = vpop.f32.mrb[0].mxu0
      %v3455 = vadd.f32 %v3294, %v3454
      %v3456 = vpop.f32.mrb[0].mxu0
      %3457 = vmatprep.mubr.bf16.mxu0 %v1542
      %3458 = vmatmul.mubr.bf16.gmra.mrb[0].mxu0 %v1541
      %v3459 = vpop.f32.mrb[0].mxu0
      %v3460 = vadd.f32 %v3299, %v3459
      %v3461 = vpop.f32.mrb[0].mxu0
      %v3462 = vpop.f32.mrb[0].mxu0
      %v3463 = vadd.f32 %v3302, %v3462
      %v3464 = vpop.f32.mrb[0].mxu0
      %3465 = vmatprep.mubr.bf16.mxu0 %v1558
      %3466 = vmatmul.mubr.bf16.gmra.mrb[0].mxu0 %v1557
      %v3467 = vpop.f32.mrb[0].mxu0
      %v3468 = vadd.f32 %v3307, %v3467
      %v3469 = vpop.f32.mrb[0].mxu0
      %v3470 = vpop.f32.mrb[0].mxu0
      %v3471 = vadd.f32 %v3310, %v3470
      %v3472 = vpop.f32.mrb[0].mxu0
      %3473 = vmatprep.mubr.bf16.mxu0 %v1574
      %3474 = vmatmul.mubr.bf16.gmra.mrb[0].mxu0 %v1573
      %v3475 = vpop.f32.mrb[0].mxu0
      %v3476 = vadd.f32 %v3315, %v3475
      %v3477 = vpop.f32.mrb[0].mxu0
      %v3478 = vpop.f32.mrb[0].mxu0
      %v3479 = vadd.f32 %v3318, %v3478
      %v3480 = vpop.f32.mrb[0].mxu0
      %3481 = vmatprep.mubr.bf16.mxu0 %v1590
      %3482 = vmatmul.mubr.bf16.gmra.mrb[0].mxu0 %v1589
      %v3483 = vpop.f32.mrb[0].mxu0
      %v3484 = vadd.f32 %v3323, %v3483
      %v3485 = vpop.f32.mrb[0].mxu0
      %v3486 = vpop.f32.mrb[0].mxu0
      %v3487 = vadd.f32 %v3326, %v3486
      %v3488 = vpop.f32.mrb[0].mxu0
      %3489 = vmatprep.mubr.bf16.mxu0 %v1606
      %3490 = vmatmul.mubr.bf16.gmra.mrb[0].mxu0 %v1605
      %v3491 = vpop.f32.mrb[0].mxu0
      %v3492 = vadd.f32 %v3331, %v3491
      %v3493 = vpop.f32.mrb[0].mxu0
      %v3494 = vpop.f32.mrb[0].mxu0
      %v3495 = vadd.f32 %v3334, %v3494
      %v3496 = vpop.f32.mrb[0].mxu0
      %3497 = vmatprep.mubr.bf16.mxu0 %v1622
      %3498 = vmatmul.mubr.bf16.gmra.mrb[0].mxu0 %v1621
      %v3499 = vpop.f32.mrb[0].mxu0
      %v3500 = vadd.f32 %v3339, %v3499
      %v3501 = vpop.f32.mrb[0].mxu0
      %v3502 = vpop.f32.mrb[0].mxu0
      %v3503 = vadd.f32 %v3342, %v3502
      %v3504 = vpop.f32.mrb[0].mxu0
      %3505 = vmatprep.mubr.bf16.mxu0 %v1638
      %3506 = vmatmul.mubr.bf16.gmra.mrb[0].mxu0 %v1637
      %v3507 = vpop.f32.mrb[0].mxu0
      %v3508 = vadd.f32 %v3347, %v3507
      %v3509 = vpop.f32.mrb[0].mxu0
      %v3510 = vpop.f32.mrb[0].mxu0
      %v3511 = vadd.f32 %v3350, %v3510
      %v3512 = vpop.f32.mrb[0].mxu0
      %3513 = vmatprep.mubr.bf16.mxu0 %v1654
      %3514 = vmatmul.mubr.bf16.gmra.mrb[0].mxu0 %v1653
      %v3515 = vpop.f32.mrb[0].mxu0
      %v3516 = vadd.f32 %v3355, %v3515
      %v3517 = vpop.f32.mrb[0].mxu0
      %v3518 = vpop.f32.mrb[0].mxu0
      %v3519 = vadd.f32 %v3358, %v3518
      %v3520 = vpop.f32.mrb[0].mxu0
      %3521 = vmatprep.mubr.bf16.mxu0 %v1670
      %3522 = vmatmul.mubr.bf16.gmra.mrb[0].mxu0 %v1669
      %v3523 = vpop.f32.mrb[0].mxu0
      %v3524 = vadd.f32 %v3363, %v3523
      %v3525 = vpop.f32.mrb[0].mxu0
      %v3526 = vpop.f32.mrb[0].mxu0
      %v3527 = vadd.f32 %v3366, %v3526
      %v3528 = vpop.f32.mrb[0].mxu0
      %3529 = vmatprep.mubr.bf16.mxu0 %v1686
      %3530 = vmatmul.mubr.bf16.gmra.mrb[0].mxu0 %v1685
      %v3531 = vpop.f32.mrb[0].mxu0
      %v3532 = vadd.f32 %v3371, %v3531
      %v3533 = vpop.f32.mrb[0].mxu0
      %v3534 = vpop.f32.mrb[0].mxu0
      %v3535 = vadd.f32 %v3374, %v3534
      %v3536 = vpop.f32.mrb[0].mxu0
      %3537 = vmatprep.mubr.bf16.mxu0 %v1702
      %3538 = vmatmul.mubr.bf16.gmra.mrb[0].mxu0 %v1701
      %v3539 = vpop.f32.mrb[0].mxu0
      %v3540 = vadd.f32 %v3379, %v3539
      %v3541 = vpop.f32.mrb[0].mxu0
      %v3542 = vpop.f32.mrb[0].mxu0
      %v3543 = vadd.f32 %v3382, %v3542
      %v3544 = vpop.f32.mrb[0].mxu0
      %3545 = vmatprep.mubr.bf16.mxu0 %v1718
      %3546 = vmatmul.mubr.bf16.gmra.mrb[0].mxu0 %v1717
      %v3547 = vpop.f32.mrb[0].mxu0
      %v3548 = vadd.f32 %v3387, %v3547
      %v3549 = vpop.f32.mrb[0].mxu0
      %v3550 = vpop.f32.mrb[0].mxu0
      %v3551 = vadd.f32 %v3390, %v3550
      %v3552 = vpop.f32.mrb[0].mxu0
      %3553 = vdwg.mxu0
      %3554 = vmatprep.subr.bf16.mxu0 0
      %3555 = vmatpush1.bf16.msra.mxu0 %v2573
      %3556 = vmatprep.subr.bf16.mxu0 0
      %3557 = vmatpush1.bf16.msra.mxu0 %v2574
      %3558 = vmatprep.subr.bf16.mxu0 0
      %3559 = vmatpush1.bf16.msra.mxu0 %v2575
      %3560 = vmatprep.subr.bf16.mxu0 0
      %3561 = vmatpush1.bf16.msra.mxu0 %v2576
      %3562 = vmatprep.subr.bf16.mxu0 0
      %3563 = vmatpush1.bf16.msra.mxu0 %v2577
      %3564 = vmatprep.subr.bf16.mxu0 0
      %3565 = vmatpush1.bf16.msra.mxu0 %v2578
      %3566 = vmatprep.subr.bf16.mxu0 0
      %3567 = vmatpush1.bf16.msra.mxu0 %v2579
      %3568 = vmatprep.subr.bf16.mxu0 0
      %3569 = vmatpush1.bf16.msra.mxu0 %v2580
      %3570 = vmatprep.subr.bf16.mxu0 0
      %3571 = vmatpush1.bf16.msra.mxu0 %v2581
      %3572 = vmatprep.subr.bf16.mxu0 0
      %3573 = vmatpush1.bf16.msra.mxu0 %v2582
      %3574 = vmatprep.subr.bf16.mxu0 0
      %3575 = vmatpush1.bf16.msra.mxu0 %v2583
      %3576 = vmatprep.subr.bf16.mxu0 0
      %3577 = vmatpush1.bf16.msra.mxu0 %v2584
      %3578 = vmatprep.subr.bf16.mxu0 0
      %3579 = vmatpush1.bf16.msra.mxu0 %v2585
      %3580 = vmatprep.subr.bf16.mxu0 0
      %3581 = vmatpush1.bf16.msra.mxu0 %v2586
      %3582 = vmatprep.subr.bf16.mxu0 0
      %3583 = vmatpush1.bf16.msra.mxu0 %v2587
      %3584 = vmatprep.subr.bf16.mxu0 0
      %3585 = vmatpush1.bf16.msra.mxu0 %v2588
      %3586 = vmatprep.mubr.bf16.mxu0 %v1480
      %3587 = vmatmul.mubr.bf16.gmra.mrb[0].mxu0 %v1479
      %v3588 = vpop.f32.mrb[0].mxu0
      %v3589 = vadd.f32 %v3428, %v3588
      %v3590 = vpop.f32.mrb[0].mxu0
      %v3591 = vpop.f32.mrb[0].mxu0
      %v3592 = vadd.f32 %v3431, %v3591
      %v3593 = vpop.f32.mrb[0].mxu0
      %3594 = vmatprep.mubr.bf16.mxu0 %v1496
      %3595 = vmatmul.mubr.bf16.gmra.mrb[0].mxu0 %v1495
      %v3596 = vpop.f32.mrb[0].mxu0
      %v3597 = vadd.f32 %v3436, %v3596
      %v3598 = vpop.f32.mrb[0].mxu0
      %v3599 = vpop.f32.mrb[0].mxu0
      %v3600 = vadd.f32 %v3439, %v3599
      %v3601 = vpop.f32.mrb[0].mxu0
      %3602 = vmatprep.mubr.bf16.mxu0 %v1512
      %3603 = vmatmul.mubr.bf16.gmra.mrb[0].mxu0 %v1511
      %v3604 = vpop.f32.mrb[0].mxu0
      %v3605 = vadd.f32 %v3444, %v3604
      %v3606 = vpop.f32.mrb[0].mxu0
      %v3607 = vpop.f32.mrb[0].mxu0
      %v3608 = vadd.f32 %v3447, %v3607
      %v3609 = vpop.f32.mrb[0].mxu0
      %3610 = vmatprep.mubr.bf16.mxu0 %v1528
      %3611 = vmatmul.mubr.bf16.gmra.mrb[0].mxu0 %v1527
      %v3612 = vpop.f32.mrb[0].mxu0
      %v3613 = vadd.f32 %v3452, %v3612
      %v3614 = vpop.f32.mrb[0].mxu0
      %v3615 = vpop.f32.mrb[0].mxu0
      %v3616 = vadd.f32 %v3455, %v3615
      %v3617 = vpop.f32.mrb[0].mxu0
      %3618 = vmatprep.mubr.bf16.mxu0 %v1544
      %3619 = vmatmul.mubr.bf16.gmra.mrb[0].mxu0 %v1543
      %v3620 = vpop.f32.mrb[0].mxu0
      %v3621 = vadd.f32 %v3460, %v3620
      %v3622 = vpop.f32.mrb[0].mxu0
      %v3623 = vpop.f32.mrb[0].mxu0
      %v3624 = vadd.f32 %v3463, %v3623
      %v3625 = vpop.f32.mrb[0].mxu0
      %3626 = vmatprep.mubr.bf16.mxu0 %v1560
      %3627 = vmatmul.mubr.bf16.gmra.mrb[0].mxu0 %v1559
      %v3628 = vpop.f32.mrb[0].mxu0
      %v3629 = vadd.f32 %v3468, %v3628
      %v3630 = vpop.f32.mrb[0].mxu0
      %v3631 = vpop.f32.mrb[0].mxu0
      %v3632 = vadd.f32 %v3471, %v3631
      %v3633 = vpop.f32.mrb[0].mxu0
      %3634 = vmatprep.mubr.bf16.mxu0 %v1576
      %3635 = vmatmul.mubr.bf16.gmra.mrb[0].mxu0 %v1575
      %v3636 = vpop.f32.mrb[0].mxu0
      %v3637 = vadd.f32 %v3476, %v3636
      %v3638 = vpop.f32.mrb[0].mxu0
      %v3639 = vpop.f32.mrb[0].mxu0
      %v3640 = vadd.f32 %v3479, %v3639
      %v3641 = vpop.f32.mrb[0].mxu0
      %3642 = vmatprep.mubr.bf16.mxu0 %v1592
      %3643 = vmatmul.mubr.bf16.gmra.mrb[0].mxu0 %v1591
      %v3644 = vpop.f32.mrb[0].mxu0
      %v3645 = vadd.f32 %v3484, %v3644
      %v3646 = vpop.f32.mrb[0].mxu0
      %v3647 = vpop.f32.mrb[0].mxu0
      %v3648 = vadd.f32 %v3487, %v3647
      %v3649 = vpop.f32.mrb[0].mxu0
      %3650 = vmatprep.mubr.bf16.mxu0 %v1608
      %3651 = vmatmul.mubr.bf16.gmra.mrb[0].mxu0 %v1607
      %v3652 = vpop.f32.mrb[0].mxu0
      %v3653 = vadd.f32 %v3492, %v3652
      %v3654 = vpop.f32.mrb[0].mxu0
      %v3655 = vpop.f32.mrb[0].mxu0
      %v3656 = vadd.f32 %v3495, %v3655
      %v3657 = vpop.f32.mrb[0].mxu0
      %3658 = vmatprep.mubr.bf16.mxu0 %v1624
      %3659 = vmatmul.mubr.bf16.gmra.mrb[0].mxu0 %v1623
      %v3660 = vpop.f32.mrb[0].mxu0
      %v3661 = vadd.f32 %v3500, %v3660
      %v3662 = vpop.f32.mrb[0].mxu0
      %v3663 = vpop.f32.mrb[0].mxu0
      %v3664 = vadd.f32 %v3503, %v3663
      %v3665 = vpop.f32.mrb[0].mxu0
      %3666 = vmatprep.mubr.bf16.mxu0 %v1640
      %3667 = vmatmul.mubr.bf16.gmra.mrb[0].mxu0 %v1639
      %v3668 = vpop.f32.mrb[0].mxu0
      %v3669 = vadd.f32 %v3508, %v3668
      %v3670 = vpop.f32.mrb[0].mxu0
      %v3671 = vpop.f32.mrb[0].mxu0
      %v3672 = vadd.f32 %v3511, %v3671
      %v3673 = vpop.f32.mrb[0].mxu0
      %3674 = vmatprep.mubr.bf16.mxu0 %v1656
      %3675 = vmatmul.mubr.bf16.gmra.mrb[0].mxu0 %v1655
      %v3676 = vpop.f32.mrb[0].mxu0
      %v3677 = vadd.f32 %v3516, %v3676
      %v3678 = vpop.f32.mrb[0].mxu0
      %v3679 = vpop.f32.mrb[0].mxu0
      %v3680 = vadd.f32 %v3519, %v3679
      %v3681 = vpop.f32.mrb[0].mxu0
      %3682 = vmatprep.mubr.bf16.mxu0 %v1672
      %3683 = vmatmul.mubr.bf16.gmra.mrb[0].mxu0 %v1671
      %v3684 = vpop.f32.mrb[0].mxu0
      %v3685 = vadd.f32 %v3524, %v3684
      %v3686 = vpop.f32.mrb[0].mxu0
      %v3687 = vpop.f32.mrb[0].mxu0
      %v3688 = vadd.f32 %v3527, %v3687
      %v3689 = vpop.f32.mrb[0].mxu0
      %3690 = vmatprep.mubr.bf16.mxu0 %v1688
      %3691 = vmatmul.mubr.bf16.gmra.mrb[0].mxu0 %v1687
      %v3692 = vpop.f32.mrb[0].mxu0
      %v3693 = vadd.f32 %v3532, %v3692
      %v3694 = vpop.f32.mrb[0].mxu0
      %v3695 = vpop.f32.mrb[0].mxu0
      %v3696 = vadd.f32 %v3535, %v3695
      %v3697 = vpop.f32.mrb[0].mxu0
      %3698 = vmatprep.mubr.bf16.mxu0 %v1704
      %3699 = vmatmul.mubr.bf16.gmra.mrb[0].mxu0 %v1703
      %v3700 = vpop.f32.mrb[0].mxu0
      %v3701 = vadd.f32 %v3540, %v3700
      %v3702 = vpop.f32.mrb[0].mxu0
      %v3703 = vpop.f32.mrb[0].mxu0
      %v3704 = vadd.f32 %v3543, %v3703
      %v3705 = vpop.f32.mrb[0].mxu0
      %3706 = vmatprep.mubr.bf16.mxu0 %v1720
      %3707 = vmatmul.mubr.bf16.gmra.mrb[0].mxu0 %v1719
      %v3708 = vpop.f32.mrb[0].mxu0
      %v3709 = vadd.f32 %v3548, %v3708
      %v3710 = vpop.f32.mrb[0].mxu0
      %v3711 = vpop.f32.mrb[0].mxu0
      %v3712 = vadd.f32 %v3551, %v3711
      %v3713 = vpop.f32.mrb[0].mxu0
      %3714 = vdwg.mxu0
      %3715 = vmatprep.subr.bf16.mxu0 0
      %3716 = vmatpush1.bf16.msra.mxu0 %v2589
      %3717 = vmatprep.subr.bf16.mxu0 0
      %3718 = vmatpush1.bf16.msra.mxu0 %v2590
      %3719 = vmatprep.subr.bf16.mxu0 0
      %3720 = vmatpush1.bf16.msra.mxu0 %v2591
      %3721 = vmatprep.subr.bf16.mxu0 0
      %3722 = vmatpush1.bf16.msra.mxu0 %v2592
      %3723 = vmatprep.subr.bf16.mxu0 0
      %3724 = vmatpush1.bf16.msra.mxu0 %v2593
      %3725 = vmatprep.subr.bf16.mxu0 0
      %3726 = vmatpush1.bf16.msra.mxu0 %v2594
      %3727 = vmatprep.subr.bf16.mxu0 0
      %3728 = vmatpush1.bf16.msra.mxu0 %v2595
      %3729 = vmatprep.subr.bf16.mxu0 0
      %3730 = vmatpush1.bf16.msra.mxu0 %v2596
      %3731 = vmatprep.subr.bf16.mxu0 0
      %3732 = vmatpush1.bf16.msra.mxu0 %v2597
      %3733 = vmatprep.subr.bf16.mxu0 0
      %3734 = vmatpush1.bf16.msra.mxu0 %v2598
      %3735 = vmatprep.subr.bf16.mxu0 0
      %3736 = vmatpush1.bf16.msra.mxu0 %v2599
      %3737 = vmatprep.subr.bf16.mxu0 0
      %3738 = vmatpush1.bf16.msra.mxu0 %v2600
      %3739 = vmatprep.subr.bf16.mxu0 0
      %3740 = vmatpush1.bf16.msra.mxu0 %v2601
      %3741 = vmatprep.subr.bf16.mxu0 0
      %3742 = vmatpush1.bf16.msra.mxu0 %v2602
      %3743 = vmatprep.subr.bf16.mxu0 0
      %3744 = vmatpush1.bf16.msra.mxu0 %v2603
      %3745 = vmatprep.subr.bf16.mxu0 0
      %3746 = vmatpush1.bf16.msra.mxu0 %v2604
      %3747 = vmatprep.mubr.bf16.mxu0 %v1482
      %3748 = vmatmul.mubr.bf16.gmra.mrb[0].mxu0 %v1481
      %v3749 = vpop.f32.mrb[0].mxu0
      %v3750 = vadd.f32 %v3589, %v3749
      %v3751 = vpop.f32.mrb[0].mxu0
      %v3752 = vpop.f32.mrb[0].mxu0
      %v3753 = vadd.f32 %v3592, %v3752
      %v3754 = vpop.f32.mrb[0].mxu0
      %3755 = vmatprep.mubr.bf16.mxu0 %v1498
      %3756 = vmatmul.mubr.bf16.gmra.mrb[0].mxu0 %v1497
      %v3757 = vpop.f32.mrb[0].mxu0
      %v3758 = vadd.f32 %v3597, %v3757
      %v3759 = vpop.f32.mrb[0].mxu0
      %v3760 = vpop.f32.mrb[0].mxu0
      %v3761 = vadd.f32 %v3600, %v3760
      %v3762 = vpop.f32.mrb[0].mxu0
      %3763 = vmatprep.mubr.bf16.mxu0 %v1514
      %3764 = vmatmul.mubr.bf16.gmra.mrb[0].mxu0 %v1513
      %v3765 = vpop.f32.mrb[0].mxu0
      %v3766 = vadd.f32 %v3605, %v3765
      %v3767 = vpop.f32.mrb[0].mxu0
      %v3768 = vpop.f32.mrb[0].mxu0
      %v3769 = vadd.f32 %v3608, %v3768
      %v3770 = vpop.f32.mrb[0].mxu0
      %3771 = vmatprep.mubr.bf16.mxu0 %v1530
      %3772 = vmatmul.mubr.bf16.gmra.mrb[0].mxu0 %v1529
      %v3773 = vpop.f32.mrb[0].mxu0
      %v3774 = vadd.f32 %v3613, %v3773
      %v3775 = vpop.f32.mrb[0].mxu0
      %v3776 = vpop.f32.mrb[0].mxu0
      %v3777 = vadd.f32 %v3616, %v3776
      %v3778 = vpop.f32.mrb[0].mxu0
      %3779 = vmatprep.mubr.bf16.mxu0 %v1546
      %3780 = vmatmul.mubr.bf16.gmra.mrb[0].mxu0 %v1545
      %v3781 = vpop.f32.mrb[0].mxu0
      %v3782 = vadd.f32 %v3621, %v3781
      %v3783 = vpop.f32.mrb[0].mxu0
      %v3784 = vpop.f32.mrb[0].mxu0
      %v3785 = vadd.f32 %v3624, %v3784
      %v3786 = vpop.f32.mrb[0].mxu0
      %3787 = vmatprep.mubr.bf16.mxu0 %v1562
      %3788 = vmatmul.mubr.bf16.gmra.mrb[0].mxu0 %v1561
      %v3789 = vpop.f32.mrb[0].mxu0
      %v3790 = vadd.f32 %v3629, %v3789
      %v3791 = vpop.f32.mrb[0].mxu0
      %v3792 = vpop.f32.mrb[0].mxu0
      %v3793 = vadd.f32 %v3632, %v3792
      %v3794 = vpop.f32.mrb[0].mxu0
      %3795 = vmatprep.mubr.bf16.mxu0 %v1578
      %3796 = vmatmul.mubr.bf16.gmra.mrb[0].mxu0 %v1577
      %v3797 = vpop.f32.mrb[0].mxu0
      %v3798 = vadd.f32 %v3637, %v3797
      %v3799 = vpop.f32.mrb[0].mxu0
      %v3800 = vpop.f32.mrb[0].mxu0
      %v3801 = vadd.f32 %v3640, %v3800
      %v3802 = vpop.f32.mrb[0].mxu0
      %3803 = vmatprep.mubr.bf16.mxu0 %v1594
      %3804 = vmatmul.mubr.bf16.gmra.mrb[0].mxu0 %v1593
      %v3805 = vpop.f32.mrb[0].mxu0
      %v3806 = vadd.f32 %v3645, %v3805
      %v3807 = vpop.f32.mrb[0].mxu0
      %v3808 = vpop.f32.mrb[0].mxu0
      %v3809 = vadd.f32 %v3648, %v3808
      %v3810 = vpop.f32.mrb[0].mxu0
      %3811 = vmatprep.mubr.bf16.mxu0 %v1610
      %3812 = vmatmul.mubr.bf16.gmra.mrb[0].mxu0 %v1609
      %v3813 = vpop.f32.mrb[0].mxu0
      %v3814 = vadd.f32 %v3653, %v3813
      %v3815 = vpop.f32.mrb[0].mxu0
      %v3816 = vpop.f32.mrb[0].mxu0
      %v3817 = vadd.f32 %v3656, %v3816
      %v3818 = vpop.f32.mrb[0].mxu0
      %3819 = vmatprep.mubr.bf16.mxu0 %v1626
      %3820 = vmatmul.mubr.bf16.gmra.mrb[0].mxu0 %v1625
      %v3821 = vpop.f32.mrb[0].mxu0
      %v3822 = vadd.f32 %v3661, %v3821
      %v3823 = vpop.f32.mrb[0].mxu0
      %v3824 = vpop.f32.mrb[0].mxu0
      %v3825 = vadd.f32 %v3664, %v3824
      %v3826 = vpop.f32.mrb[0].mxu0
      %3827 = vmatprep.mubr.bf16.mxu0 %v1642
      %3828 = vmatmul.mubr.bf16.gmra.mrb[0].mxu0 %v1641
      %v3829 = vpop.f32.mrb[0].mxu0
      %v3830 = vadd.f32 %v3669, %v3829
      %v3831 = vpop.f32.mrb[0].mxu0
      %v3832 = vpop.f32.mrb[0].mxu0
      %v3833 = vadd.f32 %v3672, %v3832
      %v3834 = vpop.f32.mrb[0].mxu0
      %3835 = vmatprep.mubr.bf16.mxu0 %v1658
      %3836 = vmatmul.mubr.bf16.gmra.mrb[0].mxu0 %v1657
      %v3837 = vpop.f32.mrb[0].mxu0
      %v3838 = vadd.f32 %v3677, %v3837
      %v3839 = vpop.f32.mrb[0].mxu0
      %v3840 = vpop.f32.mrb[0].mxu0
      %v3841 = vadd.f32 %v3680, %v3840
      %v3842 = vpop.f32.mrb[0].mxu0
      %3843 = vmatprep.mubr.bf16.mxu0 %v1674
      %3844 = vmatmul.mubr.bf16.gmra.mrb[0].mxu0 %v1673
      %v3845 = vpop.f32.mrb[0].mxu0
      %v3846 = vadd.f32 %v3685, %v3845
      %v3847 = vpop.f32.mrb[0].mxu0
      %v3848 = vpop.f32.mrb[0].mxu0
      %v3849 = vadd.f32 %v3688, %v3848
      %v3850 = vpop.f32.mrb[0].mxu0
      %3851 = vmatprep.mubr.bf16.mxu0 %v1690
      %3852 = vmatmul.mubr.bf16.gmra.mrb[0].mxu0 %v1689
      %v3853 = vpop.f32.mrb[0].mxu0
      %v3854 = vadd.f32 %v3693, %v3853
      %v3855 = vpop.f32.mrb[0].mxu0
      %v3856 = vpop.f32.mrb[0].mxu0
      %v3857 = vadd.f32 %v3696, %v3856
      %v3858 = vpop.f32.mrb[0].mxu0
      %3859 = vmatprep.mubr.bf16.mxu0 %v1706
      %3860 = vmatmul.mubr.bf16.gmra.mrb[0].mxu0 %v1705
      %v3861 = vpop.f32.mrb[0].mxu0
      %v3862 = vadd.f32 %v3701, %v3861
      %v3863 = vpop.f32.mrb[0].mxu0
      %v3864 = vpop.f32.mrb[0].mxu0
      %v3865 = vadd.f32 %v3704, %v3864
      %v3866 = vpop.f32.mrb[0].mxu0
      %3867 = vmatprep.mubr.bf16.mxu0 %v1722
      %3868 = vmatmul.mubr.bf16.gmra.mrb[0].mxu0 %v1721
      %v3869 = vpop.f32.mrb[0].mxu0
      %v3870 = vadd.f32 %v3709, %v3869
      %v3871 = vpop.f32.mrb[0].mxu0
      %v3872 = vpop.f32.mrb[0].mxu0
      %v3873 = vadd.f32 %v3712, %v3872
      %v3874 = vpop.f32.mrb[0].mxu0
      %3875 = vdwg.mxu0
      %3876 = vmatprep.subr.bf16.mxu0 0
      %3877 = vmatpush1.bf16.msra.mxu0 %v2605
      %3878 = vmatprep.subr.bf16.mxu0 0
      %3879 = vmatpush1.bf16.msra.mxu0 %v2606
      %3880 = vmatprep.subr.bf16.mxu0 0
      %3881 = vmatpush1.bf16.msra.mxu0 %v2607
      %3882 = vmatprep.subr.bf16.mxu0 0
      %3883 = vmatpush1.bf16.msra.mxu0 %v2608
      %3884 = vmatprep.subr.bf16.mxu0 0
      %3885 = vmatpush1.bf16.msra.mxu0 %v2609
      %3886 = vmatprep.subr.bf16.mxu0 0
      %3887 = vmatpush1.bf16.msra.mxu0 %v2610
      %3888 = vmatprep.subr.bf16.mxu0 0
      %3889 = vmatpush1.bf16.msra.mxu0 %v2611
      %3890 = vmatprep.subr.bf16.mxu0 0
      %3891 = vmatpush1.bf16.msra.mxu0 %v2612
      %3892 = vmatprep.subr.bf16.mxu0 0
      %3893 = vmatpush1.bf16.msra.mxu0 %v2613
      %3894 = vmatprep.subr.bf16.mxu0 0
      %3895 = vmatpush1.bf16.msra.mxu0 %v2614
      %3896 = vmatprep.subr.bf16.mxu0 0
      %3897 = vmatpush1.bf16.msra.mxu0 %v2615
      %3898 = vmatprep.subr.bf16.mxu0 0
      %3899 = vmatpush1.bf16.msra.mxu0 %v2616
      %3900 = vmatprep.subr.bf16.mxu0 0
      %3901 = vmatpush1.bf16.msra.mxu0 %v2617
      %3902 = vmatprep.subr.bf16.mxu0 0
      %3903 = vmatpush1.bf16.msra.mxu0 %v2618
      %3904 = vmatprep.subr.bf16.mxu0 0
      %3905 = vmatpush1.bf16.msra.mxu0 %v2619
      %3906 = vmatprep.subr.bf16.mxu0 0
      %3907 = vmatpush1.bf16.msra.mxu0 %v2620
      %3908 = vmatprep.mubr.bf16.mxu0 %v1484
      %3909 = vmatmul.mubr.bf16.gmra.mrb[0].mxu0 %v1483
      %v3910 = vpop.f32.mrb[0].mxu0
      %v3911 = vadd.f32 %v3750, %v3910
      %v3912 = vpop.f32.mrb[0].mxu0
      %v3913 = vpop.f32.mrb[0].mxu0
      %v3914 = vadd.f32 %v3753, %v3913
      %v3915 = vpop.f32.mrb[0].mxu0
      %3916 = vmatprep.mubr.bf16.mxu0 %v1500
      %3917 = vmatmul.mubr.bf16.gmra.mrb[0].mxu0 %v1499
      %v3918 = vpop.f32.mrb[0].mxu0
      %v3919 = vadd.f32 %v3758, %v3918
      %v3920 = vpop.f32.mrb[0].mxu0
      %v3921 = vpop.f32.mrb[0].mxu0
      %v3922 = vadd.f32 %v3761, %v3921
      %v3923 = vpop.f32.mrb[0].mxu0
      %3924 = vmatprep.mubr.bf16.mxu0 %v1516
      %3925 = vmatmul.mubr.bf16.gmra.mrb[0].mxu0 %v1515
      %v3926 = vpop.f32.mrb[0].mxu0
      %v3927 = vadd.f32 %v3766, %v3926
      %v3928 = vpop.f32.mrb[0].mxu0
      %v3929 = vpop.f32.mrb[0].mxu0
      %v3930 = vadd.f32 %v3769, %v3929
      %v3931 = vpop.f32.mrb[0].mxu0
      %3932 = vmatprep.mubr.bf16.mxu0 %v1532
      %3933 = vmatmul.mubr.bf16.gmra.mrb[0].mxu0 %v1531
      %v3934 = vpop.f32.mrb[0].mxu0
      %v3935 = vadd.f32 %v3774, %v3934
      %v3936 = vpop.f32.mrb[0].mxu0
      %v3937 = vpop.f32.mrb[0].mxu0
      %v3938 = vadd.f32 %v3777, %v3937
      %v3939 = vpop.f32.mrb[0].mxu0
      %3940 = vmatprep.mubr.bf16.mxu0 %v1548
      %3941 = vmatmul.mubr.bf16.gmra.mrb[0].mxu0 %v1547
      %v3942 = vpop.f32.mrb[0].mxu0
      %v3943 = vadd.f32 %v3782, %v3942
      %v3944 = vpop.f32.mrb[0].mxu0
      %v3945 = vpop.f32.mrb[0].mxu0
      %v3946 = vadd.f32 %v3785, %v3945
      %v3947 = vpop.f32.mrb[0].mxu0
      %3948 = vmatprep.mubr.bf16.mxu0 %v1564
      %3949 = vmatmul.mubr.bf16.gmra.mrb[0].mxu0 %v1563
      %v3950 = vpop.f32.mrb[0].mxu0
      %v3951 = vadd.f32 %v3790, %v3950
      %v3952 = vpop.f32.mrb[0].mxu0
      %v3953 = vpop.f32.mrb[0].mxu0
      %v3954 = vadd.f32 %v3793, %v3953
      %v3955 = vpop.f32.mrb[0].mxu0
      %3956 = vmatprep.mubr.bf16.mxu0 %v1580
      %3957 = vmatmul.mubr.bf16.gmra.mrb[0].mxu0 %v1579
      %v3958 = vpop.f32.mrb[0].mxu0
      %v3959 = vadd.f32 %v3798, %v3958
      %v3960 = vpop.f32.mrb[0].mxu0
      %v3961 = vpop.f32.mrb[0].mxu0
      %v3962 = vadd.f32 %v3801, %v3961
      %v3963 = vpop.f32.mrb[0].mxu0
      %3964 = vmatprep.mubr.bf16.mxu0 %v1596
      %3965 = vmatmul.mubr.bf16.gmra.mrb[0].mxu0 %v1595
      %v3966 = vpop.f32.mrb[0].mxu0
      %v3967 = vadd.f32 %v3806, %v3966
      %v3968 = vpop.f32.mrb[0].mxu0
      %v3969 = vpop.f32.mrb[0].mxu0
      %v3970 = vadd.f32 %v3809, %v3969
      %v3971 = vpop.f32.mrb[0].mxu0
      %3972 = vmatprep.mubr.bf16.mxu0 %v1612
      %3973 = vmatmul.mubr.bf16.gmra.mrb[0].mxu0 %v1611
      %v3974 = vpop.f32.mrb[0].mxu0
      %v3975 = vadd.f32 %v3814, %v3974
      %v3976 = vpop.f32.mrb[0].mxu0
      %v3977 = vpop.f32.mrb[0].mxu0
      %v3978 = vadd.f32 %v3817, %v3977
      %v3979 = vpop.f32.mrb[0].mxu0
      %3980 = vmatprep.mubr.bf16.mxu0 %v1628
      %3981 = vmatmul.mubr.bf16.gmra.mrb[0].mxu0 %v1627
      %v3982 = vpop.f32.mrb[0].mxu0
      %v3983 = vadd.f32 %v3822, %v3982
      %v3984 = vpop.f32.mrb[0].mxu0
      %v3985 = vpop.f32.mrb[0].mxu0
      %v3986 = vadd.f32 %v3825, %v3985
      %v3987 = vpop.f32.mrb[0].mxu0
      %3988 = vmatprep.mubr.bf16.mxu0 %v1644
      %3989 = vmatmul.mubr.bf16.gmra.mrb[0].mxu0 %v1643
      %v3990 = vpop.f32.mrb[0].mxu0
      %v3991 = vadd.f32 %v3830, %v3990
      %v3992 = vpop.f32.mrb[0].mxu0
      %v3993 = vpop.f32.mrb[0].mxu0
      %v3994 = vadd.f32 %v3833, %v3993
      %v3995 = vpop.f32.mrb[0].mxu0
      %3996 = vmatprep.mubr.bf16.mxu0 %v1660
      %3997 = vmatmul.mubr.bf16.gmra.mrb[0].mxu0 %v1659
      %v3998 = vpop.f32.mrb[0].mxu0
      %v3999 = vadd.f32 %v3838, %v3998
      %v4000 = vpop.f32.mrb[0].mxu0
      %v4001 = vpop.f32.mrb[0].mxu0
      %v4002 = vadd.f32 %v3841, %v4001
      %v4003 = vpop.f32.mrb[0].mxu0
      %4004 = vmatprep.mubr.bf16.mxu0 %v1676
      %4005 = vmatmul.mubr.bf16.gmra.mrb[0].mxu0 %v1675
      %v4006 = vpop.f32.mrb[0].mxu0
      %v4007 = vadd.f32 %v3846, %v4006
      %v4008 = vpop.f32.mrb[0].mxu0
      %v4009 = vpop.f32.mrb[0].mxu0
      %v4010 = vadd.f32 %v3849, %v4009
      %v4011 = vpop.f32.mrb[0].mxu0
      %4012 = vmatprep.mubr.bf16.mxu0 %v1692
      %4013 = vmatmul.mubr.bf16.gmra.mrb[0].mxu0 %v1691
      %v4014 = vpop.f32.mrb[0].mxu0
      %v4015 = vadd.f32 %v3854, %v4014
      %v4016 = vpop.f32.mrb[0].mxu0
      %v4017 = vpop.f32.mrb[0].mxu0
      %v4018 = vadd.f32 %v3857, %v4017
      %v4019 = vpop.f32.mrb[0].mxu0
      %4020 = vmatprep.mubr.bf16.mxu0 %v1708
      %4021 = vmatmul.mubr.bf16.gmra.mrb[0].mxu0 %v1707
      %v4022 = vpop.f32.mrb[0].mxu0
      %v4023 = vadd.f32 %v3862, %v4022
      %v4024 = vpop.f32.mrb[0].mxu0
      %v4025 = vpop.f32.mrb[0].mxu0
      %v4026 = vadd.f32 %v3865, %v4025
      %v4027 = vpop.f32.mrb[0].mxu0
      %4028 = vmatprep.mubr.bf16.mxu0 %v1724
      %4029 = vmatmul.mubr.bf16.gmra.mrb[0].mxu0 %v1723
      %v4030 = vpop.f32.mrb[0].mxu0
      %v4031 = vadd.f32 %v3870, %v4030
      %v4032 = vpop.f32.mrb[0].mxu0
      %v4033 = vpop.f32.mrb[0].mxu0
      %v4034 = vadd.f32 %v3873, %v4033
      %v4035 = vpop.f32.mrb[0].mxu0
      %4036 = vdwg.mxu0
      %v4037 = vpack.c.bf16 %v3914, %v3911
      %v4038 = vpack.c.bf16 %v3922, %v3919
      %v4039 = vpack.c.bf16 %v3930, %v3927
      %v4040 = vpack.c.bf16 %v3938, %v3935
      %v4041 = vpack.c.bf16 %v3946, %v3943
      %v4042 = vpack.c.bf16 %v3954, %v3951
      %v4043 = vpack.c.bf16 %v3962, %v3959
      %v4044 = vpack.c.bf16 %v3970, %v3967
      %v4045 = vpack.c.bf16 %v3978, %v3975
      %v4046 = vpack.c.bf16 %v3986, %v3983
      %v4047 = vpack.c.bf16 %v3994, %v3991
      %v4048 = vpack.c.bf16 %v4002, %v3999
      %v4049 = vpack.c.bf16 %v4010, %v4007
      %v4050 = vpack.c.bf16 %v4018, %v4015
      %v4051 = vpack.c.bf16 %v4026, %v4023
      %v4052 = vpack.c.bf16 %v4034, %v4031
      %v4069 = vunpack.c.l.b16 %v4037
      %v4070 = vunpack.c.h.b16 %v4037
      %v4071 = vunpack.c.l.b16 %v4038
      %v4072 = vunpack.c.h.b16 %v4038
      %v4073 = vunpack.c.l.b16 %v4039
      %v4074 = vunpack.c.h.b16 %v4039
      %v4075 = vunpack.c.l.b16 %v4040
      %v4076 = vunpack.c.h.b16 %v4040
      %v4077 = vunpack.c.l.b16 %v4041
      %v4078 = vunpack.c.h.b16 %v4041
      %v4079 = vunpack.c.l.b16 %v4042
      %v4080 = vunpack.c.h.b16 %v4042
      %v4081 = vunpack.c.l.b16 %v4043
      %v4082 = vunpack.c.h.b16 %v4043
      %v4083 = vunpack.c.l.b16 %v4044
      %v4084 = vunpack.c.h.b16 %v4044
      %v4085 = vunpack.c.l.b16 %v4045
      %v4086 = vunpack.c.h.b16 %v4045
      %v4087 = vunpack.c.l.b16 %v4046
      %v4088 = vunpack.c.h.b16 %v4046
      %v4089 = vunpack.c.l.b16 %v4047
      %v4090 = vunpack.c.h.b16 %v4047
      %v4091 = vunpack.c.l.b16 %v4048
      %v4092 = vunpack.c.h.b16 %v4048
      %v4093 = vunpack.c.l.b16 %v4049
      %v4094 = vunpack.c.h.b16 %v4049
      %v4095 = vunpack.c.l.b16 %v4050
      %v4096 = vunpack.c.h.b16 %v4050
      %v4097 = vunpack.c.l.b16 %v4051
      %v4098 = vunpack.c.h.b16 %v4051
      %v4099 = vunpack.c.l.b16 %v4052
      %v4100 = vunpack.c.h.b16 %v4052
      %v4101 = vpack.c.b16 %v4069, %v4069
      %v4102 = vpack.c.b16 %v4070, %v4070
      %v4103 = vpack.c.b16 %v4071, %v4071
      %v4104 = vpack.c.b16 %v4072, %v4072
      %v4105 = vpack.c.b16 %v4073, %v4073
      %v4106 = vpack.c.b16 %v4074, %v4074
      %v4107 = vpack.c.b16 %v4075, %v4075
      %v4108 = vpack.c.b16 %v4076, %v4076
      %v4109 = vpack.c.b16 %v4077, %v4077
      %v4110 = vpack.c.b16 %v4078, %v4078
      %v4111 = vpack.c.b16 %v4079, %v4079
      %v4112 = vpack.c.b16 %v4080, %v4080
      %v4113 = vpack.c.b16 %v4081, %v4081
      %v4114 = vpack.c.b16 %v4082, %v4082
      %v4115 = vpack.c.b16 %v4083, %v4083
      %v4116 = vpack.c.b16 %v4084, %v4084
      %v4117 = vpack.c.b16 %v4085, %v4085
      %v4118 = vpack.c.b16 %v4086, %v4086
      %v4119 = vpack.c.b16 %v4087, %v4087
      %v4120 = vpack.c.b16 %v4088, %v4088
      %v4121 = vpack.c.b16 %v4089, %v4089
      %v4122 = vpack.c.b16 %v4090, %v4090
      %v4123 = vpack.c.b16 %v4091, %v4091
      %v4124 = vpack.c.b16 %v4092, %v4092
      %v4125 = vpack.c.b16 %v4093, %v4093
      %v4126 = vpack.c.b16 %v4094, %v4094
      %v4127 = vpack.c.b16 %v4095, %v4095
      %v4128 = vpack.c.b16 %v4096, %v4096
      %v4129 = vpack.c.b16 %v4097, %v4097
      %v4130 = vpack.c.b16 %v4098, %v4098
      %v4131 = vpack.c.b16 %v4099, %v4099
      %v4132 = vpack.c.b16 %v4100, %v4100
      %4165 = vst [vmem:[%s182] sm:$0xf] %v4101
      %4166 = vst [vmem:[%s182 + $0x4] sm:$0xf] %v4102
      %4167 = vst [vmem:[%s182 + $0x8] sm:$0xf] %v4103
      %4168 = vst [vmem:[%s182 + $0xc] sm:$0xf] %v4104
      %4169 = vst [vmem:[%s182 + $0x10] sm:$0xf] %v4105
      %4170 = vst [vmem:[%s182 + $0x14] sm:$0xf] %v4106
      %4171 = vst [vmem:[%s182 + $0x18] sm:$0xf] %v4107
      %4172 = vst [vmem:[%s182 + $0x1c] sm:$0xf] %v4108
      %4173 = vst [vmem:[%s182 + $0x20] sm:$0xf] %v4109
      %4174 = vst [vmem:[%s182 + $0x24] sm:$0xf] %v4110
      %4175 = vst [vmem:[%s182 + $0x28] sm:$0xf] %v4111
      %4176 = vst [vmem:[%s182 + $0x2c] sm:$0xf] %v4112
      %4177 = vst [vmem:[%s182 + $0x30] sm:$0xf] %v4113
      %4178 = vst [vmem:[%s182 + $0x34] sm:$0xf] %v4114
      %4179 = vst [vmem:[%s182 + $0x38] sm:$0xf] %v4115
      %4180 = vst [vmem:[%s182 + $0x3c] sm:$0xf] %v4116
      %4181 = vst [vmem:[%s182 + $0x40] sm:$0xf] %v4117
      %4182 = vst [vmem:[%s182 + $0x44] sm:$0xf] %v4118
      %4183 = vst [vmem:[%s182 + $0x48] sm:$0xf] %v4119
      %4184 = vst [vmem:[%s182 + $0x4c] sm:$0xf] %v4120
      %4185 = vst [vmem:[%s182 + $0x50] sm:$0xf] %v4121
      %4186 = vst [vmem:[%s182 + $0x54] sm:$0xf] %v4122
      %4187 = vst [vmem:[%s182 + $0x58] sm:$0xf] %v4123
      %4188 = vst [vmem:[%s182 + $0x5c] sm:$0xf] %v4124
      %4189 = vst [vmem:[%s182 + $0x60] sm:$0xf] %v4125
      %4190 = vst [vmem:[%s182 + $0x64] sm:$0xf] %v4126
      %4191 = vst [vmem:[%s182 + $0x68] sm:$0xf] %v4127
      %4192 = vst [vmem:[%s182 + $0x6c] sm:$0xf] %v4128
      %4193 = vst [vmem:[%s182 + $0x70] sm:$0xf] %v4129
      %4194 = vst [vmem:[%s182 + $0x74] sm:$0xf] %v4130
      %4195 = vst [vmem:[%s182 + $0x78] sm:$0xf] %v4131
      %4196 = vst [vmem:[%s182 + $0x7c] sm:$0xf] %v4132
      %v4197 = vadd.f32 %v3911, %v3914
      %v4198 = vadd.f32 %v4197, %v3919
      %v4199 = vadd.f32 %v4198, %v3922
      %v4200 = vadd.f32 %v4199, %v3927
      %v4201 = vadd.f32 %v4200, %v3930
      %v4202 = vadd.f32 %v4201, %v3935
      %v4203 = vadd.f32 %v4202, %v3938
      %v4204 = vadd.f32 %v4203, %v3943
      %v4205 = vadd.f32 %v4204, %v3946
      %v4206 = vadd.f32 %v4205, %v3951
      %v4207 = vadd.f32 %v4206, %v3954
      %v4208 = vadd.f32 %v4207, %v3959
      %v4209 = vadd.f32 %v4208, %v3962
      %v4210 = vadd.f32 %v4209, %v3967
      %v4211 = vadd.f32 %v4210, %v3970
      %v4212 = vadd.f32 %v4211, %v3975
      %v4213 = vadd.f32 %v4212, %v3978
      %v4214 = vadd.f32 %v4213, %v3983
      %v4215 = vadd.f32 %v4214, %v3986
      %v4216 = vadd.f32 %v4215, %v3991
      %v4217 = vadd.f32 %v4216, %v3994
      %v4218 = vadd.f32 %v4217, %v3999
      %v4219 = vadd.f32 %v4218, %v4002
      %v4220 = vadd.f32 %v4219, %v4007
      %v4221 = vadd.f32 %v4220, %v4010
      %v4222 = vadd.f32 %v4221, %v4015
      %v4223 = vadd.f32 %v4222, %v4018
      %v4224 = vadd.f32 %v4223, %v4023
      %v4225 = vadd.f32 %v4224, %v4026
      %v4226 = vadd.f32 %v4225, %v4031
      %v4227 = vadd.f32 %v4226, %v4034
      %v4228 = vrot.slane %v4227, 4
      %v4229 = vadd.f32 %v4227, %v4228
      %v4230 = vrot.slane %v4229, 2
      %v4231 = vadd.f32 %v4229, %v4230
      %v4232 = vrot.slane %v4231, 1
      %v4233 = vadd.f32 %v4231, %v4232
      %v4234 = vmul.f32 %v3911, %v3911
      %v4235 = vmul.f32 %v3914, %v3914
      %v4236 = vmul.f32 %v3919, %v3919
      %v4237 = vmul.f32 %v3922, %v3922
      %v4238 = vmul.f32 %v3927, %v3927
      %v4239 = vmul.f32 %v3930, %v3930
      %v4240 = vmul.f32 %v3935, %v3935
      %v4241 = vmul.f32 %v3938, %v3938
      %v4242 = vmul.f32 %v3943, %v3943
      %v4243 = vmul.f32 %v3946, %v3946
      %v4244 = vmul.f32 %v3951, %v3951
      %v4245 = vmul.f32 %v3954, %v3954
      %v4246 = vmul.f32 %v3959, %v3959
      %v4247 = vmul.f32 %v3962, %v3962
      %v4248 = vmul.f32 %v3967, %v3967
      %v4249 = vmul.f32 %v3970, %v3970
      %v4250 = vmul.f32 %v3975, %v3975
      %v4251 = vmul.f32 %v3978, %v3978
      %v4252 = vmul.f32 %v3983, %v3983
      %v4253 = vmul.f32 %v3986, %v3986
      %v4254 = vmul.f32 %v3991, %v3991
      %v4255 = vmul.f32 %v3994, %v3994
      %v4256 = vmul.f32 %v3999, %v3999
      %v4257 = vmul.f32 %v4002, %v4002
      %v4258 = vmul.f32 %v4007, %v4007
      %v4259 = vmul.f32 %v4010, %v4010
      %v4260 = vmul.f32 %v4015, %v4015
      %v4261 = vmul.f32 %v4018, %v4018
      %v4262 = vmul.f32 %v4023, %v4023
      %v4263 = vmul.f32 %v4026, %v4026
      %v4264 = vmul.f32 %v4031, %v4031
      %v4265 = vmul.f32 %v4034, %v4034
      %v4266 = vadd.f32 %v4234, %v4235
      %v4267 = vadd.f32 %v4266, %v4236
      %v4268 = vadd.f32 %v4267, %v4237
      %v4269 = vadd.f32 %v4268, %v4238
      %v4270 = vadd.f32 %v4269, %v4239
      %v4271 = vadd.f32 %v4270, %v4240
      %v4272 = vadd.f32 %v4271, %v4241
      %v4273 = vadd.f32 %v4272, %v4242
      %v4274 = vadd.f32 %v4273, %v4243
      %v4275 = vadd.f32 %v4274, %v4244
      %v4276 = vadd.f32 %v4275, %v4245
      %v4277 = vadd.f32 %v4276, %v4246
      %v4278 = vadd.f32 %v4277, %v4247
      %v4279 = vadd.f32 %v4278, %v4248
      %v4280 = vadd.f32 %v4279, %v4249
      %v4281 = vadd.f32 %v4280, %v4250
      %v4282 = vadd.f32 %v4281, %v4251
      %v4283 = vadd.f32 %v4282, %v4252
      %v4284 = vadd.f32 %v4283, %v4253
      %v4285 = vadd.f32 %v4284, %v4254
      %v4286 = vadd.f32 %v4285, %v4255
      %v4287 = vadd.f32 %v4286, %v4256
      %v4288 = vadd.f32 %v4287, %v4257
      %v4289 = vadd.f32 %v4288, %v4258
      %v4290 = vadd.f32 %v4289, %v4259
      %v4291 = vadd.f32 %v4290, %v4260
      %v4292 = vadd.f32 %v4291, %v4261
      %v4293 = vadd.f32 %v4292, %v4262
      %v4294 = vadd.f32 %v4293, %v4263
      %v4295 = vadd.f32 %v4294, %v4264
      %v4296 = vadd.f32 %v4295, %v4265
      %v4297 = vrot.slane %v4296, 4
      %v4298 = vadd.f32 %v4296, %v4297
      %v4299 = vrot.slane %v4298, 2
      %v4300 = vadd.f32 %v4298, %v4299
      %v4301 = vrot.slane %v4300, 1
      %v4302 = vadd.f32 %v4300, %v4301
      %v4303 = vlaneseq
      %v4304 = vshrl.u32 %v4303, 7
      %vm4305 = vcmp.eq.s32.totalorder %v4304, 0
      %vm4306 = vcmp.eq.s32.totalorder %v4304, 1
      %v4307 = vsel %vm4306, %v4302, 0.0
      %v4308 = vsel %vm4305, %v4233, %v4307
      %4309 = vst [vmem:[%s187] sm:$0xff] %v4308
      %s4310 = smul.u32 32, %s15
      %p4311 = scmp.lt.s32.totalorder %s4310, 63
      %s4312 = scalar_select %p4311, %s4310, 63
      %s4313 = smul.addr %s4312, 4
      %s4314 = scalar_lea.vmem %s2, %s4313
      %p4315 = scmp.lt.s32.totalorder %s15, 1
      %s4316 = scalar_select %p4315, %s15, 1
      %s4317 = smul.addr %s4316, 8
      %s4318 = scalar_lea.vmem %s3, %s4317
      // Predicated region
      $region29: #{discriminator_forward.6} parent=27 // pred_check
        %p4319 = pneg %p80
      $region30: #{discriminator_forward.6} parent=27 // pred_check_branch
        %4321 = sbr.rel (%p4319) target = $region32
      $region31: #{discriminator_forward.6} parent=27 // pred_region
        %s4322 = smul.u32 32, %s15
      $region32: #{discriminator_forward.6} parent=27 // pred_fallthru
        _
      // Predicated region
      $region33: #{discriminator_forward.6} parent=27 // pred_check
        %p4323 = pneg %p106
      $region34: #{discriminator_forward.6} parent=27 // pred_check_branch
        %4325 = sbr.rel (%p4323) target = $region36
      $region35: #{discriminator_forward.6} parent=27 // pred_region
        _
      $region36: #{discriminator_forward.6} parent=27 // pred_fallthru
        _
    $region28: #{discriminator_forward.6} parent=5 // pred_fallthru
      _
    %p4326 = scmp.le.s32.totalorder 2, %s10
    // Predicated region
    $region37: #{discriminator_forward.6} parent=5 // pred_check
      %p4327 = pneg %p4326
    $region38: #{discriminator_forward.6} parent=5 // pred_check_branch
      %4329 = sbr.rel (%p4327) target = $region40
    $region39: #{discriminator_forward.6} parent=5 // pred_region
      %s4330 = ssub.s32 %s10, 2
      // Predicated region
      $region41: #{discriminator_forward.6} parent=39 // pred_check
        %p4331 = pneg %p86
      $region42: #{discriminator_forward.6} parent=39 // pred_check_branch
        %4333 = sbr.rel (%p4331) target = $region44
      $region43: #{discriminator_forward.6} parent=39 // pred_region
        %s4334 = smul.u32 32, %s16
        %p4335 = scmp.lt.s32.totalorder %s4334, 63
        %s4336 = scalar_select %p4335, %s4334, 63
        %s4337 = smul.addr %s4336, 4
        %s4338 = scalar_lea.vmem %s2, %s4337
      $region44: #{discriminator_forward.6} parent=39 // pred_fallthru
        _
      // Predicated region
      $region45: #{discriminator_forward.6} parent=39 // pred_check
        %p4339 = pneg %p112
      $region46: #{discriminator_forward.6} parent=39 // pred_check_branch
        %4341 = sbr.rel (%p4339) target = $region48
      $region47: #{discriminator_forward.6} parent=39 // pred_region
        %p4342 = scmp.lt.s32.totalorder %s16, 1
        %s4343 = scalar_select %p4342, %s16, 1
        %s4344 = smul.addr %s4343, 8
        %s4345 = scalar_lea.vmem %s3, %s4344
      $region48: #{discriminator_forward.6} parent=39 // pred_fallthru
        _
    $region40: #{discriminator_forward.6} parent=5 // pred_fallthru
      _
  $region6: #{discriminator_forward.6} parent=0 // loop_footer
    %s14 = sadd.s32 1, %s10
  $region7: #{discriminator_forward.6} parent=0 // loop_footer_branch
    %9 = sbr.rel target = $region3
  $region8: #{discriminator_forward.6} parent=0 // loop_exit
    _

// kernel: discriminator_forward.7
$region0: #{discriminator_forward.7}
  #allocation0 [shape = 'u32[]', space=smem, size = 0x4, offset = 0x4, fixed_abs, tag = 'smem constant byte address 0x4 - core index']
  #allocation1 [shape = 'u32[144,128]{1,0:T(1,128)}', space=vmem, size = 0x12000, scoped, tag = 'internal scratch']
  %s0 = inlined_call_operand.vmem [shape: bf16[128,2048], index: 0, kind: input, shape index: {}]
  %s1 = inlined_call_operand.vmem [shape: bf16[2048,128], index: 1, kind: input, shape index: {}]
  %s2 = inlined_call_operand.vmem [shape: bf16[128,128], index: 2, kind: output, shape index: {0}]
  %s3 = inlined_call_operand.vmem [shape: f32[8,128], index: 3, kind: output, shape index: {1}]
  %4 = xla_tuple %s2, %s3
  %s5 = sld [smem:[#allocation0]]
  $region26: #{discriminator_forward.7} parent=0
    _
  %s7 = ssub.s32 1, %s5
  %s8 = scalar_select 0, %s7, %s5
  // Predicated region
  $region2: #{discriminator_forward.7} parent=0 // pred_check
    _
  $region3: #{discriminator_forward.7} parent=0 // pred_check_branch
    %10 = sbr.rel (0) target = $region5
  $region4: #{discriminator_forward.7} parent=0 // pred_region
    _
  $region5: #{discriminator_forward.7} parent=0 // pred_fallthru
    _
  // Predicated region
  $region6: #{discriminator_forward.7} parent=0 // pred_check
    _
  $region7: #{discriminator_forward.7} parent=0 // pred_check_branch
    %12 = sbr.rel (0) target = $region9
  $region8: #{discriminator_forward.7} parent=0 // pred_region
    _
  $region9: #{discriminator_forward.7} parent=0 // pred_fallthru
    _
  %v14 = vld [vmem:[%s0] sm:$0xff]
  %v15 = vld [vmem:[%s0 + $0x8] sm:$0xff]
  %v16 = vld [vmem:[%s0 + $0x10] sm:$0xff]
  %v17 = vld [vmem:[%s0 + $0x18] sm:$0xff]
  %v18 = vld [vmem:[%s0 + $0x20] sm:$0xff]
  %v19 = vld [vmem:[%s0 + $0x28] sm:$0xff]
  %v20 = vld [vmem:[%s0 + $0x30] sm:$0xff]
  %v21 = vld [vmem:[%s0 + $0x38] sm:$0xff]
  %v22 = vld [vmem:[%s0 + $0x40] sm:$0xff]
  %v23 = vld [vmem:[%s0 + $0x48] sm:$0xff]
  %v24 = vld [vmem:[%s0 + $0x50] sm:$0xff]
  %v25 = vld [vmem:[%s0 + $0x58] sm:$0xff]
  %v26 = vld [vmem:[%s0 + $0x60] sm:$0xff]
  %v27 = vld [vmem:[%s0 + $0x68] sm:$0xff]
  %v28 = vld [vmem:[%s0 + $0x70] sm:$0xff]
  %v29 = vld [vmem:[%s0 + $0x78] sm:$0xff]
  %v30 = vld [vmem:[%s0 + $0x80] sm:$0xff]
  %v31 = vld [vmem:[%s0 + $0x88] sm:$0xff]
  %v32 = vld [vmem:[%s0 + $0x90] sm:$0xff]
  %v33 = vld [vmem:[%s0 + $0x98] sm:$0xff]
  %v34 = vld [vmem:[%s0 + $0xa0] sm:$0xff]
  %v35 = vld [vmem:[%s0 + $0xa8] sm:$0xff]
  %v36 = vld [vmem:[%s0 + $0xb0] sm:$0xff]
  %v37 = vld [vmem:[%s0 + $0xb8] sm:$0xff]
  %v38 = vld [vmem:[%s0 + $0xc0] sm:$0xff]
  %v39 = vld [vmem:[%s0 + $0xc8] sm:$0xff]
  %v40 = vld [vmem:[%s0 + $0xd0] sm:$0xff]
  %v41 = vld [vmem:[%s0 + $0xd8] sm:$0xff]
  %v42 = vld [vmem:[%s0 + $0xe0] sm:$0xff]
  %v43 = vld [vmem:[%s0 + $0xe8] sm:$0xff]
  %v44 = vld [vmem:[%s0 + $0xf0] sm:$0xff]
  %v45 = vld [vmem:[%s0 + $0xf8] sm:$0xff]
  %v46 = vld [vmem:[%s0 + $0x100] sm:$0xff]
  %v47 = vld [vmem:[%s0 + $0x108] sm:$0xff]
  %v48 = vld [vmem:[%s0 + $0x110] sm:$0xff]
  %v49 = vld [vmem:[%s0 + $0x118] sm:$0xff]
  %v50 = vld [vmem:[%s0 + $0x120] sm:$0xff]
  %v51 = vld [vmem:[%s0 + $0x128] sm:$0xff]
  %v52 = vld [vmem:[%s0 + $0x130] sm:$0xff]
  %v53 = vld [vmem:[%s0 + $0x138] sm:$0xff]
  %v54 = vld [vmem:[%s0 + $0x140] sm:$0xff]
  %v55 = vld [vmem:[%s0 + $0x148] sm:$0xff]
  %v56 = vld [vmem:[%s0 + $0x150] sm:$0xff]
  %v57 = vld [vmem:[%s0 + $0x158] sm:$0xff]
  %v58 = vld [vmem:[%s0 + $0x160] sm:$0xff]
  %v59 = vld [vmem:[%s0 + $0x168] sm:$0xff]
  %v60 = vld [vmem:[%s0 + $0x170] sm:$0xff]
  %v61 = vld [vmem:[%s0 + $0x178] sm:$0xff]
  %v62 = vld [vmem:[%s0 + $0x180] sm:$0xff]
  %v63 = vld [vmem:[%s0 + $0x188] sm:$0xff]
  %v64 = vld [vmem:[%s0 + $0x190] sm:$0xff]
  %v65 = vld [vmem:[%s0 + $0x198] sm:$0xff]
  %v66 = vld [vmem:[%s0 + $0x1a0] sm:$0xff]
  %v67 = vld [vmem:[%s0 + $0x1a8] sm:$0xff]
  %v68 = vld [vmem:[%s0 + $0x1b0] sm:$0xff]
  %v69 = vld [vmem:[%s0 + $0x1b8] sm:$0xff]
  %v70 = vld [vmem:[%s0 + $0x1c0] sm:$0xff]
  %v71 = vld [vmem:[%s0 + $0x1c8] sm:$0xff]
  %v72 = vld [vmem:[%s0 + $0x1d0] sm:$0xff]
  %v73 = vld [vmem:[%s0 + $0x1d8] sm:$0xff]
  %v74 = vld [vmem:[%s0 + $0x1e0] sm:$0xff]
  %v75 = vld [vmem:[%s0 + $0x1e8] sm:$0xff]
  %v76 = vld [vmem:[%s0 + $0x1f0] sm:$0xff]
  %v77 = vld [vmem:[%s0 + $0x1f8] sm:$0xff]
  %v78 = vld [vmem:[%s0 + $0x200] sm:$0xff]
  %v79 = vld [vmem:[%s0 + $0x208] sm:$0xff]
  %v80 = vld [vmem:[%s0 + $0x210] sm:$0xff]
  %v81 = vld [vmem:[%s0 + $0x218] sm:$0xff]
  %v82 = vld [vmem:[%s0 + $0x220] sm:$0xff]
  %v83 = vld [vmem:[%s0 + $0x228] sm:$0xff]
  %v84 = vld [vmem:[%s0 + $0x230] sm:$0xff]
  %v85 = vld [vmem:[%s0 + $0x238] sm:$0xff]
  %v86 = vld [vmem:[%s0 + $0x240] sm:$0xff]
  %v87 = vld [vmem:[%s0 + $0x248] sm:$0xff]
  %v88 = vld [vmem:[%s0 + $0x250] sm:$0xff]
  %v89 = vld [vmem:[%s0 + $0x258] sm:$0xff]
  %v90 = vld [vmem:[%s0 + $0x260] sm:$0xff]
  %v91 = vld [vmem:[%s0 + $0x268] sm:$0xff]
  %v92 = vld [vmem:[%s0 + $0x270] sm:$0xff]
  %v93 = vld [vmem:[%s0 + $0x278] sm:$0xff]
  %v94 = vld [vmem:[%s0 + $0x280] sm:$0xff]
  %v95 = vld [vmem:[%s0 + $0x288] sm:$0xff]
  %v96 = vld [vmem:[%s0 + $0x290] sm:$0xff]
  %v97 = vld [vmem:[%s0 + $0x298] sm:$0xff]
  %v98 = vld [vmem:[%s0 + $0x2a0] sm:$0xff]
  %v99 = vld [vmem:[%s0 + $0x2a8] sm:$0xff]
  %v100 = vld [vmem:[%s0 + $0x2b0] sm:$0xff]
  %v101 = vld [vmem:[%s0 + $0x2b8] sm:$0xff]
  %v102 = vld [vmem:[%s0 + $0x2c0] sm:$0xff]
  %v103 = vld [vmem:[%s0 + $0x2c8] sm:$0xff]
  %v104 = vld [vmem:[%s0 + $0x2d0] sm:$0xff]
  %v105 = vld [vmem:[%s0 + $0x2d8] sm:$0xff]
  %v106 = vld [vmem:[%s0 + $0x2e0] sm:$0xff]
  %v107 = vld [vmem:[%s0 + $0x2e8] sm:$0xff]
  %v108 = vld [vmem:[%s0 + $0x2f0] sm:$0xff]
  %v109 = vld [vmem:[%s0 + $0x2f8] sm:$0xff]
  %v110 = vld [vmem:[%s0 + $0x300] sm:$0xff]
  %v111 = vld [vmem:[%s0 + $0x308] sm:$0xff]
  %v112 = vld [vmem:[%s0 + $0x310] sm:$0xff]
  %v113 = vld [vmem:[%s0 + $0x318] sm:$0xff]
  %v114 = vld [vmem:[%s0 + $0x320] sm:$0xff]
  %v115 = vld [vmem:[%s0 + $0x328] sm:$0xff]
  %v116 = vld [vmem:[%s0 + $0x330] sm:$0xff]
  %v117 = vld [vmem:[%s0 + $0x338] sm:$0xff]
  %v118 = vld [vmem:[%s0 + $0x340] sm:$0xff]
  %v119 = vld [vmem:[%s0 + $0x348] sm:$0xff]
  %v120 = vld [vmem:[%s0 + $0x350] sm:$0xff]
  %v121 = vld [vmem:[%s0 + $0x358] sm:$0xff]
  %v122 = vld [vmem:[%s0 + $0x360] sm:$0xff]
  %v123 = vld [vmem:[%s0 + $0x368] sm:$0xff]
  %v124 = vld [vmem:[%s0 + $0x370] sm:$0xff]
  %v125 = vld [vmem:[%s0 + $0x378] sm:$0xff]
  %v126 = vld [vmem:[%s0 + $0x380] sm:$0xff]
  %v127 = vld [vmem:[%s0 + $0x388] sm:$0xff]
  %v128 = vld [vmem:[%s0 + $0x390] sm:$0xff]
  %v129 = vld [vmem:[%s0 + $0x398] sm:$0xff]
  %v130 = vld [vmem:[%s0 + $0x3a0] sm:$0xff]
  %v131 = vld [vmem:[%s0 + $0x3a8] sm:$0xff]
  %v132 = vld [vmem:[%s0 + $0x3b0] sm:$0xff]
  %v133 = vld [vmem:[%s0 + $0x3b8] sm:$0xff]
  %v134 = vld [vmem:[%s0 + $0x3c0] sm:$0xff]
  %v135 = vld [vmem:[%s0 + $0x3c8] sm:$0xff]
  %v136 = vld [vmem:[%s0 + $0x3d0] sm:$0xff]
  %v137 = vld [vmem:[%s0 + $0x3d8] sm:$0xff]
  %v138 = vld [vmem:[%s0 + $0x3e0] sm:$0xff]
  %v139 = vld [vmem:[%s0 + $0x3e8] sm:$0xff]
  %v140 = vld [vmem:[%s0 + $0x3f0] sm:$0xff]
  %v141 = vld [vmem:[%s0 + $0x3f8] sm:$0xff]
  %v142 = vld [vmem:[%s1] sm:$0xf]
  %v143 = vld [vmem:[%s1 + $0x4] sm:$0xf]
  %v144 = vld [vmem:[%s1 + $0x8] sm:$0xf]
  %v145 = vld [vmem:[%s1 + $0xc] sm:$0xf]
  %v146 = vld [vmem:[%s1 + $0x10] sm:$0xf]
  %v147 = vld [vmem:[%s1 + $0x14] sm:$0xf]
  %v148 = vld [vmem:[%s1 + $0x18] sm:$0xf]
  %v149 = vld [vmem:[%s1 + $0x1c] sm:$0xf]
  %v150 = vld [vmem:[%s1 + $0x20] sm:$0xf]
  %v151 = vld [vmem:[%s1 + $0x24] sm:$0xf]
  %v152 = vld [vmem:[%s1 + $0x28] sm:$0xf]
  %v153 = vld [vmem:[%s1 + $0x2c] sm:$0xf]
  %v154 = vld [vmem:[%s1 + $0x30] sm:$0xf]
  %v155 = vld [vmem:[%s1 + $0x34] sm:$0xf]
  %v156 = vld [vmem:[%s1 + $0x38] sm:$0xf]
  %v157 = vld [vmem:[%s1 + $0x3c] sm:$0xf]
  %v158 = vld [vmem:[%s1 + $0x40] sm:$0xf]
  %v159 = vld [vmem:[%s1 + $0x44] sm:$0xf]
  %v160 = vld [vmem:[%s1 + $0x48] sm:$0xf]
  %v161 = vld [vmem:[%s1 + $0x4c] sm:$0xf]
  %v162 = vld [vmem:[%s1 + $0x50] sm:$0xf]
  %v163 = vld [vmem:[%s1 + $0x54] sm:$0xf]
  %v164 = vld [vmem:[%s1 + $0x58] sm:$0xf]
  %v165 = vld [vmem:[%s1 + $0x5c] sm:$0xf]
  %v166 = vld [vmem:[%s1 + $0x60] sm:$0xf]
  %v167 = vld [vmem:[%s1 + $0x64] sm:$0xf]
  %v168 = vld [vmem:[%s1 + $0x68] sm:$0xf]
  %v169 = vld [vmem:[%s1 + $0x6c] sm:$0xf]
  %v170 = vld [vmem:[%s1 + $0x70] sm:$0xf]
  %v171 = vld [vmem:[%s1 + $0x74] sm:$0xf]
  %v172 = vld [vmem:[%s1 + $0x78] sm:$0xf]
  %v173 = vld [vmem:[%s1 + $0x7c] sm:$0xf]
  %v174 = vld [vmem:[%s1 + $0x80] sm:$0xf]
  %v175 = vld [vmem:[%s1 + $0x84] sm:$0xf]
  %v176 = vld [vmem:[%s1 + $0x88] sm:$0xf]
  %v177 = vld [vmem:[%s1 + $0x8c] sm:$0xf]
  %v178 = vld [vmem:[%s1 + $0x90] sm:$0xf]
  %v179 = vld [vmem:[%s1 + $0x94] sm:$0xf]
  %v180 = vld [vmem:[%s1 + $0x98] sm:$0xf]
  %v181 = vld [vmem:[%s1 + $0x9c] sm:$0xf]
  %v182 = vld [vmem:[%s1 + $0xa0] sm:$0xf]
  %v183 = vld [vmem:[%s1 + $0xa4] sm:$0xf]
  %v184 = vld [vmem:[%s1 + $0xa8] sm:$0xf]
  %v185 = vld [vmem:[%s1 + $0xac] sm:$0xf]
  %v186 = vld [vmem:[%s1 + $0xb0] sm:$0xf]
  %v187 = vld [vmem:[%s1 + $0xb4] sm:$0xf]
  %v188 = vld [vmem:[%s1 + $0xb8] sm:$0xf]
  %v189 = vld [vmem:[%s1 + $0xbc] sm:$0xf]
  %v190 = vld [vmem:[%s1 + $0xc0] sm:$0xf]
  %v191 = vld [vmem:[%s1 + $0xc4] sm:$0xf]
  %v192 = vld [vmem:[%s1 + $0xc8] sm:$0xf]
  %v193 = vld [vmem:[%s1 + $0xcc] sm:$0xf]
  %v194 = vld [vmem:[%s1 + $0xd0] sm:$0xf]
  %v195 = vld [vmem:[%s1 + $0xd4] sm:$0xf]
  %v196 = vld [vmem:[%s1 + $0xd8] sm:$0xf]
  %v197 = vld [vmem:[%s1 + $0xdc] sm:$0xf]
  %v198 = vld [vmem:[%s1 + $0xe0] sm:$0xf]
  %v199 = vld [vmem:[%s1 + $0xe4] sm:$0xf]
  %v200 = vld [vmem:[%s1 + $0xe8] sm:$0xf]
  %v201 = vld [vmem:[%s1 + $0xec] sm:$0xf]
  %v202 = vld [vmem:[%s1 + $0xf0] sm:$0xf]
  %v203 = vld [vmem:[%s1 + $0xf4] sm:$0xf]
  %v204 = vld [vmem:[%s1 + $0xf8] sm:$0xf]
  %v205 = vld [vmem:[%s1 + $0xfc] sm:$0xf]
  %v206 = vld [vmem:[%s1 + $0x100] sm:$0xf]
  %v207 = vld [vmem:[%s1 + $0x104] sm:$0xf]
  %v208 = vld [vmem:[%s1 + $0x108] sm:$0xf]
  %v209 = vld [vmem:[%s1 + $0x10c] sm:$0xf]
  %v210 = vld [vmem:[%s1 + $0x110] sm:$0xf]
  %v211 = vld [vmem:[%s1 + $0x114] sm:$0xf]
  %v212 = vld [vmem:[%s1 + $0x118] sm:$0xf]
  %v213 = vld [vmem:[%s1 + $0x11c] sm:$0xf]
  %v214 = vld [vmem:[%s1 + $0x120] sm:$0xf]
  %v215 = vld [vmem:[%s1 + $0x124] sm:$0xf]
  %v216 = vld [vmem:[%s1 + $0x128] sm:$0xf]
  %v217 = vld [vmem:[%s1 + $0x12c] sm:$0xf]
  %v218 = vld [vmem:[%s1 + $0x130] sm:$0xf]
  %v219 = vld [vmem:[%s1 + $0x134] sm:$0xf]
  %v220 = vld [vmem:[%s1 + $0x138] sm:$0xf]
  %v221 = vld [vmem:[%s1 + $0x13c] sm:$0xf]
  %v222 = vld [vmem:[%s1 + $0x140] sm:$0xf]
  %v223 = vld [vmem:[%s1 + $0x144] sm:$0xf]
  %v224 = vld [vmem:[%s1 + $0x148] sm:$0xf]
  %v225 = vld [vmem:[%s1 + $0x14c] sm:$0xf]
  %v226 = vld [vmem:[%s1 + $0x150] sm:$0xf]
  %v227 = vld [vmem:[%s1 + $0x154] sm:$0xf]
  %v228 = vld [vmem:[%s1 + $0x158] sm:$0xf]
  %v229 = vld [vmem:[%s1 + $0x15c] sm:$0xf]
  %v230 = vld [vmem:[%s1 + $0x160] sm:$0xf]
  %v231 = vld [vmem:[%s1 + $0x164] sm:$0xf]
  %v232 = vld [vmem:[%s1 + $0x168] sm:$0xf]
  %v233 = vld [vmem:[%s1 + $0x16c] sm:$0xf]
  %v234 = vld [vmem:[%s1 + $0x170] sm:$0xf]
  %v235 = vld [vmem:[%s1 + $0x174] sm:$0xf]
  %v236 = vld [vmem:[%s1 + $0x178] sm:$0xf]
  %v237 = vld [vmem:[%s1 + $0x17c] sm:$0xf]
  %v238 = vld [vmem:[%s1 + $0x180] sm:$0xf]
  %v239 = vld [vmem:[%s1 + $0x184] sm:$0xf]
  %v240 = vld [vmem:[%s1 + $0x188] sm:$0xf]
  %v241 = vld [vmem:[%s1 + $0x18c] sm:$0xf]
  %v242 = vld [vmem:[%s1 + $0x190] sm:$0xf]
  %v243 = vld [vmem:[%s1 + $0x194] sm:$0xf]
  %v244 = vld [vmem:[%s1 + $0x198] sm:$0xf]
  %v245 = vld [vmem:[%s1 + $0x19c] sm:$0xf]
  %v246 = vld [vmem:[%s1 + $0x1a0] sm:$0xf]
  %v247 = vld [vmem:[%s1 + $0x1a4] sm:$0xf]
  %v248 = vld [vmem:[%s1 + $0x1a8] sm:$0xf]
  %v249 = vld [vmem:[%s1 + $0x1ac] sm:$0xf]
  %v250 = vld [vmem:[%s1 + $0x1b0] sm:$0xf]
  %v251 = vld [vmem:[%s1 + $0x1b4] sm:$0xf]
  %v252 = vld [vmem:[%s1 + $0x1b8] sm:$0xf]
  %v253 = vld [vmem:[%s1 + $0x1bc] sm:$0xf]
  %v254 = vld [vmem:[%s1 + $0x1c0] sm:$0xf]
  %v255 = vld [vmem:[%s1 + $0x1c4] sm:$0xf]
  %v256 = vld [vmem:[%s1 + $0x1c8] sm:$0xf]
  %v257 = vld [vmem:[%s1 + $0x1cc] sm:$0xf]
  %v258 = vld [vmem:[%s1 + $0x1d0] sm:$0xf]
  %v259 = vld [vmem:[%s1 + $0x1d4] sm:$0xf]
  %v260 = vld [vmem:[%s1 + $0x1d8] sm:$0xf]
  %v261 = vld [vmem:[%s1 + $0x1dc] sm:$0xf]
  %v262 = vld [vmem:[%s1 + $0x1e0] sm:$0xf]
  %v263 = vld [vmem:[%s1 + $0x1e4] sm:$0xf]
  %v264 = vld [vmem:[%s1 + $0x1e8] sm:$0xf]
  %v265 = vld [vmem:[%s1 + $0x1ec] sm:$0xf]
  %v266 = vld [vmem:[%s1 + $0x1f0] sm:$0xf]
  %v267 = vld [vmem:[%s1 + $0x1f4] sm:$0xf]
  %v268 = vld [vmem:[%s1 + $0x1f8] sm:$0xf]
  %v269 = vld [vmem:[%s1 + $0x1fc] sm:$0xf]
  %v270 = vld [vmem:[%s1 + $0x200] sm:$0xf]
  %v271 = vld [vmem:[%s1 + $0x204] sm:$0xf]
  %v272 = vld [vmem:[%s1 + $0x208] sm:$0xf]
  %v273 = vld [vmem:[%s1 + $0x20c] sm:$0xf]
  %v274 = vld [vmem:[%s1 + $0x210] sm:$0xf]
  %v275 = vld [vmem:[%s1 + $0x214] sm:$0xf]
  %v276 = vld [vmem:[%s1 + $0x218] sm:$0xf]
  %v277 = vld [vmem:[%s1 + $0x21c] sm:$0xf]
  %v278 = vld [vmem:[%s1 + $0x220] sm:$0xf]
  %v279 = vld [vmem:[%s1 + $0x224] sm:$0xf]
  %v280 = vld [vmem:[%s1 + $0x228] sm:$0xf]
  %v281 = vld [vmem:[%s1 + $0x22c] sm:$0xf]
  %v282 = vld [vmem:[%s1 + $0x230] sm:$0xf]
  %v283 = vld [vmem:[%s1 + $0x234] sm:$0xf]
  %v284 = vld [vmem:[%s1 + $0x238] sm:$0xf]
  %v285 = vld [vmem:[%s1 + $0x23c] sm:$0xf]
  %v286 = vld [vmem:[%s1 + $0x240] sm:$0xf]
  %v287 = vld [vmem:[%s1 + $0x244] sm:$0xf]
  %v288 = vld [vmem:[%s1 + $0x248] sm:$0xf]
  %v289 = vld [vmem:[%s1 + $0x24c] sm:$0xf]
  %v290 = vld [vmem:[%s1 + $0x250] sm:$0xf]
  %v291 = vld [vmem:[%s1 + $0x254] sm:$0xf]
  %v292 = vld [vmem:[%s1 + $0x258] sm:$0xf]
  %v293 = vld [vmem:[%s1 + $0x25c] sm:$0xf]
  %v294 = vld [vmem:[%s1 + $0x260] sm:$0xf]
  %v295 = vld [vmem:[%s1 + $0x264] sm:$0xf]
  %v296 = vld [vmem:[%s1 + $0x268] sm:$0xf]
  %v297 = vld [vmem:[%s1 + $0x26c] sm:$0xf]
  %v298 = vld [vmem:[%s1 + $0x270] sm:$0xf]
  %v299 = vld [vmem:[%s1 + $0x274] sm:$0xf]
  %v300 = vld [vmem:[%s1 + $0x278] sm:$0xf]
  %v301 = vld [vmem:[%s1 + $0x27c] sm:$0xf]
  %v302 = vld [vmem:[%s1 + $0x280] sm:$0xf]
  %v303 = vld [vmem:[%s1 + $0x284] sm:$0xf]
  %v304 = vld [vmem:[%s1 + $0x288] sm:$0xf]
  %v305 = vld [vmem:[%s1 + $0x28c] sm:$0xf]
  %v306 = vld [vmem:[%s1 + $0x290] sm:$0xf]
  %v307 = vld [vmem:[%s1 + $0x294] sm:$0xf]
  %v308 = vld [vmem:[%s1 + $0x298] sm:$0xf]
  %v309 = vld [vmem:[%s1 + $0x29c] sm:$0xf]
  %v310 = vld [vmem:[%s1 + $0x2a0] sm:$0xf]
  %v311 = vld [vmem:[%s1 + $0x2a4] sm:$0xf]
  %v312 = vld [vmem:[%s1 + $0x2a8] sm:$0xf]
  %v313 = vld [vmem:[%s1 + $0x2ac] sm:$0xf]
  %v314 = vld [vmem:[%s1 + $0x2b0] sm:$0xf]
  %v315 = vld [vmem:[%s1 + $0x2b4] sm:$0xf]
  %v316 = vld [vmem:[%s1 + $0x2b8] sm:$0xf]
  %v317 = vld [vmem:[%s1 + $0x2bc] sm:$0xf]
  %v318 = vld [vmem:[%s1 + $0x2c0] sm:$0xf]
  %v319 = vld [vmem:[%s1 + $0x2c4] sm:$0xf]
  %v320 = vld [vmem:[%s1 + $0x2c8] sm:$0xf]
  %v321 = vld [vmem:[%s1 + $0x2cc] sm:$0xf]
  %v322 = vld [vmem:[%s1 + $0x2d0] sm:$0xf]
  %v323 = vld [vmem:[%s1 + $0x2d4] sm:$0xf]
  %v324 = vld [vmem:[%s1 + $0x2d8] sm:$0xf]
  %v325 = vld [vmem:[%s1 + $0x2dc] sm:$0xf]
  %v326 = vld [vmem:[%s1 + $0x2e0] sm:$0xf]
  %v327 = vld [vmem:[%s1 + $0x2e4] sm:$0xf]
  %v328 = vld [vmem:[%s1 + $0x2e8] sm:$0xf]
  %v329 = vld [vmem:[%s1 + $0x2ec] sm:$0xf]
  %v330 = vld [vmem:[%s1 + $0x2f0] sm:$0xf]
  %v331 = vld [vmem:[%s1 + $0x2f4] sm:$0xf]
  %v332 = vld [vmem:[%s1 + $0x2f8] sm:$0xf]
  %v333 = vld [vmem:[%s1 + $0x2fc] sm:$0xf]
  %v334 = vld [vmem:[%s1 + $0x300] sm:$0xf]
  %v335 = vld [vmem:[%s1 + $0x304] sm:$0xf]
  %v336 = vld [vmem:[%s1 + $0x308] sm:$0xf]
  %v337 = vld [vmem:[%s1 + $0x30c] sm:$0xf]
  %v338 = vld [vmem:[%s1 + $0x310] sm:$0xf]
  %v339 = vld [vmem:[%s1 + $0x314] sm:$0xf]
  %v340 = vld [vmem:[%s1 + $0x318] sm:$0xf]
  %v341 = vld [vmem:[%s1 + $0x31c] sm:$0xf]
  %v342 = vld [vmem:[%s1 + $0x320] sm:$0xf]
  %v343 = vld [vmem:[%s1 + $0x324] sm:$0xf]
  %v344 = vld [vmem:[%s1 + $0x328] sm:$0xf]
  %v345 = vld [vmem:[%s1 + $0x32c] sm:$0xf]
  %v346 = vld [vmem:[%s1 + $0x330] sm:$0xf]
  %v347 = vld [vmem:[%s1 + $0x334] sm:$0xf]
  %v348 = vld [vmem:[%s1 + $0x338] sm:$0xf]
  %v349 = vld [vmem:[%s1 + $0x33c] sm:$0xf]
  %v350 = vld [vmem:[%s1 + $0x340] sm:$0xf]
  %v351 = vld [vmem:[%s1 + $0x344] sm:$0xf]
  %v352 = vld [vmem:[%s1 + $0x348] sm:$0xf]
  %v353 = vld [vmem:[%s1 + $0x34c] sm:$0xf]
  %v354 = vld [vmem:[%s1 + $0x350] sm:$0xf]
  %v355 = vld [vmem:[%s1 + $0x354] sm:$0xf]
  %v356 = vld [vmem:[%s1 + $0x358] sm:$0xf]
  %v357 = vld [vmem:[%s1 + $0x35c] sm:$0xf]
  %v358 = vld [vmem:[%s1 + $0x360] sm:$0xf]
  %v359 = vld [vmem:[%s1 + $0x364] sm:$0xf]
  %v360 = vld [vmem:[%s1 + $0x368] sm:$0xf]
  %v361 = vld [vmem:[%s1 + $0x36c] sm:$0xf]
  %v362 = vld [vmem:[%s1 + $0x370] sm:$0xf]
  %v363 = vld [vmem:[%s1 + $0x374] sm:$0xf]
  %v364 = vld [vmem:[%s1 + $0x378] sm:$0xf]
  %v365 = vld [vmem:[%s1 + $0x37c] sm:$0xf]
  %v366 = vld [vmem:[%s1 + $0x380] sm:$0xf]
  %v367 = vld [vmem:[%s1 + $0x384] sm:$0xf]
  %v368 = vld [vmem:[%s1 + $0x388] sm:$0xf]
  %v369 = vld [vmem:[%s1 + $0x38c] sm:$0xf]
  %v370 = vld [vmem:[%s1 + $0x390] sm:$0xf]
  %v371 = vld [vmem:[%s1 + $0x394] sm:$0xf]
  %v372 = vld [vmem:[%s1 + $0x398] sm:$0xf]
  %v373 = vld [vmem:[%s1 + $0x39c] sm:$0xf]
  %v374 = vld [vmem:[%s1 + $0x3a0] sm:$0xf]
  %v375 = vld [vmem:[%s1 + $0x3a4] sm:$0xf]
  %v376 = vld [vmem:[%s1 + $0x3a8] sm:$0xf]
  %v377 = vld [vmem:[%s1 + $0x3ac] sm:$0xf]
  %v378 = vld [vmem:[%s1 + $0x3b0] sm:$0xf]
  %v379 = vld [vmem:[%s1 + $0x3b4] sm:$0xf]
  %v380 = vld [vmem:[%s1 + $0x3b8] sm:$0xf]
  %v381 = vld [vmem:[%s1 + $0x3bc] sm:$0xf]
  %v382 = vld [vmem:[%s1 + $0x3c0] sm:$0xf]
  %v383 = vld [vmem:[%s1 + $0x3c4] sm:$0xf]
  %v384 = vld [vmem:[%s1 + $0x3c8] sm:$0xf]
  %v385 = vld [vmem:[%s1 + $0x3cc] sm:$0xf]
  %v386 = vld [vmem:[%s1 + $0x3d0] sm:$0xf]
  %v387 = vld [vmem:[%s1 + $0x3d4] sm:$0xf]
  %v388 = vld [vmem:[%s1 + $0x3d8] sm:$0xf]
  %v389 = vld [vmem:[%s1 + $0x3dc] sm:$0xf]
  %v390 = vld [vmem:[%s1 + $0x3e0] sm:$0xf]
  %v391 = vld [vmem:[%s1 + $0x3e4] sm:$0xf]
  %v392 = vld [vmem:[%s1 + $0x3e8] sm:$0xf]
  %v393 = vld [vmem:[%s1 + $0x3ec] sm:$0xf]
  %v394 = vld [vmem:[%s1 + $0x3f0] sm:$0xf]
  %v395 = vld [vmem:[%s1 + $0x3f4] sm:$0xf]
  %v396 = vld [vmem:[%s1 + $0x3f8] sm:$0xf]
  %v397 = vld [vmem:[%s1 + $0x3fc] sm:$0xf]
  %v526 = vunpack.c.l.b16 %v14
  %v527 = vunpack.c.h.b16 %v14
  %v528 = vunpack.c.l.b16 %v15
  %v529 = vunpack.c.h.b16 %v15
  %v530 = vunpack.c.l.b16 %v16
  %v531 = vunpack.c.h.b16 %v16
  %v532 = vunpack.c.l.b16 %v17
  %v533 = vunpack.c.h.b16 %v17
  %v534 = vunpack.c.l.b16 %v18
  %v535 = vunpack.c.h.b16 %v18
  %v536 = vunpack.c.l.b16 %v19
  %v537 = vunpack.c.h.b16 %v19
  %v538 = vunpack.c.l.b16 %v20
  %v539 = vunpack.c.h.b16 %v20
  %v540 = vunpack.c.l.b16 %v21
  %v541 = vunpack.c.h.b16 %v21
  %v542 = vunpack.c.l.b16 %v22
  %v543 = vunpack.c.h.b16 %v22
  %v544 = vunpack.c.l.b16 %v23
  %v545 = vunpack.c.h.b16 %v23
  %v546 = vunpack.c.l.b16 %v24
  %v547 = vunpack.c.h.b16 %v24
  %v548 = vunpack.c.l.b16 %v25
  %v549 = vunpack.c.h.b16 %v25
  %v550 = vunpack.c.l.b16 %v26
  %v551 = vunpack.c.h.b16 %v26
  %v552 = vunpack.c.l.b16 %v27
  %v553 = vunpack.c.h.b16 %v27
  %v554 = vunpack.c.l.b16 %v28
  %v555 = vunpack.c.h.b16 %v28
  %v556 = vunpack.c.l.b16 %v29
  %v557 = vunpack.c.h.b16 %v29
  %v558 = vunpack.c.l.b16 %v30
  %v559 = vunpack.c.h.b16 %v30
  %v560 = vunpack.c.l.b16 %v31
  %v561 = vunpack.c.h.b16 %v31
  %v562 = vunpack.c.l.b16 %v32
  %v563 = vunpack.c.h.b16 %v32
  %v564 = vunpack.c.l.b16 %v33
  %v565 = vunpack.c.h.b16 %v33
  %v566 = vunpack.c.l.b16 %v34
  %v567 = vunpack.c.h.b16 %v34
  %v568 = vunpack.c.l.b16 %v35
  %v569 = vunpack.c.h.b16 %v35
  %v570 = vunpack.c.l.b16 %v36
  %v571 = vunpack.c.h.b16 %v36
  %v572 = vunpack.c.l.b16 %v37
  %v573 = vunpack.c.h.b16 %v37
  %v574 = vunpack.c.l.b16 %v38
  %v575 = vunpack.c.h.b16 %v38
  %v576 = vunpack.c.l.b16 %v39
  %v577 = vunpack.c.h.b16 %v39
  %v578 = vunpack.c.l.b16 %v40
  %v579 = vunpack.c.h.b16 %v40
  %v580 = vunpack.c.l.b16 %v41
  %v581 = vunpack.c.h.b16 %v41
  %v582 = vunpack.c.l.b16 %v42
  %v583 = vunpack.c.h.b16 %v42
  %v584 = vunpack.c.l.b16 %v43
  %v585 = vunpack.c.h.b16 %v43
  %v586 = vunpack.c.l.b16 %v44
  %v587 = vunpack.c.h.b16 %v44
  %v588 = vunpack.c.l.b16 %v45
  %v589 = vunpack.c.h.b16 %v45
  %v590 = vunpack.c.l.b16 %v46
  %v591 = vunpack.c.h.b16 %v46
  %v592 = vunpack.c.l.b16 %v47
  %v593 = vunpack.c.h.b16 %v47
  %v594 = vunpack.c.l.b16 %v48
  %v595 = vunpack.c.h.b16 %v48
  %v596 = vunpack.c.l.b16 %v49
  %v597 = vunpack.c.h.b16 %v49
  %v598 = vunpack.c.l.b16 %v50
  %v599 = vunpack.c.h.b16 %v50
  %v600 = vunpack.c.l.b16 %v51
  %v601 = vunpack.c.h.b16 %v51
  %v602 = vunpack.c.l.b16 %v52
  %v603 = vunpack.c.h.b16 %v52
  %v604 = vunpack.c.l.b16 %v53
  %v605 = vunpack.c.h.b16 %v53
  %v606 = vunpack.c.l.b16 %v54
  %v607 = vunpack.c.h.b16 %v54
  %v608 = vunpack.c.l.b16 %v55
  %v609 = vunpack.c.h.b16 %v55
  %v610 = vunpack.c.l.b16 %v56
  %v611 = vunpack.c.h.b16 %v56
  %v612 = vunpack.c.l.b16 %v57
  %v613 = vunpack.c.h.b16 %v57
  %v614 = vunpack.c.l.b16 %v58
  %v615 = vunpack.c.h.b16 %v58
  %v616 = vunpack.c.l.b16 %v59
  %v617 = vunpack.c.h.b16 %v59
  %v618 = vunpack.c.l.b16 %v60
  %v619 = vunpack.c.h.b16 %v60
  %v620 = vunpack.c.l.b16 %v61
  %v621 = vunpack.c.h.b16 %v61
  %v622 = vunpack.c.l.b16 %v62
  %v623 = vunpack.c.h.b16 %v62
  %v624 = vunpack.c.l.b16 %v63
  %v625 = vunpack.c.h.b16 %v63
  %v626 = vunpack.c.l.b16 %v64
  %v627 = vunpack.c.h.b16 %v64
  %v628 = vunpack.c.l.b16 %v65
  %v629 = vunpack.c.h.b16 %v65
  %v630 = vunpack.c.l.b16 %v66
  %v631 = vunpack.c.h.b16 %v66
  %v632 = vunpack.c.l.b16 %v67
  %v633 = vunpack.c.h.b16 %v67
  %v634 = vunpack.c.l.b16 %v68
  %v635 = vunpack.c.h.b16 %v68
  %v636 = vunpack.c.l.b16 %v69
  %v637 = vunpack.c.h.b16 %v69
  %v638 = vunpack.c.l.b16 %v70
  %v639 = vunpack.c.h.b16 %v70
  %v640 = vunpack.c.l.b16 %v71
  %v641 = vunpack.c.h.b16 %v71
  %v642 = vunpack.c.l.b16 %v72
  %v643 = vunpack.c.h.b16 %v72
  %v644 = vunpack.c.l.b16 %v73
  %v645 = vunpack.c.h.b16 %v73
  %v646 = vunpack.c.l.b16 %v74
  %v647 = vunpack.c.h.b16 %v74
  %v648 = vunpack.c.l.b16 %v75
  %v649 = vunpack.c.h.b16 %v75
  %v650 = vunpack.c.l.b16 %v76
  %v651 = vunpack.c.h.b16 %v76
  %v652 = vunpack.c.l.b16 %v77
  %v653 = vunpack.c.h.b16 %v77
  %v654 = vunpack.c.l.b16 %v78
  %v655 = vunpack.c.h.b16 %v78
  %v656 = vunpack.c.l.b16 %v79
  %v657 = vunpack.c.h.b16 %v79
  %v658 = vunpack.c.l.b16 %v80
  %v659 = vunpack.c.h.b16 %v80
  %v660 = vunpack.c.l.b16 %v81
  %v661 = vunpack.c.h.b16 %v81
  %v662 = vunpack.c.l.b16 %v82
  %v663 = vunpack.c.h.b16 %v82
  %v664 = vunpack.c.l.b16 %v83
  %v665 = vunpack.c.h.b16 %v83
  %v666 = vunpack.c.l.b16 %v84
  %v667 = vunpack.c.h.b16 %v84
  %v668 = vunpack.c.l.b16 %v85
  %v669 = vunpack.c.h.b16 %v85
  %v670 = vunpack.c.l.b16 %v86
  %v671 = vunpack.c.h.b16 %v86
  %v672 = vunpack.c.l.b16 %v87
  %v673 = vunpack.c.h.b16 %v87
  %v674 = vunpack.c.l.b16 %v88
  %v675 = vunpack.c.h.b16 %v88
  %v676 = vunpack.c.l.b16 %v89
  %v677 = vunpack.c.h.b16 %v89
  %v678 = vunpack.c.l.b16 %v90
  %v679 = vunpack.c.h.b16 %v90
  %v680 = vunpack.c.l.b16 %v91
  %v681 = vunpack.c.h.b16 %v91
  %v682 = vunpack.c.l.b16 %v92
  %v683 = vunpack.c.h.b16 %v92
  %v684 = vunpack.c.l.b16 %v93
  %v685 = vunpack.c.h.b16 %v93
  %v686 = vunpack.c.l.b16 %v94
  %v687 = vunpack.c.h.b16 %v94
  %v688 = vunpack.c.l.b16 %v95
  %v689 = vunpack.c.h.b16 %v95
  %v690 = vunpack.c.l.b16 %v96
  %v691 = vunpack.c.h.b16 %v96
  %v692 = vunpack.c.l.b16 %v97
  %v693 = vunpack.c.h.b16 %v97
  %v694 = vunpack.c.l.b16 %v98
  %v695 = vunpack.c.h.b16 %v98
  %v696 = vunpack.c.l.b16 %v99
  %v697 = vunpack.c.h.b16 %v99
  %v698 = vunpack.c.l.b16 %v100
  %v699 = vunpack.c.h.b16 %v100
  %v700 = vunpack.c.l.b16 %v101
  %v701 = vunpack.c.h.b16 %v101
  %v702 = vunpack.c.l.b16 %v102
  %v703 = vunpack.c.h.b16 %v102
  %v704 = vunpack.c.l.b16 %v103
  %v705 = vunpack.c.h.b16 %v103
  %v706 = vunpack.c.l.b16 %v104
  %v707 = vunpack.c.h.b16 %v104
  %v708 = vunpack.c.l.b16 %v105
  %v709 = vunpack.c.h.b16 %v105
  %v710 = vunpack.c.l.b16 %v106
  %v711 = vunpack.c.h.b16 %v106
  %v712 = vunpack.c.l.b16 %v107
  %v713 = vunpack.c.h.b16 %v107
  %v714 = vunpack.c.l.b16 %v108
  %v715 = vunpack.c.h.b16 %v108
  %v716 = vunpack.c.l.b16 %v109
  %v717 = vunpack.c.h.b16 %v109
  %v718 = vunpack.c.l.b16 %v110
  %v719 = vunpack.c.h.b16 %v110
  %v720 = vunpack.c.l.b16 %v111
  %v721 = vunpack.c.h.b16 %v111
  %v722 = vunpack.c.l.b16 %v112
  %v723 = vunpack.c.h.b16 %v112
  %v724 = vunpack.c.l.b16 %v113
  %v725 = vunpack.c.h.b16 %v113
  %v726 = vunpack.c.l.b16 %v114
  %v727 = vunpack.c.h.b16 %v114
  %v728 = vunpack.c.l.b16 %v115
  %v729 = vunpack.c.h.b16 %v115
  %v730 = vunpack.c.l.b16 %v116
  %v731 = vunpack.c.h.b16 %v116
  %v732 = vunpack.c.l.b16 %v117
  %v733 = vunpack.c.h.b16 %v117
  %v734 = vunpack.c.l.b16 %v118
  %v735 = vunpack.c.h.b16 %v118
  %v736 = vunpack.c.l.b16 %v119
  %v737 = vunpack.c.h.b16 %v119
  %v738 = vunpack.c.l.b16 %v120
  %v739 = vunpack.c.h.b16 %v120
  %v740 = vunpack.c.l.b16 %v121
  %v741 = vunpack.c.h.b16 %v121
  %v742 = vunpack.c.l.b16 %v122
  %v743 = vunpack.c.h.b16 %v122
  %v744 = vunpack.c.l.b16 %v123
  %v745 = vunpack.c.h.b16 %v123
  %v746 = vunpack.c.l.b16 %v124
  %v747 = vunpack.c.h.b16 %v124
  %v748 = vunpack.c.l.b16 %v125
  %v749 = vunpack.c.h.b16 %v125
  %v750 = vunpack.c.l.b16 %v126
  %v751 = vunpack.c.h.b16 %v126
  %v752 = vunpack.c.l.b16 %v127
  %v753 = vunpack.c.h.b16 %v127
  %v754 = vunpack.c.l.b16 %v128
  %v755 = vunpack.c.h.b16 %v128
  %v756 = vunpack.c.l.b16 %v129
  %v757 = vunpack.c.h.b16 %v129
  %v758 = vunpack.c.l.b16 %v130
  %v759 = vunpack.c.h.b16 %v130
  %v760 = vunpack.c.l.b16 %v131
  %v761 = vunpack.c.h.b16 %v131
  %v762 = vunpack.c.l.b16 %v132
  %v763 = vunpack.c.h.b16 %v132
  %v764 = vunpack.c.l.b16 %v133
  %v765 = vunpack.c.h.b16 %v133
  %v766 = vunpack.c.l.b16 %v134
  %v767 = vunpack.c.h.b16 %v134
  %v768 = vunpack.c.l.b16 %v135
  %v769 = vunpack.c.h.b16 %v135
  %v770 = vunpack.c.l.b16 %v136
  %v771 = vunpack.c.h.b16 %v136
  %v772 = vunpack.c.l.b16 %v137
  %v773 = vunpack.c.h.b16 %v137
  %v774 = vunpack.c.l.b16 %v138
  %v775 = vunpack.c.h.b16 %v138
  %v776 = vunpack.c.l.b16 %v139
  %v777 = vunpack.c.h.b16 %v139
  %v778 = vunpack.c.l.b16 %v140
  %v779 = vunpack.c.h.b16 %v140
  %v780 = vunpack.c.l.b16 %v141
  %v781 = vunpack.c.h.b16 %v141
  %v782 = vpack.c.b16 %v542, %v526
  %v783 = vpack.c.b16 %v543, %v527
  %v784 = vpack.c.b16 %v544, %v528
  %v785 = vpack.c.b16 %v545, %v529
  %v786 = vpack.c.b16 %v546, %v530
  %v787 = vpack.c.b16 %v547, %v531
  %v788 = vpack.c.b16 %v548, %v532
  %v789 = vpack.c.b16 %v549, %v533
  %v790 = vpack.c.b16 %v550, %v534
  %v791 = vpack.c.b16 %v551, %v535
  %v792 = vpack.c.b16 %v552, %v536
  %v793 = vpack.c.b16 %v553, %v537
  %v794 = vpack.c.b16 %v554, %v538
  %v795 = vpack.c.b16 %v555, %v539
  %v796 = vpack.c.b16 %v556, %v540
  %v797 = vpack.c.b16 %v557, %v541
  %v798 = vpack.c.b16 %v574, %v558
  %v799 = vpack.c.b16 %v575, %v559
  %v800 = vpack.c.b16 %v576, %v560
  %v801 = vpack.c.b16 %v577, %v561
  %v802 = vpack.c.b16 %v578, %v562
  %v803 = vpack.c.b16 %v579, %v563
  %v804 = vpack.c.b16 %v580, %v564
  %v805 = vpack.c.b16 %v581, %v565
  %v806 = vpack.c.b16 %v582, %v566
  %v807 = vpack.c.b16 %v583, %v567
  %v808 = vpack.c.b16 %v584, %v568
  %v809 = vpack.c.b16 %v585, %v569
  %v810 = vpack.c.b16 %v586, %v570
  %v811 = vpack.c.b16 %v587, %v571
  %v812 = vpack.c.b16 %v588, %v572
  %v813 = vpack.c.b16 %v589, %v573
  %v814 = vpack.c.b16 %v606, %v590
  %v815 = vpack.c.b16 %v607, %v591
  %v816 = vpack.c.b16 %v608, %v592
  %v817 = vpack.c.b16 %v609, %v593
  %v818 = vpack.c.b16 %v610, %v594
  %v819 = vpack.c.b16 %v611, %v595
  %v820 = vpack.c.b16 %v612, %v596
  %v821 = vpack.c.b16 %v613, %v597
  %v822 = vpack.c.b16 %v614, %v598
  %v823 = vpack.c.b16 %v615, %v599
  %v824 = vpack.c.b16 %v616, %v600
  %v825 = vpack.c.b16 %v617, %v601
  %v826 = vpack.c.b16 %v618, %v602
  %v827 = vpack.c.b16 %v619, %v603
  %v828 = vpack.c.b16 %v620, %v604
  %v829 = vpack.c.b16 %v621, %v605
  %v830 = vpack.c.b16 %v638, %v622
  %v831 = vpack.c.b16 %v639, %v623
  %v832 = vpack.c.b16 %v640, %v624
  %v833 = vpack.c.b16 %v641, %v625
  %v834 = vpack.c.b16 %v642, %v626
  %v835 = vpack.c.b16 %v643, %v627
  %v836 = vpack.c.b16 %v644, %v628
  %v837 = vpack.c.b16 %v645, %v629
  %v838 = vpack.c.b16 %v646, %v630
  %v839 = vpack.c.b16 %v647, %v631
  %v840 = vpack.c.b16 %v648, %v632
  %v841 = vpack.c.b16 %v649, %v633
  %v842 = vpack.c.b16 %v650, %v634
  %v843 = vpack.c.b16 %v651, %v635
  %v844 = vpack.c.b16 %v652, %v636
  %v845 = vpack.c.b16 %v653, %v637
  %v846 = vpack.c.b16 %v670, %v654
  %v847 = vpack.c.b16 %v671, %v655
  %v848 = vpack.c.b16 %v672, %v656
  %v849 = vpack.c.b16 %v673, %v657
  %v850 = vpack.c.b16 %v674, %v658
  %v851 = vpack.c.b16 %v675, %v659
  %v852 = vpack.c.b16 %v676, %v660
  %v853 = vpack.c.b16 %v677, %v661
  %v854 = vpack.c.b16 %v678, %v662
  %v855 = vpack.c.b16 %v679, %v663
  %v856 = vpack.c.b16 %v680, %v664
  %v857 = vpack.c.b16 %v681, %v665
  %v858 = vpack.c.b16 %v682, %v666
  %v859 = vpack.c.b16 %v683, %v667
  %v860 = vpack.c.b16 %v684, %v668
  %v861 = vpack.c.b16 %v685, %v669
  %v862 = vpack.c.b16 %v702, %v686
  %v863 = vpack.c.b16 %v703, %v687
  %v864 = vpack.c.b16 %v704, %v688
  %v865 = vpack.c.b16 %v705, %v689
  %v866 = vpack.c.b16 %v706, %v690
  %v867 = vpack.c.b16 %v707, %v691
  %v868 = vpack.c.b16 %v708, %v692
  %v869 = vpack.c.b16 %v709, %v693
  %v870 = vpack.c.b16 %v710, %v694
  %v871 = vpack.c.b16 %v711, %v695
  %v872 = vpack.c.b16 %v712, %v696
  %v873 = vpack.c.b16 %v713, %v697
  %v874 = vpack.c.b16 %v714, %v698
  %v875 = vpack.c.b16 %v715, %v699
  %v876 = vpack.c.b16 %v716, %v700
  %v877 = vpack.c.b16 %v717, %v701
  %v878 = vpack.c.b16 %v734, %v718
  %v879 = vpack.c.b16 %v735, %v719
  %v880 = vpack.c.b16 %v736, %v720
  %v881 = vpack.c.b16 %v737, %v721
  %v882 = vpack.c.b16 %v738, %v722
  %v883 = vpack.c.b16 %v739, %v723
  %v884 = vpack.c.b16 %v740, %v724
  %v885 = vpack.c.b16 %v741, %v725
  %v886 = vpack.c.b16 %v742, %v726
  %v887 = vpack.c.b16 %v743, %v727
  %v888 = vpack.c.b16 %v744, %v728
  %v889 = vpack.c.b16 %v745, %v729
  %v890 = vpack.c.b16 %v746, %v730
  %v891 = vpack.c.b16 %v747, %v731
  %v892 = vpack.c.b16 %v748, %v732
  %v893 = vpack.c.b16 %v749, %v733
  %v894 = vpack.c.b16 %v766, %v750
  %v895 = vpack.c.b16 %v767, %v751
  %v896 = vpack.c.b16 %v768, %v752
  %v897 = vpack.c.b16 %v769, %v753
  %v898 = vpack.c.b16 %v770, %v754
  %v899 = vpack.c.b16 %v771, %v755
  %v900 = vpack.c.b16 %v772, %v756
  %v901 = vpack.c.b16 %v773, %v757
  %v902 = vpack.c.b16 %v774, %v758
  %v903 = vpack.c.b16 %v775, %v759
  %v904 = vpack.c.b16 %v776, %v760
  %v905 = vpack.c.b16 %v777, %v761
  %v906 = vpack.c.b16 %v778, %v762
  %v907 = vpack.c.b16 %v779, %v763
  %v908 = vpack.c.b16 %v780, %v764
  %v909 = vpack.c.b16 %v781, %v765
  %v1294 = vunpack.c.l.b16 %v142
  %v1295 = vunpack.c.l.b16 %v143
  %v1296 = vunpack.c.l.b16 %v144
  %v1297 = vunpack.c.l.b16 %v145
  %v1298 = vunpack.c.l.b16 %v146
  %v1299 = vunpack.c.l.b16 %v147
  %v1300 = vunpack.c.l.b16 %v148
  %v1301 = vunpack.c.l.b16 %v149
  %v1302 = vunpack.c.l.b16 %v150
  %v1303 = vunpack.c.l.b16 %v151
  %v1304 = vunpack.c.l.b16 %v152
  %v1305 = vunpack.c.l.b16 %v153
  %v1306 = vunpack.c.l.b16 %v154
  %v1307 = vunpack.c.l.b16 %v155
  %v1308 = vunpack.c.l.b16 %v156
  %v1309 = vunpack.c.l.b16 %v157
  %v1310 = vunpack.c.l.b16 %v158
  %v1311 = vunpack.c.l.b16 %v159
  %v1312 = vunpack.c.l.b16 %v160
  %v1313 = vunpack.c.l.b16 %v161
  %v1314 = vunpack.c.l.b16 %v162
  %v1315 = vunpack.c.l.b16 %v163
  %v1316 = vunpack.c.l.b16 %v164
  %v1317 = vunpack.c.l.b16 %v165
  %v1318 = vunpack.c.l.b16 %v166
  %v1319 = vunpack.c.l.b16 %v167
  %v1320 = vunpack.c.l.b16 %v168
  %v1321 = vunpack.c.l.b16 %v169
  %v1322 = vunpack.c.l.b16 %v170
  %v1323 = vunpack.c.l.b16 %v171
  %v1324 = vunpack.c.l.b16 %v172
  %v1325 = vunpack.c.l.b16 %v173
  %v1326 = vunpack.c.l.b16 %v174
  %v1327 = vunpack.c.l.b16 %v175
  %v1328 = vunpack.c.l.b16 %v176
  %v1329 = vunpack.c.l.b16 %v177
  %v1330 = vunpack.c.l.b16 %v178
  %v1331 = vunpack.c.l.b16 %v179
  %v1332 = vunpack.c.l.b16 %v180
  %v1333 = vunpack.c.l.b16 %v181
  %v1334 = vunpack.c.l.b16 %v182
  %v1335 = vunpack.c.l.b16 %v183
  %v1336 = vunpack.c.l.b16 %v184
  %v1337 = vunpack.c.l.b16 %v185
  %v1338 = vunpack.c.l.b16 %v186
  %v1339 = vunpack.c.l.b16 %v187
  %v1340 = vunpack.c.l.b16 %v188
  %v1341 = vunpack.c.l.b16 %v189
  %v1342 = vunpack.c.l.b16 %v190
  %v1343 = vunpack.c.l.b16 %v191
  %v1344 = vunpack.c.l.b16 %v192
  %v1345 = vunpack.c.l.b16 %v193
  %v1346 = vunpack.c.l.b16 %v194
  %v1347 = vunpack.c.l.b16 %v195
  %v1348 = vunpack.c.l.b16 %v196
  %v1349 = vunpack.c.l.b16 %v197
  %v1350 = vunpack.c.l.b16 %v198
  %v1351 = vunpack.c.l.b16 %v199
  %v1352 = vunpack.c.l.b16 %v200
  %v1353 = vunpack.c.l.b16 %v201
  %v1354 = vunpack.c.l.b16 %v202
  %v1355 = vunpack.c.l.b16 %v203
  %v1356 = vunpack.c.l.b16 %v204
  %v1357 = vunpack.c.l.b16 %v205
  %v1358 = vunpack.c.l.b16 %v206
  %v1359 = vunpack.c.l.b16 %v207
  %v1360 = vunpack.c.l.b16 %v208
  %v1361 = vunpack.c.l.b16 %v209
  %v1362 = vunpack.c.l.b16 %v210
  %v1363 = vunpack.c.l.b16 %v211
  %v1364 = vunpack.c.l.b16 %v212
  %v1365 = vunpack.c.l.b16 %v213
  %v1366 = vunpack.c.l.b16 %v214
  %v1367 = vunpack.c.l.b16 %v215
  %v1368 = vunpack.c.l.b16 %v216
  %v1369 = vunpack.c.l.b16 %v217
  %v1370 = vunpack.c.l.b16 %v218
  %v1371 = vunpack.c.l.b16 %v219
  %v1372 = vunpack.c.l.b16 %v220
  %v1373 = vunpack.c.l.b16 %v221
  %v1374 = vunpack.c.l.b16 %v222
  %v1375 = vunpack.c.l.b16 %v223
  %v1376 = vunpack.c.l.b16 %v224
  %v1377 = vunpack.c.l.b16 %v225
  %v1378 = vunpack.c.l.b16 %v226
  %v1379 = vunpack.c.l.b16 %v227
  %v1380 = vunpack.c.l.b16 %v228
  %v1381 = vunpack.c.l.b16 %v229
  %v1382 = vunpack.c.l.b16 %v230
  %v1383 = vunpack.c.l.b16 %v231
  %v1384 = vunpack.c.l.b16 %v232
  %v1385 = vunpack.c.l.b16 %v233
  %v1386 = vunpack.c.l.b16 %v234
  %v1387 = vunpack.c.l.b16 %v235
  %v1388 = vunpack.c.l.b16 %v236
  %v1389 = vunpack.c.l.b16 %v237
  %v1390 = vunpack.c.l.b16 %v238
  %v1391 = vunpack.c.l.b16 %v239
  %v1392 = vunpack.c.l.b16 %v240
  %v1393 = vunpack.c.l.b16 %v241
  %v1394 = vunpack.c.l.b16 %v242
  %v1395 = vunpack.c.l.b16 %v243
  %v1396 = vunpack.c.l.b16 %v244
  %v1397 = vunpack.c.l.b16 %v245
  %v1398 = vunpack.c.l.b16 %v246
  %v1399 = vunpack.c.l.b16 %v247
  %v1400 = vunpack.c.l.b16 %v248
  %v1401 = vunpack.c.l.b16 %v249
  %v1402 = vunpack.c.l.b16 %v250
  %v1403 = vunpack.c.l.b16 %v251
  %v1404 = vunpack.c.l.b16 %v252
  %v1405 = vunpack.c.l.b16 %v253
  %v1406 = vunpack.c.l.b16 %v254
  %v1407 = vunpack.c.l.b16 %v255
  %v1408 = vunpack.c.l.b16 %v256
  %v1409 = vunpack.c.l.b16 %v257
  %v1410 = vunpack.c.l.b16 %v258
  %v1411 = vunpack.c.l.b16 %v259
  %v1412 = vunpack.c.l.b16 %v260
  %v1413 = vunpack.c.l.b16 %v261
  %v1414 = vunpack.c.l.b16 %v262
  %v1415 = vunpack.c.l.b16 %v263
  %v1416 = vunpack.c.l.b16 %v264
  %v1417 = vunpack.c.l.b16 %v265
  %v1418 = vunpack.c.l.b16 %v266
  %v1419 = vunpack.c.l.b16 %v267
  %v1420 = vunpack.c.l.b16 %v268
  %v1421 = vunpack.c.l.b16 %v269
  %v1422 = vunpack.c.l.b16 %v270
  %v1423 = vunpack.c.l.b16 %v271
  %v1424 = vunpack.c.l.b16 %v272
  %v1425 = vunpack.c.l.b16 %v273
  %v1426 = vunpack.c.l.b16 %v274
  %v1427 = vunpack.c.l.b16 %v275
  %v1428 = vunpack.c.l.b16 %v276
  %v1429 = vunpack.c.l.b16 %v277
  %v1430 = vunpack.c.l.b16 %v278
  %v1431 = vunpack.c.l.b16 %v279
  %v1432 = vunpack.c.l.b16 %v280
  %v1433 = vunpack.c.l.b16 %v281
  %v1434 = vunpack.c.l.b16 %v282
  %v1435 = vunpack.c.l.b16 %v283
  %v1436 = vunpack.c.l.b16 %v284
  %v1437 = vunpack.c.l.b16 %v285
  %v1438 = vunpack.c.l.b16 %v286
  %v1439 = vunpack.c.l.b16 %v287
  %v1440 = vunpack.c.l.b16 %v288
  %v1441 = vunpack.c.l.b16 %v289
  %v1442 = vunpack.c.l.b16 %v290
  %v1443 = vunpack.c.l.b16 %v291
  %v1444 = vunpack.c.l.b16 %v292
  %v1445 = vunpack.c.l.b16 %v293
  %v1446 = vunpack.c.l.b16 %v294
  %v1447 = vunpack.c.l.b16 %v295
  %v1448 = vunpack.c.l.b16 %v296
  %v1449 = vunpack.c.l.b16 %v297
  %v1450 = vunpack.c.l.b16 %v298
  %v1451 = vunpack.c.l.b16 %v299
  %v1452 = vunpack.c.l.b16 %v300
  %v1453 = vunpack.c.l.b16 %v301
  %v1454 = vunpack.c.l.b16 %v302
  %v1455 = vunpack.c.l.b16 %v303
  %v1456 = vunpack.c.l.b16 %v304
  %v1457 = vunpack.c.l.b16 %v305
  %v1458 = vunpack.c.l.b16 %v306
  %v1459 = vunpack.c.l.b16 %v307
  %v1460 = vunpack.c.l.b16 %v308
  %v1461 = vunpack.c.l.b16 %v309
  %v1462 = vunpack.c.l.b16 %v310
  %v1463 = vunpack.c.l.b16 %v311
  %v1464 = vunpack.c.l.b16 %v312
  %v1465 = vunpack.c.l.b16 %v313
  %v1466 = vunpack.c.l.b16 %v314
  %v1467 = vunpack.c.l.b16 %v315
  %v1468 = vunpack.c.l.b16 %v316
  %v1469 = vunpack.c.l.b16 %v317
  %v1470 = vunpack.c.l.b16 %v318
  %v1471 = vunpack.c.l.b16 %v319
  %v1472 = vunpack.c.l.b16 %v320
  %v1473 = vunpack.c.l.b16 %v321
  %v1474 = vunpack.c.l.b16 %v322
  %v1475 = vunpack.c.l.b16 %v323
  %v1476 = vunpack.c.l.b16 %v324
  %v1477 = vunpack.c.l.b16 %v325
  %v1478 = vunpack.c.l.b16 %v326
  %v1479 = vunpack.c.l.b16 %v327
  %v1480 = vunpack.c.l.b16 %v328
  %v1481 = vunpack.c.l.b16 %v329
  %v1482 = vunpack.c.l.b16 %v330
  %v1483 = vunpack.c.l.b16 %v331
  %v1484 = vunpack.c.l.b16 %v332
  %v1485 = vunpack.c.l.b16 %v333
  %v1486 = vunpack.c.l.b16 %v334
  %v1487 = vunpack.c.l.b16 %v335
  %v1488 = vunpack.c.l.b16 %v336
  %v1489 = vunpack.c.l.b16 %v337
  %v1490 = vunpack.c.l.b16 %v338
  %v1491 = vunpack.c.l.b16 %v339
  %v1492 = vunpack.c.l.b16 %v340
  %v1493 = vunpack.c.l.b16 %v341
  %v1494 = vunpack.c.l.b16 %v342
  %v1495 = vunpack.c.l.b16 %v343
  %v1496 = vunpack.c.l.b16 %v344
  %v1497 = vunpack.c.l.b16 %v345
  %v1498 = vunpack.c.l.b16 %v346
  %v1499 = vunpack.c.l.b16 %v347
  %v1500 = vunpack.c.l.b16 %v348
  %v1501 = vunpack.c.l.b16 %v349
  %v1502 = vunpack.c.l.b16 %v350
  %v1503 = vunpack.c.l.b16 %v351
  %v1504 = vunpack.c.l.b16 %v352
  %v1505 = vunpack.c.l.b16 %v353
  %v1506 = vunpack.c.l.b16 %v354
  %v1507 = vunpack.c.l.b16 %v355
  %v1508 = vunpack.c.l.b16 %v356
  %v1509 = vunpack.c.l.b16 %v357
  %v1510 = vunpack.c.l.b16 %v358
  %v1511 = vunpack.c.l.b16 %v359
  %v1512 = vunpack.c.l.b16 %v360
  %v1513 = vunpack.c.l.b16 %v361
  %v1514 = vunpack.c.l.b16 %v362
  %v1515 = vunpack.c.l.b16 %v363
  %v1516 = vunpack.c.l.b16 %v364
  %v1517 = vunpack.c.l.b16 %v365
  %v1518 = vunpack.c.l.b16 %v366
  %v1519 = vunpack.c.l.b16 %v367
  %v1520 = vunpack.c.l.b16 %v368
  %v1521 = vunpack.c.l.b16 %v369
  %v1522 = vunpack.c.l.b16 %v370
  %v1523 = vunpack.c.l.b16 %v371
  %v1524 = vunpack.c.l.b16 %v372
  %v1525 = vunpack.c.l.b16 %v373
  %v1526 = vunpack.c.l.b16 %v374
  %v1527 = vunpack.c.l.b16 %v375
  %v1528 = vunpack.c.l.b16 %v376
  %v1529 = vunpack.c.l.b16 %v377
  %v1530 = vunpack.c.l.b16 %v378
  %v1531 = vunpack.c.l.b16 %v379
  %v1532 = vunpack.c.l.b16 %v380
  %v1533 = vunpack.c.l.b16 %v381
  %v1534 = vunpack.c.l.b16 %v382
  %v1535 = vunpack.c.l.b16 %v383
  %v1536 = vunpack.c.l.b16 %v384
  %v1537 = vunpack.c.l.b16 %v385
  %v1538 = vunpack.c.l.b16 %v386
  %v1539 = vunpack.c.l.b16 %v387
  %v1540 = vunpack.c.l.b16 %v388
  %v1541 = vunpack.c.l.b16 %v389
  %v1542 = vunpack.c.l.b16 %v390
  %v1543 = vunpack.c.l.b16 %v391
  %v1544 = vunpack.c.l.b16 %v392
  %v1545 = vunpack.c.l.b16 %v393
  %v1546 = vunpack.c.l.b16 %v394
  %v1547 = vunpack.c.l.b16 %v395
  %v1548 = vunpack.c.l.b16 %v396
  %v1549 = vunpack.c.l.b16 %v397
  %v1550 = vpack.c.b16 %v1295, %v1294
  %v1551 = vpack.c.b16 %v1297, %v1296
  %v1552 = vpack.c.b16 %v1299, %v1298
  %v1553 = vpack.c.b16 %v1301, %v1300
  %v1554 = vpack.c.b16 %v1303, %v1302
  %v1555 = vpack.c.b16 %v1305, %v1304
  %v1556 = vpack.c.b16 %v1307, %v1306
  %v1557 = vpack.c.b16 %v1309, %v1308
  %v1558 = vpack.c.b16 %v1311, %v1310
  %v1559 = vpack.c.b16 %v1313, %v1312
  %v1560 = vpack.c.b16 %v1315, %v1314
  %v1561 = vpack.c.b16 %v1317, %v1316
  %v1562 = vpack.c.b16 %v1319, %v1318
  %v1563 = vpack.c.b16 %v1321, %v1320
  %v1564 = vpack.c.b16 %v1323, %v1322
  %v1565 = vpack.c.b16 %v1325, %v1324
  %v1566 = vpack.c.b16 %v1327, %v1326
  %v1567 = vpack.c.b16 %v1329, %v1328
  %v1568 = vpack.c.b16 %v1331, %v1330
  %v1569 = vpack.c.b16 %v1333, %v1332
  %v1570 = vpack.c.b16 %v1335, %v1334
  %v1571 = vpack.c.b16 %v1337, %v1336
  %v1572 = vpack.c.b16 %v1339, %v1338
  %v1573 = vpack.c.b16 %v1341, %v1340
  %v1574 = vpack.c.b16 %v1343, %v1342
  %v1575 = vpack.c.b16 %v1345, %v1344
  %v1576 = vpack.c.b16 %v1347, %v1346
  %v1577 = vpack.c.b16 %v1349, %v1348
  %v1578 = vpack.c.b16 %v1351, %v1350
  %v1579 = vpack.c.b16 %v1353, %v1352
  %v1580 = vpack.c.b16 %v1355, %v1354
  %v1581 = vpack.c.b16 %v1357, %v1356
  %v1582 = vpack.c.b16 %v1359, %v1358
  %v1583 = vpack.c.b16 %v1361, %v1360
  %v1584 = vpack.c.b16 %v1363, %v1362
  %v1585 = vpack.c.b16 %v1365, %v1364
  %v1586 = vpack.c.b16 %v1367, %v1366
  %v1587 = vpack.c.b16 %v1369, %v1368
  %v1588 = vpack.c.b16 %v1371, %v1370
  %v1589 = vpack.c.b16 %v1373, %v1372
  %v1590 = vpack.c.b16 %v1375, %v1374
  %v1591 = vpack.c.b16 %v1377, %v1376
  %v1592 = vpack.c.b16 %v1379, %v1378
  %v1593 = vpack.c.b16 %v1381, %v1380
  %v1594 = vpack.c.b16 %v1383, %v1382
  %v1595 = vpack.c.b16 %v1385, %v1384
  %v1596 = vpack.c.b16 %v1387, %v1386
  %v1597 = vpack.c.b16 %v1389, %v1388
  %v1598 = vpack.c.b16 %v1391, %v1390
  %v1599 = vpack.c.b16 %v1393, %v1392
  %v1600 = vpack.c.b16 %v1395, %v1394
  %v1601 = vpack.c.b16 %v1397, %v1396
  %v1602 = vpack.c.b16 %v1399, %v1398
  %v1603 = vpack.c.b16 %v1401, %v1400
  %v1604 = vpack.c.b16 %v1403, %v1402
  %v1605 = vpack.c.b16 %v1405, %v1404
  %v1606 = vpack.c.b16 %v1407, %v1406
  %v1607 = vpack.c.b16 %v1409, %v1408
  %v1608 = vpack.c.b16 %v1411, %v1410
  %v1609 = vpack.c.b16 %v1413, %v1412
  %v1610 = vpack.c.b16 %v1415, %v1414
  %v1611 = vpack.c.b16 %v1417, %v1416
  %v1612 = vpack.c.b16 %v1419, %v1418
  %v1613 = vpack.c.b16 %v1421, %v1420
  %v1614 = vpack.c.b16 %v1423, %v1422
  %v1615 = vpack.c.b16 %v1425, %v1424
  %v1616 = vpack.c.b16 %v1427, %v1426
  %v1617 = vpack.c.b16 %v1429, %v1428
  %v1618 = vpack.c.b16 %v1431, %v1430
  %v1619 = vpack.c.b16 %v1433, %v1432
  %v1620 = vpack.c.b16 %v1435, %v1434
  %v1621 = vpack.c.b16 %v1437, %v1436
  %v1622 = vpack.c.b16 %v1439, %v1438
  %v1623 = vpack.c.b16 %v1441, %v1440
  %v1624 = vpack.c.b16 %v1443, %v1442
  %v1625 = vpack.c.b16 %v1445, %v1444
  %v1626 = vpack.c.b16 %v1447, %v1446
  %v1627 = vpack.c.b16 %v1449, %v1448
  %v1628 = vpack.c.b16 %v1451, %v1450
  %v1629 = vpack.c.b16 %v1453, %v1452
  %v1630 = vpack.c.b16 %v1455, %v1454
  %v1631 = vpack.c.b16 %v1457, %v1456
  %v1632 = vpack.c.b16 %v1459, %v1458
  %v1633 = vpack.c.b16 %v1461, %v1460
  %v1634 = vpack.c.b16 %v1463, %v1462
  %v1635 = vpack.c.b16 %v1465, %v1464
  %v1636 = vpack.c.b16 %v1467, %v1466
  %v1637 = vpack.c.b16 %v1469, %v1468
  %v1638 = vpack.c.b16 %v1471, %v1470
  %v1639 = vpack.c.b16 %v1473, %v1472
  %v1640 = vpack.c.b16 %v1475, %v1474
  %v1641 = vpack.c.b16 %v1477, %v1476
  %v1642 = vpack.c.b16 %v1479, %v1478
  %v1643 = vpack.c.b16 %v1481, %v1480
  %v1644 = vpack.c.b16 %v1483, %v1482
  %v1645 = vpack.c.b16 %v1485, %v1484
  %v1646 = vpack.c.b16 %v1487, %v1486
  %v1647 = vpack.c.b16 %v1489, %v1488
  %v1648 = vpack.c.b16 %v1491, %v1490
  %v1649 = vpack.c.b16 %v1493, %v1492
  %v1650 = vpack.c.b16 %v1495, %v1494
  %v1651 = vpack.c.b16 %v1497, %v1496
  %v1652 = vpack.c.b16 %v1499, %v1498
  %v1653 = vpack.c.b16 %v1501, %v1500
  %v1654 = vpack.c.b16 %v1503, %v1502
  %v1655 = vpack.c.b16 %v1505, %v1504
  %v1656 = vpack.c.b16 %v1507, %v1506
  %v1657 = vpack.c.b16 %v1509, %v1508
  %v1658 = vpack.c.b16 %v1511, %v1510
  %v1659 = vpack.c.b16 %v1513, %v1512
  %v1660 = vpack.c.b16 %v1515, %v1514
  %v1661 = vpack.c.b16 %v1517, %v1516
  %v1662 = vpack.c.b16 %v1519, %v1518
  %v1663 = vpack.c.b16 %v1521, %v1520
  %v1664 = vpack.c.b16 %v1523, %v1522
  %v1665 = vpack.c.b16 %v1525, %v1524
  %v1666 = vpack.c.b16 %v1527, %v1526
  %v1667 = vpack.c.b16 %v1529, %v1528
  %v1668 = vpack.c.b16 %v1531, %v1530
  %v1669 = vpack.c.b16 %v1533, %v1532
  %v1670 = vpack.c.b16 %v1535, %v1534
  %v1671 = vpack.c.b16 %v1537, %v1536
  %v1672 = vpack.c.b16 %v1539, %v1538
  %v1673 = vpack.c.b16 %v1541, %v1540
  %v1674 = vpack.c.b16 %v1543, %v1542
  %v1675 = vpack.c.b16 %v1545, %v1544
  %v1676 = vpack.c.b16 %v1547, %v1546
  %v1677 = vpack.c.b16 %v1549, %v1548
  %1806 = vmatprep.subr.bf16.mxu0 0
  %1807 = vmatpush1.bf16.msra.mxu0 %v1550
  %1808 = vmatprep.subr.bf16.mxu0 0
  %1809 = vmatpush1.bf16.msra.mxu0 %v1551
  %1810 = vmatprep.subr.bf16.mxu0 0
  %1811 = vmatpush1.bf16.msra.mxu0 %v1552
  %1812 = vmatprep.subr.bf16.mxu0 0
  %1813 = vmatpush1.bf16.msra.mxu0 %v1553
  %1814 = vmatprep.subr.bf16.mxu0 0
  %1815 = vmatpush1.bf16.msra.mxu0 %v1554
  %1816 = vmatprep.subr.bf16.mxu0 0
  %1817 = vmatpush1.bf16.msra.mxu0 %v1555
  %1818 = vmatprep.subr.bf16.mxu0 0
  %1819 = vmatpush1.bf16.msra.mxu0 %v1556
  %1820 = vmatprep.subr.bf16.mxu0 0
  %1821 = vmatpush1.bf16.msra.mxu0 %v1557
  %1822 = vmatprep.subr.bf16.mxu0 0
  %1823 = vmatpush1.bf16.msra.mxu0 %v1558
  %1824 = vmatprep.subr.bf16.mxu0 0
  %1825 = vmatpush1.bf16.msra.mxu0 %v1559
  %1826 = vmatprep.subr.bf16.mxu0 0
  %1827 = vmatpush1.bf16.msra.mxu0 %v1560
  %1828 = vmatprep.subr.bf16.mxu0 0
  %1829 = vmatpush1.bf16.msra.mxu0 %v1561
  %1830 = vmatprep.subr.bf16.mxu0 0
  %1831 = vmatpush1.bf16.msra.mxu0 %v1562
  %1832 = vmatprep.subr.bf16.mxu0 0
  %1833 = vmatpush1.bf16.msra.mxu0 %v1563
  %1834 = vmatprep.subr.bf16.mxu0 0
  %1835 = vmatpush1.bf16.msra.mxu0 %v1564
  %1836 = vmatprep.subr.bf16.mxu0 0
  %1837 = vmatpush1.bf16.msra.mxu0 %v1565
  %1838 = vmatprep.mubr.bf16.mxu0 %v783
  %1839 = vmatmul.mubr.bf16.gmra.mrb[0].mxu0 %v782
  %v1840 = vpop.f32.mrb[0].mxu0
  %v1841 = vadd.f32 0.0, %v1840
  %v1842 = vpop.f32.mrb[0].mxu0
  %v1843 = vpop.f32.mrb[0].mxu0
  %v1844 = vadd.f32 0.0, %v1843
  %v1845 = vpop.f32.mrb[0].mxu0
  %1846 = vmatprep.mubr.bf16.mxu0 %v799
  %1847 = vmatmul.mubr.bf16.gmra.mrb[0].mxu0 %v798
  %v1848 = vpop.f32.mrb[0].mxu0
  %v1849 = vadd.f32 0.0, %v1848
  %v1850 = vpop.f32.mrb[0].mxu0
  %v1851 = vpop.f32.mrb[0].mxu0
  %v1852 = vadd.f32 0.0, %v1851
  %v1853 = vpop.f32.mrb[0].mxu0
  %1854 = vmatprep.mubr.bf16.mxu0 %v815
  %1855 = vmatmul.mubr.bf16.gmra.mrb[0].mxu0 %v814
  %v1856 = vpop.f32.mrb[0].mxu0
  %v1857 = vadd.f32 0.0, %v1856
  %v1858 = vpop.f32.mrb[0].mxu0
  %v1859 = vpop.f32.mrb[0].mxu0
  %v1860 = vadd.f32 0.0, %v1859
  %v1861 = vpop.f32.mrb[0].mxu0
  %1862 = vmatprep.mubr.bf16.mxu0 %v831
  %1863 = vmatmul.mubr.bf16.gmra.mrb[0].mxu0 %v830
  %v1864 = vpop.f32.mrb[0].mxu0
  %v1865 = vadd.f32 0.0, %v1864
  %v1866 = vpop.f32.mrb[0].mxu0
  %v1867 = vpop.f32.mrb[0].mxu0
  %v1868 = vadd.f32 0.0, %v1867
  %v1869 = vpop.f32.mrb[0].mxu0
  %1870 = vmatprep.mubr.bf16.mxu0 %v847
  %1871 = vmatmul.mubr.bf16.gmra.mrb[0].mxu0 %v846
  %v1872 = vpop.f32.mrb[0].mxu0
  %v1873 = vadd.f32 0.0, %v1872
  %v1874 = vpop.f32.mrb[0].mxu0
  %v1875 = vpop.f32.mrb[0].mxu0
  %v1876 = vadd.f32 0.0, %v1875
  %v1877 = vpop.f32.mrb[0].mxu0
  %1878 = vmatprep.mubr.bf16.mxu0 %v863
  %1879 = vmatmul.mubr.bf16.gmra.mrb[0].mxu0 %v862
  %v1880 = vpop.f32.mrb[0].mxu0
  %v1881 = vadd.f32 0.0, %v1880
  %v1882 = vpop.f32.mrb[0].mxu0
  %v1883 = vpop.f32.mrb[0].mxu0
  %v1884 = vadd.f32 0.0, %v1883
  %v1885 = vpop.f32.mrb[0].mxu0
  %1886 = vmatprep.mubr.bf16.mxu0 %v879
  %1887 = vmatmul.mubr.bf16.gmra.mrb[0].mxu0 %v878
  %v1888 = vpop.f32.mrb[0].mxu0
  %v1889 = vadd.f32 0.0, %v1888
  %v1890 = vpop.f32.mrb[0].mxu0
  %v1891 = vpop.f32.mrb[0].mxu0
  %v1892 = vadd.f32 0.0, %v1891
  %v1893 = vpop.f32.mrb[0].mxu0
  %1894 = vmatprep.mubr.bf16.mxu0 %v895
  %1895 = vmatmul.mubr.bf16.gmra.mrb[0].mxu0 %v894
  %v1896 = vpop.f32.mrb[0].mxu0
  %v1897 = vadd.f32 0.0, %v1896
  %v1898 = vpop.f32.mrb[0].mxu0
  %v1899 = vpop.f32.mrb[0].mxu0
  %v1900 = vadd.f32 0.0, %v1899
  %v1901 = vpop.f32.mrb[0].mxu0
  %1902 = vdwg.mxu0
  %1903 = vmatprep.subr.bf16.mxu0 0
  %1904 = vmatpush1.bf16.msra.mxu0 %v1566
  %1905 = vmatprep.subr.bf16.mxu0 0
  %1906 = vmatpush1.bf16.msra.mxu0 %v1567
  %1907 = vmatprep.subr.bf16.mxu0 0
  %1908 = vmatpush1.bf16.msra.mxu0 %v1568
  %1909 = vmatprep.subr.bf16.mxu0 0
  %1910 = vmatpush1.bf16.msra.mxu0 %v1569
  %1911 = vmatprep.subr.bf16.mxu0 0
  %1912 = vmatpush1.bf16.msra.mxu0 %v1570
  %1913 = vmatprep.subr.bf16.mxu0 0
  %1914 = vmatpush1.bf16.msra.mxu0 %v1571
  %1915 = vmatprep.subr.bf16.mxu0 0
  %1916 = vmatpush1.bf16.msra.mxu0 %v1572
  %1917 = vmatprep.subr.bf16.mxu0 0
  %1918 = vmatpush1.bf16.msra.mxu0 %v1573
  %1919 = vmatprep.subr.bf16.mxu0 0
  %1920 = vmatpush1.bf16.msra.mxu0 %v1574
  %1921 = vmatprep.subr.bf16.mxu0 0
  %1922 = vmatpush1.bf16.msra.mxu0 %v1575
  %1923 = vmatprep.subr.bf16.mxu0 0
  %1924 = vmatpush1.bf16.msra.mxu0 %v1576
  %1925 = vmatprep.subr.bf16.mxu0 0
  %1926 = vmatpush1.bf16.msra.mxu0 %v1577
  %1927 = vmatprep.subr.bf16.mxu0 0
  %1928 = vmatpush1.bf16.msra.mxu0 %v1578
  %1929 = vmatprep.subr.bf16.mxu0 0
  %1930 = vmatpush1.bf16.msra.mxu0 %v1579
  %1931 = vmatprep.subr.bf16.mxu0 0
  %1932 = vmatpush1.bf16.msra.mxu0 %v1580
  %1933 = vmatprep.subr.bf16.mxu0 0
  %1934 = vmatpush1.bf16.msra.mxu0 %v1581
  %1935 = vmatprep.mubr.bf16.mxu0 %v785
  %1936 = vmatmul.mubr.bf16.gmra.mrb[0].mxu0 %v784
  %v1937 = vpop.f32.mrb[0].mxu0
  %v1938 = vadd.f32 %v1841, %v1937
  %v1939 = vpop.f32.mrb[0].mxu0
  %v1940 = vpop.f32.mrb[0].mxu0
  %v1941 = vadd.f32 %v1844, %v1940
  %v1942 = vpop.f32.mrb[0].mxu0
  %1943 = vmatprep.mubr.bf16.mxu0 %v801
  %1944 = vmatmul.mubr.bf16.gmra.mrb[0].mxu0 %v800
  %v1945 = vpop.f32.mrb[0].mxu0
  %v1946 = vadd.f32 %v1849, %v1945
  %v1947 = vpop.f32.mrb[0].mxu0
  %v1948 = vpop.f32.mrb[0].mxu0
  %v1949 = vadd.f32 %v1852, %v1948
  %v1950 = vpop.f32.mrb[0].mxu0
  %1951 = vmatprep.mubr.bf16.mxu0 %v817
  %1952 = vmatmul.mubr.bf16.gmra.mrb[0].mxu0 %v816
  %v1953 = vpop.f32.mrb[0].mxu0
  %v1954 = vadd.f32 %v1857, %v1953
  %v1955 = vpop.f32.mrb[0].mxu0
  %v1956 = vpop.f32.mrb[0].mxu0
  %v1957 = vadd.f32 %v1860, %v1956
  %v1958 = vpop.f32.mrb[0].mxu0
  %1959 = vmatprep.mubr.bf16.mxu0 %v833
  %1960 = vmatmul.mubr.bf16.gmra.mrb[0].mxu0 %v832
  %v1961 = vpop.f32.mrb[0].mxu0
  %v1962 = vadd.f32 %v1865, %v1961
  %v1963 = vpop.f32.mrb[0].mxu0
  %v1964 = vpop.f32.mrb[0].mxu0
  %v1965 = vadd.f32 %v1868, %v1964
  %v1966 = vpop.f32.mrb[0].mxu0
  %1967 = vmatprep.mubr.bf16.mxu0 %v849
  %1968 = vmatmul.mubr.bf16.gmra.mrb[0].mxu0 %v848
  %v1969 = vpop.f32.mrb[0].mxu0
  %v1970 = vadd.f32 %v1873, %v1969
  %v1971 = vpop.f32.mrb[0].mxu0
  %v1972 = vpop.f32.mrb[0].mxu0
  %v1973 = vadd.f32 %v1876, %v1972
  %v1974 = vpop.f32.mrb[0].mxu0
  %1975 = vmatprep.mubr.bf16.mxu0 %v865
  %1976 = vmatmul.mubr.bf16.gmra.mrb[0].mxu0 %v864
  %v1977 = vpop.f32.mrb[0].mxu0
  %v1978 = vadd.f32 %v1881, %v1977
  %v1979 = vpop.f32.mrb[0].mxu0
  %v1980 = vpop.f32.mrb[0].mxu0
  %v1981 = vadd.f32 %v1884, %v1980
  %v1982 = vpop.f32.mrb[0].mxu0
  %1983 = vmatprep.mubr.bf16.mxu0 %v881
  %1984 = vmatmul.mubr.bf16.gmra.mrb[0].mxu0 %v880
  %v1985 = vpop.f32.mrb[0].mxu0
  %v1986 = vadd.f32 %v1889, %v1985
  %v1987 = vpop.f32.mrb[0].mxu0
  %v1988 = vpop.f32.mrb[0].mxu0
  %v1989 = vadd.f32 %v1892, %v1988
  %v1990 = vpop.f32.mrb[0].mxu0
  %1991 = vmatprep.mubr.bf16.mxu0 %v897
  %1992 = vmatmul.mubr.bf16.gmra.mrb[0].mxu0 %v896
  %v1993 = vpop.f32.mrb[0].mxu0
  %v1994 = vadd.f32 %v1897, %v1993
  %v1995 = vpop.f32.mrb[0].mxu0
  %v1996 = vpop.f32.mrb[0].mxu0
  %v1997 = vadd.f32 %v1900, %v1996
  %v1998 = vpop.f32.mrb[0].mxu0
  %1999 = vdwg.mxu0
  %2000 = vmatprep.subr.bf16.mxu0 0
  %2001 = vmatpush1.bf16.msra.mxu0 %v1582
  %2002 = vmatprep.subr.bf16.mxu0 0
  %2003 = vmatpush1.bf16.msra.mxu0 %v1583
  %2004 = vmatprep.subr.bf16.mxu0 0
  %2005 = vmatpush1.bf16.msra.mxu0 %v1584
  %2006 = vmatprep.subr.bf16.mxu0 0
  %2007 = vmatpush1.bf16.msra.mxu0 %v1585
  %2008 = vmatprep.subr.bf16.mxu0 0
  %2009 = vmatpush1.bf16.msra.mxu0 %v1586
  %2010 = vmatprep.subr.bf16.mxu0 0
  %2011 = vmatpush1.bf16.msra.mxu0 %v1587
  %2012 = vmatprep.subr.bf16.mxu0 0
  %2013 = vmatpush1.bf16.msra.mxu0 %v1588
  %2014 = vmatprep.subr.bf16.mxu0 0
  %2015 = vmatpush1.bf16.msra.mxu0 %v1589
  %2016 = vmatprep.subr.bf16.mxu0 0
  %2017 = vmatpush1.bf16.msra.mxu0 %v1590
  %2018 = vmatprep.subr.bf16.mxu0 0
  %2019 = vmatpush1.bf16.msra.mxu0 %v1591
  %2020 = vmatprep.subr.bf16.mxu0 0
  %2021 = vmatpush1.bf16.msra.mxu0 %v1592
  %2022 = vmatprep.subr.bf16.mxu0 0
  %2023 = vmatpush1.bf16.msra.mxu0 %v1593
  %2024 = vmatprep.subr.bf16.mxu0 0
  %2025 = vmatpush1.bf16.msra.mxu0 %v1594
  %2026 = vmatprep.subr.bf16.mxu0 0
  %2027 = vmatpush1.bf16.msra.mxu0 %v1595
  %2028 = vmatprep.subr.bf16.mxu0 0
  %2029 = vmatpush1.bf16.msra.mxu0 %v1596
  %2030 = vmatprep.subr.bf16.mxu0 0
  %2031 = vmatpush1.bf16.msra.mxu0 %v1597
  %2032 = vmatprep.mubr.bf16.mxu0 %v787
  %2033 = vmatmul.mubr.bf16.gmra.mrb[0].mxu0 %v786
  %v2034 = vpop.f32.mrb[0].mxu0
  %v2035 = vadd.f32 %v1938, %v2034
  %v2036 = vpop.f32.mrb[0].mxu0
  %v2037 = vpop.f32.mrb[0].mxu0
  %v2038 = vadd.f32 %v1941, %v2037
  %v2039 = vpop.f32.mrb[0].mxu0
  %2040 = vmatprep.mubr.bf16.mxu0 %v803
  %2041 = vmatmul.mubr.bf16.gmra.mrb[0].mxu0 %v802
  %v2042 = vpop.f32.mrb[0].mxu0
  %v2043 = vadd.f32 %v1946, %v2042
  %v2044 = vpop.f32.mrb[0].mxu0
  %v2045 = vpop.f32.mrb[0].mxu0
  %v2046 = vadd.f32 %v1949, %v2045
  %v2047 = vpop.f32.mrb[0].mxu0
  %2048 = vmatprep.mubr.bf16.mxu0 %v819
  %2049 = vmatmul.mubr.bf16.gmra.mrb[0].mxu0 %v818
  %v2050 = vpop.f32.mrb[0].mxu0
  %v2051 = vadd.f32 %v1954, %v2050
  %v2052 = vpop.f32.mrb[0].mxu0
  %v2053 = vpop.f32.mrb[0].mxu0
  %v2054 = vadd.f32 %v1957, %v2053
  %v2055 = vpop.f32.mrb[0].mxu0
  %2056 = vmatprep.mubr.bf16.mxu0 %v835
  %2057 = vmatmul.mubr.bf16.gmra.mrb[0].mxu0 %v834
  %v2058 = vpop.f32.mrb[0].mxu0
  %v2059 = vadd.f32 %v1962, %v2058
  %v2060 = vpop.f32.mrb[0].mxu0
  %v2061 = vpop.f32.mrb[0].mxu0
  %v2062 = vadd.f32 %v1965, %v2061
  %v2063 = vpop.f32.mrb[0].mxu0
  %2064 = vmatprep.mubr.bf16.mxu0 %v851
  %2065 = vmatmul.mubr.bf16.gmra.mrb[0].mxu0 %v850
  %v2066 = vpop.f32.mrb[0].mxu0
  %v2067 = vadd.f32 %v1970, %v2066
  %v2068 = vpop.f32.mrb[0].mxu0
  %v2069 = vpop.f32.mrb[0].mxu0
  %v2070 = vadd.f32 %v1973, %v2069
  %v2071 = vpop.f32.mrb[0].mxu0
  %2072 = vmatprep.mubr.bf16.mxu0 %v867
  %2073 = vmatmul.mubr.bf16.gmra.mrb[0].mxu0 %v866
  %v2074 = vpop.f32.mrb[0].mxu0
  %v2075 = vadd.f32 %v1978, %v2074
  %v2076 = vpop.f32.mrb[0].mxu0
  %v2077 = vpop.f32.mrb[0].mxu0
  %v2078 = vadd.f32 %v1981, %v2077
  %v2079 = vpop.f32.mrb[0].mxu0
  %2080 = vmatprep.mubr.bf16.mxu0 %v883
  %2081 = vmatmul.mubr.bf16.gmra.mrb[0].mxu0 %v882
  %v2082 = vpop.f32.mrb[0].mxu0
  %v2083 = vadd.f32 %v1986, %v2082
  %v2084 = vpop.f32.mrb[0].mxu0
  %v2085 = vpop.f32.mrb[0].mxu0
  %v2086 = vadd.f32 %v1989, %v2085
  %v2087 = vpop.f32.mrb[0].mxu0
  %2088 = vmatprep.mubr.bf16.mxu0 %v899
  %2089 = vmatmul.mubr.bf16.gmra.mrb[0].mxu0 %v898
  %v2090 = vpop.f32.mrb[0].mxu0
  %v2091 = vadd.f32 %v1994, %v2090
  %v2092 = vpop.f32.mrb[0].mxu0
  %v2093 = vpop.f32.mrb[0].mxu0
  %v2094 = vadd.f32 %v1997, %v2093
  %v2095 = vpop.f32.mrb[0].mxu0
  %2096 = vdwg.mxu0
  %2097 = vmatprep.subr.bf16.mxu0 0
  %2098 = vmatpush1.bf16.msra.mxu0 %v1598
  %2099 = vmatprep.subr.bf16.mxu0 0
  %2100 = vmatpush1.bf16.msra.mxu0 %v1599
  %2101 = vmatprep.subr.bf16.mxu0 0
  %2102 = vmatpush1.bf16.msra.mxu0 %v1600
  %2103 = vmatprep.subr.bf16.mxu0 0
  %2104 = vmatpush1.bf16.msra.mxu0 %v1601
  %2105 = vmatprep.subr.bf16.mxu0 0
  %2106 = vmatpush1.bf16.msra.mxu0 %v1602
  %2107 = vmatprep.subr.bf16.mxu0 0
  %2108 = vmatpush1.bf16.msra.mxu0 %v1603
  %2109 = vmatprep.subr.bf16.mxu0 0
  %2110 = vmatpush1.bf16.msra.mxu0 %v1604
  %2111 = vmatprep.subr.bf16.mxu0 0
  %2112 = vmatpush1.bf16.msra.mxu0 %v1605
  %2113 = vmatprep.subr.bf16.mxu0 0
  %2114 = vmatpush1.bf16.msra.mxu0 %v1606
  %2115 = vmatprep.subr.bf16.mxu0 0
  %2116 = vmatpush1.bf16.msra.mxu0 %v1607
  %2117 = vmatprep.subr.bf16.mxu0 0
  %2118 = vmatpush1.bf16.msra.mxu0 %v1608
  %2119 = vmatprep.subr.bf16.mxu0 0
  %2120 = vmatpush1.bf16.msra.mxu0 %v1609
  %2121 = vmatprep.subr.bf16.mxu0 0
  %2122 = vmatpush1.bf16.msra.mxu0 %v1610
  %2123 = vmatprep.subr.bf16.mxu0 0
  %2124 = vmatpush1.bf16.msra.mxu0 %v1611
  %2125 = vmatprep.subr.bf16.mxu0 0
  %2126 = vmatpush1.bf16.msra.mxu0 %v1612
  %2127 = vmatprep.subr.bf16.mxu0 0
  %2128 = vmatpush1.bf16.msra.mxu0 %v1613
  %2129 = vmatprep.mubr.bf16.mxu0 %v789
  %2130 = vmatmul.mubr.bf16.gmra.mrb[0].mxu0 %v788
  %v2131 = vpop.f32.mrb[0].mxu0
  %v2132 = vadd.f32 %v2035, %v2131
  %v2133 = vpop.f32.mrb[0].mxu0
  %v2134 = vpop.f32.mrb[0].mxu0
  %v2135 = vadd.f32 %v2038, %v2134
  %v2136 = vpop.f32.mrb[0].mxu0
  %2137 = vmatprep.mubr.bf16.mxu0 %v805
  %2138 = vmatmul.mubr.bf16.gmra.mrb[0].mxu0 %v804
  %v2139 = vpop.f32.mrb[0].mxu0
  %v2140 = vadd.f32 %v2043, %v2139
  %v2141 = vpop.f32.mrb[0].mxu0
  %v2142 = vpop.f32.mrb[0].mxu0
  %v2143 = vadd.f32 %v2046, %v2142
  %v2144 = vpop.f32.mrb[0].mxu0
  %2145 = vmatprep.mubr.bf16.mxu0 %v821
  %2146 = vmatmul.mubr.bf16.gmra.mrb[0].mxu0 %v820
  %v2147 = vpop.f32.mrb[0].mxu0
  %v2148 = vadd.f32 %v2051, %v2147
  %v2149 = vpop.f32.mrb[0].mxu0
  %v2150 = vpop.f32.mrb[0].mxu0
  %v2151 = vadd.f32 %v2054, %v2150
  %v2152 = vpop.f32.mrb[0].mxu0
  %2153 = vmatprep.mubr.bf16.mxu0 %v837
  %2154 = vmatmul.mubr.bf16.gmra.mrb[0].mxu0 %v836
  %v2155 = vpop.f32.mrb[0].mxu0
  %v2156 = vadd.f32 %v2059, %v2155
  %v2157 = vpop.f32.mrb[0].mxu0
  %v2158 = vpop.f32.mrb[0].mxu0
  %v2159 = vadd.f32 %v2062, %v2158
  %v2160 = vpop.f32.mrb[0].mxu0
  %2161 = vmatprep.mubr.bf16.mxu0 %v853
  %2162 = vmatmul.mubr.bf16.gmra.mrb[0].mxu0 %v852
  %v2163 = vpop.f32.mrb[0].mxu0
  %v2164 = vadd.f32 %v2067, %v2163
  %v2165 = vpop.f32.mrb[0].mxu0
  %v2166 = vpop.f32.mrb[0].mxu0
  %v2167 = vadd.f32 %v2070, %v2166
  %v2168 = vpop.f32.mrb[0].mxu0
  %2169 = vmatprep.mubr.bf16.mxu0 %v869
  %2170 = vmatmul.mubr.bf16.gmra.mrb[0].mxu0 %v868
  %v2171 = vpop.f32.mrb[0].mxu0
  %v2172 = vadd.f32 %v2075, %v2171
  %v2173 = vpop.f32.mrb[0].mxu0
  %v2174 = vpop.f32.mrb[0].mxu0
  %v2175 = vadd.f32 %v2078, %v2174
  %v2176 = vpop.f32.mrb[0].mxu0
  %2177 = vmatprep.mubr.bf16.mxu0 %v885
  %2178 = vmatmul.mubr.bf16.gmra.mrb[0].mxu0 %v884
  %v2179 = vpop.f32.mrb[0].mxu0
  %v2180 = vadd.f32 %v2083, %v2179
  %v2181 = vpop.f32.mrb[0].mxu0
  %v2182 = vpop.f32.mrb[0].mxu0
  %v2183 = vadd.f32 %v2086, %v2182
  %v2184 = vpop.f32.mrb[0].mxu0
  %2185 = vmatprep.mubr.bf16.mxu0 %v901
  %2186 = vmatmul.mubr.bf16.gmra.mrb[0].mxu0 %v900
  %v2187 = vpop.f32.mrb[0].mxu0
  %v2188 = vadd.f32 %v2091, %v2187
  %v2189 = vpop.f32.mrb[0].mxu0
  %v2190 = vpop.f32.mrb[0].mxu0
  %v2191 = vadd.f32 %v2094, %v2190
  %v2192 = vpop.f32.mrb[0].mxu0
  %2193 = vdwg.mxu0
  %2194 = vmatprep.subr.bf16.mxu0 0
  %2195 = vmatpush1.bf16.msra.mxu0 %v1614
  %2196 = vmatprep.subr.bf16.mxu0 0
  %2197 = vmatpush1.bf16.msra.mxu0 %v1615
  %2198 = vmatprep.subr.bf16.mxu0 0
  %2199 = vmatpush1.bf16.msra.mxu0 %v1616
  %2200 = vmatprep.subr.bf16.mxu0 0
  %2201 = vmatpush1.bf16.msra.mxu0 %v1617
  %2202 = vmatprep.subr.bf16.mxu0 0
  %2203 = vmatpush1.bf16.msra.mxu0 %v1618
  %2204 = vmatprep.subr.bf16.mxu0 0
  %2205 = vmatpush1.bf16.msra.mxu0 %v1619
  %2206 = vmatprep.subr.bf16.mxu0 0
  %2207 = vmatpush1.bf16.msra.mxu0 %v1620
  %2208 = vmatprep.subr.bf16.mxu0 0
  %2209 = vmatpush1.bf16.msra.mxu0 %v1621
  %2210 = vmatprep.subr.bf16.mxu0 0
  %2211 = vmatpush1.bf16.msra.mxu0 %v1622
  %2212 = vmatprep.subr.bf16.mxu0 0
  %2213 = vmatpush1.bf16.msra.mxu0 %v1623
  %2214 = vmatprep.subr.bf16.mxu0 0
  %2215 = vmatpush1.bf16.msra.mxu0 %v1624
  %2216 = vmatprep.subr.bf16.mxu0 0
  %2217 = vmatpush1.bf16.msra.mxu0 %v1625
  %2218 = vmatprep.subr.bf16.mxu0 0
  %2219 = vmatpush1.bf16.msra.mxu0 %v1626
  %2220 = vmatprep.subr.bf16.mxu0 0
  %2221 = vmatpush1.bf16.msra.mxu0 %v1627
  %2222 = vmatprep.subr.bf16.mxu0 0
  %2223 = vmatpush1.bf16.msra.mxu0 %v1628
  %2224 = vmatprep.subr.bf16.mxu0 0
  %2225 = vmatpush1.bf16.msra.mxu0 %v1629
  %2226 = vmatprep.mubr.bf16.mxu0 %v791
  %2227 = vmatmul.mubr.bf16.gmra.mrb[0].mxu0 %v790
  %v2228 = vpop.f32.mrb[0].mxu0
  %v2229 = vadd.f32 %v2132, %v2228
  %v2230 = vpop.f32.mrb[0].mxu0
  %v2231 = vpop.f32.mrb[0].mxu0
  %v2232 = vadd.f32 %v2135, %v2231
  %v2233 = vpop.f32.mrb[0].mxu0
  %2234 = vmatprep.mubr.bf16.mxu0 %v807
  %2235 = vmatmul.mubr.bf16.gmra.mrb[0].mxu0 %v806
  %v2236 = vpop.f32.mrb[0].mxu0
  %v2237 = vadd.f32 %v2140, %v2236
  %v2238 = vpop.f32.mrb[0].mxu0
  %v2239 = vpop.f32.mrb[0].mxu0
  %v2240 = vadd.f32 %v2143, %v2239
  %v2241 = vpop.f32.mrb[0].mxu0
  %2242 = vmatprep.mubr.bf16.mxu0 %v823
  %2243 = vmatmul.mubr.bf16.gmra.mrb[0].mxu0 %v822
  %v2244 = vpop.f32.mrb[0].mxu0
  %v2245 = vadd.f32 %v2148, %v2244
  %v2246 = vpop.f32.mrb[0].mxu0
  %v2247 = vpop.f32.mrb[0].mxu0
  %v2248 = vadd.f32 %v2151, %v2247
  %v2249 = vpop.f32.mrb[0].mxu0
  %2250 = vmatprep.mubr.bf16.mxu0 %v839
  %2251 = vmatmul.mubr.bf16.gmra.mrb[0].mxu0 %v838
  %v2252 = vpop.f32.mrb[0].mxu0
  %v2253 = vadd.f32 %v2156, %v2252
  %v2254 = vpop.f32.mrb[0].mxu0
  %v2255 = vpop.f32.mrb[0].mxu0
  %v2256 = vadd.f32 %v2159, %v2255
  %v2257 = vpop.f32.mrb[0].mxu0
  %2258 = vmatprep.mubr.bf16.mxu0 %v855
  %2259 = vmatmul.mubr.bf16.gmra.mrb[0].mxu0 %v854
  %v2260 = vpop.f32.mrb[0].mxu0
  %v2261 = vadd.f32 %v2164, %v2260
  %v2262 = vpop.f32.mrb[0].mxu0
  %v2263 = vpop.f32.mrb[0].mxu0
  %v2264 = vadd.f32 %v2167, %v2263
  %v2265 = vpop.f32.mrb[0].mxu0
  %2266 = vmatprep.mubr.bf16.mxu0 %v871
  %2267 = vmatmul.mubr.bf16.gmra.mrb[0].mxu0 %v870
  %v2268 = vpop.f32.mrb[0].mxu0
  %v2269 = vadd.f32 %v2172, %v2268
  %v2270 = vpop.f32.mrb[0].mxu0
  %v2271 = vpop.f32.mrb[0].mxu0
  %v2272 = vadd.f32 %v2175, %v2271
  %v2273 = vpop.f32.mrb[0].mxu0
  %2274 = vmatprep.mubr.bf16.mxu0 %v887
  %2275 = vmatmul.mubr.bf16.gmra.mrb[0].mxu0 %v886
  %v2276 = vpop.f32.mrb[0].mxu0
  %v2277 = vadd.f32 %v2180, %v2276
  %v2278 = vpop.f32.mrb[0].mxu0
  %v2279 = vpop.f32.mrb[0].mxu0
  %v2280 = vadd.f32 %v2183, %v2279
  %v2281 = vpop.f32.mrb[0].mxu0
  %2282 = vmatprep.mubr.bf16.mxu0 %v903
  %2283 = vmatmul.mubr.bf16.gmra.mrb[0].mxu0 %v902
  %v2284 = vpop.f32.mrb[0].mxu0
  %v2285 = vadd.f32 %v2188, %v2284
  %v2286 = vpop.f32.mrb[0].mxu0
  %v2287 = vpop.f32.mrb[0].mxu0
  %v2288 = vadd.f32 %v2191, %v2287
  %v2289 = vpop.f32.mrb[0].mxu0
  %2290 = vdwg.mxu0
  %2291 = vmatprep.subr.bf16.mxu0 0
  %2292 = vmatpush1.bf16.msra.mxu0 %v1630
  %2293 = vmatprep.subr.bf16.mxu0 0
  %2294 = vmatpush1.bf16.msra.mxu0 %v1631
  %2295 = vmatprep.subr.bf16.mxu0 0
  %2296 = vmatpush1.bf16.msra.mxu0 %v1632
  %2297 = vmatprep.subr.bf16.mxu0 0
  %2298 = vmatpush1.bf16.msra.mxu0 %v1633
  %2299 = vmatprep.subr.bf16.mxu0 0
  %2300 = vmatpush1.bf16.msra.mxu0 %v1634
  %2301 = vmatprep.subr.bf16.mxu0 0
  %2302 = vmatpush1.bf16.msra.mxu0 %v1635
  %2303 = vmatprep.subr.bf16.mxu0 0
  %2304 = vmatpush1.bf16.msra.mxu0 %v1636
  %2305 = vmatprep.subr.bf16.mxu0 0
  %2306 = vmatpush1.bf16.msra.mxu0 %v1637
  %2307 = vmatprep.subr.bf16.mxu0 0
  %2308 = vmatpush1.bf16.msra.mxu0 %v1638
  %2309 = vmatprep.subr.bf16.mxu0 0
  %2310 = vmatpush1.bf16.msra.mxu0 %v1639
  %2311 = vmatprep.subr.bf16.mxu0 0
  %2312 = vmatpush1.bf16.msra.mxu0 %v1640
  %2313 = vmatprep.subr.bf16.mxu0 0
  %2314 = vmatpush1.bf16.msra.mxu0 %v1641
  %2315 = vmatprep.subr.bf16.mxu0 0
  %2316 = vmatpush1.bf16.msra.mxu0 %v1642
  %2317 = vmatprep.subr.bf16.mxu0 0
  %2318 = vmatpush1.bf16.msra.mxu0 %v1643
  %2319 = vmatprep.subr.bf16.mxu0 0
  %2320 = vmatpush1.bf16.msra.mxu0 %v1644
  %2321 = vmatprep.subr.bf16.mxu0 0
  %2322 = vmatpush1.bf16.msra.mxu0 %v1645
  %2323 = vmatprep.mubr.bf16.mxu0 %v793
  %2324 = vmatmul.mubr.bf16.gmra.mrb[0].mxu0 %v792
  %v2325 = vpop.f32.mrb[0].mxu0
  %v2326 = vadd.f32 %v2229, %v2325
  %v2327 = vpop.f32.mrb[0].mxu0
  %v2328 = vpop.f32.mrb[0].mxu0
  %v2329 = vadd.f32 %v2232, %v2328
  %v2330 = vpop.f32.mrb[0].mxu0
  %2331 = vmatprep.mubr.bf16.mxu0 %v809
  %2332 = vmatmul.mubr.bf16.gmra.mrb[0].mxu0 %v808
  %v2333 = vpop.f32.mrb[0].mxu0
  %v2334 = vadd.f32 %v2237, %v2333
  %v2335 = vpop.f32.mrb[0].mxu0
  %v2336 = vpop.f32.mrb[0].mxu0
  %v2337 = vadd.f32 %v2240, %v2336
  %v2338 = vpop.f32.mrb[0].mxu0
  %2339 = vmatprep.mubr.bf16.mxu0 %v825
  %2340 = vmatmul.mubr.bf16.gmra.mrb[0].mxu0 %v824
  %v2341 = vpop.f32.mrb[0].mxu0
  %v2342 = vadd.f32 %v2245, %v2341
  %v2343 = vpop.f32.mrb[0].mxu0
  %v2344 = vpop.f32.mrb[0].mxu0
  %v2345 = vadd.f32 %v2248, %v2344
  %v2346 = vpop.f32.mrb[0].mxu0
  %2347 = vmatprep.mubr.bf16.mxu0 %v841
  %2348 = vmatmul.mubr.bf16.gmra.mrb[0].mxu0 %v840
  %v2349 = vpop.f32.mrb[0].mxu0
  %v2350 = vadd.f32 %v2253, %v2349
  %v2351 = vpop.f32.mrb[0].mxu0
  %v2352 = vpop.f32.mrb[0].mxu0
  %v2353 = vadd.f32 %v2256, %v2352
  %v2354 = vpop.f32.mrb[0].mxu0
  %2355 = vmatprep.mubr.bf16.mxu0 %v857
  %2356 = vmatmul.mubr.bf16.gmra.mrb[0].mxu0 %v856
  %v2357 = vpop.f32.mrb[0].mxu0
  %v2358 = vadd.f32 %v2261, %v2357
  %v2359 = vpop.f32.mrb[0].mxu0
  %v2360 = vpop.f32.mrb[0].mxu0
  %v2361 = vadd.f32 %v2264, %v2360
  %v2362 = vpop.f32.mrb[0].mxu0
  %2363 = vmatprep.mubr.bf16.mxu0 %v873
  %2364 = vmatmul.mubr.bf16.gmra.mrb[0].mxu0 %v872
  %v2365 = vpop.f32.mrb[0].mxu0
  %v2366 = vadd.f32 %v2269, %v2365
  %v2367 = vpop.f32.mrb[0].mxu0
  %v2368 = vpop.f32.mrb[0].mxu0
  %v2369 = vadd.f32 %v2272, %v2368
  %v2370 = vpop.f32.mrb[0].mxu0
  %2371 = vmatprep.mubr.bf16.mxu0 %v889
  %2372 = vmatmul.mubr.bf16.gmra.mrb[0].mxu0 %v888
  %v2373 = vpop.f32.mrb[0].mxu0
  %v2374 = vadd.f32 %v2277, %v2373
  %v2375 = vpop.f32.mrb[0].mxu0
  %v2376 = vpop.f32.mrb[0].mxu0
  %v2377 = vadd.f32 %v2280, %v2376
  %v2378 = vpop.f32.mrb[0].mxu0
  %2379 = vmatprep.mubr.bf16.mxu0 %v905
  %2380 = vmatmul.mubr.bf16.gmra.mrb[0].mxu0 %v904
  %v2381 = vpop.f32.mrb[0].mxu0
  %v2382 = vadd.f32 %v2285, %v2381
  %v2383 = vpop.f32.mrb[0].mxu0
  %v2384 = vpop.f32.mrb[0].mxu0
  %v2385 = vadd.f32 %v2288, %v2384
  %v2386 = vpop.f32.mrb[0].mxu0
  %2387 = vdwg.mxu0
  %2388 = vmatprep.subr.bf16.mxu0 0
  %2389 = vmatpush1.bf16.msra.mxu0 %v1646
  %2390 = vmatprep.subr.bf16.mxu0 0
  %2391 = vmatpush1.bf16.msra.mxu0 %v1647
  %2392 = vmatprep.subr.bf16.mxu0 0
  %2393 = vmatpush1.bf16.msra.mxu0 %v1648
  %2394 = vmatprep.subr.bf16.mxu0 0
  %2395 = vmatpush1.bf16.msra.mxu0 %v1649
  %2396 = vmatprep.subr.bf16.mxu0 0
  %2397 = vmatpush1.bf16.msra.mxu0 %v1650
  %2398 = vmatprep.subr.bf16.mxu0 0
  %2399 = vmatpush1.bf16.msra.mxu0 %v1651
  %2400 = vmatprep.subr.bf16.mxu0 0
  %2401 = vmatpush1.bf16.msra.mxu0 %v1652
  %2402 = vmatprep.subr.bf16.mxu0 0
  %2403 = vmatpush1.bf16.msra.mxu0 %v1653
  %2404 = vmatprep.subr.bf16.mxu0 0
  %2405 = vmatpush1.bf16.msra.mxu0 %v1654
  %2406 = vmatprep.subr.bf16.mxu0 0
  %2407 = vmatpush1.bf16.msra.mxu0 %v1655
  %2408 = vmatprep.subr.bf16.mxu0 0
  %2409 = vmatpush1.bf16.msra.mxu0 %v1656
  %2410 = vmatprep.subr.bf16.mxu0 0
  %2411 = vmatpush1.bf16.msra.mxu0 %v1657
  %2412 = vmatprep.subr.bf16.mxu0 0
  %2413 = vmatpush1.bf16.msra.mxu0 %v1658
  %2414 = vmatprep.subr.bf16.mxu0 0
  %2415 = vmatpush1.bf16.msra.mxu0 %v1659
  %2416 = vmatprep.subr.bf16.mxu0 0
  %2417 = vmatpush1.bf16.msra.mxu0 %v1660
  %2418 = vmatprep.subr.bf16.mxu0 0
  %2419 = vmatpush1.bf16.msra.mxu0 %v1661
  %2420 = vmatprep.mubr.bf16.mxu0 %v795
  %2421 = vmatmul.mubr.bf16.gmra.mrb[0].mxu0 %v794
  %v2422 = vpop.f32.mrb[0].mxu0
  %v2423 = vadd.f32 %v2326, %v2422
  %v2424 = vpop.f32.mrb[0].mxu0
  %v2425 = vpop.f32.mrb[0].mxu0
  %v2426 = vadd.f32 %v2329, %v2425
  %v2427 = vpop.f32.mrb[0].mxu0
  %2428 = vmatprep.mubr.bf16.mxu0 %v811
  %2429 = vmatmul.mubr.bf16.gmra.mrb[0].mxu0 %v810
  %v2430 = vpop.f32.mrb[0].mxu0
  %v2431 = vadd.f32 %v2334, %v2430
  %v2432 = vpop.f32.mrb[0].mxu0
  %v2433 = vpop.f32.mrb[0].mxu0
  %v2434 = vadd.f32 %v2337, %v2433
  %v2435 = vpop.f32.mrb[0].mxu0
  %2436 = vmatprep.mubr.bf16.mxu0 %v827
  %2437 = vmatmul.mubr.bf16.gmra.mrb[0].mxu0 %v826
  %v2438 = vpop.f32.mrb[0].mxu0
  %v2439 = vadd.f32 %v2342, %v2438
  %v2440 = vpop.f32.mrb[0].mxu0
  %v2441 = vpop.f32.mrb[0].mxu0
  %v2442 = vadd.f32 %v2345, %v2441
  %v2443 = vpop.f32.mrb[0].mxu0
  %2444 = vmatprep.mubr.bf16.mxu0 %v843
  %2445 = vmatmul.mubr.bf16.gmra.mrb[0].mxu0 %v842
  %v2446 = vpop.f32.mrb[0].mxu0
  %v2447 = vadd.f32 %v2350, %v2446
  %v2448 = vpop.f32.mrb[0].mxu0
  %v2449 = vpop.f32.mrb[0].mxu0
  %v2450 = vadd.f32 %v2353, %v2449
  %v2451 = vpop.f32.mrb[0].mxu0
  %2452 = vmatprep.mubr.bf16.mxu0 %v859
  %2453 = vmatmul.mubr.bf16.gmra.mrb[0].mxu0 %v858
  %v2454 = vpop.f32.mrb[0].mxu0
  %v2455 = vadd.f32 %v2358, %v2454
  %v2456 = vpop.f32.mrb[0].mxu0
  %v2457 = vpop.f32.mrb[0].mxu0
  %v2458 = vadd.f32 %v2361, %v2457
  %v2459 = vpop.f32.mrb[0].mxu0
  %2460 = vmatprep.mubr.bf16.mxu0 %v875
  %2461 = vmatmul.mubr.bf16.gmra.mrb[0].mxu0 %v874
  %v2462 = vpop.f32.mrb[0].mxu0
  %v2463 = vadd.f32 %v2366, %v2462
  %v2464 = vpop.f32.mrb[0].mxu0
  %v2465 = vpop.f32.mrb[0].mxu0
  %v2466 = vadd.f32 %v2369, %v2465
  %v2467 = vpop.f32.mrb[0].mxu0
  %2468 = vmatprep.mubr.bf16.mxu0 %v891
  %2469 = vmatmul.mubr.bf16.gmra.mrb[0].mxu0 %v890
  %v2470 = vpop.f32.mrb[0].mxu0
  %v2471 = vadd.f32 %v2374, %v2470
  %v2472 = vpop.f32.mrb[0].mxu0
  %v2473 = vpop.f32.mrb[0].mxu0
  %v2474 = vadd.f32 %v2377, %v2473
  %v2475 = vpop.f32.mrb[0].mxu0
  %2476 = vmatprep.mubr.bf16.mxu0 %v907
  %2477 = vmatmul.mubr.bf16.gmra.mrb[0].mxu0 %v906
  %v2478 = vpop.f32.mrb[0].mxu0
  %v2479 = vadd.f32 %v2382, %v2478
  %v2480 = vpop.f32.mrb[0].mxu0
  %v2481 = vpop.f32.mrb[0].mxu0
  %v2482 = vadd.f32 %v2385, %v2481
  %v2483 = vpop.f32.mrb[0].mxu0
  %2484 = vdwg.mxu0
  %2485 = vmatprep.subr.bf16.mxu0 0
  %2486 = vmatpush1.bf16.msra.mxu0 %v1662
  %2487 = vmatprep.subr.bf16.mxu0 0
  %2488 = vmatpush1.bf16.msra.mxu0 %v1663
  %2489 = vmatprep.subr.bf16.mxu0 0
  %2490 = vmatpush1.bf16.msra.mxu0 %v1664
  %2491 = vmatprep.subr.bf16.mxu0 0
  %2492 = vmatpush1.bf16.msra.mxu0 %v1665
  %2493 = vmatprep.subr.bf16.mxu0 0
  %2494 = vmatpush1.bf16.msra.mxu0 %v1666
  %2495 = vmatprep.subr.bf16.mxu0 0
  %2496 = vmatpush1.bf16.msra.mxu0 %v1667
  %2497 = vmatprep.subr.bf16.mxu0 0
  %2498 = vmatpush1.bf16.msra.mxu0 %v1668
  %2499 = vmatprep.subr.bf16.mxu0 0
  %2500 = vmatpush1.bf16.msra.mxu0 %v1669
  %2501 = vmatprep.subr.bf16.mxu0 0
  %2502 = vmatpush1.bf16.msra.mxu0 %v1670
  %2503 = vmatprep.subr.bf16.mxu0 0
  %2504 = vmatpush1.bf16.msra.mxu0 %v1671
  %2505 = vmatprep.subr.bf16.mxu0 0
  %2506 = vmatpush1.bf16.msra.mxu0 %v1672
  %2507 = vmatprep.subr.bf16.mxu0 0
  %2508 = vmatpush1.bf16.msra.mxu0 %v1673
  %2509 = vmatprep.subr.bf16.mxu0 0
  %2510 = vmatpush1.bf16.msra.mxu0 %v1674
  %2511 = vmatprep.subr.bf16.mxu0 0
  %2512 = vmatpush1.bf16.msra.mxu0 %v1675
  %2513 = vmatprep.subr.bf16.mxu0 0
  %2514 = vmatpush1.bf16.msra.mxu0 %v1676
  %2515 = vmatprep.subr.bf16.mxu0 0
  %2516 = vmatpush1.bf16.msra.mxu0 %v1677
  %2517 = vmatprep.mubr.bf16.mxu0 %v797
  %2518 = vmatmul.mubr.bf16.gmra.mrb[0].mxu0 %v796
  %v2519 = vpop.f32.mrb[0].mxu0
  %v2520 = vadd.f32 %v2423, %v2519
  %v2521 = vpop.f32.mrb[0].mxu0
  %v2522 = vpop.f32.mrb[0].mxu0
  %v2523 = vadd.f32 %v2426, %v2522
  %v2524 = vpop.f32.mrb[0].mxu0
  %2525 = vmatprep.mubr.bf16.mxu0 %v813
  %2526 = vmatmul.mubr.bf16.gmra.mrb[0].mxu0 %v812
  %v2527 = vpop.f32.mrb[0].mxu0
  %v2528 = vadd.f32 %v2431, %v2527
  %v2529 = vpop.f32.mrb[0].mxu0
  %v2530 = vpop.f32.mrb[0].mxu0
  %v2531 = vadd.f32 %v2434, %v2530
  %v2532 = vpop.f32.mrb[0].mxu0
  %2533 = vmatprep.mubr.bf16.mxu0 %v829
  %2534 = vmatmul.mubr.bf16.gmra.mrb[0].mxu0 %v828
  %v2535 = vpop.f32.mrb[0].mxu0
  %v2536 = vadd.f32 %v2439, %v2535
  %v2537 = vpop.f32.mrb[0].mxu0
  %v2538 = vpop.f32.mrb[0].mxu0
  %v2539 = vadd.f32 %v2442, %v2538
  %v2540 = vpop.f32.mrb[0].mxu0
  %2541 = vmatprep.mubr.bf16.mxu0 %v845
  %2542 = vmatmul.mubr.bf16.gmra.mrb[0].mxu0 %v844
  %v2543 = vpop.f32.mrb[0].mxu0
  %v2544 = vadd.f32 %v2447, %v2543
  %v2545 = vpop.f32.mrb[0].mxu0
  %v2546 = vpop.f32.mrb[0].mxu0
  %v2547 = vadd.f32 %v2450, %v2546
  %v2548 = vpop.f32.mrb[0].mxu0
  %2549 = vmatprep.mubr.bf16.mxu0 %v861
  %2550 = vmatmul.mubr.bf16.gmra.mrb[0].mxu0 %v860
  %v2551 = vpop.f32.mrb[0].mxu0
  %v2552 = vadd.f32 %v2455, %v2551
  %v2553 = vpop.f32.mrb[0].mxu0
  %v2554 = vpop.f32.mrb[0].mxu0
  %v2555 = vadd.f32 %v2458, %v2554
  %v2556 = vpop.f32.mrb[0].mxu0
  %2557 = vmatprep.mubr.bf16.mxu0 %v877
  %2558 = vmatmul.mubr.bf16.gmra.mrb[0].mxu0 %v876
  %v2559 = vpop.f32.mrb[0].mxu0
  %v2560 = vadd.f32 %v2463, %v2559
  %v2561 = vpop.f32.mrb[0].mxu0
  %v2562 = vpop.f32.mrb[0].mxu0
  %v2563 = vadd.f32 %v2466, %v2562
  %v2564 = vpop.f32.mrb[0].mxu0
  %2565 = vmatprep.mubr.bf16.mxu0 %v893
  %2566 = vmatmul.mubr.bf16.gmra.mrb[0].mxu0 %v892
  %v2567 = vpop.f32.mrb[0].mxu0
  %v2568 = vadd.f32 %v2471, %v2567
  %v2569 = vpop.f32.mrb[0].mxu0
  %v2570 = vpop.f32.mrb[0].mxu0
  %v2571 = vadd.f32 %v2474, %v2570
  %v2572 = vpop.f32.mrb[0].mxu0
  %2573 = vmatprep.mubr.bf16.mxu0 %v909
  %2574 = vmatmul.mubr.bf16.gmra.mrb[0].mxu0 %v908
  %v2575 = vpop.f32.mrb[0].mxu0
  %v2576 = vadd.f32 %v2479, %v2575
  %v2577 = vpop.f32.mrb[0].mxu0
  %v2578 = vpop.f32.mrb[0].mxu0
  %v2579 = vadd.f32 %v2482, %v2578
  %v2580 = vpop.f32.mrb[0].mxu0
  %2581 = vdwg.mxu0
  %v2582 = vpack.c.bf16 %v2523, %v2520
  %v2583 = vpack.c.bf16 %v2531, %v2528
  %v2584 = vpack.c.bf16 %v2539, %v2536
  %v2585 = vpack.c.bf16 %v2547, %v2544
  %v2586 = vpack.c.bf16 %v2555, %v2552
  %v2587 = vpack.c.bf16 %v2563, %v2560
  %v2588 = vpack.c.bf16 %v2571, %v2568
  %v2589 = vpack.c.bf16 %v2579, %v2576
  %v2598 = vunpack.c.l.b16 %v2582
  %v2599 = vunpack.c.h.b16 %v2582
  %v2600 = vunpack.c.l.b16 %v2583
  %v2601 = vunpack.c.h.b16 %v2583
  %v2602 = vunpack.c.l.b16 %v2584
  %v2603 = vunpack.c.h.b16 %v2584
  %v2604 = vunpack.c.l.b16 %v2585
  %v2605 = vunpack.c.h.b16 %v2585
  %v2606 = vunpack.c.l.b16 %v2586
  %v2607 = vunpack.c.h.b16 %v2586
  %v2608 = vunpack.c.l.b16 %v2587
  %v2609 = vunpack.c.h.b16 %v2587
  %v2610 = vunpack.c.l.b16 %v2588
  %v2611 = vunpack.c.h.b16 %v2588
  %v2612 = vunpack.c.l.b16 %v2589
  %v2613 = vunpack.c.h.b16 %v2589
  %v2614 = vpack.c.b16 %v2598, %v2598
  %v2615 = vpack.c.b16 %v2599, %v2599
  %v2616 = vpack.c.b16 %v2600, %v2600
  %v2617 = vpack.c.b16 %v2601, %v2601
  %v2618 = vpack.c.b16 %v2602, %v2602
  %v2619 = vpack.c.b16 %v2603, %v2603
  %v2620 = vpack.c.b16 %v2604, %v2604
  %v2621 = vpack.c.b16 %v2605, %v2605
  %v2622 = vpack.c.b16 %v2606, %v2606
  %v2623 = vpack.c.b16 %v2607, %v2607
  %v2624 = vpack.c.b16 %v2608, %v2608
  %v2625 = vpack.c.b16 %v2609, %v2609
  %v2626 = vpack.c.b16 %v2610, %v2610
  %v2627 = vpack.c.b16 %v2611, %v2611
  %v2628 = vpack.c.b16 %v2612, %v2612
  %v2629 = vpack.c.b16 %v2613, %v2613
  %2646 = vst [vmem:[%s2] sm:$0xf] %v2614
  %2647 = vst [vmem:[%s2 + $0x4] sm:$0xf] %v2615
  %2648 = vst [vmem:[%s2 + $0x8] sm:$0xf] %v2616
  %2649 = vst [vmem:[%s2 + $0xc] sm:$0xf] %v2617
  %2650 = vst [vmem:[%s2 + $0x10] sm:$0xf] %v2618
  %2651 = vst [vmem:[%s2 + $0x14] sm:$0xf] %v2619
  %2652 = vst [vmem:[%s2 + $0x18] sm:$0xf] %v2620
  %2653 = vst [vmem:[%s2 + $0x1c] sm:$0xf] %v2621
  %2654 = vst [vmem:[%s2 + $0x20] sm:$0xf] %v2622
  %2655 = vst [vmem:[%s2 + $0x24] sm:$0xf] %v2623
  %2656 = vst [vmem:[%s2 + $0x28] sm:$0xf] %v2624
  %2657 = vst [vmem:[%s2 + $0x2c] sm:$0xf] %v2625
  %2658 = vst [vmem:[%s2 + $0x30] sm:$0xf] %v2626
  %2659 = vst [vmem:[%s2 + $0x34] sm:$0xf] %v2627
  %2660 = vst [vmem:[%s2 + $0x38] sm:$0xf] %v2628
  %2661 = vst [vmem:[%s2 + $0x3c] sm:$0xf] %v2629
  %v2662 = vadd.f32 %v2520, %v2523
  %v2663 = vadd.f32 %v2662, %v2528
  %v2664 = vadd.f32 %v2663, %v2531
  %v2665 = vadd.f32 %v2664, %v2536
  %v2666 = vadd.f32 %v2665, %v2539
  %v2667 = vadd.f32 %v2666, %v2544
  %v2668 = vadd.f32 %v2667, %v2547
  %v2669 = vadd.f32 %v2668, %v2552
  %v2670 = vadd.f32 %v2669, %v2555
  %v2671 = vadd.f32 %v2670, %v2560
  %v2672 = vadd.f32 %v2671, %v2563
  %v2673 = vadd.f32 %v2672, %v2568
  %v2674 = vadd.f32 %v2673, %v2571
  %v2675 = vadd.f32 %v2674, %v2576
  %v2676 = vadd.f32 %v2675, %v2579
  %v2677 = vrot.slane %v2676, 4
  %v2678 = vadd.f32 %v2676, %v2677
  %v2679 = vrot.slane %v2678, 2
  %v2680 = vadd.f32 %v2678, %v2679
  %v2681 = vrot.slane %v2680, 1
  %v2682 = vadd.f32 %v2680, %v2681
  %v2683 = vmul.f32 %v2520, %v2520
  %v2684 = vmul.f32 %v2523, %v2523
  %v2685 = vmul.f32 %v2528, %v2528
  %v2686 = vmul.f32 %v2531, %v2531
  %v2687 = vmul.f32 %v2536, %v2536
  %v2688 = vmul.f32 %v2539, %v2539
  %v2689 = vmul.f32 %v2544, %v2544
  %v2690 = vmul.f32 %v2547, %v2547
  %v2691 = vmul.f32 %v2552, %v2552
  %v2692 = vmul.f32 %v2555, %v2555
  %v2693 = vmul.f32 %v2560, %v2560
  %v2694 = vmul.f32 %v2563, %v2563
  %v2695 = vmul.f32 %v2568, %v2568
  %v2696 = vmul.f32 %v2571, %v2571
  %v2697 = vmul.f32 %v2576, %v2576
  %v2698 = vmul.f32 %v2579, %v2579
  %v2699 = vadd.f32 %v2683, %v2684
  %v2700 = vadd.f32 %v2699, %v2685
  %v2701 = vadd.f32 %v2700, %v2686
  %v2702 = vadd.f32 %v2701, %v2687
  %v2703 = vadd.f32 %v2702, %v2688
  %v2704 = vadd.f32 %v2703, %v2689
  %v2705 = vadd.f32 %v2704, %v2690
  %v2706 = vadd.f32 %v2705, %v2691
  %v2707 = vadd.f32 %v2706, %v2692
  %v2708 = vadd.f32 %v2707, %v2693
  %v2709 = vadd.f32 %v2708, %v2694
  %v2710 = vadd.f32 %v2709, %v2695
  %v2711 = vadd.f32 %v2710, %v2696
  %v2712 = vadd.f32 %v2711, %v2697
  %v2713 = vadd.f32 %v2712, %v2698
  %v2714 = vrot.slane %v2713, 4
  %v2715 = vadd.f32 %v2713, %v2714
  %v2716 = vrot.slane %v2715, 2
  %v2717 = vadd.f32 %v2715, %v2716
  %v2718 = vrot.slane %v2717, 1
  %v2719 = vadd.f32 %v2717, %v2718
  %v2720 = vlaneseq
  %v2721 = vshrl.u32 %v2720, 7
  %vm2722 = vcmp.eq.s32.totalorder %v2721, 0
  %vm2723 = vcmp.eq.s32.totalorder %v2721, 1
  %v2724 = vsel %vm2723, %v2719, 0.0
  %v2725 = vsel %vm2722, %v2682, %v2724
  %2726 = vst [vmem:[%s3] sm:$0xff] %v2725
  // Predicated region
  $region10: #{discriminator_forward.7} parent=0 // pred_check
    _
  $region11: #{discriminator_forward.7} parent=0 // pred_check_branch
    %2728 = sbr.rel (0) target = $region13
  $region12: #{discriminator_forward.7} parent=0 // pred_region
    _
  $region13: #{discriminator_forward.7} parent=0 // pred_fallthru
    _
  // Predicated region
  $region14: #{discriminator_forward.7} parent=0 // pred_check
    _
  $region15: #{discriminator_forward.7} parent=0 // pred_check_branch
    %2730 = sbr.rel (0) target = $region17
  $region16: #{discriminator_forward.7} parent=0 // pred_region
    _
  $region17: #{discriminator_forward.7} parent=0 // pred_fallthru
    _
  // Predicated region
  $region18: #{discriminator_forward.7} parent=0 // pred_check
    _
  $region19: #{discriminator_forward.7} parent=0 // pred_check_branch
    %2732 = sbr.rel (0) target = $region21
  $region20: #{discriminator_forward.7} parent=0 // pred_region
    _
  $region21: #{discriminator_forward.7} parent=0 // pred_fallthru
    _
  // Predicated region
  $region22: #{discriminator_forward.7} parent=0 // pred_check
    _
  $region23: #{discriminator_forward.7} parent=0 // pred_check_branch
    %2734 = sbr.rel (0) target = $region25
  $region24: #{discriminator_forward.7} parent=0 // pred_region
    _
  $region25: #{discriminator_forward.7} parent=0 // pred_fallthru
    _

// kernel: discriminator_forward.8
$region0: #{discriminator_forward.8}
  #allocation0 [shape = 'u32[]', space=smem, size = 0x4, offset = 0x4, fixed_abs, tag = 'smem constant byte address 0x4 - core index']
  #allocation1 [shape = 'u32[144,128]{1,0:T(1,128)}', space=vmem, size = 0x12000, scoped, tag = 'internal scratch']
  %s0 = inlined_call_operand.vmem [shape: bf16[32,2048], index: 0, kind: input, shape index: {}]
  %s1 = inlined_call_operand.vmem [shape: bf16[2048,128], index: 1, kind: input, shape index: {}]
  %s2 = inlined_call_operand.vmem [shape: bf16[32,128], index: 2, kind: output, shape index: {0}]
  %s3 = inlined_call_operand.vmem [shape: f32[8,128], index: 3, kind: output, shape index: {1}]
  %4 = xla_tuple %s2, %s3
  %s5 = sld [smem:[#allocation0]]
  $region26: #{discriminator_forward.8} parent=0
    _
  %s7 = ssub.s32 1, %s5
  %s8 = scalar_select 0, %s7, %s5
  // Predicated region
  $region2: #{discriminator_forward.8} parent=0 // pred_check
    _
  $region3: #{discriminator_forward.8} parent=0 // pred_check_branch
    %10 = sbr.rel (0) target = $region5
  $region4: #{discriminator_forward.8} parent=0 // pred_region
    _
  $region5: #{discriminator_forward.8} parent=0 // pred_fallthru
    _
  // Predicated region
  $region6: #{discriminator_forward.8} parent=0 // pred_check
    _
  $region7: #{discriminator_forward.8} parent=0 // pred_check_branch
    %12 = sbr.rel (0) target = $region9
  $region8: #{discriminator_forward.8} parent=0 // pred_region
    _
  $region9: #{discriminator_forward.8} parent=0 // pred_fallthru
    _
  %v14 = vld [vmem:[%s0] sm:$0xff]
  %v15 = vld [vmem:[%s0 + $0x8] sm:$0xff]
  %v16 = vld [vmem:[%s0 + $0x10] sm:$0xff]
  %v17 = vld [vmem:[%s0 + $0x18] sm:$0xff]
  %v18 = vld [vmem:[%s0 + $0x20] sm:$0xff]
  %v19 = vld [vmem:[%s0 + $0x28] sm:$0xff]
  %v20 = vld [vmem:[%s0 + $0x30] sm:$0xff]
  %v21 = vld [vmem:[%s0 + $0x38] sm:$0xff]
  %v22 = vld [vmem:[%s0 + $0x40] sm:$0xff]
  %v23 = vld [vmem:[%s0 + $0x48] sm:$0xff]
  %v24 = vld [vmem:[%s0 + $0x50] sm:$0xff]
  %v25 = vld [vmem:[%s0 + $0x58] sm:$0xff]
  %v26 = vld [vmem:[%s0 + $0x60] sm:$0xff]
  %v27 = vld [vmem:[%s0 + $0x68] sm:$0xff]
  %v28 = vld [vmem:[%s0 + $0x70] sm:$0xff]
  %v29 = vld [vmem:[%s0 + $0x78] sm:$0xff]
  %v30 = vld [vmem:[%s0 + $0x80] sm:$0xff]
  %v31 = vld [vmem:[%s0 + $0x88] sm:$0xff]
  %v32 = vld [vmem:[%s0 + $0x90] sm:$0xff]
  %v33 = vld [vmem:[%s0 + $0x98] sm:$0xff]
  %v34 = vld [vmem:[%s0 + $0xa0] sm:$0xff]
  %v35 = vld [vmem:[%s0 + $0xa8] sm:$0xff]
  %v36 = vld [vmem:[%s0 + $0xb0] sm:$0xff]
  %v37 = vld [vmem:[%s0 + $0xb8] sm:$0xff]
  %v38 = vld [vmem:[%s0 + $0xc0] sm:$0xff]
  %v39 = vld [vmem:[%s0 + $0xc8] sm:$0xff]
  %v40 = vld [vmem:[%s0 + $0xd0] sm:$0xff]
  %v41 = vld [vmem:[%s0 + $0xd8] sm:$0xff]
  %v42 = vld [vmem:[%s0 + $0xe0] sm:$0xff]
  %v43 = vld [vmem:[%s0 + $0xe8] sm:$0xff]
  %v44 = vld [vmem:[%s0 + $0xf0] sm:$0xff]
  %v45 = vld [vmem:[%s0 + $0xf8] sm:$0xff]
  %v46 = vld [vmem:[%s1] sm:$0xf]
  %v47 = vld [vmem:[%s1 + $0x4] sm:$0xf]
  %v48 = vld [vmem:[%s1 + $0x8] sm:$0xf]
  %v49 = vld [vmem:[%s1 + $0xc] sm:$0xf]
  %v50 = vld [vmem:[%s1 + $0x10] sm:$0xf]
  %v51 = vld [vmem:[%s1 + $0x14] sm:$0xf]
  %v52 = vld [vmem:[%s1 + $0x18] sm:$0xf]
  %v53 = vld [vmem:[%s1 + $0x1c] sm:$0xf]
  %v54 = vld [vmem:[%s1 + $0x20] sm:$0xf]
  %v55 = vld [vmem:[%s1 + $0x24] sm:$0xf]
  %v56 = vld [vmem:[%s1 + $0x28] sm:$0xf]
  %v57 = vld [vmem:[%s1 + $0x2c] sm:$0xf]
  %v58 = vld [vmem:[%s1 + $0x30] sm:$0xf]
  %v59 = vld [vmem:[%s1 + $0x34] sm:$0xf]
  %v60 = vld [vmem:[%s1 + $0x38] sm:$0xf]
  %v61 = vld [vmem:[%s1 + $0x3c] sm:$0xf]
  %v62 = vld [vmem:[%s1 + $0x40] sm:$0xf]
  %v63 = vld [vmem:[%s1 + $0x44] sm:$0xf]
  %v64 = vld [vmem:[%s1 + $0x48] sm:$0xf]
  %v65 = vld [vmem:[%s1 + $0x4c] sm:$0xf]
  %v66 = vld [vmem:[%s1 + $0x50] sm:$0xf]
  %v67 = vld [vmem:[%s1 + $0x54] sm:$0xf]
  %v68 = vld [vmem:[%s1 + $0x58] sm:$0xf]
  %v69 = vld [vmem:[%s1 + $0x5c] sm:$0xf]
  %v70 = vld [vmem:[%s1 + $0x60] sm:$0xf]
  %v71 = vld [vmem:[%s1 + $0x64] sm:$0xf]
  %v72 = vld [vmem:[%s1 + $0x68] sm:$0xf]
  %v73 = vld [vmem:[%s1 + $0x6c] sm:$0xf]
  %v74 = vld [vmem:[%s1 + $0x70] sm:$0xf]
  %v75 = vld [vmem:[%s1 + $0x74] sm:$0xf]
  %v76 = vld [vmem:[%s1 + $0x78] sm:$0xf]
  %v77 = vld [vmem:[%s1 + $0x7c] sm:$0xf]
  %v78 = vld [vmem:[%s1 + $0x80] sm:$0xf]
  %v79 = vld [vmem:[%s1 + $0x84] sm:$0xf]
  %v80 = vld [vmem:[%s1 + $0x88] sm:$0xf]
  %v81 = vld [vmem:[%s1 + $0x8c] sm:$0xf]
  %v82 = vld [vmem:[%s1 + $0x90] sm:$0xf]
  %v83 = vld [vmem:[%s1 + $0x94] sm:$0xf]
  %v84 = vld [vmem:[%s1 + $0x98] sm:$0xf]
  %v85 = vld [vmem:[%s1 + $0x9c] sm:$0xf]
  %v86 = vld [vmem:[%s1 + $0xa0] sm:$0xf]
  %v87 = vld [vmem:[%s1 + $0xa4] sm:$0xf]
  %v88 = vld [vmem:[%s1 + $0xa8] sm:$0xf]
  %v89 = vld [vmem:[%s1 + $0xac] sm:$0xf]
  %v90 = vld [vmem:[%s1 + $0xb0] sm:$0xf]
  %v91 = vld [vmem:[%s1 + $0xb4] sm:$0xf]
  %v92 = vld [vmem:[%s1 + $0xb8] sm:$0xf]
  %v93 = vld [vmem:[%s1 + $0xbc] sm:$0xf]
  %v94 = vld [vmem:[%s1 + $0xc0] sm:$0xf]
  %v95 = vld [vmem:[%s1 + $0xc4] sm:$0xf]
  %v96 = vld [vmem:[%s1 + $0xc8] sm:$0xf]
  %v97 = vld [vmem:[%s1 + $0xcc] sm:$0xf]
  %v98 = vld [vmem:[%s1 + $0xd0] sm:$0xf]
  %v99 = vld [vmem:[%s1 + $0xd4] sm:$0xf]
  %v100 = vld [vmem:[%s1 + $0xd8] sm:$0xf]
  %v101 = vld [vmem:[%s1 + $0xdc] sm:$0xf]
  %v102 = vld [vmem:[%s1 + $0xe0] sm:$0xf]
  %v103 = vld [vmem:[%s1 + $0xe4] sm:$0xf]
  %v104 = vld [vmem:[%s1 + $0xe8] sm:$0xf]
  %v105 = vld [vmem:[%s1 + $0xec] sm:$0xf]
  %v106 = vld [vmem:[%s1 + $0xf0] sm:$0xf]
  %v107 = vld [vmem:[%s1 + $0xf4] sm:$0xf]
  %v108 = vld [vmem:[%s1 + $0xf8] sm:$0xf]
  %v109 = vld [vmem:[%s1 + $0xfc] sm:$0xf]
  %v110 = vld [vmem:[%s1 + $0x100] sm:$0xf]
  %v111 = vld [vmem:[%s1 + $0x104] sm:$0xf]
  %v112 = vld [vmem:[%s1 + $0x108] sm:$0xf]
  %v113 = vld [vmem:[%s1 + $0x10c] sm:$0xf]
  %v114 = vld [vmem:[%s1 + $0x110] sm:$0xf]
  %v115 = vld [vmem:[%s1 + $0x114] sm:$0xf]
  %v116 = vld [vmem:[%s1 + $0x118] sm:$0xf]
  %v117 = vld [vmem:[%s1 + $0x11c] sm:$0xf]
  %v118 = vld [vmem:[%s1 + $0x120] sm:$0xf]
  %v119 = vld [vmem:[%s1 + $0x124] sm:$0xf]
  %v120 = vld [vmem:[%s1 + $0x128] sm:$0xf]
  %v121 = vld [vmem:[%s1 + $0x12c] sm:$0xf]
  %v122 = vld [vmem:[%s1 + $0x130] sm:$0xf]
  %v123 = vld [vmem:[%s1 + $0x134] sm:$0xf]
  %v124 = vld [vmem:[%s1 + $0x138] sm:$0xf]
  %v125 = vld [vmem:[%s1 + $0x13c] sm:$0xf]
  %v126 = vld [vmem:[%s1 + $0x140] sm:$0xf]
  %v127 = vld [vmem:[%s1 + $0x144] sm:$0xf]
  %v128 = vld [vmem:[%s1 + $0x148] sm:$0xf]
  %v129 = vld [vmem:[%s1 + $0x14c] sm:$0xf]
  %v130 = vld [vmem:[%s1 + $0x150] sm:$0xf]
  %v131 = vld [vmem:[%s1 + $0x154] sm:$0xf]
  %v132 = vld [vmem:[%s1 + $0x158] sm:$0xf]
  %v133 = vld [vmem:[%s1 + $0x15c] sm:$0xf]
  %v134 = vld [vmem:[%s1 + $0x160] sm:$0xf]
  %v135 = vld [vmem:[%s1 + $0x164] sm:$0xf]
  %v136 = vld [vmem:[%s1 + $0x168] sm:$0xf]
  %v137 = vld [vmem:[%s1 + $0x16c] sm:$0xf]
  %v138 = vld [vmem:[%s1 + $0x170] sm:$0xf]
  %v139 = vld [vmem:[%s1 + $0x174] sm:$0xf]
  %v140 = vld [vmem:[%s1 + $0x178] sm:$0xf]
  %v141 = vld [vmem:[%s1 + $0x17c] sm:$0xf]
  %v142 = vld [vmem:[%s1 + $0x180] sm:$0xf]
  %v143 = vld [vmem:[%s1 + $0x184] sm:$0xf]
  %v144 = vld [vmem:[%s1 + $0x188] sm:$0xf]
  %v145 = vld [vmem:[%s1 + $0x18c] sm:$0xf]
  %v146 = vld [vmem:[%s1 + $0x190] sm:$0xf]
  %v147 = vld [vmem:[%s1 + $0x194] sm:$0xf]
  %v148 = vld [vmem:[%s1 + $0x198] sm:$0xf]
  %v149 = vld [vmem:[%s1 + $0x19c] sm:$0xf]
  %v150 = vld [vmem:[%s1 + $0x1a0] sm:$0xf]
  %v151 = vld [vmem:[%s1 + $0x1a4] sm:$0xf]
  %v152 = vld [vmem:[%s1 + $0x1a8] sm:$0xf]
  %v153 = vld [vmem:[%s1 + $0x1ac] sm:$0xf]
  %v154 = vld [vmem:[%s1 + $0x1b0] sm:$0xf]
  %v155 = vld [vmem:[%s1 + $0x1b4] sm:$0xf]
  %v156 = vld [vmem:[%s1 + $0x1b8] sm:$0xf]
  %v157 = vld [vmem:[%s1 + $0x1bc] sm:$0xf]
  %v158 = vld [vmem:[%s1 + $0x1c0] sm:$0xf]
  %v159 = vld [vmem:[%s1 + $0x1c4] sm:$0xf]
  %v160 = vld [vmem:[%s1 + $0x1c8] sm:$0xf]
  %v161 = vld [vmem:[%s1 + $0x1cc] sm:$0xf]
  %v162 = vld [vmem:[%s1 + $0x1d0] sm:$0xf]
  %v163 = vld [vmem:[%s1 + $0x1d4] sm:$0xf]
  %v164 = vld [vmem:[%s1 + $0x1d8] sm:$0xf]
  %v165 = vld [vmem:[%s1 + $0x1dc] sm:$0xf]
  %v166 = vld [vmem:[%s1 + $0x1e0] sm:$0xf]
  %v167 = vld [vmem:[%s1 + $0x1e4] sm:$0xf]
  %v168 = vld [vmem:[%s1 + $0x1e8] sm:$0xf]
  %v169 = vld [vmem:[%s1 + $0x1ec] sm:$0xf]
  %v170 = vld [vmem:[%s1 + $0x1f0] sm:$0xf]
  %v171 = vld [vmem:[%s1 + $0x1f4] sm:$0xf]
  %v172 = vld [vmem:[%s1 + $0x1f8] sm:$0xf]
  %v173 = vld [vmem:[%s1 + $0x1fc] sm:$0xf]
  %v174 = vld [vmem:[%s1 + $0x200] sm:$0xf]
  %v175 = vld [vmem:[%s1 + $0x204] sm:$0xf]
  %v176 = vld [vmem:[%s1 + $0x208] sm:$0xf]
  %v177 = vld [vmem:[%s1 + $0x20c] sm:$0xf]
  %v178 = vld [vmem:[%s1 + $0x210] sm:$0xf]
  %v179 = vld [vmem:[%s1 + $0x214] sm:$0xf]
  %v180 = vld [vmem:[%s1 + $0x218] sm:$0xf]
  %v181 = vld [vmem:[%s1 + $0x21c] sm:$0xf]
  %v182 = vld [vmem:[%s1 + $0x220] sm:$0xf]
  %v183 = vld [vmem:[%s1 + $0x224] sm:$0xf]
  %v184 = vld [vmem:[%s1 + $0x228] sm:$0xf]
  %v185 = vld [vmem:[%s1 + $0x22c] sm:$0xf]
  %v186 = vld [vmem:[%s1 + $0x230] sm:$0xf]
  %v187 = vld [vmem:[%s1 + $0x234] sm:$0xf]
  %v188 = vld [vmem:[%s1 + $0x238] sm:$0xf]
  %v189 = vld [vmem:[%s1 + $0x23c] sm:$0xf]
  %v190 = vld [vmem:[%s1 + $0x240] sm:$0xf]
  %v191 = vld [vmem:[%s1 + $0x244] sm:$0xf]
  %v192 = vld [vmem:[%s1 + $0x248] sm:$0xf]
  %v193 = vld [vmem:[%s1 + $0x24c] sm:$0xf]
  %v194 = vld [vmem:[%s1 + $0x250] sm:$0xf]
  %v195 = vld [vmem:[%s1 + $0x254] sm:$0xf]
  %v196 = vld [vmem:[%s1 + $0x258] sm:$0xf]
  %v197 = vld [vmem:[%s1 + $0x25c] sm:$0xf]
  %v198 = vld [vmem:[%s1 + $0x260] sm:$0xf]
  %v199 = vld [vmem:[%s1 + $0x264] sm:$0xf]
  %v200 = vld [vmem:[%s1 + $0x268] sm:$0xf]
  %v201 = vld [vmem:[%s1 + $0x26c] sm:$0xf]
  %v202 = vld [vmem:[%s1 + $0x270] sm:$0xf]
  %v203 = vld [vmem:[%s1 + $0x274] sm:$0xf]
  %v204 = vld [vmem:[%s1 + $0x278] sm:$0xf]
  %v205 = vld [vmem:[%s1 + $0x27c] sm:$0xf]
  %v206 = vld [vmem:[%s1 + $0x280] sm:$0xf]
  %v207 = vld [vmem:[%s1 + $0x284] sm:$0xf]
  %v208 = vld [vmem:[%s1 + $0x288] sm:$0xf]
  %v209 = vld [vmem:[%s1 + $0x28c] sm:$0xf]
  %v210 = vld [vmem:[%s1 + $0x290] sm:$0xf]
  %v211 = vld [vmem:[%s1 + $0x294] sm:$0xf]
  %v212 = vld [vmem:[%s1 + $0x298] sm:$0xf]
  %v213 = vld [vmem:[%s1 + $0x29c] sm:$0xf]
  %v214 = vld [vmem:[%s1 + $0x2a0] sm:$0xf]
  %v215 = vld [vmem:[%s1 + $0x2a4] sm:$0xf]
  %v216 = vld [vmem:[%s1 + $0x2a8] sm:$0xf]
  %v217 = vld [vmem:[%s1 + $0x2ac] sm:$0xf]
  %v218 = vld [vmem:[%s1 + $0x2b0] sm:$0xf]
  %v219 = vld [vmem:[%s1 + $0x2b4] sm:$0xf]
  %v220 = vld [vmem:[%s1 + $0x2b8] sm:$0xf]
  %v221 = vld [vmem:[%s1 + $0x2bc] sm:$0xf]
  %v222 = vld [vmem:[%s1 + $0x2c0] sm:$0xf]
  %v223 = vld [vmem:[%s1 + $0x2c4] sm:$0xf]
  %v224 = vld [vmem:[%s1 + $0x2c8] sm:$0xf]
  %v225 = vld [vmem:[%s1 + $0x2cc] sm:$0xf]
  %v226 = vld [vmem:[%s1 + $0x2d0] sm:$0xf]
  %v227 = vld [vmem:[%s1 + $0x2d4] sm:$0xf]
  %v228 = vld [vmem:[%s1 + $0x2d8] sm:$0xf]
  %v229 = vld [vmem:[%s1 + $0x2dc] sm:$0xf]
  %v230 = vld [vmem:[%s1 + $0x2e0] sm:$0xf]
  %v231 = vld [vmem:[%s1 + $0x2e4] sm:$0xf]
  %v232 = vld [vmem:[%s1 + $0x2e8] sm:$0xf]
  %v233 = vld [vmem:[%s1 + $0x2ec] sm:$0xf]
  %v234 = vld [vmem:[%s1 + $0x2f0] sm:$0xf]
  %v235 = vld [vmem:[%s1 + $0x2f4] sm:$0xf]
  %v236 = vld [vmem:[%s1 + $0x2f8] sm:$0xf]
  %v237 = vld [vmem:[%s1 + $0x2fc] sm:$0xf]
  %v238 = vld [vmem:[%s1 + $0x300] sm:$0xf]
  %v239 = vld [vmem:[%s1 + $0x304] sm:$0xf]
  %v240 = vld [vmem:[%s1 + $0x308] sm:$0xf]
  %v241 = vld [vmem:[%s1 + $0x30c] sm:$0xf]
  %v242 = vld [vmem:[%s1 + $0x310] sm:$0xf]
  %v243 = vld [vmem:[%s1 + $0x314] sm:$0xf]
  %v244 = vld [vmem:[%s1 + $0x318] sm:$0xf]
  %v245 = vld [vmem:[%s1 + $0x31c] sm:$0xf]
  %v246 = vld [vmem:[%s1 + $0x320] sm:$0xf]
  %v247 = vld [vmem:[%s1 + $0x324] sm:$0xf]
  %v248 = vld [vmem:[%s1 + $0x328] sm:$0xf]
  %v249 = vld [vmem:[%s1 + $0x32c] sm:$0xf]
  %v250 = vld [vmem:[%s1 + $0x330] sm:$0xf]
  %v251 = vld [vmem:[%s1 + $0x334] sm:$0xf]
  %v252 = vld [vmem:[%s1 + $0x338] sm:$0xf]
  %v253 = vld [vmem:[%s1 + $0x33c] sm:$0xf]
  %v254 = vld [vmem:[%s1 + $0x340] sm:$0xf]
  %v255 = vld [vmem:[%s1 + $0x344] sm:$0xf]
  %v256 = vld [vmem:[%s1 + $0x348] sm:$0xf]
  %v257 = vld [vmem:[%s1 + $0x34c] sm:$0xf]
  %v258 = vld [vmem:[%s1 + $0x350] sm:$0xf]
  %v259 = vld [vmem:[%s1 + $0x354] sm:$0xf]
  %v260 = vld [vmem:[%s1 + $0x358] sm:$0xf]
  %v261 = vld [vmem:[%s1 + $0x35c] sm:$0xf]
  %v262 = vld [vmem:[%s1 + $0x360] sm:$0xf]
  %v263 = vld [vmem:[%s1 + $0x364] sm:$0xf]
  %v264 = vld [vmem:[%s1 + $0x368] sm:$0xf]
  %v265 = vld [vmem:[%s1 + $0x36c] sm:$0xf]
  %v266 = vld [vmem:[%s1 + $0x370] sm:$0xf]
  %v267 = vld [vmem:[%s1 + $0x374] sm:$0xf]
  %v268 = vld [vmem:[%s1 + $0x378] sm:$0xf]
  %v269 = vld [vmem:[%s1 + $0x37c] sm:$0xf]
  %v270 = vld [vmem:[%s1 + $0x380] sm:$0xf]
  %v271 = vld [vmem:[%s1 + $0x384] sm:$0xf]
  %v272 = vld [vmem:[%s1 + $0x388] sm:$0xf]
  %v273 = vld [vmem:[%s1 + $0x38c] sm:$0xf]
  %v274 = vld [vmem:[%s1 + $0x390] sm:$0xf]
  %v275 = vld [vmem:[%s1 + $0x394] sm:$0xf]
  %v276 = vld [vmem:[%s1 + $0x398] sm:$0xf]
  %v277 = vld [vmem:[%s1 + $0x39c] sm:$0xf]
  %v278 = vld [vmem:[%s1 + $0x3a0] sm:$0xf]
  %v279 = vld [vmem:[%s1 + $0x3a4] sm:$0xf]
  %v280 = vld [vmem:[%s1 + $0x3a8] sm:$0xf]
  %v281 = vld [vmem:[%s1 + $0x3ac] sm:$0xf]
  %v282 = vld [vmem:[%s1 + $0x3b0] sm:$0xf]
  %v283 = vld [vmem:[%s1 + $0x3b4] sm:$0xf]
  %v284 = vld [vmem:[%s1 + $0x3b8] sm:$0xf]
  %v285 = vld [vmem:[%s1 + $0x3bc] sm:$0xf]
  %v286 = vld [vmem:[%s1 + $0x3c0] sm:$0xf]
  %v287 = vld [vmem:[%s1 + $0x3c4] sm:$0xf]
  %v288 = vld [vmem:[%s1 + $0x3c8] sm:$0xf]
  %v289 = vld [vmem:[%s1 + $0x3cc] sm:$0xf]
  %v290 = vld [vmem:[%s1 + $0x3d0] sm:$0xf]
  %v291 = vld [vmem:[%s1 + $0x3d4] sm:$0xf]
  %v292 = vld [vmem:[%s1 + $0x3d8] sm:$0xf]
  %v293 = vld [vmem:[%s1 + $0x3dc] sm:$0xf]
  %v294 = vld [vmem:[%s1 + $0x3e0] sm:$0xf]
  %v295 = vld [vmem:[%s1 + $0x3e4] sm:$0xf]
  %v296 = vld [vmem:[%s1 + $0x3e8] sm:$0xf]
  %v297 = vld [vmem:[%s1 + $0x3ec] sm:$0xf]
  %v298 = vld [vmem:[%s1 + $0x3f0] sm:$0xf]
  %v299 = vld [vmem:[%s1 + $0x3f4] sm:$0xf]
  %v300 = vld [vmem:[%s1 + $0x3f8] sm:$0xf]
  %v301 = vld [vmem:[%s1 + $0x3fc] sm:$0xf]
  %v334 = vunpack.c.l.b16 %v14
  %v335 = vunpack.c.h.b16 %v14
  %v336 = vunpack.c.l.b16 %v15
  %v337 = vunpack.c.h.b16 %v15
  %v338 = vunpack.c.l.b16 %v16
  %v339 = vunpack.c.h.b16 %v16
  %v340 = vunpack.c.l.b16 %v17
  %v341 = vunpack.c.h.b16 %v17
  %v342 = vunpack.c.l.b16 %v18
  %v343 = vunpack.c.h.b16 %v18
  %v344 = vunpack.c.l.b16 %v19
  %v345 = vunpack.c.h.b16 %v19
  %v346 = vunpack.c.l.b16 %v20
  %v347 = vunpack.c.h.b16 %v20
  %v348 = vunpack.c.l.b16 %v21
  %v349 = vunpack.c.h.b16 %v21
  %v350 = vunpack.c.l.b16 %v22
  %v351 = vunpack.c.h.b16 %v22
  %v352 = vunpack.c.l.b16 %v23
  %v353 = vunpack.c.h.b16 %v23
  %v354 = vunpack.c.l.b16 %v24
  %v355 = vunpack.c.h.b16 %v24
  %v356 = vunpack.c.l.b16 %v25
  %v357 = vunpack.c.h.b16 %v25
  %v358 = vunpack.c.l.b16 %v26
  %v359 = vunpack.c.h.b16 %v26
  %v360 = vunpack.c.l.b16 %v27
  %v361 = vunpack.c.h.b16 %v27
  %v362 = vunpack.c.l.b16 %v28
  %v363 = vunpack.c.h.b16 %v28
  %v364 = vunpack.c.l.b16 %v29
  %v365 = vunpack.c.h.b16 %v29
  %v366 = vunpack.c.l.b16 %v30
  %v367 = vunpack.c.h.b16 %v30
  %v368 = vunpack.c.l.b16 %v31
  %v369 = vunpack.c.h.b16 %v31
  %v370 = vunpack.c.l.b16 %v32
  %v371 = vunpack.c.h.b16 %v32
  %v372 = vunpack.c.l.b16 %v33
  %v373 = vunpack.c.h.b16 %v33
  %v374 = vunpack.c.l.b16 %v34
  %v375 = vunpack.c.h.b16 %v34
  %v376 = vunpack.c.l.b16 %v35
  %v377 = vunpack.c.h.b16 %v35
  %v378 = vunpack.c.l.b16 %v36
  %v379 = vunpack.c.h.b16 %v36
  %v380 = vunpack.c.l.b16 %v37
  %v381 = vunpack.c.h.b16 %v37
  %v382 = vunpack.c.l.b16 %v38
  %v383 = vunpack.c.h.b16 %v38
  %v384 = vunpack.c.l.b16 %v39
  %v385 = vunpack.c.h.b16 %v39
  %v386 = vunpack.c.l.b16 %v40
  %v387 = vunpack.c.h.b16 %v40
  %v388 = vunpack.c.l.b16 %v41
  %v389 = vunpack.c.h.b16 %v41
  %v390 = vunpack.c.l.b16 %v42
  %v391 = vunpack.c.h.b16 %v42
  %v392 = vunpack.c.l.b16 %v43
  %v393 = vunpack.c.h.b16 %v43
  %v394 = vunpack.c.l.b16 %v44
  %v395 = vunpack.c.h.b16 %v44
  %v396 = vunpack.c.l.b16 %v45
  %v397 = vunpack.c.h.b16 %v45
  %v398 = vpack.c.b16 %v350, %v334
  %v399 = vpack.c.b16 %v351, %v335
  %v400 = vpack.c.b16 %v352, %v336
  %v401 = vpack.c.b16 %v353, %v337
  %v402 = vpack.c.b16 %v354, %v338
  %v403 = vpack.c.b16 %v355, %v339
  %v404 = vpack.c.b16 %v356, %v340
  %v405 = vpack.c.b16 %v357, %v341
  %v406 = vpack.c.b16 %v358, %v342
  %v407 = vpack.c.b16 %v359, %v343
  %v408 = vpack.c.b16 %v360, %v344
  %v409 = vpack.c.b16 %v361, %v345
  %v410 = vpack.c.b16 %v362, %v346
  %v411 = vpack.c.b16 %v363, %v347
  %v412 = vpack.c.b16 %v364, %v348
  %v413 = vpack.c.b16 %v365, %v349
  %v414 = vpack.c.b16 %v382, %v366
  %v415 = vpack.c.b16 %v383, %v367
  %v416 = vpack.c.b16 %v384, %v368
  %v417 = vpack.c.b16 %v385, %v369
  %v418 = vpack.c.b16 %v386, %v370
  %v419 = vpack.c.b16 %v387, %v371
  %v420 = vpack.c.b16 %v388, %v372
  %v421 = vpack.c.b16 %v389, %v373
  %v422 = vpack.c.b16 %v390, %v374
  %v423 = vpack.c.b16 %v391, %v375
  %v424 = vpack.c.b16 %v392, %v376
  %v425 = vpack.c.b16 %v393, %v377
  %v426 = vpack.c.b16 %v394, %v378
  %v427 = vpack.c.b16 %v395, %v379
  %v428 = vpack.c.b16 %v396, %v380
  %v429 = vpack.c.b16 %v397, %v381
  %v718 = vunpack.c.l.b16 %v46
  %v719 = vunpack.c.l.b16 %v47
  %v720 = vunpack.c.l.b16 %v48
  %v721 = vunpack.c.l.b16 %v49
  %v722 = vunpack.c.l.b16 %v50
  %v723 = vunpack.c.l.b16 %v51
  %v724 = vunpack.c.l.b16 %v52
  %v725 = vunpack.c.l.b16 %v53
  %v726 = vunpack.c.l.b16 %v54
  %v727 = vunpack.c.l.b16 %v55
  %v728 = vunpack.c.l.b16 %v56
  %v729 = vunpack.c.l.b16 %v57
  %v730 = vunpack.c.l.b16 %v58
  %v731 = vunpack.c.l.b16 %v59
  %v732 = vunpack.c.l.b16 %v60
  %v733 = vunpack.c.l.b16 %v61
  %v734 = vunpack.c.l.b16 %v62
  %v735 = vunpack.c.l.b16 %v63
  %v736 = vunpack.c.l.b16 %v64
  %v737 = vunpack.c.l.b16 %v65
  %v738 = vunpack.c.l.b16 %v66
  %v739 = vunpack.c.l.b16 %v67
  %v740 = vunpack.c.l.b16 %v68
  %v741 = vunpack.c.l.b16 %v69
  %v742 = vunpack.c.l.b16 %v70
  %v743 = vunpack.c.l.b16 %v71
  %v744 = vunpack.c.l.b16 %v72
  %v745 = vunpack.c.l.b16 %v73
  %v746 = vunpack.c.l.b16 %v74
  %v747 = vunpack.c.l.b16 %v75
  %v748 = vunpack.c.l.b16 %v76
  %v749 = vunpack.c.l.b16 %v77
  %v750 = vunpack.c.l.b16 %v78
  %v751 = vunpack.c.l.b16 %v79
  %v752 = vunpack.c.l.b16 %v80
  %v753 = vunpack.c.l.b16 %v81
  %v754 = vunpack.c.l.b16 %v82
  %v755 = vunpack.c.l.b16 %v83
  %v756 = vunpack.c.l.b16 %v84
  %v757 = vunpack.c.l.b16 %v85
  %v758 = vunpack.c.l.b16 %v86
  %v759 = vunpack.c.l.b16 %v87
  %v760 = vunpack.c.l.b16 %v88
  %v761 = vunpack.c.l.b16 %v89
  %v762 = vunpack.c.l.b16 %v90
  %v763 = vunpack.c.l.b16 %v91
  %v764 = vunpack.c.l.b16 %v92
  %v765 = vunpack.c.l.b16 %v93
  %v766 = vunpack.c.l.b16 %v94
  %v767 = vunpack.c.l.b16 %v95
  %v768 = vunpack.c.l.b16 %v96
  %v769 = vunpack.c.l.b16 %v97
  %v770 = vunpack.c.l.b16 %v98
  %v771 = vunpack.c.l.b16 %v99
  %v772 = vunpack.c.l.b16 %v100
  %v773 = vunpack.c.l.b16 %v101
  %v774 = vunpack.c.l.b16 %v102
  %v775 = vunpack.c.l.b16 %v103
  %v776 = vunpack.c.l.b16 %v104
  %v777 = vunpack.c.l.b16 %v105
  %v778 = vunpack.c.l.b16 %v106
  %v779 = vunpack.c.l.b16 %v107
  %v780 = vunpack.c.l.b16 %v108
  %v781 = vunpack.c.l.b16 %v109
  %v782 = vunpack.c.l.b16 %v110
  %v783 = vunpack.c.l.b16 %v111
  %v784 = vunpack.c.l.b16 %v112
  %v785 = vunpack.c.l.b16 %v113
  %v786 = vunpack.c.l.b16 %v114
  %v787 = vunpack.c.l.b16 %v115
  %v788 = vunpack.c.l.b16 %v116
  %v789 = vunpack.c.l.b16 %v117
  %v790 = vunpack.c.l.b16 %v118
  %v791 = vunpack.c.l.b16 %v119
  %v792 = vunpack.c.l.b16 %v120
  %v793 = vunpack.c.l.b16 %v121
  %v794 = vunpack.c.l.b16 %v122
  %v795 = vunpack.c.l.b16 %v123
  %v796 = vunpack.c.l.b16 %v124
  %v797 = vunpack.c.l.b16 %v125
  %v798 = vunpack.c.l.b16 %v126
  %v799 = vunpack.c.l.b16 %v127
  %v800 = vunpack.c.l.b16 %v128
  %v801 = vunpack.c.l.b16 %v129
  %v802 = vunpack.c.l.b16 %v130
  %v803 = vunpack.c.l.b16 %v131
  %v804 = vunpack.c.l.b16 %v132
  %v805 = vunpack.c.l.b16 %v133
  %v806 = vunpack.c.l.b16 %v134
  %v807 = vunpack.c.l.b16 %v135
  %v808 = vunpack.c.l.b16 %v136
  %v809 = vunpack.c.l.b16 %v137
  %v810 = vunpack.c.l.b16 %v138
  %v811 = vunpack.c.l.b16 %v139
  %v812 = vunpack.c.l.b16 %v140
  %v813 = vunpack.c.l.b16 %v141
  %v814 = vunpack.c.l.b16 %v142
  %v815 = vunpack.c.l.b16 %v143
  %v816 = vunpack.c.l.b16 %v144
  %v817 = vunpack.c.l.b16 %v145
  %v818 = vunpack.c.l.b16 %v146
  %v819 = vunpack.c.l.b16 %v147
  %v820 = vunpack.c.l.b16 %v148
  %v821 = vunpack.c.l.b16 %v149
  %v822 = vunpack.c.l.b16 %v150
  %v823 = vunpack.c.l.b16 %v151
  %v824 = vunpack.c.l.b16 %v152
  %v825 = vunpack.c.l.b16 %v153
  %v826 = vunpack.c.l.b16 %v154
  %v827 = vunpack.c.l.b16 %v155
  %v828 = vunpack.c.l.b16 %v156
  %v829 = vunpack.c.l.b16 %v157
  %v830 = vunpack.c.l.b16 %v158
  %v831 = vunpack.c.l.b16 %v159
  %v832 = vunpack.c.l.b16 %v160
  %v833 = vunpack.c.l.b16 %v161
  %v834 = vunpack.c.l.b16 %v162
  %v835 = vunpack.c.l.b16 %v163
  %v836 = vunpack.c.l.b16 %v164
  %v837 = vunpack.c.l.b16 %v165
  %v838 = vunpack.c.l.b16 %v166
  %v839 = vunpack.c.l.b16 %v167
  %v840 = vunpack.c.l.b16 %v168
  %v841 = vunpack.c.l.b16 %v169
  %v842 = vunpack.c.l.b16 %v170
  %v843 = vunpack.c.l.b16 %v171
  %v844 = vunpack.c.l.b16 %v172
  %v845 = vunpack.c.l.b16 %v173
  %v846 = vunpack.c.l.b16 %v174
  %v847 = vunpack.c.l.b16 %v175
  %v848 = vunpack.c.l.b16 %v176
  %v849 = vunpack.c.l.b16 %v177
  %v850 = vunpack.c.l.b16 %v178
  %v851 = vunpack.c.l.b16 %v179
  %v852 = vunpack.c.l.b16 %v180
  %v853 = vunpack.c.l.b16 %v181
  %v854 = vunpack.c.l.b16 %v182
  %v855 = vunpack.c.l.b16 %v183
  %v856 = vunpack.c.l.b16 %v184
  %v857 = vunpack.c.l.b16 %v185
  %v858 = vunpack.c.l.b16 %v186
  %v859 = vunpack.c.l.b16 %v187
  %v860 = vunpack.c.l.b16 %v188
  %v861 = vunpack.c.l.b16 %v189
  %v862 = vunpack.c.l.b16 %v190
  %v863 = vunpack.c.l.b16 %v191
  %v864 = vunpack.c.l.b16 %v192
  %v865 = vunpack.c.l.b16 %v193
  %v866 = vunpack.c.l.b16 %v194
  %v867 = vunpack.c.l.b16 %v195
  %v868 = vunpack.c.l.b16 %v196
  %v869 = vunpack.c.l.b16 %v197
  %v870 = vunpack.c.l.b16 %v198
  %v871 = vunpack.c.l.b16 %v199
  %v872 = vunpack.c.l.b16 %v200
  %v873 = vunpack.c.l.b16 %v201
  %v874 = vunpack.c.l.b16 %v202
  %v875 = vunpack.c.l.b16 %v203
  %v876 = vunpack.c.l.b16 %v204
  %v877 = vunpack.c.l.b16 %v205
  %v878 = vunpack.c.l.b16 %v206
  %v879 = vunpack.c.l.b16 %v207
  %v880 = vunpack.c.l.b16 %v208
  %v881 = vunpack.c.l.b16 %v209
  %v882 = vunpack.c.l.b16 %v210
  %v883 = vunpack.c.l.b16 %v211
  %v884 = vunpack.c.l.b16 %v212
  %v885 = vunpack.c.l.b16 %v213
  %v886 = vunpack.c.l.b16 %v214
  %v887 = vunpack.c.l.b16 %v215
  %v888 = vunpack.c.l.b16 %v216
  %v889 = vunpack.c.l.b16 %v217
  %v890 = vunpack.c.l.b16 %v218
  %v891 = vunpack.c.l.b16 %v219
  %v892 = vunpack.c.l.b16 %v220
  %v893 = vunpack.c.l.b16 %v221
  %v894 = vunpack.c.l.b16 %v222
  %v895 = vunpack.c.l.b16 %v223
  %v896 = vunpack.c.l.b16 %v224
  %v897 = vunpack.c.l.b16 %v225
  %v898 = vunpack.c.l.b16 %v226
  %v899 = vunpack.c.l.b16 %v227
  %v900 = vunpack.c.l.b16 %v228
  %v901 = vunpack.c.l.b16 %v229
  %v902 = vunpack.c.l.b16 %v230
  %v903 = vunpack.c.l.b16 %v231
  %v904 = vunpack.c.l.b16 %v232
  %v905 = vunpack.c.l.b16 %v233
  %v906 = vunpack.c.l.b16 %v234
  %v907 = vunpack.c.l.b16 %v235
  %v908 = vunpack.c.l.b16 %v236
  %v909 = vunpack.c.l.b16 %v237
  %v910 = vunpack.c.l.b16 %v238
  %v911 = vunpack.c.l.b16 %v239
  %v912 = vunpack.c.l.b16 %v240
  %v913 = vunpack.c.l.b16 %v241
  %v914 = vunpack.c.l.b16 %v242
  %v915 = vunpack.c.l.b16 %v243
  %v916 = vunpack.c.l.b16 %v244
  %v917 = vunpack.c.l.b16 %v245
  %v918 = vunpack.c.l.b16 %v246
  %v919 = vunpack.c.l.b16 %v247
  %v920 = vunpack.c.l.b16 %v248
  %v921 = vunpack.c.l.b16 %v249
  %v922 = vunpack.c.l.b16 %v250
  %v923 = vunpack.c.l.b16 %v251
  %v924 = vunpack.c.l.b16 %v252
  %v925 = vunpack.c.l.b16 %v253
  %v926 = vunpack.c.l.b16 %v254
  %v927 = vunpack.c.l.b16 %v255
  %v928 = vunpack.c.l.b16 %v256
  %v929 = vunpack.c.l.b16 %v257
  %v930 = vunpack.c.l.b16 %v258
  %v931 = vunpack.c.l.b16 %v259
  %v932 = vunpack.c.l.b16 %v260
  %v933 = vunpack.c.l.b16 %v261
  %v934 = vunpack.c.l.b16 %v262
  %v935 = vunpack.c.l.b16 %v263
  %v936 = vunpack.c.l.b16 %v264
  %v937 = vunpack.c.l.b16 %v265
  %v938 = vunpack.c.l.b16 %v266
  %v939 = vunpack.c.l.b16 %v267
  %v940 = vunpack.c.l.b16 %v268
  %v941 = vunpack.c.l.b16 %v269
  %v942 = vunpack.c.l.b16 %v270
  %v943 = vunpack.c.l.b16 %v271
  %v944 = vunpack.c.l.b16 %v272
  %v945 = vunpack.c.l.b16 %v273
  %v946 = vunpack.c.l.b16 %v274
  %v947 = vunpack.c.l.b16 %v275
  %v948 = vunpack.c.l.b16 %v276
  %v949 = vunpack.c.l.b16 %v277
  %v950 = vunpack.c.l.b16 %v278
  %v951 = vunpack.c.l.b16 %v279
  %v952 = vunpack.c.l.b16 %v280
  %v953 = vunpack.c.l.b16 %v281
  %v954 = vunpack.c.l.b16 %v282
  %v955 = vunpack.c.l.b16 %v283
  %v956 = vunpack.c.l.b16 %v284
  %v957 = vunpack.c.l.b16 %v285
  %v958 = vunpack.c.l.b16 %v286
  %v959 = vunpack.c.l.b16 %v287
  %v960 = vunpack.c.l.b16 %v288
  %v961 = vunpack.c.l.b16 %v289
  %v962 = vunpack.c.l.b16 %v290
  %v963 = vunpack.c.l.b16 %v291
  %v964 = vunpack.c.l.b16 %v292
  %v965 = vunpack.c.l.b16 %v293
  %v966 = vunpack.c.l.b16 %v294
  %v967 = vunpack.c.l.b16 %v295
  %v968 = vunpack.c.l.b16 %v296
  %v969 = vunpack.c.l.b16 %v297
  %v970 = vunpack.c.l.b16 %v298
  %v971 = vunpack.c.l.b16 %v299
  %v972 = vunpack.c.l.b16 %v300
  %v973 = vunpack.c.l.b16 %v301
  %v974 = vpack.c.b16 %v719, %v718
  %v975 = vpack.c.b16 %v721, %v720
  %v976 = vpack.c.b16 %v723, %v722
  %v977 = vpack.c.b16 %v725, %v724
  %v978 = vpack.c.b16 %v727, %v726
  %v979 = vpack.c.b16 %v729, %v728
  %v980 = vpack.c.b16 %v731, %v730
  %v981 = vpack.c.b16 %v733, %v732
  %v982 = vpack.c.b16 %v735, %v734
  %v983 = vpack.c.b16 %v737, %v736
  %v984 = vpack.c.b16 %v739, %v738
  %v985 = vpack.c.b16 %v741, %v740
  %v986 = vpack.c.b16 %v743, %v742
  %v987 = vpack.c.b16 %v745, %v744
  %v988 = vpack.c.b16 %v747, %v746
  %v989 = vpack.c.b16 %v749, %v748
  %v990 = vpack.c.b16 %v751, %v750
  %v991 = vpack.c.b16 %v753, %v752
  %v992 = vpack.c.b16 %v755, %v754
  %v993 = vpack.c.b16 %v757, %v756
  %v994 = vpack.c.b16 %v759, %v758
  %v995 = vpack.c.b16 %v761, %v760
  %v996 = vpack.c.b16 %v763, %v762
  %v997 = vpack.c.b16 %v765, %v764
  %v998 = vpack.c.b16 %v767, %v766
  %v999 = vpack.c.b16 %v769, %v768
  %v1000 = vpack.c.b16 %v771, %v770
  %v1001 = vpack.c.b16 %v773, %v772
  %v1002 = vpack.c.b16 %v775, %v774
  %v1003 = vpack.c.b16 %v777, %v776
  %v1004 = vpack.c.b16 %v779, %v778
  %v1005 = vpack.c.b16 %v781, %v780
  %v1006 = vpack.c.b16 %v783, %v782
  %v1007 = vpack.c.b16 %v785, %v784
  %v1008 = vpack.c.b16 %v787, %v786
  %v1009 = vpack.c.b16 %v789, %v788
  %v1010 = vpack.c.b16 %v791, %v790
  %v1011 = vpack.c.b16 %v793, %v792
  %v1012 = vpack.c.b16 %v795, %v794
  %v1013 = vpack.c.b16 %v797, %v796
  %v1014 = vpack.c.b16 %v799, %v798
  %v1015 = vpack.c.b16 %v801, %v800
  %v1016 = vpack.c.b16 %v803, %v802
  %v1017 = vpack.c.b16 %v805, %v804
  %v1018 = vpack.c.b16 %v807, %v806
  %v1019 = vpack.c.b16 %v809, %v808
  %v1020 = vpack.c.b16 %v811, %v810
  %v1021 = vpack.c.b16 %v813, %v812
  %v1022 = vpack.c.b16 %v815, %v814
  %v1023 = vpack.c.b16 %v817, %v816
  %v1024 = vpack.c.b16 %v819, %v818
  %v1025 = vpack.c.b16 %v821, %v820
  %v1026 = vpack.c.b16 %v823, %v822
  %v1027 = vpack.c.b16 %v825, %v824
  %v1028 = vpack.c.b16 %v827, %v826
  %v1029 = vpack.c.b16 %v829, %v828
  %v1030 = vpack.c.b16 %v831, %v830
  %v1031 = vpack.c.b16 %v833, %v832
  %v1032 = vpack.c.b16 %v835, %v834
  %v1033 = vpack.c.b16 %v837, %v836
  %v1034 = vpack.c.b16 %v839, %v838
  %v1035 = vpack.c.b16 %v841, %v840
  %v1036 = vpack.c.b16 %v843, %v842
  %v1037 = vpack.c.b16 %v845, %v844
  %v1038 = vpack.c.b16 %v847, %v846
  %v1039 = vpack.c.b16 %v849, %v848
  %v1040 = vpack.c.b16 %v851, %v850
  %v1041 = vpack.c.b16 %v853, %v852
  %v1042 = vpack.c.b16 %v855, %v854
  %v1043 = vpack.c.b16 %v857, %v856
  %v1044 = vpack.c.b16 %v859, %v858
  %v1045 = vpack.c.b16 %v861, %v860
  %v1046 = vpack.c.b16 %v863, %v862
  %v1047 = vpack.c.b16 %v865, %v864
  %v1048 = vpack.c.b16 %v867, %v866
  %v1049 = vpack.c.b16 %v869, %v868
  %v1050 = vpack.c.b16 %v871, %v870
  %v1051 = vpack.c.b16 %v873, %v872
  %v1052 = vpack.c.b16 %v875, %v874
  %v1053 = vpack.c.b16 %v877, %v876
  %v1054 = vpack.c.b16 %v879, %v878
  %v1055 = vpack.c.b16 %v881, %v880
  %v1056 = vpack.c.b16 %v883, %v882
  %v1057 = vpack.c.b16 %v885, %v884
  %v1058 = vpack.c.b16 %v887, %v886
  %v1059 = vpack.c.b16 %v889, %v888
  %v1060 = vpack.c.b16 %v891, %v890
  %v1061 = vpack.c.b16 %v893, %v892
  %v1062 = vpack.c.b16 %v895, %v894
  %v1063 = vpack.c.b16 %v897, %v896
  %v1064 = vpack.c.b16 %v899, %v898
  %v1065 = vpack.c.b16 %v901, %v900
  %v1066 = vpack.c.b16 %v903, %v902
  %v1067 = vpack.c.b16 %v905, %v904
  %v1068 = vpack.c.b16 %v907, %v906
  %v1069 = vpack.c.b16 %v909, %v908
  %v1070 = vpack.c.b16 %v911, %v910
  %v1071 = vpack.c.b16 %v913, %v912
  %v1072 = vpack.c.b16 %v915, %v914
  %v1073 = vpack.c.b16 %v917, %v916
  %v1074 = vpack.c.b16 %v919, %v918
  %v1075 = vpack.c.b16 %v921, %v920
  %v1076 = vpack.c.b16 %v923, %v922
  %v1077 = vpack.c.b16 %v925, %v924
  %v1078 = vpack.c.b16 %v927, %v926
  %v1079 = vpack.c.b16 %v929, %v928
  %v1080 = vpack.c.b16 %v931, %v930
  %v1081 = vpack.c.b16 %v933, %v932
  %v1082 = vpack.c.b16 %v935, %v934
  %v1083 = vpack.c.b16 %v937, %v936
  %v1084 = vpack.c.b16 %v939, %v938
  %v1085 = vpack.c.b16 %v941, %v940
  %v1086 = vpack.c.b16 %v943, %v942
  %v1087 = vpack.c.b16 %v945, %v944
  %v1088 = vpack.c.b16 %v947, %v946
  %v1089 = vpack.c.b16 %v949, %v948
  %v1090 = vpack.c.b16 %v951, %v950
  %v1091 = vpack.c.b16 %v953, %v952
  %v1092 = vpack.c.b16 %v955, %v954
  %v1093 = vpack.c.b16 %v957, %v956
  %v1094 = vpack.c.b16 %v959, %v958
  %v1095 = vpack.c.b16 %v961, %v960
  %v1096 = vpack.c.b16 %v963, %v962
  %v1097 = vpack.c.b16 %v965, %v964
  %v1098 = vpack.c.b16 %v967, %v966
  %v1099 = vpack.c.b16 %v969, %v968
  %v1100 = vpack.c.b16 %v971, %v970
  %v1101 = vpack.c.b16 %v973, %v972
  %1230 = vmatprep.subr.bf16.mxu0 0
  %1231 = vmatpush1.bf16.msra.mxu0 %v974
  %1232 = vmatprep.subr.bf16.mxu0 0
  %1233 = vmatpush1.bf16.msra.mxu0 %v975
  %1234 = vmatprep.subr.bf16.mxu0 0
  %1235 = vmatpush1.bf16.msra.mxu0 %v976
  %1236 = vmatprep.subr.bf16.mxu0 0
  %1237 = vmatpush1.bf16.msra.mxu0 %v977
  %1238 = vmatprep.subr.bf16.mxu0 0
  %1239 = vmatpush1.bf16.msra.mxu0 %v978
  %1240 = vmatprep.subr.bf16.mxu0 0
  %1241 = vmatpush1.bf16.msra.mxu0 %v979
  %1242 = vmatprep.subr.bf16.mxu0 0
  %1243 = vmatpush1.bf16.msra.mxu0 %v980
  %1244 = vmatprep.subr.bf16.mxu0 0
  %1245 = vmatpush1.bf16.msra.mxu0 %v981
  %1246 = vmatprep.subr.bf16.mxu0 0
  %1247 = vmatpush1.bf16.msra.mxu0 %v982
  %1248 = vmatprep.subr.bf16.mxu0 0
  %1249 = vmatpush1.bf16.msra.mxu0 %v983
  %1250 = vmatprep.subr.bf16.mxu0 0
  %1251 = vmatpush1.bf16.msra.mxu0 %v984
  %1252 = vmatprep.subr.bf16.mxu0 0
  %1253 = vmatpush1.bf16.msra.mxu0 %v985
  %1254 = vmatprep.subr.bf16.mxu0 0
  %1255 = vmatpush1.bf16.msra.mxu0 %v986
  %1256 = vmatprep.subr.bf16.mxu0 0
  %1257 = vmatpush1.bf16.msra.mxu0 %v987
  %1258 = vmatprep.subr.bf16.mxu0 0
  %1259 = vmatpush1.bf16.msra.mxu0 %v988
  %1260 = vmatprep.subr.bf16.mxu0 0
  %1261 = vmatpush1.bf16.msra.mxu0 %v989
  %1262 = vmatprep.mubr.bf16.mxu0 %v399
  %1263 = vmatmul.mubr.bf16.gmra.mrb[0].mxu0 %v398
  %v1264 = vpop.f32.mrb[0].mxu0
  %v1265 = vadd.f32 0.0, %v1264
  %v1266 = vpop.f32.mrb[0].mxu0
  %v1267 = vpop.f32.mrb[0].mxu0
  %v1268 = vadd.f32 0.0, %v1267
  %v1269 = vpop.f32.mrb[0].mxu0
  %1270 = vmatprep.mubr.bf16.mxu0 %v415
  %1271 = vmatmul.mubr.bf16.gmra.mrb[0].mxu0 %v414
  %v1272 = vpop.f32.mrb[0].mxu0
  %v1273 = vadd.f32 0.0, %v1272
  %v1274 = vpop.f32.mrb[0].mxu0
  %v1275 = vpop.f32.mrb[0].mxu0
  %v1276 = vadd.f32 0.0, %v1275
  %v1277 = vpop.f32.mrb[0].mxu0
  %1278 = vdwg.mxu0
  %1279 = vmatprep.subr.bf16.mxu0 0
  %1280 = vmatpush1.bf16.msra.mxu0 %v990
  %1281 = vmatprep.subr.bf16.mxu0 0
  %1282 = vmatpush1.bf16.msra.mxu0 %v991
  %1283 = vmatprep.subr.bf16.mxu0 0
  %1284 = vmatpush1.bf16.msra.mxu0 %v992
  %1285 = vmatprep.subr.bf16.mxu0 0
  %1286 = vmatpush1.bf16.msra.mxu0 %v993
  %1287 = vmatprep.subr.bf16.mxu0 0
  %1288 = vmatpush1.bf16.msra.mxu0 %v994
  %1289 = vmatprep.subr.bf16.mxu0 0
  %1290 = vmatpush1.bf16.msra.mxu0 %v995
  %1291 = vmatprep.subr.bf16.mxu0 0
  %1292 = vmatpush1.bf16.msra.mxu0 %v996
  %1293 = vmatprep.subr.bf16.mxu0 0
  %1294 = vmatpush1.bf16.msra.mxu0 %v997
  %1295 = vmatprep.subr.bf16.mxu0 0
  %1296 = vmatpush1.bf16.msra.mxu0 %v998
  %1297 = vmatprep.subr.bf16.mxu0 0
  %1298 = vmatpush1.bf16.msra.mxu0 %v999
  %1299 = vmatprep.subr.bf16.mxu0 0
  %1300 = vmatpush1.bf16.msra.mxu0 %v1000
  %1301 = vmatprep.subr.bf16.mxu0 0
  %1302 = vmatpush1.bf16.msra.mxu0 %v1001
  %1303 = vmatprep.subr.bf16.mxu0 0
  %1304 = vmatpush1.bf16.msra.mxu0 %v1002
  %1305 = vmatprep.subr.bf16.mxu0 0
  %1306 = vmatpush1.bf16.msra.mxu0 %v1003
  %1307 = vmatprep.subr.bf16.mxu0 0
  %1308 = vmatpush1.bf16.msra.mxu0 %v1004
  %1309 = vmatprep.subr.bf16.mxu0 0
  %1310 = vmatpush1.bf16.msra.mxu0 %v1005
  %1311 = vmatprep.mubr.bf16.mxu0 %v401
  %1312 = vmatmul.mubr.bf16.gmra.mrb[0].mxu0 %v400
  %v1313 = vpop.f32.mrb[0].mxu0
  %v1314 = vadd.f32 %v1265, %v1313
  %v1315 = vpop.f32.mrb[0].mxu0
  %v1316 = vpop.f32.mrb[0].mxu0
  %v1317 = vadd.f32 %v1268, %v1316
  %v1318 = vpop.f32.mrb[0].mxu0
  %1319 = vmatprep.mubr.bf16.mxu0 %v417
  %1320 = vmatmul.mubr.bf16.gmra.mrb[0].mxu0 %v416
  %v1321 = vpop.f32.mrb[0].mxu0
  %v1322 = vadd.f32 %v1273, %v1321
  %v1323 = vpop.f32.mrb[0].mxu0
  %v1324 = vpop.f32.mrb[0].mxu0
  %v1325 = vadd.f32 %v1276, %v1324
  %v1326 = vpop.f32.mrb[0].mxu0
  %1327 = vdwg.mxu0
  %1328 = vmatprep.subr.bf16.mxu0 0
  %1329 = vmatpush1.bf16.msra.mxu0 %v1006
  %1330 = vmatprep.subr.bf16.mxu0 0
  %1331 = vmatpush1.bf16.msra.mxu0 %v1007
  %1332 = vmatprep.subr.bf16.mxu0 0
  %1333 = vmatpush1.bf16.msra.mxu0 %v1008
  %1334 = vmatprep.subr.bf16.mxu0 0
  %1335 = vmatpush1.bf16.msra.mxu0 %v1009
  %1336 = vmatprep.subr.bf16.mxu0 0
  %1337 = vmatpush1.bf16.msra.mxu0 %v1010
  %1338 = vmatprep.subr.bf16.mxu0 0
  %1339 = vmatpush1.bf16.msra.mxu0 %v1011
  %1340 = vmatprep.subr.bf16.mxu0 0
  %1341 = vmatpush1.bf16.msra.mxu0 %v1012
  %1342 = vmatprep.subr.bf16.mxu0 0
  %1343 = vmatpush1.bf16.msra.mxu0 %v1013
  %1344 = vmatprep.subr.bf16.mxu0 0
  %1345 = vmatpush1.bf16.msra.mxu0 %v1014
  %1346 = vmatprep.subr.bf16.mxu0 0
  %1347 = vmatpush1.bf16.msra.mxu0 %v1015
  %1348 = vmatprep.subr.bf16.mxu0 0
  %1349 = vmatpush1.bf16.msra.mxu0 %v1016
  %1350 = vmatprep.subr.bf16.mxu0 0
  %1351 = vmatpush1.bf16.msra.mxu0 %v1017
  %1352 = vmatprep.subr.bf16.mxu0 0
  %1353 = vmatpush1.bf16.msra.mxu0 %v1018
  %1354 = vmatprep.subr.bf16.mxu0 0
  %1355 = vmatpush1.bf16.msra.mxu0 %v1019
  %1356 = vmatprep.subr.bf16.mxu0 0
  %1357 = vmatpush1.bf16.msra.mxu0 %v1020
  %1358 = vmatprep.subr.bf16.mxu0 0
  %1359 = vmatpush1.bf16.msra.mxu0 %v1021
  %1360 = vmatprep.mubr.bf16.mxu0 %v403
  %1361 = vmatmul.mubr.bf16.gmra.mrb[0].mxu0 %v402
  %v1362 = vpop.f32.mrb[0].mxu0
  %v1363 = vadd.f32 %v1314, %v1362
  %v1364 = vpop.f32.mrb[0].mxu0
  %v1365 = vpop.f32.mrb[0].mxu0
  %v1366 = vadd.f32 %v1317, %v1365
  %v1367 = vpop.f32.mrb[0].mxu0
  %1368 = vmatprep.mubr.bf16.mxu0 %v419
  %1369 = vmatmul.mubr.bf16.gmra.mrb[0].mxu0 %v418
  %v1370 = vpop.f32.mrb[0].mxu0
  %v1371 = vadd.f32 %v1322, %v1370
  %v1372 = vpop.f32.mrb[0].mxu0
  %v1373 = vpop.f32.mrb[0].mxu0
  %v1374 = vadd.f32 %v1325, %v1373
  %v1375 = vpop.f32.mrb[0].mxu0
  %1376 = vdwg.mxu0
  %1377 = vmatprep.subr.bf16.mxu0 0
  %1378 = vmatpush1.bf16.msra.mxu0 %v1022
  %1379 = vmatprep.subr.bf16.mxu0 0
  %1380 = vmatpush1.bf16.msra.mxu0 %v1023
  %1381 = vmatprep.subr.bf16.mxu0 0
  %1382 = vmatpush1.bf16.msra.mxu0 %v1024
  %1383 = vmatprep.subr.bf16.mxu0 0
  %1384 = vmatpush1.bf16.msra.mxu0 %v1025
  %1385 = vmatprep.subr.bf16.mxu0 0
  %1386 = vmatpush1.bf16.msra.mxu0 %v1026
  %1387 = vmatprep.subr.bf16.mxu0 0
  %1388 = vmatpush1.bf16.msra.mxu0 %v1027
  %1389 = vmatprep.subr.bf16.mxu0 0
  %1390 = vmatpush1.bf16.msra.mxu0 %v1028
  %1391 = vmatprep.subr.bf16.mxu0 0
  %1392 = vmatpush1.bf16.msra.mxu0 %v1029
  %1393 = vmatprep.subr.bf16.mxu0 0
  %1394 = vmatpush1.bf16.msra.mxu0 %v1030
  %1395 = vmatprep.subr.bf16.mxu0 0
  %1396 = vmatpush1.bf16.msra.mxu0 %v1031
  %1397 = vmatprep.subr.bf16.mxu0 0
  %1398 = vmatpush1.bf16.msra.mxu0 %v1032
  %1399 = vmatprep.subr.bf16.mxu0 0
  %1400 = vmatpush1.bf16.msra.mxu0 %v1033
  %1401 = vmatprep.subr.bf16.mxu0 0
  %1402 = vmatpush1.bf16.msra.mxu0 %v1034
  %1403 = vmatprep.subr.bf16.mxu0 0
  %1404 = vmatpush1.bf16.msra.mxu0 %v1035
  %1405 = vmatprep.subr.bf16.mxu0 0
  %1406 = vmatpush1.bf16.msra.mxu0 %v1036
  %1407 = vmatprep.subr.bf16.mxu0 0
  %1408 = vmatpush1.bf16.msra.mxu0 %v1037
  %1409 = vmatprep.mubr.bf16.mxu0 %v405
  %1410 = vmatmul.mubr.bf16.gmra.mrb[0].mxu0 %v404
  %v1411 = vpop.f32.mrb[0].mxu0
  %v1412 = vadd.f32 %v1363, %v1411
  %v1413 = vpop.f32.mrb[0].mxu0
  %v1414 = vpop.f32.mrb[0].mxu0
  %v1415 = vadd.f32 %v1366, %v1414
  %v1416 = vpop.f32.mrb[0].mxu0
  %1417 = vmatprep.mubr.bf16.mxu0 %v421
  %1418 = vmatmul.mubr.bf16.gmra.mrb[0].mxu0 %v420
  %v1419 = vpop.f32.mrb[0].mxu0
  %v1420 = vadd.f32 %v1371, %v1419
  %v1421 = vpop.f32.mrb[0].mxu0
  %v1422 = vpop.f32.mrb[0].mxu0
  %v1423 = vadd.f32 %v1374, %v1422
  %v1424 = vpop.f32.mrb[0].mxu0
  %1425 = vdwg.mxu0
  %1426 = vmatprep.subr.bf16.mxu0 0
  %1427 = vmatpush1.bf16.msra.mxu0 %v1038
  %1428 = vmatprep.subr.bf16.mxu0 0
  %1429 = vmatpush1.bf16.msra.mxu0 %v1039
  %1430 = vmatprep.subr.bf16.mxu0 0
  %1431 = vmatpush1.bf16.msra.mxu0 %v1040
  %1432 = vmatprep.subr.bf16.mxu0 0
  %1433 = vmatpush1.bf16.msra.mxu0 %v1041
  %1434 = vmatprep.subr.bf16.mxu0 0
  %1435 = vmatpush1.bf16.msra.mxu0 %v1042
  %1436 = vmatprep.subr.bf16.mxu0 0
  %1437 = vmatpush1.bf16.msra.mxu0 %v1043
  %1438 = vmatprep.subr.bf16.mxu0 0
  %1439 = vmatpush1.bf16.msra.mxu0 %v1044
  %1440 = vmatprep.subr.bf16.mxu0 0
  %1441 = vmatpush1.bf16.msra.mxu0 %v1045
  %1442 = vmatprep.subr.bf16.mxu0 0
  %1443 = vmatpush1.bf16.msra.mxu0 %v1046
  %1444 = vmatprep.subr.bf16.mxu0 0
  %1445 = vmatpush1.bf16.msra.mxu0 %v1047
  %1446 = vmatprep.subr.bf16.mxu0 0
  %1447 = vmatpush1.bf16.msra.mxu0 %v1048
  %1448 = vmatprep.subr.bf16.mxu0 0
  %1449 = vmatpush1.bf16.msra.mxu0 %v1049
  %1450 = vmatprep.subr.bf16.mxu0 0
  %1451 = vmatpush1.bf16.msra.mxu0 %v1050
  %1452 = vmatprep.subr.bf16.mxu0 0
  %1453 = vmatpush1.bf16.msra.mxu0 %v1051
  %1454 = vmatprep.subr.bf16.mxu0 0
  %1455 = vmatpush1.bf16.msra.mxu0 %v1052
  %1456 = vmatprep.subr.bf16.mxu0 0
  %1457 = vmatpush1.bf16.msra.mxu0 %v1053
  %1458 = vmatprep.mubr.bf16.mxu0 %v407
  %1459 = vmatmul.mubr.bf16.gmra.mrb[0].mxu0 %v406
  %v1460 = vpop.f32.mrb[0].mxu0
  %v1461 = vadd.f32 %v1412, %v1460
  %v1462 = vpop.f32.mrb[0].mxu0
  %v1463 = vpop.f32.mrb[0].mxu0
  %v1464 = vadd.f32 %v1415, %v1463
  %v1465 = vpop.f32.mrb[0].mxu0
  %1466 = vmatprep.mubr.bf16.mxu0 %v423
  %1467 = vmatmul.mubr.bf16.gmra.mrb[0].mxu0 %v422
  %v1468 = vpop.f32.mrb[0].mxu0
  %v1469 = vadd.f32 %v1420, %v1468
  %v1470 = vpop.f32.mrb[0].mxu0
  %v1471 = vpop.f32.mrb[0].mxu0
  %v1472 = vadd.f32 %v1423, %v1471
  %v1473 = vpop.f32.mrb[0].mxu0
  %1474 = vdwg.mxu0
  %1475 = vmatprep.subr.bf16.mxu0 0
  %1476 = vmatpush1.bf16.msra.mxu0 %v1054
  %1477 = vmatprep.subr.bf16.mxu0 0
  %1478 = vmatpush1.bf16.msra.mxu0 %v1055
  %1479 = vmatprep.subr.bf16.mxu0 0
  %1480 = vmatpush1.bf16.msra.mxu0 %v1056
  %1481 = vmatprep.subr.bf16.mxu0 0
  %1482 = vmatpush1.bf16.msra.mxu0 %v1057
  %1483 = vmatprep.subr.bf16.mxu0 0
  %1484 = vmatpush1.bf16.msra.mxu0 %v1058
  %1485 = vmatprep.subr.bf16.mxu0 0
  %1486 = vmatpush1.bf16.msra.mxu0 %v1059
  %1487 = vmatprep.subr.bf16.mxu0 0
  %1488 = vmatpush1.bf16.msra.mxu0 %v1060
  %1489 = vmatprep.subr.bf16.mxu0 0
  %1490 = vmatpush1.bf16.msra.mxu0 %v1061
  %1491 = vmatprep.subr.bf16.mxu0 0
  %1492 = vmatpush1.bf16.msra.mxu0 %v1062
  %1493 = vmatprep.subr.bf16.mxu0 0
  %1494 = vmatpush1.bf16.msra.mxu0 %v1063
  %1495 = vmatprep.subr.bf16.mxu0 0
  %1496 = vmatpush1.bf16.msra.mxu0 %v1064
  %1497 = vmatprep.subr.bf16.mxu0 0
  %1498 = vmatpush1.bf16.msra.mxu0 %v1065
  %1499 = vmatprep.subr.bf16.mxu0 0
  %1500 = vmatpush1.bf16.msra.mxu0 %v1066
  %1501 = vmatprep.subr.bf16.mxu0 0
  %1502 = vmatpush1.bf16.msra.mxu0 %v1067
  %1503 = vmatprep.subr.bf16.mxu0 0
  %1504 = vmatpush1.bf16.msra.mxu0 %v1068
  %1505 = vmatprep.subr.bf16.mxu0 0
  %1506 = vmatpush1.bf16.msra.mxu0 %v1069
  %1507 = vmatprep.mubr.bf16.mxu0 %v409
  %1508 = vmatmul.mubr.bf16.gmra.mrb[0].mxu0 %v408
  %v1509 = vpop.f32.mrb[0].mxu0
  %v1510 = vadd.f32 %v1461, %v1509
  %v1511 = vpop.f32.mrb[0].mxu0
  %v1512 = vpop.f32.mrb[0].mxu0
  %v1513 = vadd.f32 %v1464, %v1512
  %v1514 = vpop.f32.mrb[0].mxu0
  %1515 = vmatprep.mubr.bf16.mxu0 %v425
  %1516 = vmatmul.mubr.bf16.gmra.mrb[0].mxu0 %v424
  %v1517 = vpop.f32.mrb[0].mxu0
  %v1518 = vadd.f32 %v1469, %v1517
  %v1519 = vpop.f32.mrb[0].mxu0
  %v1520 = vpop.f32.mrb[0].mxu0
  %v1521 = vadd.f32 %v1472, %v1520
  %v1522 = vpop.f32.mrb[0].mxu0
  %1523 = vdwg.mxu0
  %1524 = vmatprep.subr.bf16.mxu0 0
  %1525 = vmatpush1.bf16.msra.mxu0 %v1070
  %1526 = vmatprep.subr.bf16.mxu0 0
  %1527 = vmatpush1.bf16.msra.mxu0 %v1071
  %1528 = vmatprep.subr.bf16.mxu0 0
  %1529 = vmatpush1.bf16.msra.mxu0 %v1072
  %1530 = vmatprep.subr.bf16.mxu0 0
  %1531 = vmatpush1.bf16.msra.mxu0 %v1073
  %1532 = vmatprep.subr.bf16.mxu0 0
  %1533 = vmatpush1.bf16.msra.mxu0 %v1074
  %1534 = vmatprep.subr.bf16.mxu0 0
  %1535 = vmatpush1.bf16.msra.mxu0 %v1075
  %1536 = vmatprep.subr.bf16.mxu0 0
  %1537 = vmatpush1.bf16.msra.mxu0 %v1076
  %1538 = vmatprep.subr.bf16.mxu0 0
  %1539 = vmatpush1.bf16.msra.mxu0 %v1077
  %1540 = vmatprep.subr.bf16.mxu0 0
  %1541 = vmatpush1.bf16.msra.mxu0 %v1078
  %1542 = vmatprep.subr.bf16.mxu0 0
  %1543 = vmatpush1.bf16.msra.mxu0 %v1079
  %1544 = vmatprep.subr.bf16.mxu0 0
  %1545 = vmatpush1.bf16.msra.mxu0 %v1080
  %1546 = vmatprep.subr.bf16.mxu0 0
  %1547 = vmatpush1.bf16.msra.mxu0 %v1081
  %1548 = vmatprep.subr.bf16.mxu0 0
  %1549 = vmatpush1.bf16.msra.mxu0 %v1082
  %1550 = vmatprep.subr.bf16.mxu0 0
  %1551 = vmatpush1.bf16.msra.mxu0 %v1083
  %1552 = vmatprep.subr.bf16.mxu0 0
  %1553 = vmatpush1.bf16.msra.mxu0 %v1084
  %1554 = vmatprep.subr.bf16.mxu0 0
  %1555 = vmatpush1.bf16.msra.mxu0 %v1085
  %1556 = vmatprep.mubr.bf16.mxu0 %v411
  %1557 = vmatmul.mubr.bf16.gmra.mrb[0].mxu0 %v410
  %v1558 = vpop.f32.mrb[0].mxu0
  %v1559 = vadd.f32 %v1510, %v1558
  %v1560 = vpop.f32.mrb[0].mxu0
  %v1561 = vpop.f32.mrb[0].mxu0
  %v1562 = vadd.f32 %v1513, %v1561
  %v1563 = vpop.f32.mrb[0].mxu0
  %1564 = vmatprep.mubr.bf16.mxu0 %v427
  %1565 = vmatmul.mubr.bf16.gmra.mrb[0].mxu0 %v426
  %v1566 = vpop.f32.mrb[0].mxu0
  %v1567 = vadd.f32 %v1518, %v1566
  %v1568 = vpop.f32.mrb[0].mxu0
  %v1569 = vpop.f32.mrb[0].mxu0
  %v1570 = vadd.f32 %v1521, %v1569
  %v1571 = vpop.f32.mrb[0].mxu0
  %1572 = vdwg.mxu0
  %1573 = vmatprep.subr.bf16.mxu0 0
  %1574 = vmatpush1.bf16.msra.mxu0 %v1086
  %1575 = vmatprep.subr.bf16.mxu0 0
  %1576 = vmatpush1.bf16.msra.mxu0 %v1087
  %1577 = vmatprep.subr.bf16.mxu0 0
  %1578 = vmatpush1.bf16.msra.mxu0 %v1088
  %1579 = vmatprep.subr.bf16.mxu0 0
  %1580 = vmatpush1.bf16.msra.mxu0 %v1089
  %1581 = vmatprep.subr.bf16.mxu0 0
  %1582 = vmatpush1.bf16.msra.mxu0 %v1090
  %1583 = vmatprep.subr.bf16.mxu0 0
  %1584 = vmatpush1.bf16.msra.mxu0 %v1091
  %1585 = vmatprep.subr.bf16.mxu0 0
  %1586 = vmatpush1.bf16.msra.mxu0 %v1092
  %1587 = vmatprep.subr.bf16.mxu0 0
  %1588 = vmatpush1.bf16.msra.mxu0 %v1093
  %1589 = vmatprep.subr.bf16.mxu0 0
  %1590 = vmatpush1.bf16.msra.mxu0 %v1094
  %1591 = vmatprep.subr.bf16.mxu0 0
  %1592 = vmatpush1.bf16.msra.mxu0 %v1095
  %1593 = vmatprep.subr.bf16.mxu0 0
  %1594 = vmatpush1.bf16.msra.mxu0 %v1096
  %1595 = vmatprep.subr.bf16.mxu0 0
  %1596 = vmatpush1.bf16.msra.mxu0 %v1097
  %1597 = vmatprep.subr.bf16.mxu0 0
  %1598 = vmatpush1.bf16.msra.mxu0 %v1098
  %1599 = vmatprep.subr.bf16.mxu0 0
  %1600 = vmatpush1.bf16.msra.mxu0 %v1099
  %1601 = vmatprep.subr.bf16.mxu0 0
  %1602 = vmatpush1.bf16.msra.mxu0 %v1100
  %1603 = vmatprep.subr.bf16.mxu0 0
  %1604 = vmatpush1.bf16.msra.mxu0 %v1101
  %1605 = vmatprep.mubr.bf16.mxu0 %v413
  %1606 = vmatmul.mubr.bf16.gmra.mrb[0].mxu0 %v412
  %v1607 = vpop.f32.mrb[0].mxu0
  %v1608 = vadd.f32 %v1559, %v1607
  %v1609 = vpop.f32.mrb[0].mxu0
  %v1610 = vpop.f32.mrb[0].mxu0
  %v1611 = vadd.f32 %v1562, %v1610
  %v1612 = vpop.f32.mrb[0].mxu0
  %1613 = vmatprep.mubr.bf16.mxu0 %v429
  %1614 = vmatmul.mubr.bf16.gmra.mrb[0].mxu0 %v428
  %v1615 = vpop.f32.mrb[0].mxu0
  %v1616 = vadd.f32 %v1567, %v1615
  %v1617 = vpop.f32.mrb[0].mxu0
  %v1618 = vpop.f32.mrb[0].mxu0
  %v1619 = vadd.f32 %v1570, %v1618
  %v1620 = vpop.f32.mrb[0].mxu0
  %1621 = vdwg.mxu0
  %v1622 = vpack.c.bf16 %v1611, %v1608
  %v1623 = vpack.c.bf16 %v1619, %v1616
  %v1626 = vunpack.c.l.b16 %v1622
  %v1627 = vunpack.c.h.b16 %v1622
  %v1628 = vunpack.c.l.b16 %v1623
  %v1629 = vunpack.c.h.b16 %v1623
  %v1630 = vpack.c.b16 %v1626, %v1626
  %v1631 = vpack.c.b16 %v1627, %v1627
  %v1632 = vpack.c.b16 %v1628, %v1628
  %v1633 = vpack.c.b16 %v1629, %v1629
  %1638 = vst [vmem:[%s2] sm:$0xf] %v1630
  %1639 = vst [vmem:[%s2 + $0x4] sm:$0xf] %v1631
  %1640 = vst [vmem:[%s2 + $0x8] sm:$0xf] %v1632
  %1641 = vst [vmem:[%s2 + $0xc] sm:$0xf] %v1633
  %v1642 = vadd.f32 %v1608, %v1611
  %v1643 = vadd.f32 %v1642, %v1616
  %v1644 = vadd.f32 %v1643, %v1619
  %v1645 = vrot.slane %v1644, 4
  %v1646 = vadd.f32 %v1644, %v1645
  %v1647 = vrot.slane %v1646, 2
  %v1648 = vadd.f32 %v1646, %v1647
  %v1649 = vrot.slane %v1648, 1
  %v1650 = vadd.f32 %v1648, %v1649
  %v1651 = vmul.f32 %v1608, %v1608
  %v1652 = vmul.f32 %v1611, %v1611
  %v1653 = vmul.f32 %v1616, %v1616
  %v1654 = vmul.f32 %v1619, %v1619
  %v1655 = vadd.f32 %v1651, %v1652
  %v1656 = vadd.f32 %v1655, %v1653
  %v1657 = vadd.f32 %v1656, %v1654
  %v1658 = vrot.slane %v1657, 4
  %v1659 = vadd.f32 %v1657, %v1658
  %v1660 = vrot.slane %v1659, 2
  %v1661 = vadd.f32 %v1659, %v1660
  %v1662 = vrot.slane %v1661, 1
  %v1663 = vadd.f32 %v1661, %v1662
  %v1664 = vlaneseq
  %v1665 = vshrl.u32 %v1664, 7
  %vm1666 = vcmp.eq.s32.totalorder %v1665, 0
  %vm1667 = vcmp.eq.s32.totalorder %v1665, 1
  %v1668 = vsel %vm1667, %v1663, 0.0
  %v1669 = vsel %vm1666, %v1650, %v1668
  %1670 = vst [vmem:[%s3] sm:$0xff] %v1669
  // Predicated region
  $region10: #{discriminator_forward.8} parent=0 // pred_check
    _
  $region11: #{discriminator_forward.8} parent=0 // pred_check_branch
    %1672 = sbr.rel (0) target = $region13
  $region12: #{discriminator_forward.8} parent=0 // pred_region
    _
  $region13: #{discriminator_forward.8} parent=0 // pred_fallthru
    _
  // Predicated region
  $region14: #{discriminator_forward.8} parent=0 // pred_check
    _
  $region15: #{discriminator_forward.8} parent=0 // pred_check_branch
    %1674 = sbr.rel (0) target = $region17
  $region16: #{discriminator_forward.8} parent=0 // pred_region
    _
  $region17: #{discriminator_forward.8} parent=0 // pred_fallthru
    _
  // Predicated region
  $region18: #{discriminator_forward.8} parent=0 // pred_check
    _
  $region19: #{discriminator_forward.8} parent=0 // pred_check_branch
    %1676 = sbr.rel (0) target = $region21
  $region20: #{discriminator_forward.8} parent=0 // pred_region
    _
  $region21: #{discriminator_forward.8} parent=0 // pred_fallthru
    _
  // Predicated region
  $region22: #{discriminator_forward.8} parent=0 // pred_check
    _
  $region23: #{discriminator_forward.8} parent=0 // pred_check_branch
    %1678 = sbr.rel (0) target = $region25
  $region24: #{discriminator_forward.8} parent=0 // pred_region
    _
  $region25: #{discriminator_forward.8} parent=0 // pred_fallthru
    _

// kernel: discriminator_forward.9
$region0: #{discriminator_forward.9}
  #allocation0 [shape = 'u32[]', space=smem, size = 0x4, offset = 0x4, fixed_abs, tag = 'smem constant byte address 0x4 - core index']
  #allocation1 [shape = 'u32[144,128]{1,0:T(1,128)}', space=vmem, size = 0x12000, scoped, tag = 'internal scratch']
  %s0 = inlined_call_operand.vmem [shape: bf16[16,2048], index: 0, kind: input, shape index: {}]
  %s1 = inlined_call_operand.vmem [shape: bf16[2048,128], index: 1, kind: input, shape index: {}]
  %s2 = inlined_call_operand.vmem [shape: f32[16,128], index: 2, kind: output, shape index: {}]
  %s3 = sld [smem:[#allocation0]]
  $region18: #{discriminator_forward.9} parent=0
    _
  %s5 = ssub.s32 1, %s3
  %s6 = scalar_select 0, %s5, %s3
  // Predicated region
  $region2: #{discriminator_forward.9} parent=0 // pred_check
    _
  $region3: #{discriminator_forward.9} parent=0 // pred_check_branch
    %8 = sbr.rel (0) target = $region5
  $region4: #{discriminator_forward.9} parent=0 // pred_region
    _
  $region5: #{discriminator_forward.9} parent=0 // pred_fallthru
    _
  // Predicated region
  $region6: #{discriminator_forward.9} parent=0 // pred_check
    _
  $region7: #{discriminator_forward.9} parent=0 // pred_check_branch
    %10 = sbr.rel (0) target = $region9
  $region8: #{discriminator_forward.9} parent=0 // pred_region
    _
  $region9: #{discriminator_forward.9} parent=0 // pred_fallthru
    _
  %v12 = vld [vmem:[%s0] sm:$0xff]
  %v13 = vld [vmem:[%s0 + $0x8] sm:$0xff]
  %v14 = vld [vmem:[%s0 + $0x10] sm:$0xff]
  %v15 = vld [vmem:[%s0 + $0x18] sm:$0xff]
  %v16 = vld [vmem:[%s0 + $0x20] sm:$0xff]
  %v17 = vld [vmem:[%s0 + $0x28] sm:$0xff]
  %v18 = vld [vmem:[%s0 + $0x30] sm:$0xff]
  %v19 = vld [vmem:[%s0 + $0x38] sm:$0xff]
  %v20 = vld [vmem:[%s0 + $0x40] sm:$0xff]
  %v21 = vld [vmem:[%s0 + $0x48] sm:$0xff]
  %v22 = vld [vmem:[%s0 + $0x50] sm:$0xff]
  %v23 = vld [vmem:[%s0 + $0x58] sm:$0xff]
  %v24 = vld [vmem:[%s0 + $0x60] sm:$0xff]
  %v25 = vld [vmem:[%s0 + $0x68] sm:$0xff]
  %v26 = vld [vmem:[%s0 + $0x70] sm:$0xff]
  %v27 = vld [vmem:[%s0 + $0x78] sm:$0xff]
  %v28 = vld [vmem:[%s1] sm:$0xf]
  %v29 = vld [vmem:[%s1 + $0x4] sm:$0xf]
  %v30 = vld [vmem:[%s1 + $0x8] sm:$0xf]
  %v31 = vld [vmem:[%s1 + $0xc] sm:$0xf]
  %v32 = vld [vmem:[%s1 + $0x10] sm:$0xf]
  %v33 = vld [vmem:[%s1 + $0x14] sm:$0xf]
  %v34 = vld [vmem:[%s1 + $0x18] sm:$0xf]
  %v35 = vld [vmem:[%s1 + $0x1c] sm:$0xf]
  %v36 = vld [vmem:[%s1 + $0x20] sm:$0xf]
  %v37 = vld [vmem:[%s1 + $0x24] sm:$0xf]
  %v38 = vld [vmem:[%s1 + $0x28] sm:$0xf]
  %v39 = vld [vmem:[%s1 + $0x2c] sm:$0xf]
  %v40 = vld [vmem:[%s1 + $0x30] sm:$0xf]
  %v41 = vld [vmem:[%s1 + $0x34] sm:$0xf]
  %v42 = vld [vmem:[%s1 + $0x38] sm:$0xf]
  %v43 = vld [vmem:[%s1 + $0x3c] sm:$0xf]
  %v44 = vld [vmem:[%s1 + $0x40] sm:$0xf]
  %v45 = vld [vmem:[%s1 + $0x44] sm:$0xf]
  %v46 = vld [vmem:[%s1 + $0x48] sm:$0xf]
  %v47 = vld [vmem:[%s1 + $0x4c] sm:$0xf]
  %v48 = vld [vmem:[%s1 + $0x50] sm:$0xf]
  %v49 = vld [vmem:[%s1 + $0x54] sm:$0xf]
  %v50 = vld [vmem:[%s1 + $0x58] sm:$0xf]
  %v51 = vld [vmem:[%s1 + $0x5c] sm:$0xf]
  %v52 = vld [vmem:[%s1 + $0x60] sm:$0xf]
  %v53 = vld [vmem:[%s1 + $0x64] sm:$0xf]
  %v54 = vld [vmem:[%s1 + $0x68] sm:$0xf]
  %v55 = vld [vmem:[%s1 + $0x6c] sm:$0xf]
  %v56 = vld [vmem:[%s1 + $0x70] sm:$0xf]
  %v57 = vld [vmem:[%s1 + $0x74] sm:$0xf]
  %v58 = vld [vmem:[%s1 + $0x78] sm:$0xf]
  %v59 = vld [vmem:[%s1 + $0x7c] sm:$0xf]
  %v60 = vld [vmem:[%s1 + $0x80] sm:$0xf]
  %v61 = vld [vmem:[%s1 + $0x84] sm:$0xf]
  %v62 = vld [vmem:[%s1 + $0x88] sm:$0xf]
  %v63 = vld [vmem:[%s1 + $0x8c] sm:$0xf]
  %v64 = vld [vmem:[%s1 + $0x90] sm:$0xf]
  %v65 = vld [vmem:[%s1 + $0x94] sm:$0xf]
  %v66 = vld [vmem:[%s1 + $0x98] sm:$0xf]
  %v67 = vld [vmem:[%s1 + $0x9c] sm:$0xf]
  %v68 = vld [vmem:[%s1 + $0xa0] sm:$0xf]
  %v69 = vld [vmem:[%s1 + $0xa4] sm:$0xf]
  %v70 = vld [vmem:[%s1 + $0xa8] sm:$0xf]
  %v71 = vld [vmem:[%s1 + $0xac] sm:$0xf]
  %v72 = vld [vmem:[%s1 + $0xb0] sm:$0xf]
  %v73 = vld [vmem:[%s1 + $0xb4] sm:$0xf]
  %v74 = vld [vmem:[%s1 + $0xb8] sm:$0xf]
  %v75 = vld [vmem:[%s1 + $0xbc] sm:$0xf]
  %v76 = vld [vmem:[%s1 + $0xc0] sm:$0xf]
  %v77 = vld [vmem:[%s1 + $0xc4] sm:$0xf]
  %v78 = vld [vmem:[%s1 + $0xc8] sm:$0xf]
  %v79 = vld [vmem:[%s1 + $0xcc] sm:$0xf]
  %v80 = vld [vmem:[%s1 + $0xd0] sm:$0xf]
  %v81 = vld [vmem:[%s1 + $0xd4] sm:$0xf]
  %v82 = vld [vmem:[%s1 + $0xd8] sm:$0xf]
  %v83 = vld [vmem:[%s1 + $0xdc] sm:$0xf]
  %v84 = vld [vmem:[%s1 + $0xe0] sm:$0xf]
  %v85 = vld [vmem:[%s1 + $0xe4] sm:$0xf]
  %v86 = vld [vmem:[%s1 + $0xe8] sm:$0xf]
  %v87 = vld [vmem:[%s1 + $0xec] sm:$0xf]
  %v88 = vld [vmem:[%s1 + $0xf0] sm:$0xf]
  %v89 = vld [vmem:[%s1 + $0xf4] sm:$0xf]
  %v90 = vld [vmem:[%s1 + $0xf8] sm:$0xf]
  %v91 = vld [vmem:[%s1 + $0xfc] sm:$0xf]
  %v92 = vld [vmem:[%s1 + $0x100] sm:$0xf]
  %v93 = vld [vmem:[%s1 + $0x104] sm:$0xf]
  %v94 = vld [vmem:[%s1 + $0x108] sm:$0xf]
  %v95 = vld [vmem:[%s1 + $0x10c] sm:$0xf]
  %v96 = vld [vmem:[%s1 + $0x110] sm:$0xf]
  %v97 = vld [vmem:[%s1 + $0x114] sm:$0xf]
  %v98 = vld [vmem:[%s1 + $0x118] sm:$0xf]
  %v99 = vld [vmem:[%s1 + $0x11c] sm:$0xf]
  %v100 = vld [vmem:[%s1 + $0x120] sm:$0xf]
  %v101 = vld [vmem:[%s1 + $0x124] sm:$0xf]
  %v102 = vld [vmem:[%s1 + $0x128] sm:$0xf]
  %v103 = vld [vmem:[%s1 + $0x12c] sm:$0xf]
  %v104 = vld [vmem:[%s1 + $0x130] sm:$0xf]
  %v105 = vld [vmem:[%s1 + $0x134] sm:$0xf]
  %v106 = vld [vmem:[%s1 + $0x138] sm:$0xf]
  %v107 = vld [vmem:[%s1 + $0x13c] sm:$0xf]
  %v108 = vld [vmem:[%s1 + $0x140] sm:$0xf]
  %v109 = vld [vmem:[%s1 + $0x144] sm:$0xf]
  %v110 = vld [vmem:[%s1 + $0x148] sm:$0xf]
  %v111 = vld [vmem:[%s1 + $0x14c] sm:$0xf]
  %v112 = vld [vmem:[%s1 + $0x150] sm:$0xf]
  %v113 = vld [vmem:[%s1 + $0x154] sm:$0xf]
  %v114 = vld [vmem:[%s1 + $0x158] sm:$0xf]
  %v115 = vld [vmem:[%s1 + $0x15c] sm:$0xf]
  %v116 = vld [vmem:[%s1 + $0x160] sm:$0xf]
  %v117 = vld [vmem:[%s1 + $0x164] sm:$0xf]
  %v118 = vld [vmem:[%s1 + $0x168] sm:$0xf]
  %v119 = vld [vmem:[%s1 + $0x16c] sm:$0xf]
  %v120 = vld [vmem:[%s1 + $0x170] sm:$0xf]
  %v121 = vld [vmem:[%s1 + $0x174] sm:$0xf]
  %v122 = vld [vmem:[%s1 + $0x178] sm:$0xf]
  %v123 = vld [vmem:[%s1 + $0x17c] sm:$0xf]
  %v124 = vld [vmem:[%s1 + $0x180] sm:$0xf]
  %v125 = vld [vmem:[%s1 + $0x184] sm:$0xf]
  %v126 = vld [vmem:[%s1 + $0x188] sm:$0xf]
  %v127 = vld [vmem:[%s1 + $0x18c] sm:$0xf]
  %v128 = vld [vmem:[%s1 + $0x190] sm:$0xf]
  %v129 = vld [vmem:[%s1 + $0x194] sm:$0xf]
  %v130 = vld [vmem:[%s1 + $0x198] sm:$0xf]
  %v131 = vld [vmem:[%s1 + $0x19c] sm:$0xf]
  %v132 = vld [vmem:[%s1 + $0x1a0] sm:$0xf]
  %v133 = vld [vmem:[%s1 + $0x1a4] sm:$0xf]
  %v134 = vld [vmem:[%s1 + $0x1a8] sm:$0xf]
  %v135 = vld [vmem:[%s1 + $0x1ac] sm:$0xf]
  %v136 = vld [vmem:[%s1 + $0x1b0] sm:$0xf]
  %v137 = vld [vmem:[%s1 + $0x1b4] sm:$0xf]
  %v138 = vld [vmem:[%s1 + $0x1b8] sm:$0xf]
  %v139 = vld [vmem:[%s1 + $0x1bc] sm:$0xf]
  %v140 = vld [vmem:[%s1 + $0x1c0] sm:$0xf]
  %v141 = vld [vmem:[%s1 + $0x1c4] sm:$0xf]
  %v142 = vld [vmem:[%s1 + $0x1c8] sm:$0xf]
  %v143 = vld [vmem:[%s1 + $0x1cc] sm:$0xf]
  %v144 = vld [vmem:[%s1 + $0x1d0] sm:$0xf]
  %v145 = vld [vmem:[%s1 + $0x1d4] sm:$0xf]
  %v146 = vld [vmem:[%s1 + $0x1d8] sm:$0xf]
  %v147 = vld [vmem:[%s1 + $0x1dc] sm:$0xf]
  %v148 = vld [vmem:[%s1 + $0x1e0] sm:$0xf]
  %v149 = vld [vmem:[%s1 + $0x1e4] sm:$0xf]
  %v150 = vld [vmem:[%s1 + $0x1e8] sm:$0xf]
  %v151 = vld [vmem:[%s1 + $0x1ec] sm:$0xf]
  %v152 = vld [vmem:[%s1 + $0x1f0] sm:$0xf]
  %v153 = vld [vmem:[%s1 + $0x1f4] sm:$0xf]
  %v154 = vld [vmem:[%s1 + $0x1f8] sm:$0xf]
  %v155 = vld [vmem:[%s1 + $0x1fc] sm:$0xf]
  %v156 = vld [vmem:[%s1 + $0x200] sm:$0xf]
  %v157 = vld [vmem:[%s1 + $0x204] sm:$0xf]
  %v158 = vld [vmem:[%s1 + $0x208] sm:$0xf]
  %v159 = vld [vmem:[%s1 + $0x20c] sm:$0xf]
  %v160 = vld [vmem:[%s1 + $0x210] sm:$0xf]
  %v161 = vld [vmem:[%s1 + $0x214] sm:$0xf]
  %v162 = vld [vmem:[%s1 + $0x218] sm:$0xf]
  %v163 = vld [vmem:[%s1 + $0x21c] sm:$0xf]
  %v164 = vld [vmem:[%s1 + $0x220] sm:$0xf]
  %v165 = vld [vmem:[%s1 + $0x224] sm:$0xf]
  %v166 = vld [vmem:[%s1 + $0x228] sm:$0xf]
  %v167 = vld [vmem:[%s1 + $0x22c] sm:$0xf]
  %v168 = vld [vmem:[%s1 + $0x230] sm:$0xf]
  %v169 = vld [vmem:[%s1 + $0x234] sm:$0xf]
  %v170 = vld [vmem:[%s1 + $0x238] sm:$0xf]
  %v171 = vld [vmem:[%s1 + $0x23c] sm:$0xf]
  %v172 = vld [vmem:[%s1 + $0x240] sm:$0xf]
  %v173 = vld [vmem:[%s1 + $0x244] sm:$0xf]
  %v174 = vld [vmem:[%s1 + $0x248] sm:$0xf]
  %v175 = vld [vmem:[%s1 + $0x24c] sm:$0xf]
  %v176 = vld [vmem:[%s1 + $0x250] sm:$0xf]
  %v177 = vld [vmem:[%s1 + $0x254] sm:$0xf]
  %v178 = vld [vmem:[%s1 + $0x258] sm:$0xf]
  %v179 = vld [vmem:[%s1 + $0x25c] sm:$0xf]
  %v180 = vld [vmem:[%s1 + $0x260] sm:$0xf]
  %v181 = vld [vmem:[%s1 + $0x264] sm:$0xf]
  %v182 = vld [vmem:[%s1 + $0x268] sm:$0xf]
  %v183 = vld [vmem:[%s1 + $0x26c] sm:$0xf]
  %v184 = vld [vmem:[%s1 + $0x270] sm:$0xf]
  %v185 = vld [vmem:[%s1 + $0x274] sm:$0xf]
  %v186 = vld [vmem:[%s1 + $0x278] sm:$0xf]
  %v187 = vld [vmem:[%s1 + $0x27c] sm:$0xf]
  %v188 = vld [vmem:[%s1 + $0x280] sm:$0xf]
  %v189 = vld [vmem:[%s1 + $0x284] sm:$0xf]
  %v190 = vld [vmem:[%s1 + $0x288] sm:$0xf]
  %v191 = vld [vmem:[%s1 + $0x28c] sm:$0xf]
  %v192 = vld [vmem:[%s1 + $0x290] sm:$0xf]
  %v193 = vld [vmem:[%s1 + $0x294] sm:$0xf]
  %v194 = vld [vmem:[%s1 + $0x298] sm:$0xf]
  %v195 = vld [vmem:[%s1 + $0x29c] sm:$0xf]
  %v196 = vld [vmem:[%s1 + $0x2a0] sm:$0xf]
  %v197 = vld [vmem:[%s1 + $0x2a4] sm:$0xf]
  %v198 = vld [vmem:[%s1 + $0x2a8] sm:$0xf]
  %v199 = vld [vmem:[%s1 + $0x2ac] sm:$0xf]
  %v200 = vld [vmem:[%s1 + $0x2b0] sm:$0xf]
  %v201 = vld [vmem:[%s1 + $0x2b4] sm:$0xf]
  %v202 = vld [vmem:[%s1 + $0x2b8] sm:$0xf]
  %v203 = vld [vmem:[%s1 + $0x2bc] sm:$0xf]
  %v204 = vld [vmem:[%s1 + $0x2c0] sm:$0xf]
  %v205 = vld [vmem:[%s1 + $0x2c4] sm:$0xf]
  %v206 = vld [vmem:[%s1 + $0x2c8] sm:$0xf]
  %v207 = vld [vmem:[%s1 + $0x2cc] sm:$0xf]
  %v208 = vld [vmem:[%s1 + $0x2d0] sm:$0xf]
  %v209 = vld [vmem:[%s1 + $0x2d4] sm:$0xf]
  %v210 = vld [vmem:[%s1 + $0x2d8] sm:$0xf]
  %v211 = vld [vmem:[%s1 + $0x2dc] sm:$0xf]
  %v212 = vld [vmem:[%s1 + $0x2e0] sm:$0xf]
  %v213 = vld [vmem:[%s1 + $0x2e4] sm:$0xf]
  %v214 = vld [vmem:[%s1 + $0x2e8] sm:$0xf]
  %v215 = vld [vmem:[%s1 + $0x2ec] sm:$0xf]
  %v216 = vld [vmem:[%s1 + $0x2f0] sm:$0xf]
  %v217 = vld [vmem:[%s1 + $0x2f4] sm:$0xf]
  %v218 = vld [vmem:[%s1 + $0x2f8] sm:$0xf]
  %v219 = vld [vmem:[%s1 + $0x2fc] sm:$0xf]
  %v220 = vld [vmem:[%s1 + $0x300] sm:$0xf]
  %v221 = vld [vmem:[%s1 + $0x304] sm:$0xf]
  %v222 = vld [vmem:[%s1 + $0x308] sm:$0xf]
  %v223 = vld [vmem:[%s1 + $0x30c] sm:$0xf]
  %v224 = vld [vmem:[%s1 + $0x310] sm:$0xf]
  %v225 = vld [vmem:[%s1 + $0x314] sm:$0xf]
  %v226 = vld [vmem:[%s1 + $0x318] sm:$0xf]
  %v227 = vld [vmem:[%s1 + $0x31c] sm:$0xf]
  %v228 = vld [vmem:[%s1 + $0x320] sm:$0xf]
  %v229 = vld [vmem:[%s1 + $0x324] sm:$0xf]
  %v230 = vld [vmem:[%s1 + $0x328] sm:$0xf]
  %v231 = vld [vmem:[%s1 + $0x32c] sm:$0xf]
  %v232 = vld [vmem:[%s1 + $0x330] sm:$0xf]
  %v233 = vld [vmem:[%s1 + $0x334] sm:$0xf]
  %v234 = vld [vmem:[%s1 + $0x338] sm:$0xf]
  %v235 = vld [vmem:[%s1 + $0x33c] sm:$0xf]
  %v236 = vld [vmem:[%s1 + $0x340] sm:$0xf]
  %v237 = vld [vmem:[%s1 + $0x344] sm:$0xf]
  %v238 = vld [vmem:[%s1 + $0x348] sm:$0xf]
  %v239 = vld [vmem:[%s1 + $0x34c] sm:$0xf]
  %v240 = vld [vmem:[%s1 + $0x350] sm:$0xf]
  %v241 = vld [vmem:[%s1 + $0x354] sm:$0xf]
  %v242 = vld [vmem:[%s1 + $0x358] sm:$0xf]
  %v243 = vld [vmem:[%s1 + $0x35c] sm:$0xf]
  %v244 = vld [vmem:[%s1 + $0x360] sm:$0xf]
  %v245 = vld [vmem:[%s1 + $0x364] sm:$0xf]
  %v246 = vld [vmem:[%s1 + $0x368] sm:$0xf]
  %v247 = vld [vmem:[%s1 + $0x36c] sm:$0xf]
  %v248 = vld [vmem:[%s1 + $0x370] sm:$0xf]
  %v249 = vld [vmem:[%s1 + $0x374] sm:$0xf]
  %v250 = vld [vmem:[%s1 + $0x378] sm:$0xf]
  %v251 = vld [vmem:[%s1 + $0x37c] sm:$0xf]
  %v252 = vld [vmem:[%s1 + $0x380] sm:$0xf]
  %v253 = vld [vmem:[%s1 + $0x384] sm:$0xf]
  %v254 = vld [vmem:[%s1 + $0x388] sm:$0xf]
  %v255 = vld [vmem:[%s1 + $0x38c] sm:$0xf]
  %v256 = vld [vmem:[%s1 + $0x390] sm:$0xf]
  %v257 = vld [vmem:[%s1 + $0x394] sm:$0xf]
  %v258 = vld [vmem:[%s1 + $0x398] sm:$0xf]
  %v259 = vld [vmem:[%s1 + $0x39c] sm:$0xf]
  %v260 = vld [vmem:[%s1 + $0x3a0] sm:$0xf]
  %v261 = vld [vmem:[%s1 + $0x3a4] sm:$0xf]
  %v262 = vld [vmem:[%s1 + $0x3a8] sm:$0xf]
  %v263 = vld [vmem:[%s1 + $0x3ac] sm:$0xf]
  %v264 = vld [vmem:[%s1 + $0x3b0] sm:$0xf]
  %v265 = vld [vmem:[%s1 + $0x3b4] sm:$0xf]
  %v266 = vld [vmem:[%s1 + $0x3b8] sm:$0xf]
  %v267 = vld [vmem:[%s1 + $0x3bc] sm:$0xf]
  %v268 = vld [vmem:[%s1 + $0x3c0] sm:$0xf]
  %v269 = vld [vmem:[%s1 + $0x3c4] sm:$0xf]
  %v270 = vld [vmem:[%s1 + $0x3c8] sm:$0xf]
  %v271 = vld [vmem:[%s1 + $0x3cc] sm:$0xf]
  %v272 = vld [vmem:[%s1 + $0x3d0] sm:$0xf]
  %v273 = vld [vmem:[%s1 + $0x3d4] sm:$0xf]
  %v274 = vld [vmem:[%s1 + $0x3d8] sm:$0xf]
  %v275 = vld [vmem:[%s1 + $0x3dc] sm:$0xf]
  %v276 = vld [vmem:[%s1 + $0x3e0] sm:$0xf]
  %v277 = vld [vmem:[%s1 + $0x3e4] sm:$0xf]
  %v278 = vld [vmem:[%s1 + $0x3e8] sm:$0xf]
  %v279 = vld [vmem:[%s1 + $0x3ec] sm:$0xf]
  %v280 = vld [vmem:[%s1 + $0x3f0] sm:$0xf]
  %v281 = vld [vmem:[%s1 + $0x3f4] sm:$0xf]
  %v282 = vld [vmem:[%s1 + $0x3f8] sm:$0xf]
  %v283 = vld [vmem:[%s1 + $0x3fc] sm:$0xf]
  %v300 = vunpack.c.l.b16 %v12
  %v301 = vunpack.c.h.b16 %v12
  %v302 = vunpack.c.l.b16 %v13
  %v303 = vunpack.c.h.b16 %v13
  %v304 = vunpack.c.l.b16 %v14
  %v305 = vunpack.c.h.b16 %v14
  %v306 = vunpack.c.l.b16 %v15
  %v307 = vunpack.c.h.b16 %v15
  %v308 = vunpack.c.l.b16 %v16
  %v309 = vunpack.c.h.b16 %v16
  %v310 = vunpack.c.l.b16 %v17
  %v311 = vunpack.c.h.b16 %v17
  %v312 = vunpack.c.l.b16 %v18
  %v313 = vunpack.c.h.b16 %v18
  %v314 = vunpack.c.l.b16 %v19
  %v315 = vunpack.c.h.b16 %v19
  %v316 = vunpack.c.l.b16 %v20
  %v317 = vunpack.c.h.b16 %v20
  %v318 = vunpack.c.l.b16 %v21
  %v319 = vunpack.c.h.b16 %v21
  %v320 = vunpack.c.l.b16 %v22
  %v321 = vunpack.c.h.b16 %v22
  %v322 = vunpack.c.l.b16 %v23
  %v323 = vunpack.c.h.b16 %v23
  %v324 = vunpack.c.l.b16 %v24
  %v325 = vunpack.c.h.b16 %v24
  %v326 = vunpack.c.l.b16 %v25
  %v327 = vunpack.c.h.b16 %v25
  %v328 = vunpack.c.l.b16 %v26
  %v329 = vunpack.c.h.b16 %v26
  %v330 = vunpack.c.l.b16 %v27
  %v331 = vunpack.c.h.b16 %v27
  %v332 = vpack.c.b16 %v316, %v300
  %v333 = vpack.c.b16 %v317, %v301
  %v334 = vpack.c.b16 %v318, %v302
  %v335 = vpack.c.b16 %v319, %v303
  %v336 = vpack.c.b16 %v320, %v304
  %v337 = vpack.c.b16 %v321, %v305
  %v338 = vpack.c.b16 %v322, %v306
  %v339 = vpack.c.b16 %v323, %v307
  %v340 = vpack.c.b16 %v324, %v308
  %v341 = vpack.c.b16 %v325, %v309
  %v342 = vpack.c.b16 %v326, %v310
  %v343 = vpack.c.b16 %v327, %v311
  %v344 = vpack.c.b16 %v328, %v312
  %v345 = vpack.c.b16 %v329, %v313
  %v346 = vpack.c.b16 %v330, %v314
  %v347 = vpack.c.b16 %v331, %v315
  %v620 = vunpack.c.l.b16 %v28
  %v621 = vunpack.c.l.b16 %v29
  %v622 = vunpack.c.l.b16 %v30
  %v623 = vunpack.c.l.b16 %v31
  %v624 = vunpack.c.l.b16 %v32
  %v625 = vunpack.c.l.b16 %v33
  %v626 = vunpack.c.l.b16 %v34
  %v627 = vunpack.c.l.b16 %v35
  %v628 = vunpack.c.l.b16 %v36
  %v629 = vunpack.c.l.b16 %v37
  %v630 = vunpack.c.l.b16 %v38
  %v631 = vunpack.c.l.b16 %v39
  %v632 = vunpack.c.l.b16 %v40
  %v633 = vunpack.c.l.b16 %v41
  %v634 = vunpack.c.l.b16 %v42
  %v635 = vunpack.c.l.b16 %v43
  %v636 = vunpack.c.l.b16 %v44
  %v637 = vunpack.c.l.b16 %v45
  %v638 = vunpack.c.l.b16 %v46
  %v639 = vunpack.c.l.b16 %v47
  %v640 = vunpack.c.l.b16 %v48
  %v641 = vunpack.c.l.b16 %v49
  %v642 = vunpack.c.l.b16 %v50
  %v643 = vunpack.c.l.b16 %v51
  %v644 = vunpack.c.l.b16 %v52
  %v645 = vunpack.c.l.b16 %v53
  %v646 = vunpack.c.l.b16 %v54
  %v647 = vunpack.c.l.b16 %v55
  %v648 = vunpack.c.l.b16 %v56
  %v649 = vunpack.c.l.b16 %v57
  %v650 = vunpack.c.l.b16 %v58
  %v651 = vunpack.c.l.b16 %v59
  %v652 = vunpack.c.l.b16 %v60
  %v653 = vunpack.c.l.b16 %v61
  %v654 = vunpack.c.l.b16 %v62
  %v655 = vunpack.c.l.b16 %v63
  %v656 = vunpack.c.l.b16 %v64
  %v657 = vunpack.c.l.b16 %v65
  %v658 = vunpack.c.l.b16 %v66
  %v659 = vunpack.c.l.b16 %v67
  %v660 = vunpack.c.l.b16 %v68
  %v661 = vunpack.c.l.b16 %v69
  %v662 = vunpack.c.l.b16 %v70
  %v663 = vunpack.c.l.b16 %v71
  %v664 = vunpack.c.l.b16 %v72
  %v665 = vunpack.c.l.b16 %v73
  %v666 = vunpack.c.l.b16 %v74
  %v667 = vunpack.c.l.b16 %v75
  %v668 = vunpack.c.l.b16 %v76
  %v669 = vunpack.c.l.b16 %v77
  %v670 = vunpack.c.l.b16 %v78
  %v671 = vunpack.c.l.b16 %v79
  %v672 = vunpack.c.l.b16 %v80
  %v673 = vunpack.c.l.b16 %v81
  %v674 = vunpack.c.l.b16 %v82
  %v675 = vunpack.c.l.b16 %v83
  %v676 = vunpack.c.l.b16 %v84
  %v677 = vunpack.c.l.b16 %v85
  %v678 = vunpack.c.l.b16 %v86
  %v679 = vunpack.c.l.b16 %v87
  %v680 = vunpack.c.l.b16 %v88
  %v681 = vunpack.c.l.b16 %v89
  %v682 = vunpack.c.l.b16 %v90
  %v683 = vunpack.c.l.b16 %v91
  %v684 = vunpack.c.l.b16 %v92
  %v685 = vunpack.c.l.b16 %v93
  %v686 = vunpack.c.l.b16 %v94
  %v687 = vunpack.c.l.b16 %v95
  %v688 = vunpack.c.l.b16 %v96
  %v689 = vunpack.c.l.b16 %v97
  %v690 = vunpack.c.l.b16 %v98
  %v691 = vunpack.c.l.b16 %v99
  %v692 = vunpack.c.l.b16 %v100
  %v693 = vunpack.c.l.b16 %v101
  %v694 = vunpack.c.l.b16 %v102
  %v695 = vunpack.c.l.b16 %v103
  %v696 = vunpack.c.l.b16 %v104
  %v697 = vunpack.c.l.b16 %v105
  %v698 = vunpack.c.l.b16 %v106
  %v699 = vunpack.c.l.b16 %v107
  %v700 = vunpack.c.l.b16 %v108
  %v701 = vunpack.c.l.b16 %v109
  %v702 = vunpack.c.l.b16 %v110
  %v703 = vunpack.c.l.b16 %v111
  %v704 = vunpack.c.l.b16 %v112
  %v705 = vunpack.c.l.b16 %v113
  %v706 = vunpack.c.l.b16 %v114
  %v707 = vunpack.c.l.b16 %v115
  %v708 = vunpack.c.l.b16 %v116
  %v709 = vunpack.c.l.b16 %v117
  %v710 = vunpack.c.l.b16 %v118
  %v711 = vunpack.c.l.b16 %v119
  %v712 = vunpack.c.l.b16 %v120
  %v713 = vunpack.c.l.b16 %v121
  %v714 = vunpack.c.l.b16 %v122
  %v715 = vunpack.c.l.b16 %v123
  %v716 = vunpack.c.l.b16 %v124
  %v717 = vunpack.c.l.b16 %v125
  %v718 = vunpack.c.l.b16 %v126
  %v719 = vunpack.c.l.b16 %v127
  %v720 = vunpack.c.l.b16 %v128
  %v721 = vunpack.c.l.b16 %v129
  %v722 = vunpack.c.l.b16 %v130
  %v723 = vunpack.c.l.b16 %v131
  %v724 = vunpack.c.l.b16 %v132
  %v725 = vunpack.c.l.b16 %v133
  %v726 = vunpack.c.l.b16 %v134
  %v727 = vunpack.c.l.b16 %v135
  %v728 = vunpack.c.l.b16 %v136
  %v729 = vunpack.c.l.b16 %v137
  %v730 = vunpack.c.l.b16 %v138
  %v731 = vunpack.c.l.b16 %v139
  %v732 = vunpack.c.l.b16 %v140
  %v733 = vunpack.c.l.b16 %v141
  %v734 = vunpack.c.l.b16 %v142
  %v735 = vunpack.c.l.b16 %v143
  %v736 = vunpack.c.l.b16 %v144
  %v737 = vunpack.c.l.b16 %v145
  %v738 = vunpack.c.l.b16 %v146
  %v739 = vunpack.c.l.b16 %v147
  %v740 = vunpack.c.l.b16 %v148
  %v741 = vunpack.c.l.b16 %v149
  %v742 = vunpack.c.l.b16 %v150
  %v743 = vunpack.c.l.b16 %v151
  %v744 = vunpack.c.l.b16 %v152
  %v745 = vunpack.c.l.b16 %v153
  %v746 = vunpack.c.l.b16 %v154
  %v747 = vunpack.c.l.b16 %v155
  %v748 = vunpack.c.l.b16 %v156
  %v749 = vunpack.c.l.b16 %v157
  %v750 = vunpack.c.l.b16 %v158
  %v751 = vunpack.c.l.b16 %v159
  %v752 = vunpack.c.l.b16 %v160
  %v753 = vunpack.c.l.b16 %v161
  %v754 = vunpack.c.l.b16 %v162
  %v755 = vunpack.c.l.b16 %v163
  %v756 = vunpack.c.l.b16 %v164
  %v757 = vunpack.c.l.b16 %v165
  %v758 = vunpack.c.l.b16 %v166
  %v759 = vunpack.c.l.b16 %v167
  %v760 = vunpack.c.l.b16 %v168
  %v761 = vunpack.c.l.b16 %v169
  %v762 = vunpack.c.l.b16 %v170
  %v763 = vunpack.c.l.b16 %v171
  %v764 = vunpack.c.l.b16 %v172
  %v765 = vunpack.c.l.b16 %v173
  %v766 = vunpack.c.l.b16 %v174
  %v767 = vunpack.c.l.b16 %v175
  %v768 = vunpack.c.l.b16 %v176
  %v769 = vunpack.c.l.b16 %v177
  %v770 = vunpack.c.l.b16 %v178
  %v771 = vunpack.c.l.b16 %v179
  %v772 = vunpack.c.l.b16 %v180
  %v773 = vunpack.c.l.b16 %v181
  %v774 = vunpack.c.l.b16 %v182
  %v775 = vunpack.c.l.b16 %v183
  %v776 = vunpack.c.l.b16 %v184
  %v777 = vunpack.c.l.b16 %v185
  %v778 = vunpack.c.l.b16 %v186
  %v779 = vunpack.c.l.b16 %v187
  %v780 = vunpack.c.l.b16 %v188
  %v781 = vunpack.c.l.b16 %v189
  %v782 = vunpack.c.l.b16 %v190
  %v783 = vunpack.c.l.b16 %v191
  %v784 = vunpack.c.l.b16 %v192
  %v785 = vunpack.c.l.b16 %v193
  %v786 = vunpack.c.l.b16 %v194
  %v787 = vunpack.c.l.b16 %v195
  %v788 = vunpack.c.l.b16 %v196
  %v789 = vunpack.c.l.b16 %v197
  %v790 = vunpack.c.l.b16 %v198
  %v791 = vunpack.c.l.b16 %v199
  %v792 = vunpack.c.l.b16 %v200
  %v793 = vunpack.c.l.b16 %v201
  %v794 = vunpack.c.l.b16 %v202
  %v795 = vunpack.c.l.b16 %v203
  %v796 = vunpack.c.l.b16 %v204
  %v797 = vunpack.c.l.b16 %v205
  %v798 = vunpack.c.l.b16 %v206
  %v799 = vunpack.c.l.b16 %v207
  %v800 = vunpack.c.l.b16 %v208
  %v801 = vunpack.c.l.b16 %v209
  %v802 = vunpack.c.l.b16 %v210
  %v803 = vunpack.c.l.b16 %v211
  %v804 = vunpack.c.l.b16 %v212
  %v805 = vunpack.c.l.b16 %v213
  %v806 = vunpack.c.l.b16 %v214
  %v807 = vunpack.c.l.b16 %v215
  %v808 = vunpack.c.l.b16 %v216
  %v809 = vunpack.c.l.b16 %v217
  %v810 = vunpack.c.l.b16 %v218
  %v811 = vunpack.c.l.b16 %v219
  %v812 = vunpack.c.l.b16 %v220
  %v813 = vunpack.c.l.b16 %v221
  %v814 = vunpack.c.l.b16 %v222
  %v815 = vunpack.c.l.b16 %v223
  %v816 = vunpack.c.l.b16 %v224
  %v817 = vunpack.c.l.b16 %v225
  %v818 = vunpack.c.l.b16 %v226
  %v819 = vunpack.c.l.b16 %v227
  %v820 = vunpack.c.l.b16 %v228
  %v821 = vunpack.c.l.b16 %v229
  %v822 = vunpack.c.l.b16 %v230
  %v823 = vunpack.c.l.b16 %v231
  %v824 = vunpack.c.l.b16 %v232
  %v825 = vunpack.c.l.b16 %v233
  %v826 = vunpack.c.l.b16 %v234
  %v827 = vunpack.c.l.b16 %v235
  %v828 = vunpack.c.l.b16 %v236
  %v829 = vunpack.c.l.b16 %v237
  %v830 = vunpack.c.l.b16 %v238
  %v831 = vunpack.c.l.b16 %v239
  %v832 = vunpack.c.l.b16 %v240
  %v833 = vunpack.c.l.b16 %v241
  %v834 = vunpack.c.l.b16 %v242
  %v835 = vunpack.c.l.b16 %v243
  %v836 = vunpack.c.l.b16 %v244
  %v837 = vunpack.c.l.b16 %v245
  %v838 = vunpack.c.l.b16 %v246
  %v839 = vunpack.c.l.b16 %v247
  %v840 = vunpack.c.l.b16 %v248
  %v841 = vunpack.c.l.b16 %v249
  %v842 = vunpack.c.l.b16 %v250
  %v843 = vunpack.c.l.b16 %v251
  %v844 = vunpack.c.l.b16 %v252
  %v845 = vunpack.c.l.b16 %v253
  %v846 = vunpack.c.l.b16 %v254
  %v847 = vunpack.c.l.b16 %v255
  %v848 = vunpack.c.l.b16 %v256
  %v849 = vunpack.c.l.b16 %v257
  %v850 = vunpack.c.l.b16 %v258
  %v851 = vunpack.c.l.b16 %v259
  %v852 = vunpack.c.l.b16 %v260
  %v853 = vunpack.c.l.b16 %v261
  %v854 = vunpack.c.l.b16 %v262
  %v855 = vunpack.c.l.b16 %v263
  %v856 = vunpack.c.l.b16 %v264
  %v857 = vunpack.c.l.b16 %v265
  %v858 = vunpack.c.l.b16 %v266
  %v859 = vunpack.c.l.b16 %v267
  %v860 = vunpack.c.l.b16 %v268
  %v861 = vunpack.c.l.b16 %v269
  %v862 = vunpack.c.l.b16 %v270
  %v863 = vunpack.c.l.b16 %v271
  %v864 = vunpack.c.l.b16 %v272
  %v865 = vunpack.c.l.b16 %v273
  %v866 = vunpack.c.l.b16 %v274
  %v867 = vunpack.c.l.b16 %v275
  %v868 = vunpack.c.l.b16 %v276
  %v869 = vunpack.c.l.b16 %v277
  %v870 = vunpack.c.l.b16 %v278
  %v871 = vunpack.c.l.b16 %v279
  %v872 = vunpack.c.l.b16 %v280
  %v873 = vunpack.c.l.b16 %v281
  %v874 = vunpack.c.l.b16 %v282
  %v875 = vunpack.c.l.b16 %v283
  %v876 = vpack.c.b16 %v621, %v620
  %v877 = vpack.c.b16 %v623, %v622
  %v878 = vpack.c.b16 %v625, %v624
  %v879 = vpack.c.b16 %v627, %v626
  %v880 = vpack.c.b16 %v629, %v628
  %v881 = vpack.c.b16 %v631, %v630
  %v882 = vpack.c.b16 %v633, %v632
  %v883 = vpack.c.b16 %v635, %v634
  %v884 = vpack.c.b16 %v637, %v636
  %v885 = vpack.c.b16 %v639, %v638
  %v886 = vpack.c.b16 %v641, %v640
  %v887 = vpack.c.b16 %v643, %v642
  %v888 = vpack.c.b16 %v645, %v644
  %v889 = vpack.c.b16 %v647, %v646
  %v890 = vpack.c.b16 %v649, %v648
  %v891 = vpack.c.b16 %v651, %v650
  %v892 = vpack.c.b16 %v653, %v652
  %v893 = vpack.c.b16 %v655, %v654
  %v894 = vpack.c.b16 %v657, %v656
  %v895 = vpack.c.b16 %v659, %v658
  %v896 = vpack.c.b16 %v661, %v660
  %v897 = vpack.c.b16 %v663, %v662
  %v898 = vpack.c.b16 %v665, %v664
  %v899 = vpack.c.b16 %v667, %v666
  %v900 = vpack.c.b16 %v669, %v668
  %v901 = vpack.c.b16 %v671, %v670
  %v902 = vpack.c.b16 %v673, %v672
  %v903 = vpack.c.b16 %v675, %v674
  %v904 = vpack.c.b16 %v677, %v676
  %v905 = vpack.c.b16 %v679, %v678
  %v906 = vpack.c.b16 %v681, %v680
  %v907 = vpack.c.b16 %v683, %v682
  %v908 = vpack.c.b16 %v685, %v684
  %v909 = vpack.c.b16 %v687, %v686
  %v910 = vpack.c.b16 %v689, %v688
  %v911 = vpack.c.b16 %v691, %v690
  %v912 = vpack.c.b16 %v693, %v692
  %v913 = vpack.c.b16 %v695, %v694
  %v914 = vpack.c.b16 %v697, %v696
  %v915 = vpack.c.b16 %v699, %v698
  %v916 = vpack.c.b16 %v701, %v700
  %v917 = vpack.c.b16 %v703, %v702
  %v918 = vpack.c.b16 %v705, %v704
  %v919 = vpack.c.b16 %v707, %v706
  %v920 = vpack.c.b16 %v709, %v708
  %v921 = vpack.c.b16 %v711, %v710
  %v922 = vpack.c.b16 %v713, %v712
  %v923 = vpack.c.b16 %v715, %v714
  %v924 = vpack.c.b16 %v717, %v716
  %v925 = vpack.c.b16 %v719, %v718
  %v926 = vpack.c.b16 %v721, %v720
  %v927 = vpack.c.b16 %v723, %v722
  %v928 = vpack.c.b16 %v725, %v724
  %v929 = vpack.c.b16 %v727, %v726
  %v930 = vpack.c.b16 %v729, %v728
  %v931 = vpack.c.b16 %v731, %v730
  %v932 = vpack.c.b16 %v733, %v732
  %v933 = vpack.c.b16 %v735, %v734
  %v934 = vpack.c.b16 %v737, %v736
  %v935 = vpack.c.b16 %v739, %v738
  %v936 = vpack.c.b16 %v741, %v740
  %v937 = vpack.c.b16 %v743, %v742
  %v938 = vpack.c.b16 %v745, %v744
  %v939 = vpack.c.b16 %v747, %v746
  %v940 = vpack.c.b16 %v749, %v748
  %v941 = vpack.c.b16 %v751, %v750
  %v942 = vpack.c.b16 %v753, %v752
  %v943 = vpack.c.b16 %v755, %v754
  %v944 = vpack.c.b16 %v757, %v756
  %v945 = vpack.c.b16 %v759, %v758
  %v946 = vpack.c.b16 %v761, %v760
  %v947 = vpack.c.b16 %v763, %v762
  %v948 = vpack.c.b16 %v765, %v764
  %v949 = vpack.c.b16 %v767, %v766
  %v950 = vpack.c.b16 %v769, %v768
  %v951 = vpack.c.b16 %v771, %v770
  %v952 = vpack.c.b16 %v773, %v772
  %v953 = vpack.c.b16 %v775, %v774
  %v954 = vpack.c.b16 %v777, %v776
  %v955 = vpack.c.b16 %v779, %v778
  %v956 = vpack.c.b16 %v781, %v780
  %v957 = vpack.c.b16 %v783, %v782
  %v958 = vpack.c.b16 %v785, %v784
  %v959 = vpack.c.b16 %v787, %v786
  %v960 = vpack.c.b16 %v789, %v788
  %v961 = vpack.c.b16 %v791, %v790
  %v962 = vpack.c.b16 %v793, %v792
  %v963 = vpack.c.b16 %v795, %v794
  %v964 = vpack.c.b16 %v797, %v796
  %v965 = vpack.c.b16 %v799, %v798
  %v966 = vpack.c.b16 %v801, %v800
  %v967 = vpack.c.b16 %v803, %v802
  %v968 = vpack.c.b16 %v805, %v804
  %v969 = vpack.c.b16 %v807, %v806
  %v970 = vpack.c.b16 %v809, %v808
  %v971 = vpack.c.b16 %v811, %v810
  %v972 = vpack.c.b16 %v813, %v812
  %v973 = vpack.c.b16 %v815, %v814
  %v974 = vpack.c.b16 %v817, %v816
  %v975 = vpack.c.b16 %v819, %v818
  %v976 = vpack.c.b16 %v821, %v820
  %v977 = vpack.c.b16 %v823, %v822
  %v978 = vpack.c.b16 %v825, %v824
  %v979 = vpack.c.b16 %v827, %v826
  %v980 = vpack.c.b16 %v829, %v828
  %v981 = vpack.c.b16 %v831, %v830
  %v982 = vpack.c.b16 %v833, %v832
  %v983 = vpack.c.b16 %v835, %v834
  %v984 = vpack.c.b16 %v837, %v836
  %v985 = vpack.c.b16 %v839, %v838
  %v986 = vpack.c.b16 %v841, %v840
  %v987 = vpack.c.b16 %v843, %v842
  %v988 = vpack.c.b16 %v845, %v844
  %v989 = vpack.c.b16 %v847, %v846
  %v990 = vpack.c.b16 %v849, %v848
  %v991 = vpack.c.b16 %v851, %v850
  %v992 = vpack.c.b16 %v853, %v852
  %v993 = vpack.c.b16 %v855, %v854
  %v994 = vpack.c.b16 %v857, %v856
  %v995 = vpack.c.b16 %v859, %v858
  %v996 = vpack.c.b16 %v861, %v860
  %v997 = vpack.c.b16 %v863, %v862
  %v998 = vpack.c.b16 %v865, %v864
  %v999 = vpack.c.b16 %v867, %v866
  %v1000 = vpack.c.b16 %v869, %v868
  %v1001 = vpack.c.b16 %v871, %v870
  %v1002 = vpack.c.b16 %v873, %v872
  %v1003 = vpack.c.b16 %v875, %v874
  %1132 = vmatprep.subr.bf16.mxu0 0
  %1133 = vmatpush1.bf16.msra.mxu0 %v876
  %1134 = vmatprep.subr.bf16.mxu0 0
  %1135 = vmatpush1.bf16.msra.mxu0 %v877
  %1136 = vmatprep.subr.bf16.mxu0 0
  %1137 = vmatpush1.bf16.msra.mxu0 %v878
  %1138 = vmatprep.subr.bf16.mxu0 0
  %1139 = vmatpush1.bf16.msra.mxu0 %v879
  %1140 = vmatprep.subr.bf16.mxu0 0
  %1141 = vmatpush1.bf16.msra.mxu0 %v880
  %1142 = vmatprep.subr.bf16.mxu0 0
  %1143 = vmatpush1.bf16.msra.mxu0 %v881
  %1144 = vmatprep.subr.bf16.mxu0 0
  %1145 = vmatpush1.bf16.msra.mxu0 %v882
  %1146 = vmatprep.subr.bf16.mxu0 0
  %1147 = vmatpush1.bf16.msra.mxu0 %v883
  %1148 = vmatprep.subr.bf16.mxu0 0
  %1149 = vmatpush1.bf16.msra.mxu0 %v884
  %1150 = vmatprep.subr.bf16.mxu0 0
  %1151 = vmatpush1.bf16.msra.mxu0 %v885
  %1152 = vmatprep.subr.bf16.mxu0 0
  %1153 = vmatpush1.bf16.msra.mxu0 %v886
  %1154 = vmatprep.subr.bf16.mxu0 0
  %1155 = vmatpush1.bf16.msra.mxu0 %v887
  %1156 = vmatprep.subr.bf16.mxu0 0
  %1157 = vmatpush1.bf16.msra.mxu0 %v888
  %1158 = vmatprep.subr.bf16.mxu0 0
  %1159 = vmatpush1.bf16.msra.mxu0 %v889
  %1160 = vmatprep.subr.bf16.mxu0 0
  %1161 = vmatpush1.bf16.msra.mxu0 %v890
  %1162 = vmatprep.subr.bf16.mxu0 0
  %1163 = vmatpush1.bf16.msra.mxu0 %v891
  %1164 = vmatprep.mubr.bf16.mxu0 %v333
  %1165 = vmatmul.mubr.bf16.gmra.mrb[0].mxu0 %v332
  %v1166 = vpop.f32.mrb[0].mxu0
  %v1167 = vadd.f32 0.0, %v1166
  %v1168 = vpop.f32.mrb[0].mxu0
  %v1169 = vpop.f32.mrb[0].mxu0
  %v1170 = vadd.f32 0.0, %v1169
  %v1171 = vpop.f32.mrb[0].mxu0
  %1172 = vdwg.mxu0
  %1173 = vmatprep.subr.bf16.mxu0 0
  %1174 = vmatpush1.bf16.msra.mxu0 %v892
  %1175 = vmatprep.subr.bf16.mxu0 0
  %1176 = vmatpush1.bf16.msra.mxu0 %v893
  %1177 = vmatprep.subr.bf16.mxu0 0
  %1178 = vmatpush1.bf16.msra.mxu0 %v894
  %1179 = vmatprep.subr.bf16.mxu0 0
  %1180 = vmatpush1.bf16.msra.mxu0 %v895
  %1181 = vmatprep.subr.bf16.mxu0 0
  %1182 = vmatpush1.bf16.msra.mxu0 %v896
  %1183 = vmatprep.subr.bf16.mxu0 0
  %1184 = vmatpush1.bf16.msra.mxu0 %v897
  %1185 = vmatprep.subr.bf16.mxu0 0
  %1186 = vmatpush1.bf16.msra.mxu0 %v898
  %1187 = vmatprep.subr.bf16.mxu0 0
  %1188 = vmatpush1.bf16.msra.mxu0 %v899
  %1189 = vmatprep.subr.bf16.mxu0 0
  %1190 = vmatpush1.bf16.msra.mxu0 %v900
  %1191 = vmatprep.subr.bf16.mxu0 0
  %1192 = vmatpush1.bf16.msra.mxu0 %v901
  %1193 = vmatprep.subr.bf16.mxu0 0
  %1194 = vmatpush1.bf16.msra.mxu0 %v902
  %1195 = vmatprep.subr.bf16.mxu0 0
  %1196 = vmatpush1.bf16.msra.mxu0 %v903
  %1197 = vmatprep.subr.bf16.mxu0 0
  %1198 = vmatpush1.bf16.msra.mxu0 %v904
  %1199 = vmatprep.subr.bf16.mxu0 0
  %1200 = vmatpush1.bf16.msra.mxu0 %v905
  %1201 = vmatprep.subr.bf16.mxu0 0
  %1202 = vmatpush1.bf16.msra.mxu0 %v906
  %1203 = vmatprep.subr.bf16.mxu0 0
  %1204 = vmatpush1.bf16.msra.mxu0 %v907
  %1205 = vmatprep.mubr.bf16.mxu0 %v335
  %1206 = vmatmul.mubr.bf16.gmra.mrb[0].mxu0 %v334
  %v1207 = vpop.f32.mrb[0].mxu0
  %v1208 = vadd.f32 %v1167, %v1207
  %v1209 = vpop.f32.mrb[0].mxu0
  %v1210 = vpop.f32.mrb[0].mxu0
  %v1211 = vadd.f32 %v1170, %v1210
  %v1212 = vpop.f32.mrb[0].mxu0
  %1213 = vdwg.mxu0
  %1214 = vmatprep.subr.bf16.mxu0 0
  %1215 = vmatpush1.bf16.msra.mxu0 %v908
  %1216 = vmatprep.subr.bf16.mxu0 0
  %1217 = vmatpush1.bf16.msra.mxu0 %v909
  %1218 = vmatprep.subr.bf16.mxu0 0
  %1219 = vmatpush1.bf16.msra.mxu0 %v910
  %1220 = vmatprep.subr.bf16.mxu0 0
  %1221 = vmatpush1.bf16.msra.mxu0 %v911
  %1222 = vmatprep.subr.bf16.mxu0 0
  %1223 = vmatpush1.bf16.msra.mxu0 %v912
  %1224 = vmatprep.subr.bf16.mxu0 0
  %1225 = vmatpush1.bf16.msra.mxu0 %v913
  %1226 = vmatprep.subr.bf16.mxu0 0
  %1227 = vmatpush1.bf16.msra.mxu0 %v914
  %1228 = vmatprep.subr.bf16.mxu0 0
  %1229 = vmatpush1.bf16.msra.mxu0 %v915
  %1230 = vmatprep.subr.bf16.mxu0 0
  %1231 = vmatpush1.bf16.msra.mxu0 %v916
  %1232 = vmatprep.subr.bf16.mxu0 0
  %1233 = vmatpush1.bf16.msra.mxu0 %v917
  %1234 = vmatprep.subr.bf16.mxu0 0
  %1235 = vmatpush1.bf16.msra.mxu0 %v918
  %1236 = vmatprep.subr.bf16.mxu0 0
  %1237 = vmatpush1.bf16.msra.mxu0 %v919
  %1238 = vmatprep.subr.bf16.mxu0 0
  %1239 = vmatpush1.bf16.msra.mxu0 %v920
  %1240 = vmatprep.subr.bf16.mxu0 0
  %1241 = vmatpush1.bf16.msra.mxu0 %v921
  %1242 = vmatprep.subr.bf16.mxu0 0
  %1243 = vmatpush1.bf16.msra.mxu0 %v922
  %1244 = vmatprep.subr.bf16.mxu0 0
  %1245 = vmatpush1.bf16.msra.mxu0 %v923
  %1246 = vmatprep.mubr.bf16.mxu0 %v337
  %1247 = vmatmul.mubr.bf16.gmra.mrb[0].mxu0 %v336
  %v1248 = vpop.f32.mrb[0].mxu0
  %v1249 = vadd.f32 %v1208, %v1248
  %v1250 = vpop.f32.mrb[0].mxu0
  %v1251 = vpop.f32.mrb[0].mxu0
  %v1252 = vadd.f32 %v1211, %v1251
  %v1253 = vpop.f32.mrb[0].mxu0
  %1254 = vdwg.mxu0
  %1255 = vmatprep.subr.bf16.mxu0 0
  %1256 = vmatpush1.bf16.msra.mxu0 %v924
  %1257 = vmatprep.subr.bf16.mxu0 0
  %1258 = vmatpush1.bf16.msra.mxu0 %v925
  %1259 = vmatprep.subr.bf16.mxu0 0
  %1260 = vmatpush1.bf16.msra.mxu0 %v926
  %1261 = vmatprep.subr.bf16.mxu0 0
  %1262 = vmatpush1.bf16.msra.mxu0 %v927
  %1263 = vmatprep.subr.bf16.mxu0 0
  %1264 = vmatpush1.bf16.msra.mxu0 %v928
  %1265 = vmatprep.subr.bf16.mxu0 0
  %1266 = vmatpush1.bf16.msra.mxu0 %v929
  %1267 = vmatprep.subr.bf16.mxu0 0
  %1268 = vmatpush1.bf16.msra.mxu0 %v930
  %1269 = vmatprep.subr.bf16.mxu0 0
  %1270 = vmatpush1.bf16.msra.mxu0 %v931
  %1271 = vmatprep.subr.bf16.mxu0 0
  %1272 = vmatpush1.bf16.msra.mxu0 %v932
  %1273 = vmatprep.subr.bf16.mxu0 0
  %1274 = vmatpush1.bf16.msra.mxu0 %v933
  %1275 = vmatprep.subr.bf16.mxu0 0
  %1276 = vmatpush1.bf16.msra.mxu0 %v934
  %1277 = vmatprep.subr.bf16.mxu0 0
  %1278 = vmatpush1.bf16.msra.mxu0 %v935
  %1279 = vmatprep.subr.bf16.mxu0 0
  %1280 = vmatpush1.bf16.msra.mxu0 %v936
  %1281 = vmatprep.subr.bf16.mxu0 0
  %1282 = vmatpush1.bf16.msra.mxu0 %v937
  %1283 = vmatprep.subr.bf16.mxu0 0
  %1284 = vmatpush1.bf16.msra.mxu0 %v938
  %1285 = vmatprep.subr.bf16.mxu0 0
  %1286 = vmatpush1.bf16.msra.mxu0 %v939
  %1287 = vmatprep.mubr.bf16.mxu0 %v339
  %1288 = vmatmul.mubr.bf16.gmra.mrb[0].mxu0 %v338
  %v1289 = vpop.f32.mrb[0].mxu0
  %v1290 = vadd.f32 %v1249, %v1289
  %v1291 = vpop.f32.mrb[0].mxu0
  %v1292 = vpop.f32.mrb[0].mxu0
  %v1293 = vadd.f32 %v1252, %v1292
  %v1294 = vpop.f32.mrb[0].mxu0
  %1295 = vdwg.mxu0
  %1296 = vmatprep.subr.bf16.mxu0 0
  %1297 = vmatpush1.bf16.msra.mxu0 %v940
  %1298 = vmatprep.subr.bf16.mxu0 0
  %1299 = vmatpush1.bf16.msra.mxu0 %v941
  %1300 = vmatprep.subr.bf16.mxu0 0
  %1301 = vmatpush1.bf16.msra.mxu0 %v942
  %1302 = vmatprep.subr.bf16.mxu0 0
  %1303 = vmatpush1.bf16.msra.mxu0 %v943
  %1304 = vmatprep.subr.bf16.mxu0 0
  %1305 = vmatpush1.bf16.msra.mxu0 %v944
  %1306 = vmatprep.subr.bf16.mxu0 0
  %1307 = vmatpush1.bf16.msra.mxu0 %v945
  %1308 = vmatprep.subr.bf16.mxu0 0
  %1309 = vmatpush1.bf16.msra.mxu0 %v946
  %1310 = vmatprep.subr.bf16.mxu0 0
  %1311 = vmatpush1.bf16.msra.mxu0 %v947
  %1312 = vmatprep.subr.bf16.mxu0 0
  %1313 = vmatpush1.bf16.msra.mxu0 %v948
  %1314 = vmatprep.subr.bf16.mxu0 0
  %1315 = vmatpush1.bf16.msra.mxu0 %v949
  %1316 = vmatprep.subr.bf16.mxu0 0
  %1317 = vmatpush1.bf16.msra.mxu0 %v950
  %1318 = vmatprep.subr.bf16.mxu0 0
  %1319 = vmatpush1.bf16.msra.mxu0 %v951
  %1320 = vmatprep.subr.bf16.mxu0 0
  %1321 = vmatpush1.bf16.msra.mxu0 %v952
  %1322 = vmatprep.subr.bf16.mxu0 0
  %1323 = vmatpush1.bf16.msra.mxu0 %v953
  %1324 = vmatprep.subr.bf16.mxu0 0
  %1325 = vmatpush1.bf16.msra.mxu0 %v954
  %1326 = vmatprep.subr.bf16.mxu0 0
  %1327 = vmatpush1.bf16.msra.mxu0 %v955
  %1328 = vmatprep.mubr.bf16.mxu0 %v341
  %1329 = vmatmul.mubr.bf16.gmra.mrb[0].mxu0 %v340
  %v1330 = vpop.f32.mrb[0].mxu0
  %v1331 = vadd.f32 %v1290, %v1330
  %v1332 = vpop.f32.mrb[0].mxu0
  %v1333 = vpop.f32.mrb[0].mxu0
  %v1334 = vadd.f32 %v1293, %v1333
  %v1335 = vpop.f32.mrb[0].mxu0
  %1336 = vdwg.mxu0
  %1337 = vmatprep.subr.bf16.mxu0 0
  %1338 = vmatpush1.bf16.msra.mxu0 %v956
  %1339 = vmatprep.subr.bf16.mxu0 0
  %1340 = vmatpush1.bf16.msra.mxu0 %v957
  %1341 = vmatprep.subr.bf16.mxu0 0
  %1342 = vmatpush1.bf16.msra.mxu0 %v958
  %1343 = vmatprep.subr.bf16.mxu0 0
  %1344 = vmatpush1.bf16.msra.mxu0 %v959
  %1345 = vmatprep.subr.bf16.mxu0 0
  %1346 = vmatpush1.bf16.msra.mxu0 %v960
  %1347 = vmatprep.subr.bf16.mxu0 0
  %1348 = vmatpush1.bf16.msra.mxu0 %v961
  %1349 = vmatprep.subr.bf16.mxu0 0
  %1350 = vmatpush1.bf16.msra.mxu0 %v962
  %1351 = vmatprep.subr.bf16.mxu0 0
  %1352 = vmatpush1.bf16.msra.mxu0 %v963
  %1353 = vmatprep.subr.bf16.mxu0 0
  %1354 = vmatpush1.bf16.msra.mxu0 %v964
  %1355 = vmatprep.subr.bf16.mxu0 0
  %1356 = vmatpush1.bf16.msra.mxu0 %v965
  %1357 = vmatprep.subr.bf16.mxu0 0
  %1358 = vmatpush1.bf16.msra.mxu0 %v966
  %1359 = vmatprep.subr.bf16.mxu0 0
  %1360 = vmatpush1.bf16.msra.mxu0 %v967
  %1361 = vmatprep.subr.bf16.mxu0 0
  %1362 = vmatpush1.bf16.msra.mxu0 %v968
  %1363 = vmatprep.subr.bf16.mxu0 0
  %1364 = vmatpush1.bf16.msra.mxu0 %v969
  %1365 = vmatprep.subr.bf16.mxu0 0
  %1366 = vmatpush1.bf16.msra.mxu0 %v970
  %1367 = vmatprep.subr.bf16.mxu0 0
  %1368 = vmatpush1.bf16.msra.mxu0 %v971
  %1369 = vmatprep.mubr.bf16.mxu0 %v343
  %1370 = vmatmul.mubr.bf16.gmra.mrb[0].mxu0 %v342
  %v1371 = vpop.f32.mrb[0].mxu0
  %v1372 = vadd.f32 %v1331, %v1371
  %v1373 = vpop.f32.mrb[0].mxu0
  %v1374 = vpop.f32.mrb[0].mxu0
  %v1375 = vadd.f32 %v1334, %v1374
  %v1376 = vpop.f32.mrb[0].mxu0
  %1377 = vdwg.mxu0
  %1378 = vmatprep.subr.bf16.mxu0 0
  %1379 = vmatpush1.bf16.msra.mxu0 %v972
  %1380 = vmatprep.subr.bf16.mxu0 0
  %1381 = vmatpush1.bf16.msra.mxu0 %v973
  %1382 = vmatprep.subr.bf16.mxu0 0
  %1383 = vmatpush1.bf16.msra.mxu0 %v974
  %1384 = vmatprep.subr.bf16.mxu0 0
  %1385 = vmatpush1.bf16.msra.mxu0 %v975
  %1386 = vmatprep.subr.bf16.mxu0 0
  %1387 = vmatpush1.bf16.msra.mxu0 %v976
  %1388 = vmatprep.subr.bf16.mxu0 0
  %1389 = vmatpush1.bf16.msra.mxu0 %v977
  %1390 = vmatprep.subr.bf16.mxu0 0
  %1391 = vmatpush1.bf16.msra.mxu0 %v978
  %1392 = vmatprep.subr.bf16.mxu0 0
  %1393 = vmatpush1.bf16.msra.mxu0 %v979
  %1394 = vmatprep.subr.bf16.mxu0 0
  %1395 = vmatpush1.bf16.msra.mxu0 %v980
  %1396 = vmatprep.subr.bf16.mxu0 0
  %1397 = vmatpush1.bf16.msra.mxu0 %v981
  %1398 = vmatprep.subr.bf16.mxu0 0
  %1399 = vmatpush1.bf16.msra.mxu0 %v982
  %1400 = vmatprep.subr.bf16.mxu0 0
  %1401 = vmatpush1.bf16.msra.mxu0 %v983
  %1402 = vmatprep.subr.bf16.mxu0 0
  %1403 = vmatpush1.bf16.msra.mxu0 %v984
  %1404 = vmatprep.subr.bf16.mxu0 0
  %1405 = vmatpush1.bf16.msra.mxu0 %v985
  %1406 = vmatprep.subr.bf16.mxu0 0
  %1407 = vmatpush1.bf16.msra.mxu0 %v986
  %1408 = vmatprep.subr.bf16.mxu0 0
  %1409 = vmatpush1.bf16.msra.mxu0 %v987
  %1410 = vmatprep.mubr.bf16.mxu0 %v345
  %1411 = vmatmul.mubr.bf16.gmra.mrb[0].mxu0 %v344
  %v1412 = vpop.f32.mrb[0].mxu0
  %v1413 = vadd.f32 %v1372, %v1412
  %v1414 = vpop.f32.mrb[0].mxu0
  %v1415 = vpop.f32.mrb[0].mxu0
  %v1416 = vadd.f32 %v1375, %v1415
  %v1417 = vpop.f32.mrb[0].mxu0
  %1418 = vdwg.mxu0
  %1419 = vmatprep.subr.bf16.mxu0 0
  %1420 = vmatpush1.bf16.msra.mxu0 %v988
  %1421 = vmatprep.subr.bf16.mxu0 0
  %1422 = vmatpush1.bf16.msra.mxu0 %v989
  %1423 = vmatprep.subr.bf16.mxu0 0
  %1424 = vmatpush1.bf16.msra.mxu0 %v990
  %1425 = vmatprep.subr.bf16.mxu0 0
  %1426 = vmatpush1.bf16.msra.mxu0 %v991
  %1427 = vmatprep.subr.bf16.mxu0 0
  %1428 = vmatpush1.bf16.msra.mxu0 %v992
  %1429 = vmatprep.subr.bf16.mxu0 0
  %1430 = vmatpush1.bf16.msra.mxu0 %v993
  %1431 = vmatprep.subr.bf16.mxu0 0
  %1432 = vmatpush1.bf16.msra.mxu0 %v994
  %1433 = vmatprep.subr.bf16.mxu0 0
  %1434 = vmatpush1.bf16.msra.mxu0 %v995
  %1435 = vmatprep.subr.bf16.mxu0 0
  %1436 = vmatpush1.bf16.msra.mxu0 %v996
  %1437 = vmatprep.subr.bf16.mxu0 0
  %1438 = vmatpush1.bf16.msra.mxu0 %v997
  %1439 = vmatprep.subr.bf16.mxu0 0
  %1440 = vmatpush1.bf16.msra.mxu0 %v998
  %1441 = vmatprep.subr.bf16.mxu0 0
  %1442 = vmatpush1.bf16.msra.mxu0 %v999
  %1443 = vmatprep.subr.bf16.mxu0 0
  %1444 = vmatpush1.bf16.msra.mxu0 %v1000
  %1445 = vmatprep.subr.bf16.mxu0 0
  %1446 = vmatpush1.bf16.msra.mxu0 %v1001
  %1447 = vmatprep.subr.bf16.mxu0 0
  %1448 = vmatpush1.bf16.msra.mxu0 %v1002
  %1449 = vmatprep.subr.bf16.mxu0 0
  %1450 = vmatpush1.bf16.msra.mxu0 %v1003
  %1451 = vmatprep.mubr.bf16.mxu0 %v347
  %1452 = vmatmul.mubr.bf16.gmra.mrb[0].mxu0 %v346
  %v1453 = vpop.f32.mrb[0].mxu0
  %v1454 = vadd.f32 %v1413, %v1453
  %v1455 = vpop.f32.mrb[0].mxu0
  %v1456 = vpop.f32.mrb[0].mxu0
  %v1457 = vadd.f32 %v1416, %v1456
  %v1458 = vpop.f32.mrb[0].mxu0
  %1459 = vdwg.mxu0
  %v1460 = vxor.u32 %v1454, 2147483648
  %v1461 = vxor.u32 %v1457, 2147483648
  %v1462 = vmul.f32 %v1460, 1.442695
  %v1463 = vpow.pop %v1462
  %v1464 = vmul.f32 %v1461, 1.442695
  %v1465 = vpow.pop %v1464
  %v1466 = vadd.f32 %v1463, 1.0
  %v1467 = vadd.f32 %v1465, 1.0
  %v1468 = vrcp.pop %v1466
  %v1469 = vmul.f32 1.0, %v1468
  %v1470 = vrcp.pop %v1467
  %v1471 = vmul.f32 1.0, %v1470
  %1472 = vst [vmem:[%s2] sm:$0xff] %v1469
  %1473 = vst [vmem:[%s2 + $0x8] sm:$0xff] %v1471
  // Predicated region
  $region10: #{discriminator_forward.9} parent=0 // pred_check
    _
  $region11: #{discriminator_forward.9} parent=0 // pred_check_branch
    %1475 = sbr.rel (0) target = $region13
  $region12: #{discriminator_forward.9} parent=0 // pred_region
    _
  $region13: #{discriminator_forward.9} parent=0 // pred_fallthru
    _
  // Predicated region
  $region14: #{discriminator_forward.9} parent=0 // pred_check
    _
  $region15: #{discriminator_forward.9} parent=0 // pred_check_branch
    %1477 = sbr.rel (0) target = $region17
  $region16: #{discriminator_forward.9} parent=0 // pred_region
    _
  $region17: #{discriminator_forward.9} parent=0 // pred_fallthru
    _

</llo_original>
